<compile_context>
chip_gen: v6e
topology: v6e:2x2x1
jax: 0.10.0
libtpu: 0.0.40
codegen_flags: <defaults>
</compile_context>

<pallas_src>
import functools
import math

import jax
import jax.numpy as jnp
from jax import lax
from jax.experimental import pallas as pl
from jax.experimental.pallas import tpu as pltpu

NEG_INF = -1e9  # large negative additive mask; exp() underflows to exactly 0 in f32

# attention weight rows in the packed (8, D, D) slab
_SA_Q, _SA_K, _SA_V, _SA_O, _CA_Q, _CA_K, _CA_V, _CA_O = range(8)
# packed f32 vector slab rows: 0..7 LayerNorm g/b pairs, 8..15 attn biases (same
# order as the weight slab), 16 = FFN output bias b2
_NQ_G, _NQ_B, _NC_G, _NC_B, _N1_G, _N1_B, _N2_G, _N2_B = range(8)
_B2_ROW = 16


# ----------------------------------------------------------------------------
# Elementwise helpers (run inside the kernel)
# ----------------------------------------------------------------------------
def _erf_approx(x):
    # Abramowitz & Stegun 7.1.26 rational approximation, |err| <= 1.5e-7.
    # TODO(synk): exact lax.erf lowering is not guaranteed in Mosaic; this matches
    # F.gelu's erf-based GELU to ~float32 precision.
    a1 = 0.254829592
    a2 = -0.284496736
    a3 = 1.421413741
    a4 = -1.453152027
    a5 = 1.061405429
    p = 0.3275911
    sign = jnp.where(x >= 0.0, 1.0, -1.0)
    ax = jnp.abs(x)
    t = 1.0 / (1.0 + p * ax)
    poly = ((((a5 * t + a4) * t + a3) * t + a2) * t + a1) * t
    return sign * (1.0 - poly * jnp.exp(-ax * ax))


def _gelu_exact(x):
    return 0.5 * x * (1.0 + _erf_approx(x * 0.7071067811865476))


def _layernorm(x, g, b, eps=1e-5):
    # x: (M, D) f32; g, b: (1, D). Biased variance, like torch.nn.LayerNorm.
    mean = jnp.mean(x, axis=-1, keepdims=True)
    xc = x - mean
    var = jnp.mean(xc * xc, axis=-1, keepdims=True)
    return xc * lax.rsqrt(var + eps) * g + b


# ----------------------------------------------------------------------------
# Fused whole-decoder Pallas kernel: one grid step = one (batch block, layer)
# ----------------------------------------------------------------------------
def _decoder_kernel(q_ref, c_ref, m_ref, qmask_ref, cmask_ref, fln_ref,
                    lnb_ref, attw_ref, w1_ref, b1_ref, w2_ref,
                    q_out_ref, q_state, c_state,
                    *, num_heads, num_layers, cdt):
    layer = pl.program_id(1)

    # Layer 0: load the batch block's query/content into the VMEM state carried
    # across the layer grid axis.
    @pl.when(layer == 0)
    def _():
        q_state[...] = q_ref[...]
        c_state[...] = c_ref[...]

    query = q_state[...]        # (Bb, Tq, D) f32
    content = c_state[...]      # (Bb, Tc, D) f32
    memory = m_ref[...]         # (Bb, Tm, D) f32

    Bb, Tq, D = query.shape
    Tc = content.shape[1]
    H = num_heads
    dh = D // H
    scale = 1.0 / math.sqrt(dh)

    lnb = lnb_ref[0]            # (17, D) f32: LN params, attn biases, b2
    attw = attw_ref[0]          # (8, D, D) matmul dtype
    w1 = w1_ref[0]              # (D, F)
    b1 = b1_ref[0]              # (1, F) f32
    w2 = w2_ref[0]              # (F, D)
    b2 = lnb[_B2_ROW:_B2_ROW + 1]

    def row(i):                 # (1, D) f32 row of the packed vector slab
        return lnb[i:i + 1]

    def proj(x2, w, b):         # full-width (M, D) @ (D, F) matmul, f32 accumulation
        return jnp.dot(x2.astype(cdt), w.astype(cdt),
                       preferred_element_type=jnp.float32) + b

    q_flat = query.reshape(Bb * Tq, D)
    c_flat = content.reshape(Bb * Tc, D)
    m_flat = memory.reshape(Bb * memory.shape[1], D)

    qn_flat = _layernorm(q_flat, row(_NQ_G), row(_NQ_B))
    cn_flat = _layernorm(c_flat, row(_NC_G), row(_NC_B))

    # K/V shared by both streams: self-attn K/V from content_norm, cross-attn K/V
    # from memory -- each projected ONCE per layer.
    k_sa = proj(cn_flat, attw[_SA_K], row(8 + _SA_K)).reshape(Bb, Tc, D)
    v_sa = proj(cn_flat, attw[_SA_V], row(8 + _SA_V)).reshape(Bb, Tc, D)
    k_ca = proj(m_flat, attw[_CA_K], row(8 + _CA_K)).reshape(Bb, memory.shape[1], D)
    v_ca = proj(m_flat, attw[_CA_V], row(8 + _CA_V)).reshape(Bb, memory.shape[1], D)

    def attend(xn_flat, t_q, wq, bq, k3, v3, mask, wo, bo):
        # xn_flat: (Bb*t_q, D) f32; k3/v3: (Bb, Tk, D); mask: (Bb, t_q, Tk) or None.
        q3 = proj(xn_flat, wq, bq).reshape(Bb, t_q, D)
        ctx_parts = []
        for h in range(H):      # static head loop; per-head lane slices of full Q/K/V
            sl = slice(h * dh, (h + 1) * dh)
            s = jnp.einsum('bqf,bkf->bqk',
                           q3[:, :, sl].astype(cdt), k3[:, :, sl].astype(cdt),
                           preferred_element_type=jnp.float32) * scale
            if mask is not None:
                s = s + mask
            s = s - jnp.max(s, axis=-1, keepdims=True)
            p = jnp.exp(s)
            p = p * pl.reciprocal(jnp.sum(p, axis=-1, keepdims=True), approx=True)
            ctx_parts.append(
                jnp.einsum('bqk,bkf->bqf', p.astype(cdt), v3[:, :, sl].astype(cdt),
                           preferred_element_type=jnp.float32))
        # concat heads on the feature axis; head-sum absorbed into ONE full-width
        # (M, D) @ (D, D) output projection.
        ctx = jnp.concatenate(ctx_parts, axis=-1).reshape(Bb * t_q, D)
        return jnp.dot(ctx.astype(cdt), wo.astype(cdt),
                       preferred_element_type=jnp.float32) + bo

    def ffn(xn):
        h1 = jnp.dot(xn.astype(cdt), w1.astype(cdt),
                     preferred_element_type=jnp.float32) + b1
        h1 = _gelu_exact(h1)
        return jnp.dot(h1.astype(cdt), w2.astype(cdt),
                       preferred_element_type=jnp.float32) + b2

    def stream(res_flat, xn_flat, t_q, self_mask):
        # self-attention (K/V = content_norm) + residual
        t = res_flat + attend(xn_flat, t_q, attw[_SA_Q], row(8 + _SA_Q),
                              k_sa, v_sa, self_mask, attw[_SA_O], row(8 + _SA_O))
        # cross-attention on LN1(t) with memory (no mask) + residual
        t = t + attend(_layernorm(t, row(_N1_G), row(_N1_B)), t_q,
                       attw[_CA_Q], row(8 + _CA_Q), k_ca, v_ca, None,
                       attw[_CA_O], row(8 + _CA_O))
        # MLP on LN2(t) + residual
        return t + ffn(_layernorm(t, row(_N2_G), row(_N2_B)))

    new_q = stream(q_flat, qn_flat, Tq, qmask_ref[...])
    q_state[...] = new_q.reshape(Bb, Tq, D)

    @pl.when(layer < num_layers - 1)            # update_content = not last layer
    def _():
        new_c = stream(c_flat, cn_flat, Tc, cmask_ref[...])
        c_state[...] = new_c.reshape(Bb, Tc, D)

    @pl.when(layer == num_layers - 1)           # decoder-level final LayerNorm fused
    def _():
        fln = fln_ref[...]
        q_out_ref[...] = _layernorm(new_q, fln[0:1], fln[1:2]).reshape(Bb, Tq, D)


# ----------------------------------------------------------------------------
# Wrapper: single pallas_call over (batch blocks, layers)
# ----------------------------------------------------------------------------
def _combine_masks(B, Tq, Tk, attn_mask=None, key_padding_mask=None):
    """Per-batch additive float mask (B, Tq, Tk) from a float attn_mask (Tq, Tk) and
    a boolean key_padding_mask (B, Tk) (True == pad), like nn.MultiheadAttention."""
    m = jnp.zeros((B, Tq, Tk), jnp.float32)
    if attn_mask is not None:
        m = m + attn_mask.astype(jnp.float32)[None, :, :]
    if key_padding_mask is not None:
        m = m + jnp.where(key_padding_mask, NEG_INF, 0.0).astype(jnp.float32)[:, None, :]
    return m


def _largest_divisor_leq(n, k):
    k = max(1, min(n, k))
    while n % k:
        k -= 1
    return k


def decoder_forward(params, query, content, memory,
                    query_mask=None, content_mask=None,
                    content_key_padding_mask=None, *, nhead=4, block_b=8):
    B, Tq, D = query.shape
    Tc = content.shape[1]
    Tm = memory.shape[1]
    L = params['attn_w'].shape[0]
    F = params['w1t'].shape[-1]

    q_self_mask = _combine_masks(B, Tq, Tc, query_mask, content_key_padding_mask)
    c_self_mask = _combine_masks(B, Tc, Tc, content_mask, content_key_padding_mask)

    Bb = _largest_divisor_leq(B, block_b)       # batch elements per grid step
    nb = B // Bb

    act = lambda b, l: (b, 0, 0)                # per-batch-block activations / masks
    wt3 = lambda b, l: (l, 0, 0)                # per-layer stacked weights (3-D)
    wt4 = lambda b, l: (l, 0, 0, 0)             # per-layer stacked weights (4-D)

    kernel = functools.partial(_decoder_kernel, num_heads=nhead, num_layers=L,
                               cdt=params['attn_w'].dtype)

    return pl.pallas_call(
        kernel,
        out_shape=jax.ShapeDtypeStruct((B, Tq, D), jnp.float32),
        grid=(nb, L),
        in_specs=[
            pl.BlockSpec((Bb, Tq, D), act),                 # query
            pl.BlockSpec((Bb, Tc, D), act),                 # content
            pl.BlockSpec((Bb, Tm, D), act),                 # memory
            pl.BlockSpec((Bb, Tq, Tc), act),                # query-stream self-attn mask
            pl.BlockSpec((Bb, Tc, Tc), act),                # content-stream self-attn mask
            pl.BlockSpec((2, D), lambda b, l: (0, 0)),      # final decoder LayerNorm g/b
            pl.BlockSpec((1, 17, D), wt3),                  # LN params + attn biases + b2
            pl.BlockSpec((1, 8, D, D), wt4),                # full-width attention weights
            pl.BlockSpec((1, D, F), wt3),                   # FFN w1^T
            pl.BlockSpec((1, 1, F), wt3),                   # FFN b1
            pl.BlockSpec((1, F, D), wt3),                   # FFN w2^T
        ],
        out_specs=pl.BlockSpec((Bb, Tq, D), act),
        scratch_shapes=[pltpu.VMEM((Bb, Tq, D), jnp.float32),   # query carried across layers
                        pltpu.VMEM((Bb, Tc, D), jnp.float32)],  # content carried across layers
        compiler_params=pltpu.CompilerParams(
            dimension_semantics=("parallel", "arbitrary"),
            vmem_limit_bytes=32 * 1024 * 1024),
    )(query, content, memory, q_self_mask, c_self_mask, params['fln'],
      params['lnb'], params['attn_w'], params['w1t'], params['b1'], params['w2t'])


# ----------------------------------------------------------------------------
# Parameter init (PyTorch layout) + one-time kernel-layout preparation
# ----------------------------------------------------------------------------
def init_layer_params(key, d_model, dim_ff):
    ks = iter(jax.random.split(key, 24))
    rnd = lambda shape, s: s * jax.random.normal(next(ks), shape, jnp.float32)
    p = {}
    for pre in ('sa', 'ca'):
        for nm in ('wq', 'wk', 'wv', 'wo'):
            p[f'{pre}_{nm}'] = rnd((d_model, d_model), 0.05)
        for nm in ('bq', 'bk', 'bv', 'bo'):
            p[f'{pre}_{nm}'] = rnd((d_model,), 0.02)
    p['w1'] = rnd((dim_ff, d_model), 0.05)
    p['b1'] = rnd((dim_ff,), 0.02)
    p['w2'] = rnd((d_model, dim_ff), 0.05)
    p['b2'] = rnd((d_model,), 0.02)
    for nm in ('norm1', 'norm2', 'norm_q', 'norm_c'):
        p[f'{nm}_g'] = jnp.ones((d_model,), jnp.float32)
        p[f'{nm}_b'] = jnp.zeros((d_model,), jnp.float32)
    return p


def prepare_params(raw_layers, final_norm, matmul_dtype=jnp.bfloat16):
    """One-time re-layout: full-width pre-transposed matmul weights (cast to
    matmul_dtype), f32 LN params / biases packed into one (17, D) slab per layer,
    and everything stacked along a leading layer axis for the layer grid."""
    lnb, attw, w1t, b1, w2t = [], [], [], [], []
    for raw in raw_layers:
        lnb.append(jnp.stack(
            [raw['norm_q_g'], raw['norm_q_b'],
             raw['norm_c_g'], raw['norm_c_b'],
             raw['norm1_g'], raw['norm1_b'],
             raw['norm2_g'], raw['norm2_b'],
             raw['sa_bq'], raw['sa_bk'], raw['sa_bv'], raw['sa_bo'],
             raw['ca_bq'], raw['ca_bk'], raw['ca_bv'], raw['ca_bo'],
             raw['b2']], axis=0))                                   # (17, D)
        attw.append(jnp.stack(
            [raw['sa_wq'].T, raw['sa_wk'].T, raw['sa_wv'].T, raw['sa_wo'].T,
             raw['ca_wq'].T, raw['ca_wk'].T, raw['ca_wv'].T, raw['ca_wo'].T],
            axis=0))                                                 # (8, D, D)
        w1t.append(raw['w1'].T)                                      # (D, F)
        b1.append(raw['b1'].reshape(1, -1))                          # (1, F)
        w2t.append(raw['w2'].T)                                      # (F, D)
    return {
        'lnb': jnp.stack(lnb).astype(jnp.float32),
        'attn_w': jnp.stack(attw).astype(matmul_dtype),
        'w1t': jnp.stack(w1t).astype(matmul_dtype),
        'b1': jnp.stack(b1).astype(jnp.float32),
        'w2t': jnp.stack(w2t).astype(matmul_dtype),
        'fln': jnp.stack([final_norm['g'], final_norm['b']], axis=0).astype(jnp.float32),
    }


if __name__ == "__main__":
    B, Tq, Tc, Tm = 2, 8, 8, 16
    D, H, F, L = 32, 4, 128, 2

    key = jax.random.PRNGKey(0)
    k_q, k_c, k_m, k_p = jax.random.split(key, 4)

    query = jax.random.normal(k_q, (B, Tq, D), jnp.float32)
    content = jax.random.normal(k_c, (B, Tc, D), jnp.float32)
    memory = jax.random.normal(k_m, (B, Tm, D), jnp.float32)

    # causal-style additive float masks (0 where allowed, NEG_INF where blocked)
    causal_q = jnp.tril(jnp.ones((Tq, Tc), jnp.bool_))
    query_mask = jnp.where(causal_q, 0.0, NEG_INF).astype(jnp.float32)
    content_mask = jnp.where(jnp.tril(jnp.ones((Tc, Tc), jnp.bool_)),
                             0.0, NEG_INF).astype(jnp.float32)
    # boolean key-padding mask (True == padded); pad last content token of batch 1
    content_key_padding_mask = jnp.zeros((B, Tc), jnp.bool_).at[1, Tc - 1].set(True)

    layer_keys = jax.random.split(k_p, L)
    raw_layers = [init_layer_params(layer_keys[i], D, F) for i in range(L)]
    final_norm = {'g': jnp.ones((D,), jnp.float32), 'b': jnp.zeros((D,), jnp.float32)}
    params = prepare_params(raw_layers, final_norm, matmul_dtype=jnp.bfloat16)

    run = jax.jit(functools.partial(decoder_forward, nhead=H, block_b=8))
    out = run(params, query, content, memory,
              query_mask, content_mask, content_key_padding_mask)
    out = jax.block_until_ready(out)

    assert out.shape == (B, Tq, D), out.shape
    assert bool(jnp.all(jnp.isfinite(out)))
    print("KERNEL_OK")
</pallas_src>

<mosaic_0001>
module attributes {stable_mosaic.version = 11 : i64} {
  func.func @_decoder_kernel(%arg0: i32, %arg1: i32, %arg2: memref<2x8x32xf32, #tpu.memory_space<vmem>>, %arg3: memref<2x8x32xf32, #tpu.memory_space<vmem>>, %arg4: memref<2x16x32xf32, #tpu.memory_space<vmem>>, %arg5: memref<2x8x8xf32, #tpu.memory_space<vmem>>, %arg6: memref<2x8x8xf32, #tpu.memory_space<vmem>>, %arg7: memref<2x32xf32, #tpu.memory_space<vmem>>, %arg8: memref<1x17x32xf32, #tpu.memory_space<vmem>>, %arg9: memref<1x8x32x32xbf16, #tpu.memory_space<vmem>>, %arg10: memref<1x32x128xbf16, #tpu.memory_space<vmem>>, %arg11: memref<1x1x128xf32, #tpu.memory_space<vmem>>, %arg12: memref<1x128x32xbf16, #tpu.memory_space<vmem>>, %arg13: memref<2x8x32xf32, #tpu.memory_space<vmem>>, %arg14: memref<2x8x32xf32, #tpu.memory_space<vmem>>, %arg15: memref<2x8x32xf32, #tpu.memory_space<vmem>>) attributes {dimension_semantics = [#tpu.dimension_semantics<parallel>, #tpu.dimension_semantics<arbitrary>], iteration_bounds = array<i64: 1, 2>, scalar_prefetch = 0 : i64, scratch_operands = 2 : i64, tpu.core_type = #tpu.core_type<tc>, window_params = [{transform_indices = @transform_0, window_bounds = array<i64: 2, 8, 32>}, {transform_indices = @transform_1, window_bounds = array<i64: 2, 8, 32>}, {transform_indices = @transform_2, window_bounds = array<i64: 2, 16, 32>}, {transform_indices = @transform_3, window_bounds = array<i64: 2, 8, 8>}, {transform_indices = @transform_4, window_bounds = array<i64: 2, 8, 8>}, {pipeline_mode = #tpu.pipeline_mode<synchronous>, transform_indices = @transform_5, window_bounds = array<i64: 2, 32>}, {transform_indices = @transform_6, window_bounds = array<i64: 1, 17, 32>}, {transform_indices = @transform_7, window_bounds = array<i64: 1, 8, 32, 32>}, {transform_indices = @transform_8, window_bounds = array<i64: 1, 32, 128>}, {transform_indices = @transform_9, window_bounds = array<i64: 1, 1, 128>}, {transform_indices = @transform_10, window_bounds = array<i64: 1, 128, 32>}, {transform_indices = @transform_11, window_bounds = array<i64: 2, 8, 32>}]} {
    %c0_i32 = arith.constant 0 : i32
    %0 = arith.cmpi eq, %arg1, %c0_i32 : i32
    %1 = arith.extui %0 : i1 to i32
    %c0_i32_0 = arith.constant 0 : i32
    %2 = arith.cmpi ne, %1, %c0_i32_0 : i32
    scf.if %2 {
      %c0_119 = arith.constant 0 : index
      %c0_120 = arith.constant 0 : index
      %c0_121 = arith.constant 0 : index
      %407 = vector.load %arg2[%c0_119, %c0_120, %c0_121] : memref<2x8x32xf32, #tpu.memory_space<vmem>>, vector<2x8x32xf32>
      %c0_122 = arith.constant 0 : index
      %c0_123 = arith.constant 0 : index
      %c0_124 = arith.constant 0 : index
      %408 = vector.load %arg14[%c0_122, %c0_123, %c0_124] : memref<2x8x32xf32, #tpu.memory_space<vmem>>, vector<2x8x32xf32>
      tpu.vector_store %arg14[%c0_122, %c0_123, %c0_124], %407 {strides = array<i32>} : memref<2x8x32xf32, #tpu.memory_space<vmem>>, vector<2x8x32xf32>,
      %c0_125 = arith.constant 0 : index
      %c0_126 = arith.constant 0 : index
      %c0_127 = arith.constant 0 : index
      %409 = vector.load %arg3[%c0_125, %c0_126, %c0_127] : memref<2x8x32xf32, #tpu.memory_space<vmem>>, vector<2x8x32xf32>
      %c0_128 = arith.constant 0 : index
      %c0_129 = arith.constant 0 : index
      %c0_130 = arith.constant 0 : index
      %410 = vector.load %arg15[%c0_128, %c0_129, %c0_130] : memref<2x8x32xf32, #tpu.memory_space<vmem>>, vector<2x8x32xf32>
      tpu.vector_store %arg15[%c0_128, %c0_129, %c0_130], %409 {strides = array<i32>} : memref<2x8x32xf32, #tpu.memory_space<vmem>>, vector<2x8x32xf32>,
    } else {
    }
    %c0 = arith.constant 0 : index
    %c0_1 = arith.constant 0 : index
    %c0_2 = arith.constant 0 : index
    %3 = vector.load %arg14[%c0, %c0_1, %c0_2] : memref<2x8x32xf32, #tpu.memory_space<vmem>>, vector<2x8x32xf32>
    %c0_3 = arith.constant 0 : index
    %c0_4 = arith.constant 0 : index
    %c0_5 = arith.constant 0 : index
    %4 = vector.load %arg15[%c0_3, %c0_4, %c0_5] : memref<2x8x32xf32, #tpu.memory_space<vmem>>, vector<2x8x32xf32>
    %c0_6 = arith.constant 0 : index
    %c0_7 = arith.constant 0 : index
    %c0_8 = arith.constant 0 : index
    %5 = vector.load %arg4[%c0_6, %c0_7, %c0_8] : memref<2x16x32xf32, #tpu.memory_space<vmem>>, vector<2x16x32xf32>
    %c0_9 = arith.constant 0 : index
    %c0_10 = arith.constant 0 : index
    %c0_11 = arith.constant 0 : index
    %6 = vector.load %arg8[%c0_9, %c0_10, %c0_11] : memref<1x17x32xf32, #tpu.memory_space<vmem>>, vector<1x17x32xf32>
    %7 = vector.shape_cast %6 : vector<1x17x32xf32> to vector<17x32xf32>
    %c0_12 = arith.constant 0 : index
    %c0_13 = arith.constant 0 : index
    %c0_14 = arith.constant 0 : index
    %c0_15 = arith.constant 0 : index
    %8 = vector.load %arg9[%c0_12, %c0_13, %c0_14, %c0_15] : memref<1x8x32x32xbf16, #tpu.memory_space<vmem>>, vector<1x8x32x32xbf16>
    %9 = vector.shape_cast %8 : vector<1x8x32x32xbf16> to vector<8x32x32xbf16>
    %c0_16 = arith.constant 0 : index
    %c0_17 = arith.constant 0 : index
    %c0_18 = arith.constant 0 : index
    %10 = vector.load %arg10[%c0_16, %c0_17, %c0_18] : memref<1x32x128xbf16, #tpu.memory_space<vmem>>, vector<1x32x128xbf16>
    %11 = vector.shape_cast %10 : vector<1x32x128xbf16> to vector<32x128xbf16>
    %c0_19 = arith.constant 0 : index
    %c0_20 = arith.constant 0 : index
    %c0_21 = arith.constant 0 : index
    %12 = vector.load %arg11[%c0_19, %c0_20, %c0_21] : memref<1x1x128xf32, #tpu.memory_space<vmem>>, vector<1x1x128xf32>
    %13 = vector.shape_cast %12 : vector<1x1x128xf32> to vector<1x128xf32>
    %c0_22 = arith.constant 0 : index
    %c0_23 = arith.constant 0 : index
    %c0_24 = arith.constant 0 : index
    %14 = vector.load %arg12[%c0_22, %c0_23, %c0_24] : memref<1x128x32xbf16, #tpu.memory_space<vmem>>, vector<1x128x32xbf16>
    %15 = vector.shape_cast %14 : vector<1x128x32xbf16> to vector<128x32xbf16>
    %16 = vector.extract_strided_slice %7 {offsets = [16, 0], sizes = [1, 32], strides = [1, 1]} : vector<17x32xf32> to vector<1x32xf32>
    %17 = vector.shape_cast %3 : vector<2x8x32xf32> to vector<16x32xf32>
    %18 = vector.shape_cast %4 : vector<2x8x32xf32> to vector<16x32xf32>
    %19 = vector.shape_cast %5 : vector<2x16x32xf32> to vector<32x32xf32>
    %20 = vector.extract_strided_slice %7 {offsets = [0, 0], sizes = [1, 32], strides = [1, 1]} : vector<17x32xf32> to vector<1x32xf32>
    %21 = vector.extract_strided_slice %7 {offsets = [1, 0], sizes = [1, 32], strides = [1, 1]} : vector<17x32xf32> to vector<1x32xf32>
    %cst = arith.constant dense<0.000000e+00> : vector<16xf32>
    %22 = vector.multi_reduction <add>, %17, %cst [1] : vector<16x32xf32> to vector<16xf32>
    %23 = vector.shape_cast %22 : vector<16xf32> to vector<16x1xf32>
    %cst_25 = arith.constant 3.200000e+01 : f32
    %24 = vector.broadcast %cst_25 : f32 to vector<16x1xf32>
    %25 = arith.divf %23, %24 : vector<16x1xf32>
    %26 = vector.broadcast %25 : vector<16x1xf32> to vector<16x32xf32>
    %27 = arith.subf %17, %26 : vector<16x32xf32>
    %28 = arith.mulf %27, %27 : vector<16x32xf32>
    %cst_26 = arith.constant dense<0.000000e+00> : vector<16xf32>
    %29 = vector.multi_reduction <add>, %28, %cst_26 [1] : vector<16x32xf32> to vector<16xf32>
    %30 = vector.shape_cast %29 : vector<16xf32> to vector<16x1xf32>
    %cst_27 = arith.constant 3.200000e+01 : f32
    %31 = vector.broadcast %cst_27 : f32 to vector<16x1xf32>
    %32 = arith.divf %30, %31 : vector<16x1xf32>
    %cst_28 = arith.constant 9.99999974E-6 : f32
    %33 = vector.broadcast %cst_28 : f32 to vector<16x1xf32>
    %34 = arith.addf %32, %33 : vector<16x1xf32>
    %35 = math.rsqrt %34 : vector<16x1xf32>
    %36 = vector.broadcast %35 : vector<16x1xf32> to vector<16x32xf32>
    %37 = arith.mulf %27, %36 : vector<16x32xf32>
    %38 = vector.broadcast %20 : vector<1x32xf32> to vector<16x32xf32>
    %39 = arith.mulf %37, %38 : vector<16x32xf32>
    %40 = vector.broadcast %21 : vector<1x32xf32> to vector<16x32xf32>
    %41 = arith.addf %39, %40 : vector<16x32xf32>
    %42 = vector.extract_strided_slice %7 {offsets = [2, 0], sizes = [1, 32], strides = [1, 1]} : vector<17x32xf32> to vector<1x32xf32>
    %43 = vector.extract_strided_slice %7 {offsets = [3, 0], sizes = [1, 32], strides = [1, 1]} : vector<17x32xf32> to vector<1x32xf32>
    %cst_29 = arith.constant dense<0.000000e+00> : vector<16xf32>
    %44 = vector.multi_reduction <add>, %18, %cst_29 [1] : vector<16x32xf32> to vector<16xf32>
    %45 = vector.shape_cast %44 : vector<16xf32> to vector<16x1xf32>
    %cst_30 = arith.constant 3.200000e+01 : f32
    %46 = vector.broadcast %cst_30 : f32 to vector<16x1xf32>
    %47 = arith.divf %45, %46 : vector<16x1xf32>
    %48 = vector.broadcast %47 : vector<16x1xf32> to vector<16x32xf32>
    %49 = arith.subf %18, %48 : vector<16x32xf32>
    %50 = arith.mulf %49, %49 : vector<16x32xf32>
    %cst_31 = arith.constant dense<0.000000e+00> : vector<16xf32>
    %51 = vector.multi_reduction <add>, %50, %cst_31 [1] : vector<16x32xf32> to vector<16xf32>
    %52 = vector.shape_cast %51 : vector<16xf32> to vector<16x1xf32>
    %cst_32 = arith.constant 3.200000e+01 : f32
    %53 = vector.broadcast %cst_32 : f32 to vector<16x1xf32>
    %54 = arith.divf %52, %53 : vector<16x1xf32>
    %cst_33 = arith.constant 9.99999974E-6 : f32
    %55 = vector.broadcast %cst_33 : f32 to vector<16x1xf32>
    %56 = arith.addf %54, %55 : vector<16x1xf32>
    %57 = math.rsqrt %56 : vector<16x1xf32>
    %58 = vector.broadcast %57 : vector<16x1xf32> to vector<16x32xf32>
    %59 = arith.mulf %49, %58 : vector<16x32xf32>
    %60 = vector.broadcast %42 : vector<1x32xf32> to vector<16x32xf32>
    %61 = arith.mulf %59, %60 : vector<16x32xf32>
    %62 = vector.broadcast %43 : vector<1x32xf32> to vector<16x32xf32>
    %63 = arith.addf %61, %62 : vector<16x32xf32>
    %64 = vector.extract_strided_slice %9 {offsets = [1, 0, 0], sizes = [1, 32, 32], strides = [1, 1, 1]} : vector<8x32x32xbf16> to vector<1x32x32xbf16>
    %65 = vector.shape_cast %64 : vector<1x32x32xbf16> to vector<32x32xbf16>
    %66 = vector.extract_strided_slice %7 {offsets = [9, 0], sizes = [1, 32], strides = [1, 1]} : vector<17x32xf32> to vector<1x32xf32>
    %67 = arith.truncf %63 : vector<16x32xf32> to vector<16x32xbf16>
    %cst_34 = arith.constant dense<0.000000e+00> : vector<16x32xf32>
    %68 = tpu.matmul %67, %65, %cst_34 {dimension_numbers = #tpu.dot_dimension_numbers<[1], [0], [0], [1], [0, 0, 1, 1], [], []>} : vector<16x32xbf16>, vector<32x32xbf16>, vector<16x32xf32> -> vector<16x32xf32>
    %69 = vector.broadcast %66 : vector<1x32xf32> to vector<16x32xf32>
    %70 = arith.addf %68, %69 : vector<16x32xf32>
    %71 = vector.shape_cast %70 : vector<16x32xf32> to vector<2x8x32xf32>
    %72 = vector.extract_strided_slice %9 {offsets = [2, 0, 0], sizes = [1, 32, 32], strides = [1, 1, 1]} : vector<8x32x32xbf16> to vector<1x32x32xbf16>
    %73 = vector.shape_cast %72 : vector<1x32x32xbf16> to vector<32x32xbf16>
    %74 = vector.extract_strided_slice %7 {offsets = [10, 0], sizes = [1, 32], strides = [1, 1]} : vector<17x32xf32> to vector<1x32xf32>
    %75 = arith.truncf %63 : vector<16x32xf32> to vector<16x32xbf16>
    %cst_35 = arith.constant dense<0.000000e+00> : vector<16x32xf32>
    %76 = tpu.matmul %75, %73, %cst_35 {dimension_numbers = #tpu.dot_dimension_numbers<[1], [0], [0], [1], [0, 0, 1, 1], [], []>} : vector<16x32xbf16>, vector<32x32xbf16>, vector<16x32xf32> -> vector<16x32xf32>
    %77 = vector.broadcast %74 : vector<1x32xf32> to vector<16x32xf32>
    %78 = arith.addf %76, %77 : vector<16x32xf32>
    %79 = vector.shape_cast %78 : vector<16x32xf32> to vector<2x8x32xf32>
    %80 = vector.extract_strided_slice %9 {offsets = [5, 0, 0], sizes = [1, 32, 32], strides = [1, 1, 1]} : vector<8x32x32xbf16> to vector<1x32x32xbf16>
    %81 = vector.shape_cast %80 : vector<1x32x32xbf16> to vector<32x32xbf16>
    %82 = vector.extract_strided_slice %7 {offsets = [13, 0], sizes = [1, 32], strides = [1, 1]} : vector<17x32xf32> to vector<1x32xf32>
    %83 = arith.truncf %19 : vector<32x32xf32> to vector<32x32xbf16>
    %cst_36 = arith.constant dense<0.000000e+00> : vector<32x32xf32>
    %84 = tpu.matmul %83, %81, %cst_36 {dimension_numbers = #tpu.dot_dimension_numbers<[1], [0], [0], [1], [0, 0, 1, 1], [], []>} : vector<32x32xbf16>, vector<32x32xbf16>, vector<32x32xf32> -> vector<32x32xf32>
    %85 = vector.broadcast %82 : vector<1x32xf32> to vector<32x32xf32>
    %86 = arith.addf %84, %85 : vector<32x32xf32>
    %87 = vector.shape_cast %86 : vector<32x32xf32> to vector<2x16x32xf32>
    %88 = vector.extract_strided_slice %9 {offsets = [6, 0, 0], sizes = [1, 32, 32], strides = [1, 1, 1]} : vector<8x32x32xbf16> to vector<1x32x32xbf16>
    %89 = vector.shape_cast %88 : vector<1x32x32xbf16> to vector<32x32xbf16>
    %90 = vector.extract_strided_slice %7 {offsets = [14, 0], sizes = [1, 32], strides = [1, 1]} : vector<17x32xf32> to vector<1x32xf32>
    %91 = arith.truncf %19 : vector<32x32xf32> to vector<32x32xbf16>
    %cst_37 = arith.constant dense<0.000000e+00> : vector<32x32xf32>
    %92 = tpu.matmul %91, %89, %cst_37 {dimension_numbers = #tpu.dot_dimension_numbers<[1], [0], [0], [1], [0, 0, 1, 1], [], []>} : vector<32x32xbf16>, vector<32x32xbf16>, vector<32x32xf32> -> vector<32x32xf32>
    %93 = vector.broadcast %90 : vector<1x32xf32> to vector<32x32xf32>
    %94 = arith.addf %92, %93 : vector<32x32xf32>
    %95 = vector.shape_cast %94 : vector<32x32xf32> to vector<2x16x32xf32>
    %c0_38 = arith.constant 0 : index
    %c0_39 = arith.constant 0 : index
    %c0_40 = arith.constant 0 : index
    %96 = vector.load %arg5[%c0_38, %c0_39, %c0_40] : memref<2x8x8xf32, #tpu.memory_space<vmem>>, vector<2x8x8xf32>
    %97 = vector.extract_strided_slice %9 {offsets = [0, 0, 0], sizes = [1, 32, 32], strides = [1, 1, 1]} : vector<8x32x32xbf16> to vector<1x32x32xbf16>
    %98 = vector.shape_cast %97 : vector<1x32x32xbf16> to vector<32x32xbf16>
    %99 = vector.extract_strided_slice %7 {offsets = [8, 0], sizes = [1, 32], strides = [1, 1]} : vector<17x32xf32> to vector<1x32xf32>
    %100 = vector.extract_strided_slice %9 {offsets = [3, 0, 0], sizes = [1, 32, 32], strides = [1, 1, 1]} : vector<8x32x32xbf16> to vector<1x32x32xbf16>
    %101 = vector.shape_cast %100 : vector<1x32x32xbf16> to vector<32x32xbf16>
    %102 = vector.extract_strided_slice %7 {offsets = [11, 0], sizes = [1, 32], strides = [1, 1]} : vector<17x32xf32> to vector<1x32xf32>
    %103 = arith.truncf %41 : vector<16x32xf32> to vector<16x32xbf16>
    %cst_41 = arith.constant dense<0.000000e+00> : vector<16x32xf32>
    %104 = tpu.matmul %103, %98, %cst_41 {dimension_numbers = #tpu.dot_dimension_numbers<[1], [0], [0], [1], [0, 0, 1, 1], [], []>} : vector<16x32xbf16>, vector<32x32xbf16>, vector<16x32xf32> -> vector<16x32xf32>
    %105 = vector.broadcast %99 : vector<1x32xf32> to vector<16x32xf32>
    %106 = arith.addf %104, %105 : vector<16x32xf32>
    %107 = vector.shape_cast %106 : vector<16x32xf32> to vector<2x8x32xf32>
    %108 = vector.extract_strided_slice %107 {offsets = [0, 0, 0], sizes = [2, 8, 8], strides = [1, 1, 1]} : vector<2x8x32xf32> to vector<2x8x8xf32>
    %109 = arith.truncf %108 : vector<2x8x8xf32> to vector<2x8x8xbf16>
    %110 = vector.extract_strided_slice %71 {offsets = [0, 0, 0], sizes = [2, 8, 8], strides = [1, 1, 1]} : vector<2x8x32xf32> to vector<2x8x8xf32>
    %111 = arith.truncf %110 : vector<2x8x8xf32> to vector<2x8x8xbf16>
    "tpu.trace_start"() <{level = 10 : i32, message = "bqf,bkf->bqk"}> : () -> ()
    %cst_42 = arith.constant dense<0.000000e+00> : vector<2x8x8xf32>
    %112 = tpu.matmul %109, %111, %cst_42 {dimension_numbers = #tpu.dot_dimension_numbers<[2], [2], [1], [1], [0, 0, 0, 1, 1, 1], [0], [0]>} : vector<2x8x8xbf16>, vector<2x8x8xbf16>, vector<2x8x8xf32> -> vector<2x8x8xf32>
    "tpu.trace_stop"() : () -> ()
    %cst_43 = arith.constant 0.353553385 : f32
    %113 = vector.broadcast %cst_43 : f32 to vector<2x8x8xf32>
    %114 = arith.mulf %112, %113 : vector<2x8x8xf32>
    %115 = arith.addf %114, %96 : vector<2x8x8xf32>
    %cst_44 = arith.constant dense<0xFF800000> : vector<2x8xf32>
    %116 = vector.multi_reduction <maximumf>, %115, %cst_44 [2] : vector<2x8x8xf32> to vector<2x8xf32>
    %117 = vector.shape_cast %116 : vector<2x8xf32> to vector<2x8x1xf32>
    %118 = vector.broadcast %117 : vector<2x8x1xf32> to vector<2x8x8xf32>
    %119 = arith.subf %115, %118 : vector<2x8x8xf32>
    %120 = math.exp %119 : vector<2x8x8xf32>
    %cst_45 = arith.constant dense<0.000000e+00> : vector<2x8xf32>
    %121 = vector.multi_reduction <add>, %120, %cst_45 [2] : vector<2x8x8xf32> to vector<2x8xf32>
    %122 = vector.shape_cast %121 : vector<2x8xf32> to vector<2x8x1xf32>
    %123 = tpu.reciprocal %122 {approx = true} : vector<2x8x1xf32> -> vector<2x8x1xf32>
    %124 = vector.broadcast %123 : vector<2x8x1xf32> to vector<2x8x8xf32>
    %125 = arith.mulf %120, %124 : vector<2x8x8xf32>
    %126 = arith.truncf %125 : vector<2x8x8xf32> to vector<2x8x8xbf16>
    %127 = vector.extract_strided_slice %79 {offsets = [0, 0, 0], sizes = [2, 8, 8], strides = [1, 1, 1]} : vector<2x8x32xf32> to vector<2x8x8xf32>
    %128 = arith.truncf %127 : vector<2x8x8xf32> to vector<2x8x8xbf16>
    "tpu.trace_start"() <{level = 10 : i32, message = "bqk,bkf->bqf"}> : () -> ()
    %cst_46 = arith.constant dense<0.000000e+00> : vector<2x8x8xf32>
    %129 = tpu.matmul %126, %128, %cst_46 {dimension_numbers = #tpu.dot_dimension_numbers<[2], [1], [1], [2], [0, 0, 0, 1, 1, 2], [0], [0]>} : vector<2x8x8xbf16>, vector<2x8x8xbf16>, vector<2x8x8xf32> -> vector<2x8x8xf32>
    "tpu.trace_stop"() : () -> ()
    %130 = vector.extract_strided_slice %107 {offsets = [0, 0, 8], sizes = [2, 8, 8], strides = [1, 1, 1]} : vector<2x8x32xf32> to vector<2x8x8xf32>
    %131 = arith.truncf %130 : vector<2x8x8xf32> to vector<2x8x8xbf16>
    %132 = vector.extract_strided_slice %71 {offsets = [0, 0, 8], sizes = [2, 8, 8], strides = [1, 1, 1]} : vector<2x8x32xf32> to vector<2x8x8xf32>
    %133 = arith.truncf %132 : vector<2x8x8xf32> to vector<2x8x8xbf16>
    "tpu.trace_start"() <{level = 10 : i32, message = "bqf,bkf->bqk"}> : () -> ()
    %cst_47 = arith.constant dense<0.000000e+00> : vector<2x8x8xf32>
    %134 = tpu.matmul %131, %133, %cst_47 {dimension_numbers = #tpu.dot_dimension_numbers<[2], [2], [1], [1], [0, 0, 0, 1, 1, 1], [0], [0]>} : vector<2x8x8xbf16>, vector<2x8x8xbf16>, vector<2x8x8xf32> -> vector<2x8x8xf32>
    "tpu.trace_stop"() : () -> ()
    %cst_48 = arith.constant 0.353553385 : f32
    %135 = vector.broadcast %cst_48 : f32 to vector<2x8x8xf32>
    %136 = arith.mulf %134, %135 : vector<2x8x8xf32>
    %137 = arith.addf %136, %96 : vector<2x8x8xf32>
    %cst_49 = arith.constant dense<0xFF800000> : vector<2x8xf32>
    %138 = vector.multi_reduction <maximumf>, %137, %cst_49 [2] : vector<2x8x8xf32> to vector<2x8xf32>
    %139 = vector.shape_cast %138 : vector<2x8xf32> to vector<2x8x1xf32>
    %140 = vector.broadcast %139 : vector<2x8x1xf32> to vector<2x8x8xf32>
    %141 = arith.subf %137, %140 : vector<2x8x8xf32>
    %142 = math.exp %141 : vector<2x8x8xf32>
    %cst_50 = arith.constant dense<0.000000e+00> : vector<2x8xf32>
    %143 = vector.multi_reduction <add>, %142, %cst_50 [2] : vector<2x8x8xf32> to vector<2x8xf32>
    %144 = vector.shape_cast %143 : vector<2x8xf32> to vector<2x8x1xf32>
    %145 = tpu.reciprocal %144 {approx = true} : vector<2x8x1xf32> -> vector<2x8x1xf32>
    %146 = vector.broadcast %145 : vector<2x8x1xf32> to vector<2x8x8xf32>
    %147 = arith.mulf %142, %146 : vector<2x8x8xf32>
    %148 = arith.truncf %147 : vector<2x8x8xf32> to vector<2x8x8xbf16>
    %149 = vector.extract_strided_slice %79 {offsets = [0, 0, 8], sizes = [2, 8, 8], strides = [1, 1, 1]} : vector<2x8x32xf32> to vector<2x8x8xf32>
    %150 = arith.truncf %149 : vector<2x8x8xf32> to vector<2x8x8xbf16>
    "tpu.trace_start"() <{level = 10 : i32, message = "bqk,bkf->bqf"}> : () -> ()
    %cst_51 = arith.constant dense<0.000000e+00> : vector<2x8x8xf32>
    %151 = tpu.matmul %148, %150, %cst_51 {dimension_numbers = #tpu.dot_dimension_numbers<[2], [1], [1], [2], [0, 0, 0, 1, 1, 2], [0], [0]>} : vector<2x8x8xbf16>, vector<2x8x8xbf16>, vector<2x8x8xf32> -> vector<2x8x8xf32>
    "tpu.trace_stop"() : () -> ()
    %152 = vector.extract_strided_slice %107 {offsets = [0, 0, 16], sizes = [2, 8, 8], strides = [1, 1, 1]} : vector<2x8x32xf32> to vector<2x8x8xf32>
    %153 = arith.truncf %152 : vector<2x8x8xf32> to vector<2x8x8xbf16>
    %154 = vector.extract_strided_slice %71 {offsets = [0, 0, 16], sizes = [2, 8, 8], strides = [1, 1, 1]} : vector<2x8x32xf32> to vector<2x8x8xf32>
    %155 = arith.truncf %154 : vector<2x8x8xf32> to vector<2x8x8xbf16>
    "tpu.trace_start"() <{level = 10 : i32, message = "bqf,bkf->bqk"}> : () -> ()
    %cst_52 = arith.constant dense<0.000000e+00> : vector<2x8x8xf32>
    %156 = tpu.matmul %153, %155, %cst_52 {dimension_numbers = #tpu.dot_dimension_numbers<[2], [2], [1], [1], [0, 0, 0, 1, 1, 1], [0], [0]>} : vector<2x8x8xbf16>, vector<2x8x8xbf16>, vector<2x8x8xf32> -> vector<2x8x8xf32>
    "tpu.trace_stop"() : () -> ()
    %cst_53 = arith.constant 0.353553385 : f32
    %157 = vector.broadcast %cst_53 : f32 to vector<2x8x8xf32>
    %158 = arith.mulf %156, %157 : vector<2x8x8xf32>
    %159 = arith.addf %158, %96 : vector<2x8x8xf32>
    %cst_54 = arith.constant dense<0xFF800000> : vector<2x8xf32>
    %160 = vector.multi_reduction <maximumf>, %159, %cst_54 [2] : vector<2x8x8xf32> to vector<2x8xf32>
    %161 = vector.shape_cast %160 : vector<2x8xf32> to vector<2x8x1xf32>
    %162 = vector.broadcast %161 : vector<2x8x1xf32> to vector<2x8x8xf32>
    %163 = arith.subf %159, %162 : vector<2x8x8xf32>
    %164 = math.exp %163 : vector<2x8x8xf32>
    %cst_55 = arith.constant dense<0.000000e+00> : vector<2x8xf32>
    %165 = vector.multi_reduction <add>, %164, %cst_55 [2] : vector<2x8x8xf32> to vector<2x8xf32>
    %166 = vector.shape_cast %165 : vector<2x8xf32> to vector<2x8x1xf32>
    %167 = tpu.reciprocal %166 {approx = true} : vector<2x8x1xf32> -> vector<2x8x1xf32>
    %168 = vector.broadcast %167 : vector<2x8x1xf32> to vector<2x8x8xf32>
    %169 = arith.mulf %164, %168 : vector<2x8x8xf32>
    %170 = arith.truncf %169 : vector<2x8x8xf32> to vector<2x8x8xbf16>
    %171 = vector.extract_strided_slice %79 {offsets = [0, 0, 16], sizes = [2, 8, 8], strides = [1, 1, 1]} : vector<2x8x32xf32> to vector<2x8x8xf32>
    %172 = arith.truncf %171 : vector<2x8x8xf32> to vector<2x8x8xbf16>
    "tpu.trace_start"() <{level = 10 : i32, message = "bqk,bkf->bqf"}> : () -> ()
    %cst_56 = arith.constant dense<0.000000e+00> : vector<2x8x8xf32>
    %173 = tpu.matmul %170, %172, %cst_56 {dimension_numbers = #tpu.dot_dimension_numbers<[2], [1], [1], [2], [0, 0, 0, 1, 1, 2], [0], [0]>} : vector<2x8x8xbf16>, vector<2x8x8xbf16>, vector<2x8x8xf32> -> vector<2x8x8xf32>
    "tpu.trace_stop"() : () -> ()
    %174 = vector.extract_strided_slice %107 {offsets = [0, 0, 24], sizes = [2, 8, 8], strides = [1, 1, 1]} : vector<2x8x32xf32> to vector<2x8x8xf32>
    %175 = arith.truncf %174 : vector<2x8x8xf32> to vector<2x8x8xbf16>
    %176 = vector.extract_strided_slice %71 {offsets = [0, 0, 24], sizes = [2, 8, 8], strides = [1, 1, 1]} : vector<2x8x32xf32> to vector<2x8x8xf32>
    %177 = arith.truncf %176 : vector<2x8x8xf32> to vector<2x8x8xbf16>
    "tpu.trace_start"() <{level = 10 : i32, message = "bqf,bkf->bqk"}> : () -> ()
    %cst_57 = arith.constant dense<0.000000e+00> : vector<2x8x8xf32>
    %178 = tpu.matmul %175, %177, %cst_57 {dimension_numbers = #tpu.dot_dimension_numbers<[2], [2], [1], [1], [0, 0, 0, 1, 1, 1], [0], [0]>} : vector<2x8x8xbf16>, vector<2x8x8xbf16>, vector<2x8x8xf32> -> vector<2x8x8xf32>
    "tpu.trace_stop"() : () -> ()
    %cst_58 = arith.constant 0.353553385 : f32
    %179 = vector.broadcast %cst_58 : f32 to vector<2x8x8xf32>
    %180 = arith.mulf %178, %179 : vector<2x8x8xf32>
    %181 = arith.addf %180, %96 : vector<2x8x8xf32>
    %cst_59 = arith.constant dense<0xFF800000> : vector<2x8xf32>
    %182 = vector.multi_reduction <maximumf>, %181, %cst_59 [2] : vector<2x8x8xf32> to vector<2x8xf32>
    %183 = vector.shape_cast %182 : vector<2x8xf32> to vector<2x8x1xf32>
    %184 = vector.broadcast %183 : vector<2x8x1xf32> to vector<2x8x8xf32>
    %185 = arith.subf %181, %184 : vector<2x8x8xf32>
    %186 = math.exp %185 : vector<2x8x8xf32>
    %cst_60 = arith.constant dense<0.000000e+00> : vector<2x8xf32>
    %187 = vector.multi_reduction <add>, %186, %cst_60 [2] : vector<2x8x8xf32> to vector<2x8xf32>
    %188 = vector.shape_cast %187 : vector<2x8xf32> to vector<2x8x1xf32>
    %189 = tpu.reciprocal %188 {approx = true} : vector<2x8x1xf32> -> vector<2x8x1xf32>
    %190 = vector.broadcast %189 : vector<2x8x1xf32> to vector<2x8x8xf32>
    %191 = arith.mulf %186, %190 : vector<2x8x8xf32>
    %192 = arith.truncf %191 : vector<2x8x8xf32> to vector<2x8x8xbf16>
    %193 = vector.extract_strided_slice %79 {offsets = [0, 0, 24], sizes = [2, 8, 8], strides = [1, 1, 1]} : vector<2x8x32xf32> to vector<2x8x8xf32>
    %194 = arith.truncf %193 : vector<2x8x8xf32> to vector<2x8x8xbf16>
    "tpu.trace_start"() <{level = 10 : i32, message = "bqk,bkf->bqf"}> : () -> ()
    %cst_61 = arith.constant dense<0.000000e+00> : vector<2x8x8xf32>
    %195 = tpu.matmul %192, %194, %cst_61 {dimension_numbers = #tpu.dot_dimension_numbers<[2], [1], [1], [2], [0, 0, 0, 1, 1, 2], [0], [0]>} : vector<2x8x8xbf16>, vector<2x8x8xbf16>, vector<2x8x8xf32> -> vector<2x8x8xf32>
    "tpu.trace_stop"() : () -> ()
    %196 = tpu.concatenate %129, %151, %173, %195 in 2 : vector<2x8x8xf32>, vector<2x8x8xf32>, vector<2x8x8xf32>, vector<2x8x8xf32> -> vector<2x8x32xf32>
    %197 = vector.shape_cast %196 : vector<2x8x32xf32> to vector<16x32xf32>
    %198 = arith.truncf %197 : vector<16x32xf32> to vector<16x32xbf16>
    %cst_62 = arith.constant dense<0.000000e+00> : vector<16x32xf32>
    %199 = tpu.matmul %198, %101, %cst_62 {dimension_numbers = #tpu.dot_dimension_numbers<[1], [0], [0], [1], [0, 0, 1, 1], [], []>} : vector<16x32xbf16>, vector<32x32xbf16>, vector<16x32xf32> -> vector<16x32xf32>
    %200 = vector.broadcast %102 : vector<1x32xf32> to vector<16x32xf32>
    %201 = arith.addf %199, %200 : vector<16x32xf32>
    %202 = arith.addf %17, %201 : vector<16x32xf32>
    %203 = vector.extract_strided_slice %7 {offsets = [4, 0], sizes = [1, 32], strides = [1, 1]} : vector<17x32xf32> to vector<1x32xf32>
    %204 = vector.extract_strided_slice %7 {offsets = [5, 0], sizes = [1, 32], strides = [1, 1]} : vector<17x32xf32> to vector<1x32xf32>
    %cst_63 = arith.constant dense<0.000000e+00> : vector<16xf32>
    %205 = vector.multi_reduction <add>, %202, %cst_63 [1] : vector<16x32xf32> to vector<16xf32>
    %206 = vector.shape_cast %205 : vector<16xf32> to vector<16x1xf32>
    %cst_64 = arith.constant 3.200000e+01 : f32
    %207 = vector.broadcast %cst_64 : f32 to vector<16x1xf32>
    %208 = arith.divf %206, %207 : vector<16x1xf32>
    %209 = vector.broadcast %208 : vector<16x1xf32> to vector<16x32xf32>
    %210 = arith.subf %202, %209 : vector<16x32xf32>
    %211 = arith.mulf %210, %210 : vector<16x32xf32>
    %cst_65 = arith.constant dense<0.000000e+00> : vector<16xf32>
    %212 = vector.multi_reduction <add>, %211, %cst_65 [1] : vector<16x32xf32> to vector<16xf32>
    %213 = vector.shape_cast %212 : vector<16xf32> to vector<16x1xf32>
    %cst_66 = arith.constant 3.200000e+01 : f32
    %214 = vector.broadcast %cst_66 : f32 to vector<16x1xf32>
    %215 = arith.divf %213, %214 : vector<16x1xf32>
    %cst_67 = arith.constant 9.99999974E-6 : f32
    %216 = vector.broadcast %cst_67 : f32 to vector<16x1xf32>
    %217 = arith.addf %215, %216 : vector<16x1xf32>
    %218 = math.rsqrt %217 : vector<16x1xf32>
    %219 = vector.broadcast %218 : vector<16x1xf32> to vector<16x32xf32>
    %220 = arith.mulf %210, %219 : vector<16x32xf32>
    %221 = vector.broadcast %203 : vector<1x32xf32> to vector<16x32xf32>
    %222 = arith.mulf %220, %221 : vector<16x32xf32>
    %223 = vector.broadcast %204 : vector<1x32xf32> to vector<16x32xf32>
    %224 = arith.addf %222, %223 : vector<16x32xf32>
    %225 = vector.extract_strided_slice %9 {offsets = [4, 0, 0], sizes = [1, 32, 32], strides = [1, 1, 1]} : vector<8x32x32xbf16> to vector<1x32x32xbf16>
    %226 = vector.shape_cast %225 : vector<1x32x32xbf16> to vector<32x32xbf16>
    %227 = vector.extract_strided_slice %7 {offsets = [12, 0], sizes = [1, 32], strides = [1, 1]} : vector<17x32xf32> to vector<1x32xf32>
    %228 = vector.extract_strided_slice %9 {offsets = [7, 0, 0], sizes = [1, 32, 32], strides = [1, 1, 1]} : vector<8x32x32xbf16> to vector<1x32x32xbf16>
    %229 = vector.shape_cast %228 : vector<1x32x32xbf16> to vector<32x32xbf16>
    %230 = vector.extract_strided_slice %7 {offsets = [15, 0], sizes = [1, 32], strides = [1, 1]} : vector<17x32xf32> to vector<1x32xf32>
    %231 = arith.truncf %224 : vector<16x32xf32> to vector<16x32xbf16>
    %cst_68 = arith.constant dense<0.000000e+00> : vector<16x32xf32>
    %232 = tpu.matmul %231, %226, %cst_68 {dimension_numbers = #tpu.dot_dimension_numbers<[1], [0], [0], [1], [0, 0, 1, 1], [], []>} : vector<16x32xbf16>, vector<32x32xbf16>, vector<16x32xf32> -> vector<16x32xf32>
    %233 = vector.broadcast %227 : vector<1x32xf32> to vector<16x32xf32>
    %234 = arith.addf %232, %233 : vector<16x32xf32>
    %235 = vector.shape_cast %234 : vector<16x32xf32> to vector<2x8x32xf32>
    %236 = vector.extract_strided_slice %235 {offsets = [0, 0, 0], sizes = [2, 8, 8], strides = [1, 1, 1]} : vector<2x8x32xf32> to vector<2x8x8xf32>
    %237 = arith.truncf %236 : vector<2x8x8xf32> to vector<2x8x8xbf16>
    %238 = vector.extract_strided_slice %87 {offsets = [0, 0, 0], sizes = [2, 16, 8], strides = [1, 1, 1]} : vector<2x16x32xf32> to vector<2x16x8xf32>
    %239 = arith.truncf %238 : vector<2x16x8xf32> to vector<2x16x8xbf16>
    "tpu.trace_start"() <{level = 10 : i32, message = "bqf,bkf->bqk"}> : () -> ()
    %cst_69 = arith.constant dense<0.000000e+00> : vector<2x8x16xf32>
    %240 = tpu.matmul %237, %239, %cst_69 {dimension_numbers = #tpu.dot_dimension_numbers<[2], [2], [1], [1], [0, 0, 0, 1, 1, 1], [0], [0]>} : vector<2x8x8xbf16>, vector<2x16x8xbf16>, vector<2x8x16xf32> -> vector<2x8x16xf32>
    "tpu.trace_stop"() : () -> ()
    %cst_70 = arith.constant 0.353553385 : f32
    %241 = vector.broadcast %cst_70 : f32 to vector<2x8x16xf32>
    %242 = arith.mulf %240, %241 : vector<2x8x16xf32>
    %cst_71 = arith.constant dense<0xFF800000> : vector<2x8xf32>
    %243 = vector.multi_reduction <maximumf>, %242, %cst_71 [2] : vector<2x8x16xf32> to vector<2x8xf32>
    %244 = vector.shape_cast %243 : vector<2x8xf32> to vector<2x8x1xf32>
    %245 = vector.broadcast %244 : vector<2x8x1xf32> to vector<2x8x16xf32>
    %246 = arith.subf %242, %245 : vector<2x8x16xf32>
    %247 = math.exp %246 : vector<2x8x16xf32>
    %cst_72 = arith.constant dense<0.000000e+00> : vector<2x8xf32>
    %248 = vector.multi_reduction <add>, %247, %cst_72 [2] : vector<2x8x16xf32> to vector<2x8xf32>
    %249 = vector.shape_cast %248 : vector<2x8xf32> to vector<2x8x1xf32>
    %250 = tpu.reciprocal %249 {approx = true} : vector<2x8x1xf32> -> vector<2x8x1xf32>
    %251 = vector.broadcast %250 : vector<2x8x1xf32> to vector<2x8x16xf32>
    %252 = arith.mulf %247, %251 : vector<2x8x16xf32>
    %253 = arith.truncf %252 : vector<2x8x16xf32> to vector<2x8x16xbf16>
    %254 = vector.extract_strided_slice %95 {offsets = [0, 0, 0], sizes = [2, 16, 8], strides = [1, 1, 1]} : vector<2x16x32xf32> to vector<2x16x8xf32>
    %255 = arith.truncf %254 : vector<2x16x8xf32> to vector<2x16x8xbf16>
    "tpu.trace_start"() <{level = 10 : i32, message = "bqk,bkf->bqf"}> : () -> ()
    %cst_73 = arith.constant dense<0.000000e+00> : vector<2x8x8xf32>
    %256 = tpu.matmul %253, %255, %cst_73 {dimension_numbers = #tpu.dot_dimension_numbers<[2], [1], [1], [2], [0, 0, 0, 1, 1, 2], [0], [0]>} : vector<2x8x16xbf16>, vector<2x16x8xbf16>, vector<2x8x8xf32> -> vector<2x8x8xf32>
    "tpu.trace_stop"() : () -> ()
    %257 = vector.extract_strided_slice %235 {offsets = [0, 0, 8], sizes = [2, 8, 8], strides = [1, 1, 1]} : vector<2x8x32xf32> to vector<2x8x8xf32>
    %258 = arith.truncf %257 : vector<2x8x8xf32> to vector<2x8x8xbf16>
    %259 = vector.extract_strided_slice %87 {offsets = [0, 0, 8], sizes = [2, 16, 8], strides = [1, 1, 1]} : vector<2x16x32xf32> to vector<2x16x8xf32>
    %260 = arith.truncf %259 : vector<2x16x8xf32> to vector<2x16x8xbf16>
    "tpu.trace_start"() <{level = 10 : i32, message = "bqf,bkf->bqk"}> : () -> ()
    %cst_74 = arith.constant dense<0.000000e+00> : vector<2x8x16xf32>
    %261 = tpu.matmul %258, %260, %cst_74 {dimension_numbers = #tpu.dot_dimension_numbers<[2], [2], [1], [1], [0, 0, 0, 1, 1, 1], [0], [0]>} : vector<2x8x8xbf16>, vector<2x16x8xbf16>, vector<2x8x16xf32> -> vector<2x8x16xf32>
    "tpu.trace_stop"() : () -> ()
    %cst_75 = arith.constant 0.353553385 : f32
    %262 = vector.broadcast %cst_75 : f32 to vector<2x8x16xf32>
    %263 = arith.mulf %261, %262 : vector<2x8x16xf32>
    %cst_76 = arith.constant dense<0xFF800000> : vector<2x8xf32>
    %264 = vector.multi_reduction <maximumf>, %263, %cst_76 [2] : vector<2x8x16xf32> to vector<2x8xf32>
    %265 = vector.shape_cast %264 : vector<2x8xf32> to vector<2x8x1xf32>
    %266 = vector.broadcast %265 : vector<2x8x1xf32> to vector<2x8x16xf32>
    %267 = arith.subf %263, %266 : vector<2x8x16xf32>
    %268 = math.exp %267 : vector<2x8x16xf32>
    %cst_77 = arith.constant dense<0.000000e+00> : vector<2x8xf32>
    %269 = vector.multi_reduction <add>, %268, %cst_77 [2] : vector<2x8x16xf32> to vector<2x8xf32>
    %270 = vector.shape_cast %269 : vector<2x8xf32> to vector<2x8x1xf32>
    %271 = tpu.reciprocal %270 {approx = true} : vector<2x8x1xf32> -> vector<2x8x1xf32>
    %272 = vector.broadcast %271 : vector<2x8x1xf32> to vector<2x8x16xf32>
    %273 = arith.mulf %268, %272 : vector<2x8x16xf32>
    %274 = arith.truncf %273 : vector<2x8x16xf32> to vector<2x8x16xbf16>
    %275 = vector.extract_strided_slice %95 {offsets = [0, 0, 8], sizes = [2, 16, 8], strides = [1, 1, 1]} : vector<2x16x32xf32> to vector<2x16x8xf32>
    %276 = arith.truncf %275 : vector<2x16x8xf32> to vector<2x16x8xbf16>
    "tpu.trace_start"() <{level = 10 : i32, message = "bqk,bkf->bqf"}> : () -> ()
    %cst_78 = arith.constant dense<0.000000e+00> : vector<2x8x8xf32>
    %277 = tpu.matmul %274, %276, %cst_78 {dimension_numbers = #tpu.dot_dimension_numbers<[2], [1], [1], [2], [0, 0, 0, 1, 1, 2], [0], [0]>} : vector<2x8x16xbf16>, vector<2x16x8xbf16>, vector<2x8x8xf32> -> vector<2x8x8xf32>
    "tpu.trace_stop"() : () -> ()
    %278 = vector.extract_strided_slice %235 {offsets = [0, 0, 16], sizes = [2, 8, 8], strides = [1, 1, 1]} : vector<2x8x32xf32> to vector<2x8x8xf32>
    %279 = arith.truncf %278 : vector<2x8x8xf32> to vector<2x8x8xbf16>
    %280 = vector.extract_strided_slice %87 {offsets = [0, 0, 16], sizes = [2, 16, 8], strides = [1, 1, 1]} : vector<2x16x32xf32> to vector<2x16x8xf32>
    %281 = arith.truncf %280 : vector<2x16x8xf32> to vector<2x16x8xbf16>
    "tpu.trace_start"() <{level = 10 : i32, message = "bqf,bkf->bqk"}> : () -> ()
    %cst_79 = arith.constant dense<0.000000e+00> : vector<2x8x16xf32>
    %282 = tpu.matmul %279, %281, %cst_79 {dimension_numbers = #tpu.dot_dimension_numbers<[2], [2], [1], [1], [0, 0, 0, 1, 1, 1], [0], [0]>} : vector<2x8x8xbf16>, vector<2x16x8xbf16>, vector<2x8x16xf32> -> vector<2x8x16xf32>
    "tpu.trace_stop"() : () -> ()
    %cst_80 = arith.constant 0.353553385 : f32
    %283 = vector.broadcast %cst_80 : f32 to vector<2x8x16xf32>
    %284 = arith.mulf %282, %283 : vector<2x8x16xf32>
    %cst_81 = arith.constant dense<0xFF800000> : vector<2x8xf32>
    %285 = vector.multi_reduction <maximumf>, %284, %cst_81 [2] : vector<2x8x16xf32> to vector<2x8xf32>
    %286 = vector.shape_cast %285 : vector<2x8xf32> to vector<2x8x1xf32>
    %287 = vector.broadcast %286 : vector<2x8x1xf32> to vector<2x8x16xf32>
    %288 = arith.subf %284, %287 : vector<2x8x16xf32>
    %289 = math.exp %288 : vector<2x8x16xf32>
    %cst_82 = arith.constant dense<0.000000e+00> : vector<2x8xf32>
    %290 = vector.multi_reduction <add>, %289, %cst_82 [2] : vector<2x8x16xf32> to vector<2x8xf32>
    %291 = vector.shape_cast %290 : vector<2x8xf32> to vector<2x8x1xf32>
    %292 = tpu.reciprocal %291 {approx = true} : vector<2x8x1xf32> -> vector<2x8x1xf32>
    %293 = vector.broadcast %292 : vector<2x8x1xf32> to vector<2x8x16xf32>
    %294 = arith.mulf %289, %293 : vector<2x8x16xf32>
    %295 = arith.truncf %294 : vector<2x8x16xf32> to vector<2x8x16xbf16>
    %296 = vector.extract_strided_slice %95 {offsets = [0, 0, 16], sizes = [2, 16, 8], strides = [1, 1, 1]} : vector<2x16x32xf32> to vector<2x16x8xf32>
    %297 = arith.truncf %296 : vector<2x16x8xf32> to vector<2x16x8xbf16>
    "tpu.trace_start"() <{level = 10 : i32, message = "bqk,bkf->bqf"}> : () -> ()
    %cst_83 = arith.constant dense<0.000000e+00> : vector<2x8x8xf32>
    %298 = tpu.matmul %295, %297, %cst_83 {dimension_numbers = #tpu.dot_dimension_numbers<[2], [1], [1], [2], [0, 0, 0, 1, 1, 2], [0], [0]>} : vector<2x8x16xbf16>, vector<2x16x8xbf16>, vector<2x8x8xf32> -> vector<2x8x8xf32>
    "tpu.trace_stop"() : () -> ()
    %299 = vector.extract_strided_slice %235 {offsets = [0, 0, 24], sizes = [2, 8, 8], strides = [1, 1, 1]} : vector<2x8x32xf32> to vector<2x8x8xf32>
    %300 = arith.truncf %299 : vector<2x8x8xf32> to vector<2x8x8xbf16>
    %301 = vector.extract_strided_slice %87 {offsets = [0, 0, 24], sizes = [2, 16, 8], strides = [1, 1, 1]} : vector<2x16x32xf32> to vector<2x16x8xf32>
    %302 = arith.truncf %301 : vector<2x16x8xf32> to vector<2x16x8xbf16>
    "tpu.trace_start"() <{level = 10 : i32, message = "bqf,bkf->bqk"}> : () -> ()
    %cst_84 = arith.constant dense<0.000000e+00> : vector<2x8x16xf32>
    %303 = tpu.matmul %300, %302, %cst_84 {dimension_numbers = #tpu.dot_dimension_numbers<[2], [2], [1], [1], [0, 0, 0, 1, 1, 1], [0], [0]>} : vector<2x8x8xbf16>, vector<2x16x8xbf16>, vector<2x8x16xf32> -> vector<2x8x16xf32>
    "tpu.trace_stop"() : () -> ()
    %cst_85 = arith.constant 0.353553385 : f32
    %304 = vector.broadcast %cst_85 : f32 to vector<2x8x16xf32>
    %305 = arith.mulf %303, %304 : vector<2x8x16xf32>
    %cst_86 = arith.constant dense<0xFF800000> : vector<2x8xf32>
    %306 = vector.multi_reduction <maximumf>, %305, %cst_86 [2] : vector<2x8x16xf32> to vector<2x8xf32>
    %307 = vector.shape_cast %306 : vector<2x8xf32> to vector<2x8x1xf32>
    %308 = vector.broadcast %307 : vector<2x8x1xf32> to vector<2x8x16xf32>
    %309 = arith.subf %305, %308 : vector<2x8x16xf32>
    %310 = math.exp %309 : vector<2x8x16xf32>
    %cst_87 = arith.constant dense<0.000000e+00> : vector<2x8xf32>
    %311 = vector.multi_reduction <add>, %310, %cst_87 [2] : vector<2x8x16xf32> to vector<2x8xf32>
    %312 = vector.shape_cast %311 : vector<2x8xf32> to vector<2x8x1xf32>
    %313 = tpu.reciprocal %312 {approx = true} : vector<2x8x1xf32> -> vector<2x8x1xf32>
    %314 = vector.broadcast %313 : vector<2x8x1xf32> to vector<2x8x16xf32>
    %315 = arith.mulf %310, %314 : vector<2x8x16xf32>
    %316 = arith.truncf %315 : vector<2x8x16xf32> to vector<2x8x16xbf16>
    %317 = vector.extract_strided_slice %95 {offsets = [0, 0, 24], sizes = [2, 16, 8], strides = [1, 1, 1]} : vector<2x16x32xf32> to vector<2x16x8xf32>
    %318 = arith.truncf %317 : vector<2x16x8xf32> to vector<2x16x8xbf16>
    "tpu.trace_start"() <{level = 10 : i32, message = "bqk,bkf->bqf"}> : () -> ()
    %cst_88 = arith.constant dense<0.000000e+00> : vector<2x8x8xf32>
    %319 = tpu.matmul %316, %318, %cst_88 {dimension_numbers = #tpu.dot_dimension_numbers<[2], [1], [1], [2], [0, 0, 0, 1, 1, 2], [0], [0]>} : vector<2x8x16xbf16>, vector<2x16x8xbf16>, vector<2x8x8xf32> -> vector<2x8x8xf32>
    "tpu.trace_stop"() : () -> ()
    %320 = tpu.concatenate %256, %277, %298, %319 in 2 : vector<2x8x8xf32>, vector<2x8x8xf32>, vector<2x8x8xf32>, vector<2x8x8xf32> -> vector<2x8x32xf32>
    %321 = vector.shape_cast %320 : vector<2x8x32xf32> to vector<16x32xf32>
    %322 = arith.truncf %321 : vector<16x32xf32> to vector<16x32xbf16>
    %cst_89 = arith.constant dense<0.000000e+00> : vector<16x32xf32>
    %323 = tpu.matmul %322, %229, %cst_89 {dimension_numbers = #tpu.dot_dimension_numbers<[1], [0], [0], [1], [0, 0, 1, 1], [], []>} : vector<16x32xbf16>, vector<32x32xbf16>, vector<16x32xf32> -> vector<16x32xf32>
    %324 = vector.broadcast %230 : vector<1x32xf32> to vector<16x32xf32>
    %325 = arith.addf %323, %324 : vector<16x32xf32>
    %326 = arith.addf %202, %325 : vector<16x32xf32>
    %327 = vector.extract_strided_slice %7 {offsets = [6, 0], sizes = [1, 32], strides = [1, 1]} : vector<17x32xf32> to vector<1x32xf32>
    %328 = vector.extract_strided_slice %7 {offsets = [7, 0], sizes = [1, 32], strides = [1, 1]} : vector<17x32xf32> to vector<1x32xf32>
    %cst_90 = arith.constant dense<0.000000e+00> : vector<16xf32>
    %329 = vector.multi_reduction <add>, %326, %cst_90 [1] : vector<16x32xf32> to vector<16xf32>
    %330 = vector.shape_cast %329 : vector<16xf32> to vector<16x1xf32>
    %cst_91 = arith.constant 3.200000e+01 : f32
    %331 = vector.broadcast %cst_91 : f32 to vector<16x1xf32>
    %332 = arith.divf %330, %331 : vector<16x1xf32>
    %333 = vector.broadcast %332 : vector<16x1xf32> to vector<16x32xf32>
    %334 = arith.subf %326, %333 : vector<16x32xf32>
    %335 = arith.mulf %334, %334 : vector<16x32xf32>
    %cst_92 = arith.constant dense<0.000000e+00> : vector<16xf32>
    %336 = vector.multi_reduction <add>, %335, %cst_92 [1] : vector<16x32xf32> to vector<16xf32>
    %337 = vector.shape_cast %336 : vector<16xf32> to vector<16x1xf32>
    %cst_93 = arith.constant 3.200000e+01 : f32
    %338 = vector.broadcast %cst_93 : f32 to vector<16x1xf32>
    %339 = arith.divf %337, %338 : vector<16x1xf32>
    %cst_94 = arith.constant 9.99999974E-6 : f32
    %340 = vector.broadcast %cst_94 : f32 to vector<16x1xf32>
    %341 = arith.addf %339, %340 : vector<16x1xf32>
    %342 = math.rsqrt %341 : vector<16x1xf32>
    %343 = vector.broadcast %342 : vector<16x1xf32> to vector<16x32xf32>
    %344 = arith.mulf %334, %343 : vector<16x32xf32>
    %345 = vector.broadcast %327 : vector<1x32xf32> to vector<16x32xf32>
    %346 = arith.mulf %344, %345 : vector<16x32xf32>
    %347 = vector.broadcast %328 : vector<1x32xf32> to vector<16x32xf32>
    %348 = arith.addf %346, %347 : vector<16x32xf32>
    %349 = arith.truncf %348 : vector<16x32xf32> to vector<16x32xbf16>
    %cst_95 = arith.constant dense<0.000000e+00> : vector<16x128xf32>
    %350 = tpu.matmul %349, %11, %cst_95 {dimension_numbers = #tpu.dot_dimension_numbers<[1], [0], [0], [1], [0, 0, 1, 1], [], []>} : vector<16x32xbf16>, vector<32x128xbf16>, vector<16x128xf32> -> vector<16x128xf32>
    %351 = vector.broadcast %13 : vector<1x128xf32> to vector<16x128xf32>
    %352 = arith.addf %350, %351 : vector<16x128xf32>
    %cst_96 = arith.constant 5.000000e-01 : f32
    %353 = vector.broadcast %cst_96 : f32 to vector<16x128xf32>
    %354 = arith.mulf %353, %352 : vector<16x128xf32>
    %cst_97 = arith.constant 0.707106769 : f32
    %355 = vector.broadcast %cst_97 : f32 to vector<16x128xf32>
    %356 = arith.mulf %352, %355 : vector<16x128xf32>
    %cst_98 = arith.constant 0.000000e+00 : f32
    %357 = vector.broadcast %cst_98 : f32 to vector<16x128xf32>
    %358 = arith.cmpf oge, %356, %357 : vector<16x128xf32>
    %cst_99 = arith.constant 1.000000e+00 : f32
    %cst_100 = arith.constant -1.000000e+00 : f32
    %359 = vector.broadcast %cst_99 : f32 to vector<16x128xf32>
    %360 = vector.broadcast %cst_100 : f32 to vector<16x128xf32>
    %361 = arith.select %358, %359, %360 : vector<16x128xi1>, vector<16x128xf32>
    %362 = math.absf %356 : vector<16x128xf32>
    %cst_101 = arith.constant 0.327591091 : f32
    %363 = vector.broadcast %cst_101 : f32 to vector<16x128xf32>
    %364 = arith.mulf %363, %362 : vector<16x128xf32>
    %cst_102 = arith.constant 1.000000e+00 : f32
    %365 = vector.broadcast %cst_102 : f32 to vector<16x128xf32>
    %366 = arith.addf %365, %364 : vector<16x128xf32>
    %cst_103 = arith.constant 1.000000e+00 : f32
    %367 = vector.broadcast %cst_103 : f32 to vector<16x128xf32>
    %368 = arith.divf %367, %366 : vector<16x128xf32>
    %cst_104 = arith.constant 1.06140542 : f32
    %369 = vector.broadcast %cst_104 : f32 to vector<16x128xf32>
    %370 = arith.mulf %369, %368 : vector<16x128xf32>
    %cst_105 = arith.constant -1.45315206 : f32
    %371 = vector.broadcast %cst_105 : f32 to vector<16x128xf32>
    %372 = arith.addf %370, %371 : vector<16x128xf32>
    %373 = arith.mulf %372, %368 : vector<16x128xf32>
    %cst_106 = arith.constant 1.42141378 : f32
    %374 = vector.broadcast %cst_106 : f32 to vector<16x128xf32>
    %375 = arith.addf %373, %374 : vector<16x128xf32>
    %376 = arith.mulf %375, %368 : vector<16x128xf32>
    %cst_107 = arith.constant -0.284496725 : f32
    %377 = vector.broadcast %cst_107 : f32 to vector<16x128xf32>
    %378 = arith.addf %376, %377 : vector<16x128xf32>
    %379 = arith.mulf %378, %368 : vector<16x128xf32>
    %cst_108 = arith.constant 0.254829586 : f32
    %380 = vector.broadcast %cst_108 : f32 to vector<16x128xf32>
    %381 = arith.addf %379, %380 : vector<16x128xf32>
    %382 = arith.mulf %381, %368 : vector<16x128xf32>
    %cst_109 = arith.constant 0.000000e+00 : f32
    %383 = vector.broadcast %cst_109 : f32 to vector<16x128xf32>
    %384 = arith.subf %383, %362 : vector<16x128xf32>
    %385 = arith.mulf %384, %362 : vector<16x128xf32>
    %386 = math.exp %385 : vector<16x128xf32>
    %387 = arith.mulf %382, %386 : vector<16x128xf32>
    %cst_110 = arith.constant 1.000000e+00 : f32
    %388 = vector.broadcast %cst_110 : f32 to vector<16x128xf32>
    %389 = arith.subf %388, %387 : vector<16x128xf32>
    %390 = arith.mulf %361, %389 : vector<16x128xf32>
    %cst_111 = arith.constant 1.000000e+00 : f32
    %391 = vector.broadcast %cst_111 : f32 to vector<16x128xf32>
    %392 = arith.addf %391, %390 : vector<16x128xf32>
    %393 = arith.mulf %354, %392 : vector<16x128xf32>
    %394 = arith.truncf %393 : vector<16x128xf32> to vector<16x128xbf16>
    %cst_112 = arith.constant dense<0.000000e+00> : vector<16x32xf32>
    %395 = tpu.matmul %394, %15, %cst_112 {dimension_numbers = #tpu.dot_dimension_numbers<[1], [0], [0], [1], [0, 0, 1, 1], [], []>} : vector<16x128xbf16>, vector<128x32xbf16>, vector<16x32xf32> -> vector<16x32xf32>
    %396 = vector.broadcast %16 : vector<1x32xf32> to vector<16x32xf32>
    %397 = arith.addf %395, %396 : vector<16x32xf32>
    %398 = arith.addf %326, %397 : vector<16x32xf32>
    %399 = vector.shape_cast %398 : vector<16x32xf32> to vector<2x8x32xf32>
    %c0_113 = arith.constant 0 : index
    %c0_114 = arith.constant 0 : index
    %c0_115 = arith.constant 0 : index
    %400 = vector.load %arg14[%c0_113, %c0_114, %c0_115] : memref<2x8x32xf32, #tpu.memory_space<vmem>>, vector<2x8x32xf32>
    tpu.vector_store %arg14[%c0_113, %c0_114, %c0_115], %399 {strides = array<i32>} : memref<2x8x32xf32, #tpu.memory_space<vmem>>, vector<2x8x32xf32>,
    %c1_i32 = arith.constant 1 : i32
    %401 = arith.cmpi slt, %arg1, %c1_i32 : i32
    %402 = arith.extui %401 : i1 to i32
    %c0_i32_116 = arith.constant 0 : i32
    %403 = arith.cmpi ne, %402, %c0_i32_116 : i32
    scf.if %403 {
      %c0_119 = arith.constant 0 : index
      %c0_120 = arith.constant 0 : index
      %c0_121 = arith.constant 0 : index
      %407 = vector.load %arg6[%c0_119, %c0_120, %c0_121] : memref<2x8x8xf32, #tpu.memory_space<vmem>>, vector<2x8x8xf32>
      %408 = vector.extract_strided_slice %9 {offsets = [0, 0, 0], sizes = [1, 32, 32], strides = [1, 1, 1]} : vector<8x32x32xbf16> to vector<1x32x32xbf16>
      %409 = vector.shape_cast %408 : vector<1x32x32xbf16> to vector<32x32xbf16>
      %410 = vector.extract_strided_slice %7 {offsets = [8, 0], sizes = [1, 32], strides = [1, 1]} : vector<17x32xf32> to vector<1x32xf32>
      %411 = vector.extract_strided_slice %9 {offsets = [3, 0, 0], sizes = [1, 32, 32], strides = [1, 1, 1]} : vector<8x32x32xbf16> to vector<1x32x32xbf16>
      %412 = vector.shape_cast %411 : vector<1x32x32xbf16> to vector<32x32xbf16>
      %413 = vector.extract_strided_slice %7 {offsets = [11, 0], sizes = [1, 32], strides = [1, 1]} : vector<17x32xf32> to vector<1x32xf32>
      %414 = arith.truncf %63 : vector<16x32xf32> to vector<16x32xbf16>
      %cst_122 = arith.constant dense<0.000000e+00> : vector<16x32xf32>
      %415 = tpu.matmul %414, %409, %cst_122 {dimension_numbers = #tpu.dot_dimension_numbers<[1], [0], [0], [1], [0, 0, 1, 1], [], []>} : vector<16x32xbf16>, vector<32x32xbf16>, vector<16x32xf32> -> vector<16x32xf32>
      %416 = vector.broadcast %410 : vector<1x32xf32> to vector<16x32xf32>
      %417 = arith.addf %415, %416 : vector<16x32xf32>
      %418 = vector.shape_cast %417 : vector<16x32xf32> to vector<2x8x32xf32>
      %419 = vector.extract_strided_slice %418 {offsets = [0, 0, 0], sizes = [2, 8, 8], strides = [1, 1, 1]} : vector<2x8x32xf32> to vector<2x8x8xf32>
      %420 = arith.truncf %419 : vector<2x8x8xf32> to vector<2x8x8xbf16>
      %421 = vector.extract_strided_slice %71 {offsets = [0, 0, 0], sizes = [2, 8, 8], strides = [1, 1, 1]} : vector<2x8x32xf32> to vector<2x8x8xf32>
      %422 = arith.truncf %421 : vector<2x8x8xf32> to vector<2x8x8xbf16>
      "tpu.trace_start"() <{level = 10 : i32, message = "bqf,bkf->bqk"}> : () -> ()
      %cst_123 = arith.constant dense<0.000000e+00> : vector<2x8x8xf32>
      %423 = tpu.matmul %420, %422, %cst_123 {dimension_numbers = #tpu.dot_dimension_numbers<[2], [2], [1], [1], [0, 0, 0, 1, 1, 1], [0], [0]>} : vector<2x8x8xbf16>, vector<2x8x8xbf16>, vector<2x8x8xf32> -> vector<2x8x8xf32>
      "tpu.trace_stop"() : () -> ()
      %cst_124 = arith.constant 0.353553385 : f32
      %424 = vector.broadcast %cst_124 : f32 to vector<2x8x8xf32>
      %425 = arith.mulf %423, %424 : vector<2x8x8xf32>
      %426 = arith.addf %425, %407 : vector<2x8x8xf32>
      %cst_125 = arith.constant dense<0xFF800000> : vector<2x8xf32>
      %427 = vector.multi_reduction <maximumf>, %426, %cst_125 [2] : vector<2x8x8xf32> to vector<2x8xf32>
      %428 = vector.shape_cast %427 : vector<2x8xf32> to vector<2x8x1xf32>
      %429 = vector.broadcast %428 : vector<2x8x1xf32> to vector<2x8x8xf32>
      %430 = arith.subf %426, %429 : vector<2x8x8xf32>
      %431 = math.exp %430 : vector<2x8x8xf32>
      %cst_126 = arith.constant dense<0.000000e+00> : vector<2x8xf32>
      %432 = vector.multi_reduction <add>, %431, %cst_126 [2] : vector<2x8x8xf32> to vector<2x8xf32>
      %433 = vector.shape_cast %432 : vector<2x8xf32> to vector<2x8x1xf32>
      %434 = tpu.reciprocal %433 {approx = true} : vector<2x8x1xf32> -> vector<2x8x1xf32>
      %435 = vector.broadcast %434 : vector<2x8x1xf32> to vector<2x8x8xf32>
      %436 = arith.mulf %431, %435 : vector<2x8x8xf32>
      %437 = arith.truncf %436 : vector<2x8x8xf32> to vector<2x8x8xbf16>
      %438 = vector.extract_strided_slice %79 {offsets = [0, 0, 0], sizes = [2, 8, 8], strides = [1, 1, 1]} : vector<2x8x32xf32> to vector<2x8x8xf32>
      %439 = arith.truncf %438 : vector<2x8x8xf32> to vector<2x8x8xbf16>
      "tpu.trace_start"() <{level = 10 : i32, message = "bqk,bkf->bqf"}> : () -> ()
      %cst_127 = arith.constant dense<0.000000e+00> : vector<2x8x8xf32>
      %440 = tpu.matmul %437, %439, %cst_127 {dimension_numbers = #tpu.dot_dimension_numbers<[2], [1], [1], [2], [0, 0, 0, 1, 1, 2], [0], [0]>} : vector<2x8x8xbf16>, vector<2x8x8xbf16>, vector<2x8x8xf32> -> vector<2x8x8xf32>
      "tpu.trace_stop"() : () -> ()
      %441 = vector.extract_strided_slice %418 {offsets = [0, 0, 8], sizes = [2, 8, 8], strides = [1, 1, 1]} : vector<2x8x32xf32> to vector<2x8x8xf32>
      %442 = arith.truncf %441 : vector<2x8x8xf32> to vector<2x8x8xbf16>
      %443 = vector.extract_strided_slice %71 {offsets = [0, 0, 8], sizes = [2, 8, 8], strides = [1, 1, 1]} : vector<2x8x32xf32> to vector<2x8x8xf32>
      %444 = arith.truncf %443 : vector<2x8x8xf32> to vector<2x8x8xbf16>
      "tpu.trace_start"() <{level = 10 : i32, message = "bqf,bkf->bqk"}> : () -> ()
      %cst_128 = arith.constant dense<0.000000e+00> : vector<2x8x8xf32>
      %445 = tpu.matmul %442, %444, %cst_128 {dimension_numbers = #tpu.dot_dimension_numbers<[2], [2], [1], [1], [0, 0, 0, 1, 1, 1], [0], [0]>} : vector<2x8x8xbf16>, vector<2x8x8xbf16>, vector<2x8x8xf32> -> vector<2x8x8xf32>
      "tpu.trace_stop"() : () -> ()
      %cst_129 = arith.constant 0.353553385 : f32
      %446 = vector.broadcast %cst_129 : f32 to vector<2x8x8xf32>
      %447 = arith.mulf %445, %446 : vector<2x8x8xf32>
      %448 = arith.addf %447, %407 : vector<2x8x8xf32>
      %cst_130 = arith.constant dense<0xFF800000> : vector<2x8xf32>
      %449 = vector.multi_reduction <maximumf>, %448, %cst_130 [2] : vector<2x8x8xf32> to vector<2x8xf32>
      %450 = vector.shape_cast %449 : vector<2x8xf32> to vector<2x8x1xf32>
      %451 = vector.broadcast %450 : vector<2x8x1xf32> to vector<2x8x8xf32>
      %452 = arith.subf %448, %451 : vector<2x8x8xf32>
      %453 = math.exp %452 : vector<2x8x8xf32>
      %cst_131 = arith.constant dense<0.000000e+00> : vector<2x8xf32>
      %454 = vector.multi_reduction <add>, %453, %cst_131 [2] : vector<2x8x8xf32> to vector<2x8xf32>
      %455 = vector.shape_cast %454 : vector<2x8xf32> to vector<2x8x1xf32>
      %456 = tpu.reciprocal %455 {approx = true} : vector<2x8x1xf32> -> vector<2x8x1xf32>
      %457 = vector.broadcast %456 : vector<2x8x1xf32> to vector<2x8x8xf32>
      %458 = arith.mulf %453, %457 : vector<2x8x8xf32>
      %459 = arith.truncf %458 : vector<2x8x8xf32> to vector<2x8x8xbf16>
      %460 = vector.extract_strided_slice %79 {offsets = [0, 0, 8], sizes = [2, 8, 8], strides = [1, 1, 1]} : vector<2x8x32xf32> to vector<2x8x8xf32>
      %461 = arith.truncf %460 : vector<2x8x8xf32> to vector<2x8x8xbf16>
      "tpu.trace_start"() <{level = 10 : i32, message = "bqk,bkf->bqf"}> : () -> ()
      %cst_132 = arith.constant dense<0.000000e+00> : vector<2x8x8xf32>
      %462 = tpu.matmul %459, %461, %cst_132 {dimension_numbers = #tpu.dot_dimension_numbers<[2], [1], [1], [2], [0, 0, 0, 1, 1, 2], [0], [0]>} : vector<2x8x8xbf16>, vector<2x8x8xbf16>, vector<2x8x8xf32> -> vector<2x8x8xf32>
      "tpu.trace_stop"() : () -> ()
      %463 = vector.extract_strided_slice %418 {offsets = [0, 0, 16], sizes = [2, 8, 8], strides = [1, 1, 1]} : vector<2x8x32xf32> to vector<2x8x8xf32>
      %464 = arith.truncf %463 : vector<2x8x8xf32> to vector<2x8x8xbf16>
      %465 = vector.extract_strided_slice %71 {offsets = [0, 0, 16], sizes = [2, 8, 8], strides = [1, 1, 1]} : vector<2x8x32xf32> to vector<2x8x8xf32>
      %466 = arith.truncf %465 : vector<2x8x8xf32> to vector<2x8x8xbf16>
      "tpu.trace_start"() <{level = 10 : i32, message = "bqf,bkf->bqk"}> : () -> ()
      %cst_133 = arith.constant dense<0.000000e+00> : vector<2x8x8xf32>
      %467 = tpu.matmul %464, %466, %cst_133 {dimension_numbers = #tpu.dot_dimension_numbers<[2], [2], [1], [1], [0, 0, 0, 1, 1, 1], [0], [0]>} : vector<2x8x8xbf16>, vector<2x8x8xbf16>, vector<2x8x8xf32> -> vector<2x8x8xf32>
      "tpu.trace_stop"() : () -> ()
      %cst_134 = arith.constant 0.353553385 : f32
      %468 = vector.broadcast %cst_134 : f32 to vector<2x8x8xf32>
      %469 = arith.mulf %467, %468 : vector<2x8x8xf32>
      %470 = arith.addf %469, %407 : vector<2x8x8xf32>
      %cst_135 = arith.constant dense<0xFF800000> : vector<2x8xf32>
      %471 = vector.multi_reduction <maximumf>, %470, %cst_135 [2] : vector<2x8x8xf32> to vector<2x8xf32>
      %472 = vector.shape_cast %471 : vector<2x8xf32> to vector<2x8x1xf32>
      %473 = vector.broadcast %472 : vector<2x8x1xf32> to vector<2x8x8xf32>
      %474 = arith.subf %470, %473 : vector<2x8x8xf32>
      %475 = math.exp %474 : vector<2x8x8xf32>
      %cst_136 = arith.constant dense<0.000000e+00> : vector<2x8xf32>
      %476 = vector.multi_reduction <add>, %475, %cst_136 [2] : vector<2x8x8xf32> to vector<2x8xf32>
      %477 = vector.shape_cast %476 : vector<2x8xf32> to vector<2x8x1xf32>
      %478 = tpu.reciprocal %477 {approx = true} : vector<2x8x1xf32> -> vector<2x8x1xf32>
      %479 = vector.broadcast %478 : vector<2x8x1xf32> to vector<2x8x8xf32>
      %480 = arith.mulf %475, %479 : vector<2x8x8xf32>
      %481 = arith.truncf %480 : vector<2x8x8xf32> to vector<2x8x8xbf16>
      %482 = vector.extract_strided_slice %79 {offsets = [0, 0, 16], sizes = [2, 8, 8], strides = [1, 1, 1]} : vector<2x8x32xf32> to vector<2x8x8xf32>
      %483 = arith.truncf %482 : vector<2x8x8xf32> to vector<2x8x8xbf16>
      "tpu.trace_start"() <{level = 10 : i32, message = "bqk,bkf->bqf"}> : () -> ()
      %cst_137 = arith.constant dense<0.000000e+00> : vector<2x8x8xf32>
      %484 = tpu.matmul %481, %483, %cst_137 {dimension_numbers = #tpu.dot_dimension_numbers<[2], [1], [1], [2], [0, 0, 0, 1, 1, 2], [0], [0]>} : vector<2x8x8xbf16>, vector<2x8x8xbf16>, vector<2x8x8xf32> -> vector<2x8x8xf32>
      "tpu.trace_stop"() : () -> ()
      %485 = vector.extract_strided_slice %418 {offsets = [0, 0, 24], sizes = [2, 8, 8], strides = [1, 1, 1]} : vector<2x8x32xf32> to vector<2x8x8xf32>
      %486 = arith.truncf %485 : vector<2x8x8xf32> to vector<2x8x8xbf16>
      %487 = vector.extract_strided_slice %71 {offsets = [0, 0, 24], sizes = [2, 8, 8], strides = [1, 1, 1]} : vector<2x8x32xf32> to vector<2x8x8xf32>
      %488 = arith.truncf %487 : vector<2x8x8xf32> to vector<2x8x8xbf16>
      "tpu.trace_start"() <{level = 10 : i32, message = "bqf,bkf->bqk"}> : () -> ()
      %cst_138 = arith.constant dense<0.000000e+00> : vector<2x8x8xf32>
      %489 = tpu.matmul %486, %488, %cst_138 {dimension_numbers = #tpu.dot_dimension_numbers<[2], [2], [1], [1], [0, 0, 0, 1, 1, 1], [0], [0]>} : vector<2x8x8xbf16>, vector<2x8x8xbf16>, vector<2x8x8xf32> -> vector<2x8x8xf32>
      "tpu.trace_stop"() : () -> ()
      %cst_139 = arith.constant 0.353553385 : f32
      %490 = vector.broadcast %cst_139 : f32 to vector<2x8x8xf32>
      %491 = arith.mulf %489, %490 : vector<2x8x8xf32>
      %492 = arith.addf %491, %407 : vector<2x8x8xf32>
      %cst_140 = arith.constant dense<0xFF800000> : vector<2x8xf32>
      %493 = vector.multi_reduction <maximumf>, %492, %cst_140 [2] : vector<2x8x8xf32> to vector<2x8xf32>
      %494 = vector.shape_cast %493 : vector<2x8xf32> to vector<2x8x1xf32>
      %495 = vector.broadcast %494 : vector<2x8x1xf32> to vector<2x8x8xf32>
      %496 = arith.subf %492, %495 : vector<2x8x8xf32>
      %497 = math.exp %496 : vector<2x8x8xf32>
      %cst_141 = arith.constant dense<0.000000e+00> : vector<2x8xf32>
      %498 = vector.multi_reduction <add>, %497, %cst_141 [2] : vector<2x8x8xf32> to vector<2x8xf32>
      %499 = vector.shape_cast %498 : vector<2x8xf32> to vector<2x8x1xf32>
      %500 = tpu.reciprocal %499 {approx = true} : vector<2x8x1xf32> -> vector<2x8x1xf32>
      %501 = vector.broadcast %500 : vector<2x8x1xf32> to vector<2x8x8xf32>
      %502 = arith.mulf %497, %501 : vector<2x8x8xf32>
      %503 = arith.truncf %502 : vector<2x8x8xf32> to vector<2x8x8xbf16>
      %504 = vector.extract_strided_slice %79 {offsets = [0, 0, 24], sizes = [2, 8, 8], strides = [1, 1, 1]} : vector<2x8x32xf32> to vector<2x8x8xf32>
      %505 = arith.truncf %504 : vector<2x8x8xf32> to vector<2x8x8xbf16>
      "tpu.trace_start"() <{level = 10 : i32, message = "bqk,bkf->bqf"}> : () -> ()
      %cst_142 = arith.constant dense<0.000000e+00> : vector<2x8x8xf32>
      %506 = tpu.matmul %503, %505, %cst_142 {dimension_numbers = #tpu.dot_dimension_numbers<[2], [1], [1], [2], [0, 0, 0, 1, 1, 2], [0], [0]>} : vector<2x8x8xbf16>, vector<2x8x8xbf16>, vector<2x8x8xf32> -> vector<2x8x8xf32>
      "tpu.trace_stop"() : () -> ()
      %507 = tpu.concatenate %440, %462, %484, %506 in 2 : vector<2x8x8xf32>, vector<2x8x8xf32>, vector<2x8x8xf32>, vector<2x8x8xf32> -> vector<2x8x32xf32>
      %508 = vector.shape_cast %507 : vector<2x8x32xf32> to vector<16x32xf32>
      %509 = arith.truncf %508 : vector<16x32xf32> to vector<16x32xbf16>
      %cst_143 = arith.constant dense<0.000000e+00> : vector<16x32xf32>
      %510 = tpu.matmul %509, %412, %cst_143 {dimension_numbers = #tpu.dot_dimension_numbers<[1], [0], [0], [1], [0, 0, 1, 1], [], []>} : vector<16x32xbf16>, vector<32x32xbf16>, vector<16x32xf32> -> vector<16x32xf32>
      %511 = vector.broadcast %413 : vector<1x32xf32> to vector<16x32xf32>
      %512 = arith.addf %510, %511 : vector<16x32xf32>
      %513 = arith.addf %18, %512 : vector<16x32xf32>
      %514 = vector.extract_strided_slice %7 {offsets = [4, 0], sizes = [1, 32], strides = [1, 1]} : vector<17x32xf32> to vector<1x32xf32>
      %515 = vector.extract_strided_slice %7 {offsets = [5, 0], sizes = [1, 32], strides = [1, 1]} : vector<17x32xf32> to vector<1x32xf32>
      %cst_144 = arith.constant dense<0.000000e+00> : vector<16xf32>
      %516 = vector.multi_reduction <add>, %513, %cst_144 [1] : vector<16x32xf32> to vector<16xf32>
      %517 = vector.shape_cast %516 : vector<16xf32> to vector<16x1xf32>
      %cst_145 = arith.constant 3.200000e+01 : f32
      %518 = vector.broadcast %cst_145 : f32 to vector<16x1xf32>
      %519 = arith.divf %517, %518 : vector<16x1xf32>
      %520 = vector.broadcast %519 : vector<16x1xf32> to vector<16x32xf32>
      %521 = arith.subf %513, %520 : vector<16x32xf32>
      %522 = arith.mulf %521, %521 : vector<16x32xf32>
      %cst_146 = arith.constant dense<0.000000e+00> : vector<16xf32>
      %523 = vector.multi_reduction <add>, %522, %cst_146 [1] : vector<16x32xf32> to vector<16xf32>
      %524 = vector.shape_cast %523 : vector<16xf32> to vector<16x1xf32>
      %cst_147 = arith.constant 3.200000e+01 : f32
      %525 = vector.broadcast %cst_147 : f32 to vector<16x1xf32>
      %526 = arith.divf %524, %525 : vector<16x1xf32>
      %cst_148 = arith.constant 9.99999974E-6 : f32
      %527 = vector.broadcast %cst_148 : f32 to vector<16x1xf32>
      %528 = arith.addf %526, %527 : vector<16x1xf32>
      %529 = math.rsqrt %528 : vector<16x1xf32>
      %530 = vector.broadcast %529 : vector<16x1xf32> to vector<16x32xf32>
      %531 = arith.mulf %521, %530 : vector<16x32xf32>
      %532 = vector.broadcast %514 : vector<1x32xf32> to vector<16x32xf32>
      %533 = arith.mulf %531, %532 : vector<16x32xf32>
      %534 = vector.broadcast %515 : vector<1x32xf32> to vector<16x32xf32>
      %535 = arith.addf %533, %534 : vector<16x32xf32>
      %536 = vector.extract_strided_slice %9 {offsets = [4, 0, 0], sizes = [1, 32, 32], strides = [1, 1, 1]} : vector<8x32x32xbf16> to vector<1x32x32xbf16>
      %537 = vector.shape_cast %536 : vector<1x32x32xbf16> to vector<32x32xbf16>
      %538 = vector.extract_strided_slice %7 {offsets = [12, 0], sizes = [1, 32], strides = [1, 1]} : vector<17x32xf32> to vector<1x32xf32>
      %539 = vector.extract_strided_slice %9 {offsets = [7, 0, 0], sizes = [1, 32, 32], strides = [1, 1, 1]} : vector<8x32x32xbf16> to vector<1x32x32xbf16>
      %540 = vector.shape_cast %539 : vector<1x32x32xbf16> to vector<32x32xbf16>
      %541 = vector.extract_strided_slice %7 {offsets = [15, 0], sizes = [1, 32], strides = [1, 1]} : vector<17x32xf32> to vector<1x32xf32>
      %542 = arith.truncf %535 : vector<16x32xf32> to vector<16x32xbf16>
      %cst_149 = arith.constant dense<0.000000e+00> : vector<16x32xf32>
      %543 = tpu.matmul %542, %537, %cst_149 {dimension_numbers = #tpu.dot_dimension_numbers<[1], [0], [0], [1], [0, 0, 1, 1], [], []>} : vector<16x32xbf16>, vector<32x32xbf16>, vector<16x32xf32> -> vector<16x32xf32>
      %544 = vector.broadcast %538 : vector<1x32xf32> to vector<16x32xf32>
      %545 = arith.addf %543, %544 : vector<16x32xf32>
      %546 = vector.shape_cast %545 : vector<16x32xf32> to vector<2x8x32xf32>
      %547 = vector.extract_strided_slice %546 {offsets = [0, 0, 0], sizes = [2, 8, 8], strides = [1, 1, 1]} : vector<2x8x32xf32> to vector<2x8x8xf32>
      %548 = arith.truncf %547 : vector<2x8x8xf32> to vector<2x8x8xbf16>
      %549 = vector.extract_strided_slice %87 {offsets = [0, 0, 0], sizes = [2, 16, 8], strides = [1, 1, 1]} : vector<2x16x32xf32> to vector<2x16x8xf32>
      %550 = arith.truncf %549 : vector<2x16x8xf32> to vector<2x16x8xbf16>
      "tpu.trace_start"() <{level = 10 : i32, message = "bqf,bkf->bqk"}> : () -> ()
      %cst_150 = arith.constant dense<0.000000e+00> : vector<2x8x16xf32>
      %551 = tpu.matmul %548, %550, %cst_150 {dimension_numbers = #tpu.dot_dimension_numbers<[2], [2], [1], [1], [0, 0, 0, 1, 1, 1], [0], [0]>} : vector<2x8x8xbf16>, vector<2x16x8xbf16>, vector<2x8x16xf32> -> vector<2x8x16xf32>
      "tpu.trace_stop"() : () -> ()
      %cst_151 = arith.constant 0.353553385 : f32
      %552 = vector.broadcast %cst_151 : f32 to vector<2x8x16xf32>
      %553 = arith.mulf %551, %552 : vector<2x8x16xf32>
      %cst_152 = arith.constant dense<0xFF800000> : vector<2x8xf32>
      %554 = vector.multi_reduction <maximumf>, %553, %cst_152 [2] : vector<2x8x16xf32> to vector<2x8xf32>
      %555 = vector.shape_cast %554 : vector<2x8xf32> to vector<2x8x1xf32>
      %556 = vector.broadcast %555 : vector<2x8x1xf32> to vector<2x8x16xf32>
      %557 = arith.subf %553, %556 : vector<2x8x16xf32>
      %558 = math.exp %557 : vector<2x8x16xf32>
      %cst_153 = arith.constant dense<0.000000e+00> : vector<2x8xf32>
      %559 = vector.multi_reduction <add>, %558, %cst_153 [2] : vector<2x8x16xf32> to vector<2x8xf32>
      %560 = vector.shape_cast %559 : vector<2x8xf32> to vector<2x8x1xf32>
      %561 = tpu.reciprocal %560 {approx = true} : vector<2x8x1xf32> -> vector<2x8x1xf32>
      %562 = vector.broadcast %561 : vector<2x8x1xf32> to vector<2x8x16xf32>
      %563 = arith.mulf %558, %562 : vector<2x8x16xf32>
      %564 = arith.truncf %563 : vector<2x8x16xf32> to vector<2x8x16xbf16>
      %565 = vector.extract_strided_slice %95 {offsets = [0, 0, 0], sizes = [2, 16, 8], strides = [1, 1, 1]} : vector<2x16x32xf32> to vector<2x16x8xf32>
      %566 = arith.truncf %565 : vector<2x16x8xf32> to vector<2x16x8xbf16>
      "tpu.trace_start"() <{level = 10 : i32, message = "bqk,bkf->bqf"}> : () -> ()
      %cst_154 = arith.constant dense<0.000000e+00> : vector<2x8x8xf32>
      %567 = tpu.matmul %564, %566, %cst_154 {dimension_numbers = #tpu.dot_dimension_numbers<[2], [1], [1], [2], [0, 0, 0, 1, 1, 2], [0], [0]>} : vector<2x8x16xbf16>, vector<2x16x8xbf16>, vector<2x8x8xf32> -> vector<2x8x8xf32>
      "tpu.trace_stop"() : () -> ()
      %568 = vector.extract_strided_slice %546 {offsets = [0, 0, 8], sizes = [2, 8, 8], strides = [1, 1, 1]} : vector<2x8x32xf32> to vector<2x8x8xf32>
      %569 = arith.truncf %568 : vector<2x8x8xf32> to vector<2x8x8xbf16>
      %570 = vector.extract_strided_slice %87 {offsets = [0, 0, 8], sizes = [2, 16, 8], strides = [1, 1, 1]} : vector<2x16x32xf32> to vector<2x16x8xf32>
      %571 = arith.truncf %570 : vector<2x16x8xf32> to vector<2x16x8xbf16>
      "tpu.trace_start"() <{level = 10 : i32, message = "bqf,bkf->bqk"}> : () -> ()
      %cst_155 = arith.constant dense<0.000000e+00> : vector<2x8x16xf32>
      %572 = tpu.matmul %569, %571, %cst_155 {dimension_numbers = #tpu.dot_dimension_numbers<[2], [2], [1], [1], [0, 0, 0, 1, 1, 1], [0], [0]>} : vector<2x8x8xbf16>, vector<2x16x8xbf16>, vector<2x8x16xf32> -> vector<2x8x16xf32>
      "tpu.trace_stop"() : () -> ()
      %cst_156 = arith.constant 0.353553385 : f32
      %573 = vector.broadcast %cst_156 : f32 to vector<2x8x16xf32>
      %574 = arith.mulf %572, %573 : vector<2x8x16xf32>
      %cst_157 = arith.constant dense<0xFF800000> : vector<2x8xf32>
      %575 = vector.multi_reduction <maximumf>, %574, %cst_157 [2] : vector<2x8x16xf32> to vector<2x8xf32>
      %576 = vector.shape_cast %575 : vector<2x8xf32> to vector<2x8x1xf32>
      %577 = vector.broadcast %576 : vector<2x8x1xf32> to vector<2x8x16xf32>
      %578 = arith.subf %574, %577 : vector<2x8x16xf32>
      %579 = math.exp %578 : vector<2x8x16xf32>
      %cst_158 = arith.constant dense<0.000000e+00> : vector<2x8xf32>
      %580 = vector.multi_reduction <add>, %579, %cst_158 [2] : vector<2x8x16xf32> to vector<2x8xf32>
      %581 = vector.shape_cast %580 : vector<2x8xf32> to vector<2x8x1xf32>
      %582 = tpu.reciprocal %581 {approx = true} : vector<2x8x1xf32> -> vector<2x8x1xf32>
      %583 = vector.broadcast %582 : vector<2x8x1xf32> to vector<2x8x16xf32>
      %584 = arith.mulf %579, %583 : vector<2x8x16xf32>
      %585 = arith.truncf %584 : vector<2x8x16xf32> to vector<2x8x16xbf16>
      %586 = vector.extract_strided_slice %95 {offsets = [0, 0, 8], sizes = [2, 16, 8], strides = [1, 1, 1]} : vector<2x16x32xf32> to vector<2x16x8xf32>
      %587 = arith.truncf %586 : vector<2x16x8xf32> to vector<2x16x8xbf16>
      "tpu.trace_start"() <{level = 10 : i32, message = "bqk,bkf->bqf"}> : () -> ()
      %cst_159 = arith.constant dense<0.000000e+00> : vector<2x8x8xf32>
      %588 = tpu.matmul %585, %587, %cst_159 {dimension_numbers = #tpu.dot_dimension_numbers<[2], [1], [1], [2], [0, 0, 0, 1, 1, 2], [0], [0]>} : vector<2x8x16xbf16>, vector<2x16x8xbf16>, vector<2x8x8xf32> -> vector<2x8x8xf32>
      "tpu.trace_stop"() : () -> ()
      %589 = vector.extract_strided_slice %546 {offsets = [0, 0, 16], sizes = [2, 8, 8], strides = [1, 1, 1]} : vector<2x8x32xf32> to vector<2x8x8xf32>
      %590 = arith.truncf %589 : vector<2x8x8xf32> to vector<2x8x8xbf16>
      %591 = vector.extract_strided_slice %87 {offsets = [0, 0, 16], sizes = [2, 16, 8], strides = [1, 1, 1]} : vector<2x16x32xf32> to vector<2x16x8xf32>
      %592 = arith.truncf %591 : vector<2x16x8xf32> to vector<2x16x8xbf16>
      "tpu.trace_start"() <{level = 10 : i32, message = "bqf,bkf->bqk"}> : () -> ()
      %cst_160 = arith.constant dense<0.000000e+00> : vector<2x8x16xf32>
      %593 = tpu.matmul %590, %592, %cst_160 {dimension_numbers = #tpu.dot_dimension_numbers<[2], [2], [1], [1], [0, 0, 0, 1, 1, 1], [0], [0]>} : vector<2x8x8xbf16>, vector<2x16x8xbf16>, vector<2x8x16xf32> -> vector<2x8x16xf32>
      "tpu.trace_stop"() : () -> ()
      %cst_161 = arith.constant 0.353553385 : f32
      %594 = vector.broadcast %cst_161 : f32 to vector<2x8x16xf32>
      %595 = arith.mulf %593, %594 : vector<2x8x16xf32>
      %cst_162 = arith.constant dense<0xFF800000> : vector<2x8xf32>
      %596 = vector.multi_reduction <maximumf>, %595, %cst_162 [2] : vector<2x8x16xf32> to vector<2x8xf32>
      %597 = vector.shape_cast %596 : vector<2x8xf32> to vector<2x8x1xf32>
      %598 = vector.broadcast %597 : vector<2x8x1xf32> to vector<2x8x16xf32>
      %599 = arith.subf %595, %598 : vector<2x8x16xf32>
      %600 = math.exp %599 : vector<2x8x16xf32>
      %cst_163 = arith.constant dense<0.000000e+00> : vector<2x8xf32>
      %601 = vector.multi_reduction <add>, %600, %cst_163 [2] : vector<2x8x16xf32> to vector<2x8xf32>
      %602 = vector.shape_cast %601 : vector<2x8xf32> to vector<2x8x1xf32>
      %603 = tpu.reciprocal %602 {approx = true} : vector<2x8x1xf32> -> vector<2x8x1xf32>
      %604 = vector.broadcast %603 : vector<2x8x1xf32> to vector<2x8x16xf32>
      %605 = arith.mulf %600, %604 : vector<2x8x16xf32>
      %606 = arith.truncf %605 : vector<2x8x16xf32> to vector<2x8x16xbf16>
      %607 = vector.extract_strided_slice %95 {offsets = [0, 0, 16], sizes = [2, 16, 8], strides = [1, 1, 1]} : vector<2x16x32xf32> to vector<2x16x8xf32>
      %608 = arith.truncf %607 : vector<2x16x8xf32> to vector<2x16x8xbf16>
      "tpu.trace_start"() <{level = 10 : i32, message = "bqk,bkf->bqf"}> : () -> ()
      %cst_164 = arith.constant dense<0.000000e+00> : vector<2x8x8xf32>
      %609 = tpu.matmul %606, %608, %cst_164 {dimension_numbers = #tpu.dot_dimension_numbers<[2], [1], [1], [2], [0, 0, 0, 1, 1, 2], [0], [0]>} : vector<2x8x16xbf16>, vector<2x16x8xbf16>, vector<2x8x8xf32> -> vector<2x8x8xf32>
      "tpu.trace_stop"() : () -> ()
      %610 = vector.extract_strided_slice %546 {offsets = [0, 0, 24], sizes = [2, 8, 8], strides = [1, 1, 1]} : vector<2x8x32xf32> to vector<2x8x8xf32>
      %611 = arith.truncf %610 : vector<2x8x8xf32> to vector<2x8x8xbf16>
      %612 = vector.extract_strided_slice %87 {offsets = [0, 0, 24], sizes = [2, 16, 8], strides = [1, 1, 1]} : vector<2x16x32xf32> to vector<2x16x8xf32>
      %613 = arith.truncf %612 : vector<2x16x8xf32> to vector<2x16x8xbf16>
      "tpu.trace_start"() <{level = 10 : i32, message = "bqf,bkf->bqk"}> : () -> ()
      %cst_165 = arith.constant dense<0.000000e+00> : vector<2x8x16xf32>
      %614 = tpu.matmul %611, %613, %cst_165 {dimension_numbers = #tpu.dot_dimension_numbers<[2], [2], [1], [1], [0, 0, 0, 1, 1, 1], [0], [0]>} : vector<2x8x8xbf16>, vector<2x16x8xbf16>, vector<2x8x16xf32> -> vector<2x8x16xf32>
      "tpu.trace_stop"() : () -> ()
      %cst_166 = arith.constant 0.353553385 : f32
      %615 = vector.broadcast %cst_166 : f32 to vector<2x8x16xf32>
      %616 = arith.mulf %614, %615 : vector<2x8x16xf32>
      %cst_167 = arith.constant dense<0xFF800000> : vector<2x8xf32>
      %617 = vector.multi_reduction <maximumf>, %616, %cst_167 [2] : vector<2x8x16xf32> to vector<2x8xf32>
      %618 = vector.shape_cast %617 : vector<2x8xf32> to vector<2x8x1xf32>
      %619 = vector.broadcast %618 : vector<2x8x1xf32> to vector<2x8x16xf32>
      %620 = arith.subf %616, %619 : vector<2x8x16xf32>
      %621 = math.exp %620 : vector<2x8x16xf32>
      %cst_168 = arith.constant dense<0.000000e+00> : vector<2x8xf32>
      %622 = vector.multi_reduction <add>, %621, %cst_168 [2] : vector<2x8x16xf32> to vector<2x8xf32>
      %623 = vector.shape_cast %622 : vector<2x8xf32> to vector<2x8x1xf32>
      %624 = tpu.reciprocal %623 {approx = true} : vector<2x8x1xf32> -> vector<2x8x1xf32>
      %625 = vector.broadcast %624 : vector<2x8x1xf32> to vector<2x8x16xf32>
      %626 = arith.mulf %621, %625 : vector<2x8x16xf32>
      %627 = arith.truncf %626 : vector<2x8x16xf32> to vector<2x8x16xbf16>
      %628 = vector.extract_strided_slice %95 {offsets = [0, 0, 24], sizes = [2, 16, 8], strides = [1, 1, 1]} : vector<2x16x32xf32> to vector<2x16x8xf32>
      %629 = arith.truncf %628 : vector<2x16x8xf32> to vector<2x16x8xbf16>
      "tpu.trace_start"() <{level = 10 : i32, message = "bqk,bkf->bqf"}> : () -> ()
      %cst_169 = arith.constant dense<0.000000e+00> : vector<2x8x8xf32>
      %630 = tpu.matmul %627, %629, %cst_169 {dimension_numbers = #tpu.dot_dimension_numbers<[2], [1], [1], [2], [0, 0, 0, 1, 1, 2], [0], [0]>} : vector<2x8x16xbf16>, vector<2x16x8xbf16>, vector<2x8x8xf32> -> vector<2x8x8xf32>
      "tpu.trace_stop"() : () -> ()
      %631 = tpu.concatenate %567, %588, %609, %630 in 2 : vector<2x8x8xf32>, vector<2x8x8xf32>, vector<2x8x8xf32>, vector<2x8x8xf32> -> vector<2x8x32xf32>
      %632 = vector.shape_cast %631 : vector<2x8x32xf32> to vector<16x32xf32>
      %633 = arith.truncf %632 : vector<16x32xf32> to vector<16x32xbf16>
      %cst_170 = arith.constant dense<0.000000e+00> : vector<16x32xf32>
      %634 = tpu.matmul %633, %540, %cst_170 {dimension_numbers = #tpu.dot_dimension_numbers<[1], [0], [0], [1], [0, 0, 1, 1], [], []>} : vector<16x32xbf16>, vector<32x32xbf16>, vector<16x32xf32> -> vector<16x32xf32>
      %635 = vector.broadcast %541 : vector<1x32xf32> to vector<16x32xf32>
      %636 = arith.addf %634, %635 : vector<16x32xf32>
      %637 = arith.addf %513, %636 : vector<16x32xf32>
      %638 = vector.extract_strided_slice %7 {offsets = [6, 0], sizes = [1, 32], strides = [1, 1]} : vector<17x32xf32> to vector<1x32xf32>
      %639 = vector.extract_strided_slice %7 {offsets = [7, 0], sizes = [1, 32], strides = [1, 1]} : vector<17x32xf32> to vector<1x32xf32>
      %cst_171 = arith.constant dense<0.000000e+00> : vector<16xf32>
      %640 = vector.multi_reduction <add>, %637, %cst_171 [1] : vector<16x32xf32> to vector<16xf32>
      %641 = vector.shape_cast %640 : vector<16xf32> to vector<16x1xf32>
      %cst_172 = arith.constant 3.200000e+01 : f32
      %642 = vector.broadcast %cst_172 : f32 to vector<16x1xf32>
      %643 = arith.divf %641, %642 : vector<16x1xf32>
      %644 = vector.broadcast %643 : vector<16x1xf32> to vector<16x32xf32>
      %645 = arith.subf %637, %644 : vector<16x32xf32>
      %646 = arith.mulf %645, %645 : vector<16x32xf32>
      %cst_173 = arith.constant dense<0.000000e+00> : vector<16xf32>
      %647 = vector.multi_reduction <add>, %646, %cst_173 [1] : vector<16x32xf32> to vector<16xf32>
      %648 = vector.shape_cast %647 : vector<16xf32> to vector<16x1xf32>
      %cst_174 = arith.constant 3.200000e+01 : f32
      %649 = vector.broadcast %cst_174 : f32 to vector<16x1xf32>
      %650 = arith.divf %648, %649 : vector<16x1xf32>
      %cst_175 = arith.constant 9.99999974E-6 : f32
      %651 = vector.broadcast %cst_175 : f32 to vector<16x1xf32>
      %652 = arith.addf %650, %651 : vector<16x1xf32>
      %653 = math.rsqrt %652 : vector<16x1xf32>
      %654 = vector.broadcast %653 : vector<16x1xf32> to vector<16x32xf32>
      %655 = arith.mulf %645, %654 : vector<16x32xf32>
      %656 = vector.broadcast %638 : vector<1x32xf32> to vector<16x32xf32>
      %657 = arith.mulf %655, %656 : vector<16x32xf32>
      %658 = vector.broadcast %639 : vector<1x32xf32> to vector<16x32xf32>
      %659 = arith.addf %657, %658 : vector<16x32xf32>
      %660 = arith.truncf %659 : vector<16x32xf32> to vector<16x32xbf16>
      %cst_176 = arith.constant dense<0.000000e+00> : vector<16x128xf32>
      %661 = tpu.matmul %660, %11, %cst_176 {dimension_numbers = #tpu.dot_dimension_numbers<[1], [0], [0], [1], [0, 0, 1, 1], [], []>} : vector<16x32xbf16>, vector<32x128xbf16>, vector<16x128xf32> -> vector<16x128xf32>
      %662 = vector.broadcast %13 : vector<1x128xf32> to vector<16x128xf32>
      %663 = arith.addf %661, %662 : vector<16x128xf32>
      %cst_177 = arith.constant 5.000000e-01 : f32
      %664 = vector.broadcast %cst_177 : f32 to vector<16x128xf32>
      %665 = arith.mulf %664, %663 : vector<16x128xf32>
      %cst_178 = arith.constant 0.707106769 : f32
      %666 = vector.broadcast %cst_178 : f32 to vector<16x128xf32>
      %667 = arith.mulf %663, %666 : vector<16x128xf32>
      %cst_179 = arith.constant 0.000000e+00 : f32
      %668 = vector.broadcast %cst_179 : f32 to vector<16x128xf32>
      %669 = arith.cmpf oge, %667, %668 : vector<16x128xf32>
      %cst_180 = arith.constant 1.000000e+00 : f32
      %cst_181 = arith.constant -1.000000e+00 : f32
      %670 = vector.broadcast %cst_180 : f32 to vector<16x128xf32>
      %671 = vector.broadcast %cst_181 : f32 to vector<16x128xf32>
      %672 = arith.select %669, %670, %671 : vector<16x128xi1>, vector<16x128xf32>
      %673 = math.absf %667 : vector<16x128xf32>
      %cst_182 = arith.constant 0.327591091 : f32
      %674 = vector.broadcast %cst_182 : f32 to vector<16x128xf32>
      %675 = arith.mulf %674, %673 : vector<16x128xf32>
      %cst_183 = arith.constant 1.000000e+00 : f32
      %676 = vector.broadcast %cst_183 : f32 to vector<16x128xf32>
      %677 = arith.addf %676, %675 : vector<16x128xf32>
      %cst_184 = arith.constant 1.000000e+00 : f32
      %678 = vector.broadcast %cst_184 : f32 to vector<16x128xf32>
      %679 = arith.divf %678, %677 : vector<16x128xf32>
      %cst_185 = arith.constant 1.06140542 : f32
      %680 = vector.broadcast %cst_185 : f32 to vector<16x128xf32>
      %681 = arith.mulf %680, %679 : vector<16x128xf32>
      %cst_186 = arith.constant -1.45315206 : f32
      %682 = vector.broadcast %cst_186 : f32 to vector<16x128xf32>
      %683 = arith.addf %681, %682 : vector<16x128xf32>
      %684 = arith.mulf %683, %679 : vector<16x128xf32>
      %cst_187 = arith.constant 1.42141378 : f32
      %685 = vector.broadcast %cst_187 : f32 to vector<16x128xf32>
      %686 = arith.addf %684, %685 : vector<16x128xf32>
      %687 = arith.mulf %686, %679 : vector<16x128xf32>
      %cst_188 = arith.constant -0.284496725 : f32
      %688 = vector.broadcast %cst_188 : f32 to vector<16x128xf32>
      %689 = arith.addf %687, %688 : vector<16x128xf32>
      %690 = arith.mulf %689, %679 : vector<16x128xf32>
      %cst_189 = arith.constant 0.254829586 : f32
      %691 = vector.broadcast %cst_189 : f32 to vector<16x128xf32>
      %692 = arith.addf %690, %691 : vector<16x128xf32>
      %693 = arith.mulf %692, %679 : vector<16x128xf32>
      %cst_190 = arith.constant 0.000000e+00 : f32
      %694 = vector.broadcast %cst_190 : f32 to vector<16x128xf32>
      %695 = arith.subf %694, %673 : vector<16x128xf32>
      %696 = arith.mulf %695, %673 : vector<16x128xf32>
      %697 = math.exp %696 : vector<16x128xf32>
      %698 = arith.mulf %693, %697 : vector<16x128xf32>
      %cst_191 = arith.constant 1.000000e+00 : f32
      %699 = vector.broadcast %cst_191 : f32 to vector<16x128xf32>
      %700 = arith.subf %699, %698 : vector<16x128xf32>
      %701 = arith.mulf %672, %700 : vector<16x128xf32>
      %cst_192 = arith.constant 1.000000e+00 : f32
      %702 = vector.broadcast %cst_192 : f32 to vector<16x128xf32>
      %703 = arith.addf %702, %701 : vector<16x128xf32>
      %704 = arith.mulf %665, %703 : vector<16x128xf32>
      %705 = arith.truncf %704 : vector<16x128xf32> to vector<16x128xbf16>
      %cst_193 = arith.constant dense<0.000000e+00> : vector<16x32xf32>
      %706 = tpu.matmul %705, %15, %cst_193 {dimension_numbers = #tpu.dot_dimension_numbers<[1], [0], [0], [1], [0, 0, 1, 1], [], []>} : vector<16x128xbf16>, vector<128x32xbf16>, vector<16x32xf32> -> vector<16x32xf32>
      %707 = vector.broadcast %16 : vector<1x32xf32> to vector<16x32xf32>
      %708 = arith.addf %706, %707 : vector<16x32xf32>
      %709 = arith.addf %637, %708 : vector<16x32xf32>
      %710 = vector.shape_cast %709 : vector<16x32xf32> to vector<2x8x32xf32>
      %c0_194 = arith.constant 0 : index
      %c0_195 = arith.constant 0 : index
      %c0_196 = arith.constant 0 : index
      %711 = vector.load %arg15[%c0_194, %c0_195, %c0_196] : memref<2x8x32xf32, #tpu.memory_space<vmem>>, vector<2x8x32xf32>
      tpu.vector_store %arg15[%c0_194, %c0_195, %c0_196], %710 {strides = array<i32>} : memref<2x8x32xf32, #tpu.memory_space<vmem>>, vector<2x8x32xf32>,
    } else {
    }
    %c1_i32_117 = arith.constant 1 : i32
    %404 = arith.cmpi eq, %arg1, %c1_i32_117 : i32
    %405 = arith.extui %404 : i1 to i32
    %c0_i32_118 = arith.constant 0 : i32
    %406 = arith.cmpi ne, %405, %c0_i32_118 : i32
    scf.if %406 {
      %c0_119 = arith.constant 0 : index
      %c0_120 = arith.constant 0 : index
      %407 = vector.load %arg7[%c0_119, %c0_120] : memref<2x32xf32, #tpu.memory_space<vmem>>, vector<2x32xf32>
      %408 = vector.extract_strided_slice %407 {offsets = [0, 0], sizes = [1, 32], strides = [1, 1]} : vector<2x32xf32> to vector<1x32xf32>
      %409 = vector.extract_strided_slice %407 {offsets = [1, 0], sizes = [1, 32], strides = [1, 1]} : vector<2x32xf32> to vector<1x32xf32>
      %cst_121 = arith.constant dense<0.000000e+00> : vector<16xf32>
      %410 = vector.multi_reduction <add>, %398, %cst_121 [1] : vector<16x32xf32> to vector<16xf32>
      %411 = vector.shape_cast %410 : vector<16xf32> to vector<16x1xf32>
      %cst_122 = arith.constant 3.200000e+01 : f32
      %412 = vector.broadcast %cst_122 : f32 to vector<16x1xf32>
      %413 = arith.divf %411, %412 : vector<16x1xf32>
      %414 = vector.broadcast %413 : vector<16x1xf32> to vector<16x32xf32>
      %415 = arith.subf %398, %414 : vector<16x32xf32>
      %416 = arith.mulf %415, %415 : vector<16x32xf32>
      %cst_123 = arith.constant dense<0.000000e+00> : vector<16xf32>
      %417 = vector.multi_reduction <add>, %416, %cst_123 [1] : vector<16x32xf32> to vector<16xf32>
      %418 = vector.shape_cast %417 : vector<16xf32> to vector<16x1xf32>
      %cst_124 = arith.constant 3.200000e+01 : f32
      %419 = vector.broadcast %cst_124 : f32 to vector<16x1xf32>
      %420 = arith.divf %418, %419 : vector<16x1xf32>
      %cst_125 = arith.constant 9.99999974E-6 : f32
      %421 = vector.broadcast %cst_125 : f32 to vector<16x1xf32>
      %422 = arith.addf %420, %421 : vector<16x1xf32>
      %423 = math.rsqrt %422 : vector<16x1xf32>
      %424 = vector.broadcast %423 : vector<16x1xf32> to vector<16x32xf32>
      %425 = arith.mulf %415, %424 : vector<16x32xf32>
      %426 = vector.broadcast %408 : vector<1x32xf32> to vector<16x32xf32>
      %427 = arith.mulf %425, %426 : vector<16x32xf32>
      %428 = vector.broadcast %409 : vector<1x32xf32> to vector<16x32xf32>
      %429 = arith.addf %427, %428 : vector<16x32xf32>
      %430 = vector.shape_cast %429 : vector<16x32xf32> to vector<2x8x32xf32>
      %c0_126 = arith.constant 0 : index
      %c0_127 = arith.constant 0 : index
      %c0_128 = arith.constant 0 : index
      %431 = vector.load %arg13[%c0_126, %c0_127, %c0_128] : memref<2x8x32xf32, #tpu.memory_space<vmem>>, vector<2x8x32xf32>
      tpu.vector_store %arg13[%c0_126, %c0_127, %c0_128], %430 {strides = array<i32>} : memref<2x8x32xf32, #tpu.memory_space<vmem>>, vector<2x8x32xf32>,
    } else {
    }
    return
  }
  func.func @transform_0(%arg0: i32, %arg1: i32) -> (i32, i32, i32) {
    %c0_i32 = arith.constant 0 : i32
    %c0_i32_0 = arith.constant 0 : i32
    %c0_i32_1 = arith.constant 0 : i32
    return %arg0, %c0_i32, %c0_i32_0 : i32, i32, i32
  }
  func.func @transform_1(%arg0: i32, %arg1: i32) -> (i32, i32, i32) {
    %c0_i32 = arith.constant 0 : i32
    %c0_i32_0 = arith.constant 0 : i32
    %c0_i32_1 = arith.constant 0 : i32
    return %arg0, %c0_i32, %c0_i32_0 : i32, i32, i32
  }
  func.func @transform_2(%arg0: i32, %arg1: i32) -> (i32, i32, i32) {
    %c0_i32 = arith.constant 0 : i32
    %c0_i32_0 = arith.constant 0 : i32
    %c0_i32_1 = arith.constant 0 : i32
    return %arg0, %c0_i32, %c0_i32_0 : i32, i32, i32
  }
  func.func @transform_3(%arg0: i32, %arg1: i32) -> (i32, i32, i32) {
    %c0_i32 = arith.constant 0 : i32
    %c0_i32_0 = arith.constant 0 : i32
    %c0_i32_1 = arith.constant 0 : i32
    return %arg0, %c0_i32, %c0_i32_0 : i32, i32, i32
  }
  func.func @transform_4(%arg0: i32, %arg1: i32) -> (i32, i32, i32) {
    %c0_i32 = arith.constant 0 : i32
    %c0_i32_0 = arith.constant 0 : i32
    %c0_i32_1 = arith.constant 0 : i32
    return %arg0, %c0_i32, %c0_i32_0 : i32, i32, i32
  }
  func.func @transform_5(%arg0: i32, %arg1: i32) -> (i32, i32) {
    %c0_i32 = arith.constant 0 : i32
    %c0_i32_0 = arith.constant 0 : i32
    %c0_i32_1 = arith.constant 0 : i32
    return %c0_i32, %c0_i32_0 : i32, i32
  }
  func.func @transform_6(%arg0: i32, %arg1: i32) -> (i32, i32, i32) {
    %c0_i32 = arith.constant 0 : i32
    %c0_i32_0 = arith.constant 0 : i32
    %c0_i32_1 = arith.constant 0 : i32
    return %arg1, %c0_i32, %c0_i32_0 : i32, i32, i32
  }
  func.func @transform_7(%arg0: i32, %arg1: i32) -> (i32, i32, i32, i32) {
    %c0_i32 = arith.constant 0 : i32
    %c0_i32_0 = arith.constant 0 : i32
    %c0_i32_1 = arith.constant 0 : i32
    %c0_i32_2 = arith.constant 0 : i32
    return %arg1, %c0_i32, %c0_i32_0, %c0_i32_1 : i32, i32, i32, i32
  }
  func.func @transform_8(%arg0: i32, %arg1: i32) -> (i32, i32, i32) {
    %c0_i32 = arith.constant 0 : i32
    %c0_i32_0 = arith.constant 0 : i32
    %c0_i32_1 = arith.constant 0 : i32
    return %arg1, %c0_i32, %c0_i32_0 : i32, i32, i32
  }
  func.func @transform_9(%arg0: i32, %arg1: i32) -> (i32, i32, i32) {
    %c0_i32 = arith.constant 0 : i32
    %c0_i32_0 = arith.constant 0 : i32
    %c0_i32_1 = arith.constant 0 : i32
    return %arg1, %c0_i32, %c0_i32_0 : i32, i32, i32
  }
  func.func @transform_10(%arg0: i32, %arg1: i32) -> (i32, i32, i32) {
    %c0_i32 = arith.constant 0 : i32
    %c0_i32_0 = arith.constant 0 : i32
    %c0_i32_1 = arith.constant 0 : i32
    return %arg1, %c0_i32, %c0_i32_0 : i32, i32, i32
  }
  func.func @transform_11(%arg0: i32, %arg1: i32) -> (i32, i32, i32) {
    %c0_i32 = arith.constant 0 : i32
    %c0_i32_0 = arith.constant 0 : i32
    %c0_i32_1 = arith.constant 0 : i32
    return %arg0, %c0_i32, %c0_i32_0 : i32, i32, i32
  }
}

</mosaic_0001>

<llo_original>
// kernel: decoder_forward.1
$region0: #{decoder_forward.1}
  #allocation0 [shape = 'u32[]', space=smem, size = 0x4, offset = 0x4, fixed_abs, tag = 'smem constant byte address 0x4 - core index']
  #allocation1 [shape = 'u32[144,128]{1,0:T(1,128)}', space=vmem, size = 0x12000, scoped, tag = 'internal scratch']
  #allocation2 [shape = 'f32[2,8,32]{2,1,0:T(8,128)}', space=vmem, size = 0x2000, scoped, tag = 'scratch operand']
  #allocation3 [shape = 'f32[2,8,32]{2,1,0:T(8,128)}', space=vmem, size = 0x2000, scoped, tag = 'scratch operand']
  %s0 = inlined_call_operand.vmem [shape: f32[2,8,32], index: 0, kind: input, shape index: {}]
  %s1 = inlined_call_operand.hbm [shape: f32[2,8,32], index: 1, kind: input, shape index: {}]
  %s2 = inlined_call_operand.hbm [shape: f32[2,16,32], index: 2, kind: input, shape index: {}]
  %s3 = inlined_call_operand.vmem [shape: f32[2,8,8], index: 3, kind: input, shape index: {}]
  %s4 = inlined_call_operand.vmem [shape: f32[2,8,8], index: 4, kind: input, shape index: {}]
  %s5 = inlined_call_operand.hbm [shape: f32[2,32], index: 5, kind: input, shape index: {}]
  %s6 = inlined_call_operand.vmem [shape: f32[2,17,32], index: 6, kind: input, shape index: {}]
  %s7 = inlined_call_operand.vmem [shape: bf16[2,8,32,32], index: 7, kind: input, shape index: {}]
  %s8 = inlined_call_operand.hbm [shape: bf16[2,32,128], index: 8, kind: input, shape index: {}]
  %s9 = inlined_call_operand.hbm [shape: f32[2,1,128], index: 9, kind: input, shape index: {}]
  %s10 = inlined_call_operand.vmem [shape: bf16[2,128,32], index: 10, kind: input, shape index: {}]
  %s11 = inlined_call_operand.hbm [shape: f32[2,8,32], index: 11, kind: output, shape index: {}]
  %s12 = sld [smem:[#allocation0]]
  $region109: #{decoder_forward.1} parent=0
    _
  %s14 = ssub.s32 1, %s12
  %s15 = scalar_select 0, %s14, %s12
  $region1: #{decoder_forward.1} parent=0
    #allocation4 [shape = 'u8[8192]{0}', space=vmem, size = 0x2000, scoped, tag = 'input window, operand 1, single buffered']
    #allocation5 [shape = 's32[2]{0}', space=sflag, size = 0x8, scoped, tag = 'scoped memory for decoder_forward.1']
    #allocation6 [shape = 's32[2]{0}', space=sflag, size = 0x8, scoped, tag = 'scoped memory for decoder_forward.1']
    #allocation7 [shape = 'u8[16384]{0}', space=vmem, size = 0x4000, scoped, tag = 'input window, operand 2, single buffered']
    #allocation8 [shape = 's32[1]{0}', space=sflag, size = 0x4, scoped, tag = 'scoped memory for decoder_forward.1']
    #allocation9 [shape = 'u8[1024]{0}', space=vmem, size = 0x400, scoped, tag = 'input window, operand 5, single buffered']
    #allocation10 [shape = 'u8[16384]{0}', space=vmem, size = 0x4000, scoped, tag = 'input window, operand 8']
    #allocation11 [shape = 's32[2]{0}', space=sflag, size = 0x8, scoped, tag = 'scoped memory for decoder_forward.1']
    #allocation12 [shape = 'u8[1024]{0}', space=vmem, size = 0x400, scoped, tag = 'input window, operand 9']
    #allocation13 [shape = 'u8[8192]{0}', space=vmem, size = 0x2000, scoped, tag = 'output window, operand 0, single buffered']
    %16 = vsyncpa [#allocation5], 0
    %17 = vsyncpa [#allocation8], 0
    %18 = vsyncpa [#allocation11], 0
    %s19 = scalar_lea.sflag [#allocation11], 1
    %20 = vsyncpa %s19, 0
    %21 = vsyncpa [#allocation6], 0
    loop: start=0, step=1, limit=4
    $region2: #{decoder_forward.1} parent=1 // loop_pre_header
      _
    $region3: #{decoder_forward.1} parent=1 // loop_header
      %s23 = sphi 0, %s27
      %p24 = scmp.ge.s32.totalorder %s23, 4
      %s30 = sphi 0, %s42
      %s31 = sphi 0, %s38
      %s32 = sphi 0, %s30
      %s33 = sphi 0, %s31
      %s34 = sphi 0, %s32
      %s35 = sphi 0, %s33
      %s45 = sphi 0, %s47
      %s48 = sphi 0, %s45
      %s49 = sphi 0, %s48
      %s65 = sphi 0, %s49
      %s71 = sphi 0, %s73
      %s74 = sphi 0, %s71
      %s75 = sphi 0, %s74
      %s91 = sphi 0, %s75
      %s97 = sphi 0, %s99
      %s100 = sphi 0, %s97
      %s101 = sphi 0, %s100
      %s117 = sphi 0, %s101
      %s123 = sphi 0, %s125
      %s126 = sphi 0, %s123
      %s127 = sphi 0, %s126
      %s143 = sphi 0, %s127
      %s149 = sphi 0, %s151
      %s152 = sphi 0, %s149
      %s153 = sphi 0, %s152
      %s169 = sphi 0, %s153
      %s173 = sphi 0, %s173
      %s175 = sphi 0, %s173
      %s176 = sphi 0, %s175
      %s190 = sphi 0, %s176
      %s196 = sphi 0, %s198
      %s199 = sphi 0, %s196
      %s200 = sphi 0, %s199
      %s216 = sphi 0, %s200
      %s222 = sphi 0, %s224
      %s225 = sphi 0, %s222
      %s226 = sphi 0, %s225
      %s242 = sphi 0, %s226
      %s248 = sphi 0, %s250
      %s251 = sphi 0, %s248
      %s252 = sphi 0, %s251
      %s268 = sphi 0, %s252
      %s274 = sphi 0, %s276
      %s277 = sphi 0, %s274
      %s278 = sphi 0, %s277
      %s294 = sphi 0, %s278
      %s300 = sphi 0, %s302
      %s303 = sphi 0, %s300
      %s304 = sphi 0, %s303
      %s320 = sphi 0, %s304
      %s326 = sphi 0, %s328
      %s329 = sphi 0, %s326
      %s330 = sphi 0, %s329
      %s346 = sphi 0, %s330
    $region4: #{decoder_forward.1} parent=1 // loop_header_branch
      %26 = sbr.rel (%p24) target = $region8
    $region5: #{decoder_forward.1} parent=1 // loop_body
      %s28 = ssub.s32 %s23, 1
      %s29 = ssub.s32 %s23, 2
      %s36 = sadd.s32 1, %s31
      %p37 = scmp.ge.s32.totalorder %s36, 2
      %s38 = scalar_select %p37, 0, %s36
      %s39 = sadd.s32 1, %s30
      %s40 = scalar_select %p37, %s39, %s30
      %p41 = scmp.ge.s32.totalorder %s40, 1
      %s42 = scalar_select %p41, 0, %s40
      %s43 = ssub.s32 %s30, %s42
      %p44 = scmp.eq.s32.totalorder %s43, 0
      %s46 = sadd.s32 %s45, 1
      %s47 = scalar_select %p44, %s45, %s46
      %p50 = pneg %p44
      %p51 = scmp.eq.s32.totalorder %s23, 1
      %p52 = por %p50, %p51
      %p53 = scmp.ne.s32.totalorder %s45, %s48
      %p54 = scmp.eq.s32.totalorder %s23, 0
      %p55 = por %p53, %p54
      %p56 = scmp.ne.s32.totalorder %s45, %s48
      %p57 = scmp.eq.s32.totalorder %s28, 1
      %p58 = por %p56, %p57
      %p59 = scmp.ne.s32.totalorder %s48, %s49
      %p60 = scmp.eq.s32.totalorder %s28, 0
      %p61 = por %p59, %p60
      %p62 = scmp.ne.s32.totalorder %s48, %s49
      %p63 = scmp.eq.s32.totalorder %s29, 1
      %p64 = por %p62, %p63
      %p66 = scmp.ne.s32.totalorder %s49, %s65
      %p67 = scmp.eq.s32.totalorder %s29, 0
      %p68 = por %p66, %p67
      %s69 = ssub.s32 %s30, %s42
      %p70 = scmp.eq.s32.totalorder %s69, 0
      %s72 = sadd.s32 %s71, 1
      %s73 = scalar_select %p70, %s71, %s72
      %p76 = pneg %p70
      %p77 = scmp.eq.s32.totalorder %s23, 1
      %p78 = por %p76, %p77
      %p79 = scmp.ne.s32.totalorder %s71, %s74
      %p80 = scmp.eq.s32.totalorder %s23, 0
      %p81 = por %p79, %p80
      %p82 = scmp.ne.s32.totalorder %s71, %s74
      %p83 = scmp.eq.s32.totalorder %s28, 1
      %p84 = por %p82, %p83
      %p85 = scmp.ne.s32.totalorder %s74, %s75
      %p86 = scmp.eq.s32.totalorder %s28, 0
      %p87 = por %p85, %p86
      %p88 = scmp.ne.s32.totalorder %s74, %s75
      %p89 = scmp.eq.s32.totalorder %s29, 1
      %p90 = por %p88, %p89
      %p92 = scmp.ne.s32.totalorder %s75, %s91
      %p93 = scmp.eq.s32.totalorder %s29, 0
      %p94 = por %p92, %p93
      %s95 = ssub.s32 %s30, %s42
      %p96 = scmp.eq.s32.totalorder %s95, 0
      %s98 = sadd.s32 %s97, 1
      %s99 = scalar_select %p96, %s97, %s98
      %p102 = pneg %p96
      %p103 = scmp.eq.s32.totalorder %s23, 1
      %p104 = por %p102, %p103
      %p105 = scmp.ne.s32.totalorder %s97, %s100
      %p106 = scmp.eq.s32.totalorder %s23, 0
      %p107 = por %p105, %p106
      %p108 = scmp.ne.s32.totalorder %s97, %s100
      %p109 = scmp.eq.s32.totalorder %s28, 1
      %p110 = por %p108, %p109
      %p111 = scmp.ne.s32.totalorder %s100, %s101
      %p112 = scmp.eq.s32.totalorder %s28, 0
      %p113 = por %p111, %p112
      %p114 = scmp.ne.s32.totalorder %s100, %s101
      %p115 = scmp.eq.s32.totalorder %s29, 1
      %p116 = por %p114, %p115
      %p118 = scmp.ne.s32.totalorder %s101, %s117
      %p119 = scmp.eq.s32.totalorder %s29, 0
      %p120 = por %p118, %p119
      %s121 = ssub.s32 %s30, %s42
      %p122 = scmp.eq.s32.totalorder %s121, 0
      %s124 = sadd.s32 %s123, 1
      %s125 = scalar_select %p122, %s123, %s124
      %p128 = pneg %p122
      %p129 = scmp.eq.s32.totalorder %s23, 1
      %p130 = por %p128, %p129
      %p131 = scmp.ne.s32.totalorder %s123, %s126
      %p132 = scmp.eq.s32.totalorder %s23, 0
      %p133 = por %p131, %p132
      %p134 = scmp.ne.s32.totalorder %s123, %s126
      %p135 = scmp.eq.s32.totalorder %s28, 1
      %p136 = por %p134, %p135
      %p137 = scmp.ne.s32.totalorder %s126, %s127
      %p138 = scmp.eq.s32.totalorder %s28, 0
      %p139 = por %p137, %p138
      %p140 = scmp.ne.s32.totalorder %s126, %s127
      %p141 = scmp.eq.s32.totalorder %s29, 1
      %p142 = por %p140, %p141
      %p144 = scmp.ne.s32.totalorder %s127, %s143
      %p145 = scmp.eq.s32.totalorder %s29, 0
      %p146 = por %p144, %p145
      %s147 = ssub.s32 %s30, %s42
      %p148 = scmp.eq.s32.totalorder %s147, 0
      %s150 = sadd.s32 %s149, 1
      %s151 = scalar_select %p148, %s149, %s150
      %p154 = pneg %p148
      %p155 = scmp.eq.s32.totalorder %s23, 1
      %p156 = por %p154, %p155
      %p157 = scmp.ne.s32.totalorder %s149, %s152
      %p158 = scmp.eq.s32.totalorder %s23, 0
      %p159 = por %p157, %p158
      %p160 = scmp.ne.s32.totalorder %s149, %s152
      %p161 = scmp.eq.s32.totalorder %s28, 1
      %p162 = por %p160, %p161
      %p163 = scmp.ne.s32.totalorder %s152, %s153
      %p164 = scmp.eq.s32.totalorder %s28, 0
      %p165 = por %p163, %p164
      %p166 = scmp.ne.s32.totalorder %s152, %s153
      %p167 = scmp.eq.s32.totalorder %s29, 1
      %p168 = por %p166, %p167
      %p170 = scmp.ne.s32.totalorder %s153, %s169
      %p171 = scmp.eq.s32.totalorder %s29, 0
      %p172 = por %p170, %p171
      %s174 = sadd.s32 %s173, 1
      %p177 = scmp.eq.s32.totalorder %s23, 1
      %p178 = scmp.ne.s32.totalorder %s173, %s175
      %p179 = scmp.eq.s32.totalorder %s23, 0
      %p180 = por %p178, %p179
      %p181 = scmp.ne.s32.totalorder %s173, %s175
      %p182 = scmp.eq.s32.totalorder %s28, 1
      %p183 = por %p181, %p182
      %p184 = scmp.ne.s32.totalorder %s175, %s176
      %p185 = scmp.eq.s32.totalorder %s28, 0
      %p186 = por %p184, %p185
      %p187 = scmp.ne.s32.totalorder %s175, %s176
      %p188 = scmp.eq.s32.totalorder %s29, 1
      %p189 = por %p187, %p188
      %p191 = scmp.ne.s32.totalorder %s176, %s190
      %p192 = scmp.eq.s32.totalorder %s29, 0
      %p193 = por %p191, %p192
      %s194 = ssub.s32 %s31, %s38
      %p195 = scmp.eq.s32.totalorder %s194, 0
      %s197 = sadd.s32 %s196, 1
      %s198 = scalar_select %p195, %s196, %s197
      %p201 = pneg %p195
      %p202 = scmp.eq.s32.totalorder %s23, 1
      %p203 = por %p201, %p202
      %p204 = scmp.ne.s32.totalorder %s196, %s199
      %p205 = scmp.eq.s32.totalorder %s23, 0
      %p206 = por %p204, %p205
      %p207 = scmp.ne.s32.totalorder %s196, %s199
      %p208 = scmp.eq.s32.totalorder %s28, 1
      %p209 = por %p207, %p208
      %p210 = scmp.ne.s32.totalorder %s199, %s200
      %p211 = scmp.eq.s32.totalorder %s28, 0
      %p212 = por %p210, %p211
      %p213 = scmp.ne.s32.totalorder %s199, %s200
      %p214 = scmp.eq.s32.totalorder %s29, 1
      %p215 = por %p213, %p214
      %p217 = scmp.ne.s32.totalorder %s200, %s216
      %p218 = scmp.eq.s32.totalorder %s29, 0
      %p219 = por %p217, %p218
      %s220 = ssub.s32 %s31, %s38
      %p221 = scmp.eq.s32.totalorder %s220, 0
      %s223 = sadd.s32 %s222, 1
      %s224 = scalar_select %p221, %s222, %s223
      %p227 = pneg %p221
      %p228 = scmp.eq.s32.totalorder %s23, 1
      %p229 = por %p227, %p228
      %p230 = scmp.ne.s32.totalorder %s222, %s225
      %p231 = scmp.eq.s32.totalorder %s23, 0
      %p232 = por %p230, %p231
      %p233 = scmp.ne.s32.totalorder %s222, %s225
      %p234 = scmp.eq.s32.totalorder %s28, 1
      %p235 = por %p233, %p234
      %p236 = scmp.ne.s32.totalorder %s225, %s226
      %p237 = scmp.eq.s32.totalorder %s28, 0
      %p238 = por %p236, %p237
      %p239 = scmp.ne.s32.totalorder %s225, %s226
      %p240 = scmp.eq.s32.totalorder %s29, 1
      %p241 = por %p239, %p240
      %p243 = scmp.ne.s32.totalorder %s226, %s242
      %p244 = scmp.eq.s32.totalorder %s29, 0
      %p245 = por %p243, %p244
      %s246 = ssub.s32 %s31, %s38
      %p247 = scmp.eq.s32.totalorder %s246, 0
      %s249 = sadd.s32 %s248, 1
      %s250 = scalar_select %p247, %s248, %s249
      %p253 = pneg %p247
      %p254 = scmp.eq.s32.totalorder %s23, 1
      %p255 = por %p253, %p254
      %p256 = scmp.ne.s32.totalorder %s248, %s251
      %p257 = scmp.eq.s32.totalorder %s23, 0
      %p258 = por %p256, %p257
      %p259 = scmp.ne.s32.totalorder %s248, %s251
      %p260 = scmp.eq.s32.totalorder %s28, 1
      %p261 = por %p259, %p260
      %p262 = scmp.ne.s32.totalorder %s251, %s252
      %p263 = scmp.eq.s32.totalorder %s28, 0
      %p264 = por %p262, %p263
      %p265 = scmp.ne.s32.totalorder %s251, %s252
      %p266 = scmp.eq.s32.totalorder %s29, 1
      %p267 = por %p265, %p266
      %p269 = scmp.ne.s32.totalorder %s252, %s268
      %p270 = scmp.eq.s32.totalorder %s29, 0
      %p271 = por %p269, %p270
      %s272 = ssub.s32 %s31, %s38
      %p273 = scmp.eq.s32.totalorder %s272, 0
      %s275 = sadd.s32 %s274, 1
      %s276 = scalar_select %p273, %s274, %s275
      %p279 = pneg %p273
      %p280 = scmp.eq.s32.totalorder %s23, 1
      %p281 = por %p279, %p280
      %p282 = scmp.ne.s32.totalorder %s274, %s277
      %p283 = scmp.eq.s32.totalorder %s23, 0
      %p284 = por %p282, %p283
      %p285 = scmp.ne.s32.totalorder %s274, %s277
      %p286 = scmp.eq.s32.totalorder %s28, 1
      %p287 = por %p285, %p286
      %p288 = scmp.ne.s32.totalorder %s277, %s278
      %p289 = scmp.eq.s32.totalorder %s28, 0
      %p290 = por %p288, %p289
      %p291 = scmp.ne.s32.totalorder %s277, %s278
      %p292 = scmp.eq.s32.totalorder %s29, 1
      %p293 = por %p291, %p292
      %p295 = scmp.ne.s32.totalorder %s278, %s294
      %p296 = scmp.eq.s32.totalorder %s29, 0
      %p297 = por %p295, %p296
      %s298 = ssub.s32 %s31, %s38
      %p299 = scmp.eq.s32.totalorder %s298, 0
      %s301 = sadd.s32 %s300, 1
      %s302 = scalar_select %p299, %s300, %s301
      %p305 = pneg %p299
      %p306 = scmp.eq.s32.totalorder %s23, 1
      %p307 = por %p305, %p306
      %p308 = scmp.ne.s32.totalorder %s300, %s303
      %p309 = scmp.eq.s32.totalorder %s23, 0
      %p310 = por %p308, %p309
      %p311 = scmp.ne.s32.totalorder %s300, %s303
      %p312 = scmp.eq.s32.totalorder %s28, 1
      %p313 = por %p311, %p312
      %p314 = scmp.ne.s32.totalorder %s303, %s304
      %p315 = scmp.eq.s32.totalorder %s28, 0
      %p316 = por %p314, %p315
      %p317 = scmp.ne.s32.totalorder %s303, %s304
      %p318 = scmp.eq.s32.totalorder %s29, 1
      %p319 = por %p317, %p318
      %p321 = scmp.ne.s32.totalorder %s304, %s320
      %p322 = scmp.eq.s32.totalorder %s29, 0
      %p323 = por %p321, %p322
      %s324 = ssub.s32 %s30, %s42
      %p325 = scmp.eq.s32.totalorder %s324, 0
      %s327 = sadd.s32 %s326, 1
      %s328 = scalar_select %p325, %s326, %s327
      %p331 = pneg %p325
      %p332 = scmp.eq.s32.totalorder %s23, 1
      %p333 = por %p331, %p332
      %p334 = scmp.ne.s32.totalorder %s326, %s329
      %p335 = scmp.eq.s32.totalorder %s23, 0
      %p336 = por %p334, %p335
      %p337 = scmp.ne.s32.totalorder %s326, %s329
      %p338 = scmp.eq.s32.totalorder %s28, 1
      %p339 = por %p337, %p338
      %p340 = scmp.ne.s32.totalorder %s329, %s330
      %p341 = scmp.eq.s32.totalorder %s28, 0
      %p342 = por %p340, %p341
      %p343 = scmp.ne.s32.totalorder %s329, %s330
      %p344 = scmp.eq.s32.totalorder %s29, 1
      %p345 = por %p343, %p344
      %p347 = scmp.ne.s32.totalorder %s330, %s346
      %p348 = scmp.eq.s32.totalorder %s29, 0
      %p349 = por %p347, %p348
      %p350 = scmp.le.s32.totalorder 1, %s23
      %p351 = scmp.lt.s32.totalorder %s23, 3
      %p352 = pnand %p350, %p351
      %p353 = pneg %p352
      // Predicated region
      $region9: #{decoder_forward.1} parent=5 // pred_check
        _
      $region10: #{decoder_forward.1} parent=5 // pred_check_branch
        %355 = sbr.rel (%p352) target = $region12
      $region11: #{decoder_forward.1} parent=5 // pred_region
        %s356 = ssub.s32 %s23, 1
        // Predicated region
        $region13: #{decoder_forward.1} parent=11 // pred_check
          %p357 = pneg %p61
        $region14: #{decoder_forward.1} parent=11 // pred_check_branch
          %359 = sbr.rel (%p357) target = $region16
        $region15: #{decoder_forward.1} parent=11 // pred_region
          %s360 = smul.u32 2, %s32
          %p361 = scmp.lt.s32.totalorder %s360, 1
          %s362 = scalar_select %p361, %s360, 1
          %s363 = smul.addr %s362, 8
          %s364 = scalar_lea.vmem %s0, %s363
          %s365 = smul.u32 2, %s32
        $region16: #{decoder_forward.1} parent=11 // pred_fallthru
          _
        // Predicated region
        $region17: #{decoder_forward.1} parent=11 // pred_check
          %p366 = pneg %p87
        $region18: #{decoder_forward.1} parent=11 // pred_check_branch
          %368 = sbr.rel (%p366) target = $region20
        $region19: #{decoder_forward.1} parent=11 // pred_region
          %s369 = smul.u32 2, %s32
          %s371 = ssub.s32 256, 256
          %372 = vsyncadd [#allocation5], %s371
          %s373 = smul.addr %s369, 128
          %s374 = scalar_lea.hbm %s1, %s373
          %s375 = sshll.u32 [#allocation4], 4
          %s376 = int_to_ptr.vmem [resolvable:$true] %s375
          %381 = dma.hbm_to_vmem [thread:$0]  %s374, 256, %s376, [#allocation5], 128, 128, 8
        $region20: #{decoder_forward.1} parent=11 // pred_fallthru
          _
        // Predicated region
        $region21: #{decoder_forward.1} parent=11 // pred_check
          %p382 = pneg %p113
        $region22: #{decoder_forward.1} parent=11 // pred_check_branch
          %384 = sbr.rel (%p382) target = $region24
        $region23: #{decoder_forward.1} parent=11 // pred_region
          %s385 = smul.u32 2, %s32
          %s387 = ssub.s32 512, 512
          %388 = vsyncadd [#allocation8], %s387
          %s389 = smul.addr %s385, 2
          %s390 = smul.addr %s389, 128
          %s391 = scalar_lea.hbm %s2, %s390
          %s392 = sshll.u32 [#allocation7], 4
          %s393 = int_to_ptr.vmem [resolvable:$true] %s392
          %398 = dma.hbm_to_vmem [thread:$0]  %s391, 512, %s393, [#allocation8], 128, 128, 8
        $region24: #{decoder_forward.1} parent=11 // pred_fallthru
          _
        // Predicated region
        $region25: #{decoder_forward.1} parent=11 // pred_check
          %p399 = pneg %p139
        $region26: #{decoder_forward.1} parent=11 // pred_check_branch
          %401 = sbr.rel (%p399) target = $region28
        $region27: #{decoder_forward.1} parent=11 // pred_region
          %s402 = smul.u32 2, %s32
          %p403 = scmp.lt.s32.totalorder %s402, 1
          %s404 = scalar_select %p403, %s402, 1
          %s405 = smul.addr %s404, 8
          %s406 = scalar_lea.vmem %s3, %s405
          %s407 = smul.u32 2, %s32
        $region28: #{decoder_forward.1} parent=11 // pred_fallthru
          _
        // Predicated region
        $region29: #{decoder_forward.1} parent=11 // pred_check
          %p408 = pneg %p165
        $region30: #{decoder_forward.1} parent=11 // pred_check_branch
          %410 = sbr.rel (%p408) target = $region32
        $region31: #{decoder_forward.1} parent=11 // pred_region
          %s411 = smul.u32 2, %s32
          %p412 = scmp.lt.s32.totalorder %s411, 1
          %s413 = scalar_select %p412, %s411, 1
          %s414 = smul.addr %s413, 8
          %s415 = scalar_lea.vmem %s4, %s414
          %s416 = smul.u32 2, %s32
        $region32: #{decoder_forward.1} parent=11 // pred_fallthru
          _
        // Predicated region
        $region33: #{decoder_forward.1} parent=11 // pred_check
          %p417 = pneg %p186
        $region34: #{decoder_forward.1} parent=11 // pred_check_branch
          %419 = sbr.rel (%p417) target = $region36
        $region35: #{decoder_forward.1} parent=11 // pred_region
          %s421 = ssub.s32 32, 32
          %422 = vsyncadd [#allocation8], %s421
          %s424 = sshll.u32 [#allocation9], 4
          %s425 = int_to_ptr.vmem [resolvable:$true] %s424
          %427 = dma.hbm_to_vmem [thread:$0]  %s5, 32, %s425, [#allocation8]
        $region36: #{decoder_forward.1} parent=11 // pred_fallthru
          _
      $region12: #{decoder_forward.1} parent=5 // pred_fallthru
        _
      %p428 = scmp.lt.s32.totalorder %s23, 2
      // Predicated region
      $region37: #{decoder_forward.1} parent=5 // pred_check
        %p429 = pneg %p428
      $region38: #{decoder_forward.1} parent=5 // pred_check_branch
        %431 = sbr.rel (%p429) target = $region40
      $region39: #{decoder_forward.1} parent=5 // pred_region
        // Predicated region
        $region41: #{decoder_forward.1} parent=39 // pred_check
          %p432 = pneg %p206
        $region42: #{decoder_forward.1} parent=39 // pred_check_branch
          %434 = sbr.rel (%p432) target = $region44
        $region43: #{decoder_forward.1} parent=39 // pred_region
          %p435 = scmp.lt.s32.totalorder %s31, 1
          %s436 = scalar_select %p435, %s31, 1
          %s437 = smul.addr %s436, 3
          %s438 = smul.addr %s437, 8
          %s439 = scalar_lea.vmem %s6, %s438
        $region44: #{decoder_forward.1} parent=39 // pred_fallthru
          _
        // Predicated region
        $region45: #{decoder_forward.1} parent=39 // pred_check
          %p440 = pneg %p232
        $region46: #{decoder_forward.1} parent=39 // pred_check_branch
          %442 = sbr.rel (%p440) target = $region48
        $region47: #{decoder_forward.1} parent=39 // pred_region
          %p443 = scmp.lt.s32.totalorder %s31, 1
          %s444 = scalar_select %p443, %s31, 1
          %s445 = smul.addr %s444, 32
          %s446 = smul.addr %s445, 4
          %s447 = scalar_lea.vmem %s7, %s446
        $region48: #{decoder_forward.1} parent=39 // pred_fallthru
          _
        // Predicated region
        $region49: #{decoder_forward.1} parent=39 // pred_check
          %p448 = pneg %p258
        $region50: #{decoder_forward.1} parent=39 // pred_check_branch
          %450 = sbr.rel (%p448) target = $region52
        $region51: #{decoder_forward.1} parent=39 // pred_region
          %s451 = sand.u32 %s23, 1
          %s452 = scalar_lea.sflag [#allocation11], %s451
          %s453 = sand.u32 %s248, 1
          %s454 = smul.addr %s453, 16
          %s455 = scalar_lea.vmem [#allocation10], %s454
          %s457 = ssub.s32 256, 256
          %458 = vsyncadd %s452, %s457
          %s459 = smul.addr %s31, 4
          %s460 = smul.addr %s459, 64
          %s461 = scalar_lea.hbm %s8, %s460
          %s462 = sshll.u32 %s455, 4
          %s463 = int_to_ptr.vmem [resolvable:$true] %s462
          %468 = dma.hbm_to_vmem [thread:$0]  %s461, 256, %s463, %s452, 64, 64, 4
        $region52: #{decoder_forward.1} parent=39 // pred_fallthru
          _
        // Predicated region
        $region53: #{decoder_forward.1} parent=39 // pred_check
          %p469 = pneg %p284
        $region54: #{decoder_forward.1} parent=39 // pred_check_branch
          %471 = sbr.rel (%p469) target = $region56
        $region55: #{decoder_forward.1} parent=39 // pred_region
          %s472 = sand.u32 %s23, 1
          %s473 = scalar_lea.sflag [#allocation11], %s472
          %s474 = sand.u32 %s274, 1
          %s475 = scalar_lea.vmem [#allocation12], %s474
          %s477 = ssub.s32 16, 16
          %478 = vsyncadd %s473, %s477
          %s479 = smul.addr %s31, 16
          %s480 = scalar_lea.hbm %s9, %s479
          %s482 = sshll.u32 %s475, 4
          %s483 = int_to_ptr.vmem [resolvable:$true] %s482
          %485 = dma.hbm_to_vmem [thread:$0]  %s480, 16, %s483, %s473
        $region56: #{decoder_forward.1} parent=39 // pred_fallthru
          _
        // Predicated region
        $region57: #{decoder_forward.1} parent=39 // pred_check
          %p486 = pneg %p310
        $region58: #{decoder_forward.1} parent=39 // pred_check_branch
          %488 = sbr.rel (%p486) target = $region60
        $region59: #{decoder_forward.1} parent=39 // pred_region
          %p489 = scmp.lt.s32.totalorder %s31, 1
          %s490 = scalar_select %p489, %s31, 1
          %s491 = smul.addr %s490, 16
          %s492 = smul.addr %s491, 4
          %s493 = scalar_lea.vmem %s10, %s492
        $region60: #{decoder_forward.1} parent=39 // pred_fallthru
          _
      $region40: #{decoder_forward.1} parent=5 // pred_fallthru
        _
      %p494 = scmp.le.s32.totalorder 1, %s23
      %p495 = scmp.lt.s32.totalorder %s23, 3
      %p496 = pnand %p494, %p495
      %p497 = pneg %p496
      // Predicated region
      $region61: #{decoder_forward.1} parent=5 // pred_check
        _
      $region62: #{decoder_forward.1} parent=5 // pred_check_branch
        %499 = sbr.rel (%p496) target = $region64
      $region63: #{decoder_forward.1} parent=5 // pred_region
        %s500 = ssub.s32 %s23, 1
        // Predicated region
        $region65: #{decoder_forward.1} parent=63 // pred_check
          %p501 = pneg %p87
        $region66: #{decoder_forward.1} parent=63 // pred_check_branch
          %503 = sbr.rel (%p501) target = $region68
        $region67: #{decoder_forward.1} parent=63 // pred_region
          %504 = dma.done [#allocation5], 256
        $region68: #{decoder_forward.1} parent=63 // pred_fallthru
          _
        // Predicated region
        $region69: #{decoder_forward.1} parent=63 // pred_check
          %p505 = pneg %p113
        $region70: #{decoder_forward.1} parent=63 // pred_check_branch
          %507 = sbr.rel (%p505) target = $region72
        $region71: #{decoder_forward.1} parent=63 // pred_region
          %508 = dma.done [#allocation8], 512
        $region72: #{decoder_forward.1} parent=63 // pred_fallthru
          _
        // Predicated region
        $region73: #{decoder_forward.1} parent=63 // pred_check
          %p509 = pneg %p186
        $region74: #{decoder_forward.1} parent=63 // pred_check_branch
          %511 = sbr.rel (%p509) target = $region76
        $region75: #{decoder_forward.1} parent=63 // pred_region
          %512 = dma.done [#allocation8], 32
        $region76: #{decoder_forward.1} parent=63 // pred_fallthru
          _
        %s513 = sand.u32 %s28, 1
        %s514 = scalar_lea.sflag [#allocation11], %s513
        %s515 = sand.u32 %s251, 1
        %s516 = smul.addr %s515, 16
        %s517 = scalar_lea.vmem [#allocation10], %s516
        // Predicated region
        $region77: #{decoder_forward.1} parent=63 // pred_check
          %p518 = pneg %p264
        $region78: #{decoder_forward.1} parent=63 // pred_check_branch
          %520 = sbr.rel (%p518) target = $region80
        $region79: #{decoder_forward.1} parent=63 // pred_region
          %521 = dma.done %s514, 256
        $region80: #{decoder_forward.1} parent=63 // pred_fallthru
          _
        %s522 = sand.u32 %s28, 1
        %s523 = scalar_lea.sflag [#allocation11], %s522
        %s524 = sand.u32 %s277, 1
        %s525 = scalar_lea.vmem [#allocation12], %s524
        // Predicated region
        $region81: #{decoder_forward.1} parent=63 // pred_check
          %p526 = pneg %p290
        $region82: #{decoder_forward.1} parent=63 // pred_check_branch
          %528 = sbr.rel (%p526) target = $region84
        $region83: #{decoder_forward.1} parent=63 // pred_region
          %529 = dma.done %s523, 16
        $region84: #{decoder_forward.1} parent=63 // pred_fallthru
          _
        %s530 = smul.u32 2, %s32
        %p531 = scmp.lt.s32.totalorder %s530, 1
        %s532 = scalar_select %p531, %s530, 1
        %s533 = smul.addr %s532, 8
        %s534 = scalar_lea.vmem %s0, %s533
        %p535 = pneg %p61
        %p536 = pneg %p58
        %p537 = pneg %p87
        %p538 = pneg %p84
        %p539 = pneg %p113
        %p540 = pneg %p110
        %s541 = smul.u32 2, %s32
        %p542 = scmp.lt.s32.totalorder %s541, 1
        %s543 = scalar_select %p542, %s541, 1
        %s544 = smul.addr %s543, 8
        %s545 = scalar_lea.vmem %s3, %s544
        %p546 = pneg %p139
        %p547 = pneg %p136
        %s548 = smul.u32 2, %s32
        %p549 = scmp.lt.s32.totalorder %s548, 1
        %s550 = scalar_select %p549, %s548, 1
        %s551 = smul.addr %s550, 8
        %s552 = scalar_lea.vmem %s4, %s551
        %p553 = pneg %p165
        %p554 = pneg %p162
        %p555 = pneg %p186
        %p556 = pneg %p183
        %p557 = scmp.lt.s32.totalorder %s33, 1
        %s558 = scalar_select %p557, %s33, 1
        %s559 = smul.addr %s558, 3
        %s560 = smul.addr %s559, 8
        %s561 = scalar_lea.vmem %s6, %s560
        %p562 = pneg %p212
        %p563 = pneg %p209
        %p564 = scmp.lt.s32.totalorder %s33, 1
        %s565 = scalar_select %p564, %s33, 1
        %s566 = smul.addr %s565, 32
        %s567 = smul.addr %s566, 4
        %s568 = scalar_lea.vmem %s7, %s567
        %p569 = pneg %p238
        %p570 = pneg %p235
        %s571 = sand.u32 %s28, 1
        %s572 = scalar_lea.sflag [#allocation11], %s571
        %s573 = sand.u32 %s251, 1
        %s574 = smul.addr %s573, 16
        %s575 = scalar_lea.vmem [#allocation10], %s574
        %p576 = pneg %p264
        %p577 = pneg %p261
        %s578 = sand.u32 %s28, 1
        %s579 = scalar_lea.sflag [#allocation11], %s578
        %s580 = sand.u32 %s277, 1
        %s581 = scalar_lea.vmem [#allocation12], %s580
        %p582 = pneg %p290
        %p583 = pneg %p287
        %p584 = scmp.lt.s32.totalorder %s33, 1
        %s585 = scalar_select %p584, %s33, 1
        %s586 = smul.addr %s585, 16
        %s587 = smul.addr %s586, 4
        %s588 = scalar_lea.vmem %s10, %s587
        %p589 = pneg %p316
        %p590 = pneg %p313
        %p591 = pneg %p342
        %p592 = pneg %p339
        %s593 = smul.u32 2, %s32
        %p594 = scmp.lt.s32.totalorder %s593, 1
        %s595 = scalar_select %p594, %s593, 1
        %s596 = smul.addr %s595, 8
        %s597 = scalar_lea.vmem %s0, %s596
        %s598 = smul.u32 2, %s32
        %s599 = smul.u32 2, %s32
        %s600 = smul.u32 2, %s32
        %s601 = smul.u32 2, %s32
        %p602 = scmp.lt.s32.totalorder %s601, 1
        %s603 = scalar_select %p602, %s601, 1
        %s604 = smul.addr %s603, 8
        %s605 = scalar_lea.vmem %s3, %s604
        %s606 = smul.u32 2, %s32
        %s607 = smul.u32 2, %s32
        %p608 = scmp.lt.s32.totalorder %s607, 1
        %s609 = scalar_select %p608, %s607, 1
        %s610 = smul.addr %s609, 8
        %s611 = scalar_lea.vmem %s4, %s610
        %s612 = smul.u32 2, %s32
        %p613 = scmp.lt.s32.totalorder %s33, 1
        %s614 = scalar_select %p613, %s33, 1
        %s615 = smul.addr %s614, 3
        %s616 = smul.addr %s615, 8
        %s617 = scalar_lea.vmem %s6, %s616
        %p618 = scmp.lt.s32.totalorder %s33, 1
        %s619 = scalar_select %p618, %s33, 1
        %s620 = smul.addr %s619, 32
        %s621 = smul.addr %s620, 4
        %s622 = scalar_lea.vmem %s7, %s621
        %p623 = scmp.lt.s32.totalorder %s33, 1
        %s624 = scalar_select %p623, %s33, 1
        %s625 = smul.addr %s624, 16
        %s626 = smul.addr %s625, 4
        %s627 = scalar_lea.vmem %s10, %s626
        %s628 = smul.u32 2, %s32
        %p630 = scmp.eq.s32.totalorder %s33, 0
        // Predicated region
        $region85: #{decoder_forward.1} parent=63 // pred_check
          %p631 = pneg %p630
        $region86: #{decoder_forward.1} parent=63 // pred_check_branch
          %633 = sbr.rel (%p631) target = $region88
        $region87: #{decoder_forward.1} parent=63 // pred_region
          %v634 = vld [vmem:[%s597] sm:$0xff]
          %v635 = vld [vmem:[%s597 + $0x8] sm:$0xff]
          %vm636 = vcmask 261120
          %637 = vst.msk [vmem:[#allocation2] sm:$0xff] %vm636, %v634
          %638 = vst.msk [vmem:[#allocation2 + $0x8] sm:$0xff] %vm636, %v635
          %v639 = vld [vmem:[#allocation4] sm:$0xff]
          %v640 = vld [vmem:[#allocation4 + $0x8] sm:$0xff]
          %641 = vst.msk [vmem:[#allocation3] sm:$0xff] %vm636, %v639
          %642 = vst.msk [vmem:[#allocation3 + $0x8] sm:$0xff] %vm636, %v640
        $region88: #{decoder_forward.1} parent=63 // pred_fallthru
          _
        %v643 = vld [vmem:[#allocation2] sm:$0xff]
        %v644 = vld [vmem:[#allocation2 + $0x8] sm:$0xff]
        %v645 = vld [vmem:[#allocation3] sm:$0xff]
        %v646 = vld [vmem:[#allocation3 + $0x8] sm:$0xff]
        %v647 = vld [vmem:[#allocation7] sm:$0xff]
        %v648 = vld [vmem:[#allocation7 + $0x8] sm:$0xff]
        %v649 = vld [vmem:[#allocation7 + $0x10] sm:$0xff]
        %v650 = vld [vmem:[#allocation7 + $0x18] sm:$0xff]
        %v651 = vld [vmem:[%s617] sm:$0xff]
        %v652 = vld [vmem:[%s617 + $0x8] sm:$0xff]
        %v653 = vld [vmem:[%s617 + $0x10] sm:$0x1]
        %v654 = vld [vmem:[%s622] sm:$0xf]
        %v655 = vld [vmem:[%s622 + $0x4] sm:$0xf]
        %v656 = vld [vmem:[%s622 + $0x8] sm:$0xf]
        %v657 = vld [vmem:[%s622 + $0xc] sm:$0xf]
        %v658 = vld [vmem:[%s622 + $0x10] sm:$0xf]
        %v659 = vld [vmem:[%s622 + $0x14] sm:$0xf]
        %v660 = vld [vmem:[%s622 + $0x18] sm:$0xf]
        %v661 = vld [vmem:[%s622 + $0x1c] sm:$0xf]
        %v662 = vld [vmem:[%s622 + $0x20] sm:$0xf]
        %v663 = vld [vmem:[%s622 + $0x24] sm:$0xf]
        %v664 = vld [vmem:[%s622 + $0x28] sm:$0xf]
        %v665 = vld [vmem:[%s622 + $0x2c] sm:$0xf]
        %v666 = vld [vmem:[%s622 + $0x30] sm:$0xf]
        %v667 = vld [vmem:[%s622 + $0x34] sm:$0xf]
        %v668 = vld [vmem:[%s622 + $0x38] sm:$0xf]
        %v669 = vld [vmem:[%s622 + $0x3c] sm:$0xf]
        %v670 = vld [vmem:[%s622 + $0x40] sm:$0xf]
        %v671 = vld [vmem:[%s622 + $0x44] sm:$0xf]
        %v672 = vld [vmem:[%s622 + $0x48] sm:$0xf]
        %v673 = vld [vmem:[%s622 + $0x4c] sm:$0xf]
        %v674 = vld [vmem:[%s622 + $0x50] sm:$0xf]
        %v675 = vld [vmem:[%s622 + $0x54] sm:$0xf]
        %v676 = vld [vmem:[%s622 + $0x58] sm:$0xf]
        %v677 = vld [vmem:[%s622 + $0x5c] sm:$0xf]
        %v678 = vld [vmem:[%s622 + $0x60] sm:$0xf]
        %v679 = vld [vmem:[%s622 + $0x64] sm:$0xf]
        %v680 = vld [vmem:[%s622 + $0x68] sm:$0xf]
        %v681 = vld [vmem:[%s622 + $0x6c] sm:$0xf]
        %v682 = vld [vmem:[%s622 + $0x70] sm:$0xf]
        %v683 = vld [vmem:[%s622 + $0x74] sm:$0xf]
        %v684 = vld [vmem:[%s622 + $0x78] sm:$0xf]
        %v685 = vld [vmem:[%s622 + $0x7c] sm:$0xf]
        %v686 = vld [vmem:[%s517] sm:$0xf]
        %v687 = vld [vmem:[%s517 + $0x4] sm:$0xf]
        %v688 = vld [vmem:[%s517 + $0x8] sm:$0xf]
        %v689 = vld [vmem:[%s517 + $0xc] sm:$0xf]
        %v690 = vld [vmem:[%s525] sm:$0x1]
        %v691 = vld [vmem:[%s627] sm:$0xf]
        %v692 = vld [vmem:[%s627 + $0x4] sm:$0xf]
        %v693 = vld [vmem:[%s627 + $0x8] sm:$0xf]
        %v694 = vld [vmem:[%s627 + $0xc] sm:$0xf]
        %v695 = vld [vmem:[%s627 + $0x10] sm:$0xf]
        %v696 = vld [vmem:[%s627 + $0x14] sm:$0xf]
        %v697 = vld [vmem:[%s627 + $0x18] sm:$0xf]
        %v698 = vld [vmem:[%s627 + $0x1c] sm:$0xf]
        %v699 = vld [vmem:[%s627 + $0x20] sm:$0xf]
        %v700 = vld [vmem:[%s627 + $0x24] sm:$0xf]
        %v701 = vld [vmem:[%s627 + $0x28] sm:$0xf]
        %v702 = vld [vmem:[%s627 + $0x2c] sm:$0xf]
        %v703 = vld [vmem:[%s627 + $0x30] sm:$0xf]
        %v704 = vld [vmem:[%s627 + $0x34] sm:$0xf]
        %v705 = vld [vmem:[%s627 + $0x38] sm:$0xf]
        %v706 = vld [vmem:[%s627 + $0x3c] sm:$0xf]
        %vm707 = vcmask 261120
        %v708 = vsel %vm707, %v643, 0.0
        %709 = vadd.xlane.f32.xlu0 %v708
        %v710 = vpop.xlane.xlu0 %709
        %v711 = vsel %vm707, %v644, 0.0
        %712 = vadd.xlane.f32.xlu0 %v711
        %v713 = vpop.xlane.xlu0 %712
        %v714 = vrcp.pop 32.0
        %v715 = vmul.f32 %v710, %v714
        %v716 = vmul.f32 %v713, %v714
        %v717 = vsub.f32 %v643, %v715
        %v718 = vsub.f32 %v644, %v716
        %v719 = vmul.f32 %v717, %v717
        %v720 = vmul.f32 %v718, %v718
        %v721 = vsel %vm707, %v719, 0.0
        %722 = vadd.xlane.f32.xlu0 %v721
        %v723 = vpop.xlane.xlu0 %722
        %v724 = vsel %vm707, %v720, 0.0
        %725 = vadd.xlane.f32.xlu0 %v724
        %v726 = vpop.xlane.xlu0 %725
        %v727 = vmul.f32 %v723, %v714
        %v728 = vmul.f32 %v726, %v714
        %v729 = vadd.f32 %v727, 1e-05
        %v730 = vadd.f32 %v728, 1e-05
        %v731 = vrsqrt.pop %v729
        %v732 = vrsqrt.pop %v730
        %v733 = vmul.f32 %v717, %v731
        %v734 = vmul.f32 %v718, %v732
        %v735 = vlaneseq
        %v736 = vshrl.u32 %v735, 7
        %v737 = vsub.s32 0, %v736
        %v738 = vrot.slane %v651, %v737
        %v739 = vmul.f32 %v733, %v738
        %v740 = vmul.f32 %v734, %v738
        %v741 = vlaneseq
        %v742 = vshrl.u32 %v741, 7
        %v743 = vsub.s32 1, %v742
        %v744 = vrot.slane %v651, %v743
        %v745 = vadd.f32 %v739, %v744
        %v746 = vadd.f32 %v740, %v744
        %v747 = vsel %vm707, %v645, 0.0
        %748 = vadd.xlane.f32.xlu0 %v747
        %v749 = vpop.xlane.xlu0 %748
        %v750 = vsel %vm707, %v646, 0.0
        %751 = vadd.xlane.f32.xlu0 %v750
        %v752 = vpop.xlane.xlu0 %751
        %v753 = vmul.f32 %v749, %v714
        %v754 = vmul.f32 %v752, %v714
        %v755 = vsub.f32 %v645, %v753
        %v756 = vsub.f32 %v646, %v754
        %v757 = vmul.f32 %v755, %v755
        %v758 = vmul.f32 %v756, %v756
        %v759 = vsel %vm707, %v757, 0.0
        %760 = vadd.xlane.f32.xlu0 %v759
        %v761 = vpop.xlane.xlu0 %760
        %v762 = vsel %vm707, %v758, 0.0
        %763 = vadd.xlane.f32.xlu0 %v762
        %v764 = vpop.xlane.xlu0 %763
        %v765 = vmul.f32 %v761, %v714
        %v766 = vmul.f32 %v764, %v714
        %v767 = vadd.f32 %v765, 1e-05
        %v768 = vadd.f32 %v766, 1e-05
        %v769 = vrsqrt.pop %v767
        %v770 = vrsqrt.pop %v768
        %v771 = vmul.f32 %v755, %v769
        %v772 = vmul.f32 %v756, %v770
        %v773 = vlaneseq
        %v774 = vshrl.u32 %v773, 7
        %v775 = vsub.s32 2, %v774
        %v776 = vrot.slane %v651, %v775
        %v777 = vmul.f32 %v771, %v776
        %v778 = vmul.f32 %v772, %v776
        %v779 = vlaneseq
        %v780 = vshrl.u32 %v779, 7
        %v781 = vsub.s32 3, %v780
        %v782 = vrot.slane %v651, %v781
        %v783 = vadd.f32 %v777, %v782
        %v784 = vadd.f32 %v778, %v782
        %v785 = vpack.c.bf16 %v784, %v783
        %v786 = vlaneseq
        %v787 = vshrl.u32 %v786, 7
        %v788 = vsub.s32 1, %v787
        %v789 = vrot.slane %v652, %v788
        %v794 = vunpack.c.l.b16 %v658
        %v795 = vunpack.c.l.b16 %v659
        %v796 = vunpack.c.l.b16 %v660
        %v797 = vunpack.c.l.b16 %v661
        %v798 = vpack.c.b16 %v795, %v794
        %v799 = vpack.c.b16 %v797, %v796
        %v803 = vsel %vm707, %v785, 0
        %805 = vmatprep.subr.bf16.mxu0 0
        %806 = vmatpush1.bf16.msra.mxu0 0
        %807 = vmatprep.subr.bf16.mxu0 0
        %808 = vmatpush1.bf16.msra.mxu0 0
        %809 = vmatprep.subr.bf16.mxu0 0
        %810 = vmatpush1.bf16.msra.mxu0 0
        %811 = vmatprep.subr.bf16.mxu0 0
        %812 = vmatpush1.bf16.msra.mxu0 0
        %813 = vmatprep.subr.bf16.mxu0 0
        %814 = vmatpush1.bf16.msra.mxu0 0
        %815 = vmatprep.subr.bf16.mxu0 0
        %816 = vmatpush1.bf16.msra.mxu0 0
        %817 = vmatprep.subr.bf16.mxu0 0
        %818 = vmatpush1.bf16.msra.mxu0 %v799
        %819 = vmatprep.subr.bf16.mxu0 0
        %820 = vmatpush1.bf16.msra.mxu0 %v798
        %821 = vmatprep.subr.bf16.mxu0 0
        %822 = vmatpush2.bf16.msra.mxu0 0
        %823 = vmatprep.subr.bf16.mxu0 0
        %824 = vmatpush2.bf16.msra.mxu0 0
        %825 = vmatprep.subr.bf16.mxu0 0
        %826 = vmatpush2.bf16.msra.mxu0 0
        %827 = vmatprep.subr.bf16.mxu0 0
        %828 = vmatpush2.bf16.msra.mxu0 0
        %829 = vmatprep.subr.bf16.mxu0 0
        %830 = vmatpush2.bf16.msra.mxu0 0
        %831 = vmatprep.subr.bf16.mxu0 0
        %832 = vmatpush2.bf16.msra.mxu0 0
        %833 = vmatprep.subr.bf16.mxu0 0
        %834 = vmatpush2.bf16.msra.mxu0 0
        %835 = vmatprep.subr.bf16.mxu0 0
        %836 = vmatpush2.bf16.msra.mxu0 0
        %837 = vmatprep.mubr.bf16.mxu0 0
        %838 = vmatmul.mubr.bf16.gmra.mxu0 %v803
        %v839 = vpop.f32.mrf.mxu0
        %v840 = vadd.f32 %v789, %v839
        %v841 = vpop.f32.mrf.mxu0
        %v842 = vpop.f32.mrf.mxu0
        %v843 = vadd.f32 %v789, %v842
        %v844 = vpop.f32.mrf.mxu0
        %845 = vdwg.mxu0
        %v846 = vlaneseq
        %v847 = vshrl.u32 %v846, 7
        %v848 = vsub.s32 2, %v847
        %v849 = vrot.slane %v652, %v848
        %v854 = vunpack.c.l.b16 %v662
        %v855 = vunpack.c.l.b16 %v663
        %v856 = vunpack.c.l.b16 %v664
        %v857 = vunpack.c.l.b16 %v665
        %v858 = vpack.c.b16 %v855, %v854
        %v859 = vpack.c.b16 %v857, %v856
        %862 = vmatprep.subr.bf16.mxu0 0
        %863 = vmatpush1.bf16.msra.mxu0 0
        %864 = vmatprep.subr.bf16.mxu0 0
        %865 = vmatpush1.bf16.msra.mxu0 0
        %866 = vmatprep.subr.bf16.mxu0 0
        %867 = vmatpush1.bf16.msra.mxu0 0
        %868 = vmatprep.subr.bf16.mxu0 0
        %869 = vmatpush1.bf16.msra.mxu0 0
        %870 = vmatprep.subr.bf16.mxu0 0
        %871 = vmatpush1.bf16.msra.mxu0 0
        %872 = vmatprep.subr.bf16.mxu0 0
        %873 = vmatpush1.bf16.msra.mxu0 0
        %874 = vmatprep.subr.bf16.mxu0 0
        %875 = vmatpush1.bf16.msra.mxu0 %v859
        %876 = vmatprep.subr.bf16.mxu0 0
        %877 = vmatpush1.bf16.msra.mxu0 %v858
        %878 = vmatprep.subr.bf16.mxu0 0
        %879 = vmatpush2.bf16.msra.mxu0 0
        %880 = vmatprep.subr.bf16.mxu0 0
        %881 = vmatpush2.bf16.msra.mxu0 0
        %882 = vmatprep.subr.bf16.mxu0 0
        %883 = vmatpush2.bf16.msra.mxu0 0
        %884 = vmatprep.subr.bf16.mxu0 0
        %885 = vmatpush2.bf16.msra.mxu0 0
        %886 = vmatprep.subr.bf16.mxu0 0
        %887 = vmatpush2.bf16.msra.mxu0 0
        %888 = vmatprep.subr.bf16.mxu0 0
        %889 = vmatpush2.bf16.msra.mxu0 0
        %890 = vmatprep.subr.bf16.mxu0 0
        %891 = vmatpush2.bf16.msra.mxu0 0
        %892 = vmatprep.subr.bf16.mxu0 0
        %893 = vmatpush2.bf16.msra.mxu0 0
        %894 = vmatprep.mubr.bf16.mxu0 0
        %895 = vmatmul.mubr.bf16.gmra.mxu0 %v803
        %v896 = vpop.f32.mrf.mxu0
        %v897 = vadd.f32 %v849, %v896
        %v898 = vpop.f32.mrf.mxu0
        %v899 = vpop.f32.mrf.mxu0
        %v900 = vadd.f32 %v849, %v899
        %v901 = vpop.f32.mrf.mxu0
        %902 = vdwg.mxu0
        %v903 = vpack.c.bf16 %v648, %v647
        %v904 = vpack.c.bf16 %v650, %v649
        %v905 = vlaneseq
        %v906 = vshrl.u32 %v905, 7
        %v907 = vsub.s32 5, %v906
        %v908 = vrot.slane %v652, %v907
        %v913 = vunpack.c.l.b16 %v674
        %v914 = vunpack.c.l.b16 %v675
        %v915 = vunpack.c.l.b16 %v676
        %v916 = vunpack.c.l.b16 %v677
        %v917 = vpack.c.b16 %v914, %v913
        %v918 = vpack.c.b16 %v916, %v915
        %v922 = vsel %vm707, %v903, 0
        %v925 = vsel %vm707, %v904, 0
        %927 = vmatprep.subr.bf16.mxu0 0
        %928 = vmatpush1.bf16.msra.mxu0 0
        %929 = vmatprep.subr.bf16.mxu0 0
        %930 = vmatpush1.bf16.msra.mxu0 0
        %931 = vmatprep.subr.bf16.mxu0 0
        %932 = vmatpush1.bf16.msra.mxu0 0
        %933 = vmatprep.subr.bf16.mxu0 0
        %934 = vmatpush1.bf16.msra.mxu0 0
        %935 = vmatprep.subr.bf16.mxu0 0
        %936 = vmatpush1.bf16.msra.mxu0 0
        %937 = vmatprep.subr.bf16.mxu0 0
        %938 = vmatpush1.bf16.msra.mxu0 0
        %939 = vmatprep.subr.bf16.mxu0 0
        %940 = vmatpush1.bf16.msra.mxu0 %v918
        %941 = vmatprep.subr.bf16.mxu0 0
        %942 = vmatpush1.bf16.msra.mxu0 %v917
        %943 = vmatprep.subr.bf16.mxu0 0
        %944 = vmatpush2.bf16.msra.mxu0 0
        %945 = vmatprep.subr.bf16.mxu0 0
        %946 = vmatpush2.bf16.msra.mxu0 0
        %947 = vmatprep.subr.bf16.mxu0 0
        %948 = vmatpush2.bf16.msra.mxu0 0
        %949 = vmatprep.subr.bf16.mxu0 0
        %950 = vmatpush2.bf16.msra.mxu0 0
        %951 = vmatprep.subr.bf16.mxu0 0
        %952 = vmatpush2.bf16.msra.mxu0 0
        %953 = vmatprep.subr.bf16.mxu0 0
        %954 = vmatpush2.bf16.msra.mxu0 0
        %955 = vmatprep.subr.bf16.mxu0 0
        %956 = vmatpush2.bf16.msra.mxu0 0
        %957 = vmatprep.subr.bf16.mxu0 0
        %958 = vmatpush2.bf16.msra.mxu0 0
        %959 = vmatprep.mubr.bf16.mxu0 0
        %960 = vmatmul.mubr.bf16.gmra.mxu0 %v922
        %v961 = vpop.f32.mrf.mxu0
        %v962 = vadd.f32 %v908, %v961
        %v963 = vpop.f32.mrf.mxu0
        %v964 = vpop.f32.mrf.mxu0
        %v965 = vadd.f32 %v908, %v964
        %v966 = vpop.f32.mrf.mxu0
        %967 = vmatprep.mubr.bf16.mxu0 0
        %968 = vmatmul.mubr.bf16.gmra.mxu0 %v925
        %v969 = vpop.f32.mrf.mxu0
        %v970 = vadd.f32 %v908, %v969
        %v971 = vpop.f32.mrf.mxu0
        %v972 = vpop.f32.mrf.mxu0
        %v973 = vadd.f32 %v908, %v972
        %v974 = vpop.f32.mrf.mxu0
        %975 = vdwg.mxu0
        %v976 = vlaneseq
        %v977 = vshrl.u32 %v976, 7
        %v978 = vsub.s32 6, %v977
        %v979 = vrot.slane %v652, %v978
        %v984 = vunpack.c.l.b16 %v678
        %v985 = vunpack.c.l.b16 %v679
        %v986 = vunpack.c.l.b16 %v680
        %v987 = vunpack.c.l.b16 %v681
        %v988 = vpack.c.b16 %v985, %v984
        %v989 = vpack.c.b16 %v987, %v986
        %992 = vmatprep.subr.bf16.mxu0 0
        %993 = vmatpush1.bf16.msra.mxu0 0
        %994 = vmatprep.subr.bf16.mxu0 0
        %995 = vmatpush1.bf16.msra.mxu0 0
        %996 = vmatprep.subr.bf16.mxu0 0
        %997 = vmatpush1.bf16.msra.mxu0 0
        %998 = vmatprep.subr.bf16.mxu0 0
        %999 = vmatpush1.bf16.msra.mxu0 0
        %1000 = vmatprep.subr.bf16.mxu0 0
        %1001 = vmatpush1.bf16.msra.mxu0 0
        %1002 = vmatprep.subr.bf16.mxu0 0
        %1003 = vmatpush1.bf16.msra.mxu0 0
        %1004 = vmatprep.subr.bf16.mxu0 0
        %1005 = vmatpush1.bf16.msra.mxu0 %v989
        %1006 = vmatprep.subr.bf16.mxu0 0
        %1007 = vmatpush1.bf16.msra.mxu0 %v988
        %1008 = vmatprep.subr.bf16.mxu0 0
        %1009 = vmatpush2.bf16.msra.mxu0 0
        %1010 = vmatprep.subr.bf16.mxu0 0
        %1011 = vmatpush2.bf16.msra.mxu0 0
        %1012 = vmatprep.subr.bf16.mxu0 0
        %1013 = vmatpush2.bf16.msra.mxu0 0
        %1014 = vmatprep.subr.bf16.mxu0 0
        %1015 = vmatpush2.bf16.msra.mxu0 0
        %1016 = vmatprep.subr.bf16.mxu0 0
        %1017 = vmatpush2.bf16.msra.mxu0 0
        %1018 = vmatprep.subr.bf16.mxu0 0
        %1019 = vmatpush2.bf16.msra.mxu0 0
        %1020 = vmatprep.subr.bf16.mxu0 0
        %1021 = vmatpush2.bf16.msra.mxu0 0
        %1022 = vmatprep.subr.bf16.mxu0 0
        %1023 = vmatpush2.bf16.msra.mxu0 0
        %1024 = vmatprep.mubr.bf16.mxu0 0
        %1025 = vmatmul.mubr.bf16.gmra.mxu0 %v922
        %v1026 = vpop.f32.mrf.mxu0
        %v1027 = vadd.f32 %v979, %v1026
        %v1028 = vpop.f32.mrf.mxu0
        %v1029 = vpop.f32.mrf.mxu0
        %v1030 = vadd.f32 %v979, %v1029
        %v1031 = vpop.f32.mrf.mxu0
        %1032 = vmatprep.mubr.bf16.mxu0 0
        %1033 = vmatmul.mubr.bf16.gmra.mxu0 %v925
        %v1034 = vpop.f32.mrf.mxu0
        %v1035 = vadd.f32 %v979, %v1034
        %v1036 = vpop.f32.mrf.mxu0
        %v1037 = vpop.f32.mrf.mxu0
        %v1038 = vadd.f32 %v979, %v1037
        %v1039 = vpop.f32.mrf.mxu0
        %1040 = vdwg.mxu0
        %v1041 = vld [vmem:[%s605] sm:$0xff]
        %v1042 = vld [vmem:[%s605 + $0x8] sm:$0xff]
        %v1043 = vpack.c.bf16 %v746, %v745
        %v1044 = vlaneseq
        %v1045 = vshrl.u32 %v1044, 7
        %v1046 = vsub.s32 0, %v1045
        %v1047 = vrot.slane %v652, %v1046
        %v1052 = vunpack.c.l.b16 %v654
        %v1053 = vunpack.c.l.b16 %v655
        %v1054 = vunpack.c.l.b16 %v656
        %v1055 = vunpack.c.l.b16 %v657
        %v1056 = vpack.c.b16 %v1053, %v1052
        %v1057 = vpack.c.b16 %v1055, %v1054
        %v1061 = vsel %vm707, %v1043, 0
        %1063 = vmatprep.subr.bf16.mxu0 0
        %1064 = vmatpush1.bf16.msra.mxu0 0
        %1065 = vmatprep.subr.bf16.mxu0 0
        %1066 = vmatpush1.bf16.msra.mxu0 0
        %1067 = vmatprep.subr.bf16.mxu0 0
        %1068 = vmatpush1.bf16.msra.mxu0 0
        %1069 = vmatprep.subr.bf16.mxu0 0
        %1070 = vmatpush1.bf16.msra.mxu0 0
        %1071 = vmatprep.subr.bf16.mxu0 0
        %1072 = vmatpush1.bf16.msra.mxu0 0
        %1073 = vmatprep.subr.bf16.mxu0 0
        %1074 = vmatpush1.bf16.msra.mxu0 0
        %1075 = vmatprep.subr.bf16.mxu0 0
        %1076 = vmatpush1.bf16.msra.mxu0 %v1057
        %1077 = vmatprep.subr.bf16.mxu0 0
        %1078 = vmatpush1.bf16.msra.mxu0 %v1056
        %1079 = vmatprep.subr.bf16.mxu0 0
        %1080 = vmatpush2.bf16.msra.mxu0 0
        %1081 = vmatprep.subr.bf16.mxu0 0
        %1082 = vmatpush2.bf16.msra.mxu0 0
        %1083 = vmatprep.subr.bf16.mxu0 0
        %1084 = vmatpush2.bf16.msra.mxu0 0
        %1085 = vmatprep.subr.bf16.mxu0 0
        %1086 = vmatpush2.bf16.msra.mxu0 0
        %1087 = vmatprep.subr.bf16.mxu0 0
        %1088 = vmatpush2.bf16.msra.mxu0 0
        %1089 = vmatprep.subr.bf16.mxu0 0
        %1090 = vmatpush2.bf16.msra.mxu0 0
        %1091 = vmatprep.subr.bf16.mxu0 0
        %1092 = vmatpush2.bf16.msra.mxu0 0
        %1093 = vmatprep.subr.bf16.mxu0 0
        %1094 = vmatpush2.bf16.msra.mxu0 0
        %1095 = vmatprep.mubr.bf16.mxu0 0
        %1096 = vmatmul.mubr.bf16.gmra.mxu0 %v1061
        %v1097 = vpop.f32.mrf.mxu0
        %v1098 = vadd.f32 %v1047, %v1097
        %v1099 = vpop.f32.mrf.mxu0
        %v1100 = vpop.f32.mrf.mxu0
        %v1101 = vadd.f32 %v1047, %v1100
        %v1102 = vpop.f32.mrf.mxu0
        %1103 = vdwg.mxu0
        %v1104 = vpack.c.bf16 %v1098, %v1098
        %v1105 = vpack.c.bf16 %v1101, %v1101
        %v1106 = vpack.c.bf16 %v840, %v840
        %v1107 = vpack.c.bf16 %v843, %v843
        %vm1108 = vcmask 64512
        %v1110 = vsel %vm1108, %v1104, 0
        %v1113 = vsel %vm1108, %v1106, 0
        %1115 = vmatprep.subr.bf16.mxu0 0
        %1116 = vmatpush1.bf16.xpose.msra.mxu0 0
        %1117 = vmatprep.subr.bf16.mxu0 0
        %1118 = vmatpush1.bf16.xpose.msra.mxu0 0
        %1119 = vmatprep.subr.bf16.mxu0 0
        %1120 = vmatpush1.bf16.xpose.msra.mxu0 0
        %1121 = vmatprep.subr.bf16.mxu0 0
        %1122 = vmatpush1.bf16.xpose.msra.mxu0 0
        %1123 = vmatprep.subr.bf16.mxu0 0
        %1124 = vmatpush1.bf16.xpose.msra.mxu0 0
        %1125 = vmatprep.subr.bf16.mxu0 0
        %1126 = vmatpush1.bf16.xpose.msra.mxu0 0
        %1127 = vmatprep.subr.bf16.mxu0 0
        %1128 = vmatpush1.bf16.xpose.msra.mxu0 0
        %1129 = vmatprep.subr.bf16.mxu0 0
        %1130 = vmatpush1.bf16.xpose.msra.mxu0 %v1113
        %1131 = vmatprep.subr.bf16.mxu0 0
        %1132 = vmatpush2.bf16.xpose.msra.mxu0 0
        %1133 = vmatprep.subr.bf16.mxu0 0
        %1134 = vmatpush2.bf16.xpose.msra.mxu0 0
        %1135 = vmatprep.subr.bf16.mxu0 0
        %1136 = vmatpush2.bf16.xpose.msra.mxu0 0
        %1137 = vmatprep.subr.bf16.mxu0 0
        %1138 = vmatpush2.bf16.xpose.msra.mxu0 0
        %1139 = vmatprep.subr.bf16.mxu0 0
        %1140 = vmatpush2.bf16.xpose.msra.mxu0 0
        %1141 = vmatprep.subr.bf16.mxu0 0
        %1142 = vmatpush2.bf16.xpose.msra.mxu0 0
        %1143 = vmatprep.subr.bf16.mxu0 0
        %1144 = vmatpush2.bf16.xpose.msra.mxu0 0
        %1145 = vmatprep.subr.bf16.mxu0 0
        %1146 = vmatpush2.bf16.xpose.msra.mxu0 0
        %1147 = vmatprep.mubr.bf16.mxu0 0
        %1148 = vmatmul.mubr.bf16.gmra.mxu0 %v1110
        %v1149 = vpop.f32.mrf.mxu0
        %v1150 = vadd.f32 0.0, %v1149
        %v1151 = vpop.f32.mrf.mxu0
        %v1152 = vpop.f32.mrf.mxu0
        %v1153 = vpop.f32.mrf.mxu0
        %1154 = vdwg.mxu0
        %v1156 = vsel %vm1108, %v1105, 0
        %v1159 = vsel %vm1108, %v1107, 0
        %1161 = vmatprep.subr.bf16.mxu0 0
        %1162 = vmatpush1.bf16.xpose.msra.mxu0 0
        %1163 = vmatprep.subr.bf16.mxu0 0
        %1164 = vmatpush1.bf16.xpose.msra.mxu0 0
        %1165 = vmatprep.subr.bf16.mxu0 0
        %1166 = vmatpush1.bf16.xpose.msra.mxu0 0
        %1167 = vmatprep.subr.bf16.mxu0 0
        %1168 = vmatpush1.bf16.xpose.msra.mxu0 0
        %1169 = vmatprep.subr.bf16.mxu0 0
        %1170 = vmatpush1.bf16.xpose.msra.mxu0 0
        %1171 = vmatprep.subr.bf16.mxu0 0
        %1172 = vmatpush1.bf16.xpose.msra.mxu0 0
        %1173 = vmatprep.subr.bf16.mxu0 0
        %1174 = vmatpush1.bf16.xpose.msra.mxu0 0
        %1175 = vmatprep.subr.bf16.mxu0 0
        %1176 = vmatpush1.bf16.xpose.msra.mxu0 %v1159
        %1177 = vmatprep.subr.bf16.mxu0 0
        %1178 = vmatpush2.bf16.xpose.msra.mxu0 0
        %1179 = vmatprep.subr.bf16.mxu0 0
        %1180 = vmatpush2.bf16.xpose.msra.mxu0 0
        %1181 = vmatprep.subr.bf16.mxu0 0
        %1182 = vmatpush2.bf16.xpose.msra.mxu0 0
        %1183 = vmatprep.subr.bf16.mxu0 0
        %1184 = vmatpush2.bf16.xpose.msra.mxu0 0
        %1185 = vmatprep.subr.bf16.mxu0 0
        %1186 = vmatpush2.bf16.xpose.msra.mxu0 0
        %1187 = vmatprep.subr.bf16.mxu0 0
        %1188 = vmatpush2.bf16.xpose.msra.mxu0 0
        %1189 = vmatprep.subr.bf16.mxu0 0
        %1190 = vmatpush2.bf16.xpose.msra.mxu0 0
        %1191 = vmatprep.subr.bf16.mxu0 0
        %1192 = vmatpush2.bf16.xpose.msra.mxu0 0
        %1193 = vmatprep.mubr.bf16.mxu0 0
        %1194 = vmatmul.mubr.bf16.gmra.mxu0 %v1156
        %v1195 = vpop.f32.mrf.mxu0
        %v1196 = vadd.f32 0.0, %v1195
        %v1197 = vpop.f32.mrf.mxu0
        %v1198 = vpop.f32.mrf.mxu0
        %v1199 = vpop.f32.mrf.mxu0
        %1200 = vdwg.mxu0
        %v1201 = vmul.f32 %v1150, 0.35355338
        %v1202 = vmul.f32 %v1196, 0.35355338
        %v1203 = vadd.f32 %v1201, %v1041
        %v1204 = vadd.f32 %v1202, %v1042
        %v1205 = vsel %vm1108, %v1203, -inf
        %1206 = vmax.xlane.f32.xlu0 %v1205
        %v1207 = vpop.xlane.xlu0 %1206
        %v1208 = vsel %vm1108, %v1204, -inf
        %1209 = vmax.xlane.f32.xlu0 %v1208
        %v1210 = vpop.xlane.xlu0 %1209
        %v1211 = vsub.f32 %v1203, %v1207
        %v1212 = vsub.f32 %v1204, %v1210
        %v1213 = vmul.f32 %v1211, 1.442695
        %v1214 = vpow.pop %v1213
        %v1215 = vmul.f32 %v1212, 1.442695
        %v1216 = vpow.pop %v1215
        %v1217 = vsel %vm1108, %v1214, 0.0
        %1218 = vadd.xlane.f32.xlu0 %v1217
        %v1219 = vpop.xlane.xlu0 %1218
        %v1220 = vsel %vm1108, %v1216, 0.0
        %1221 = vadd.xlane.f32.xlu0 %v1220
        %v1222 = vpop.xlane.xlu0 %1221
        %v1223 = vrcp.pop %v1219
        %v1224 = vrcp.pop %v1222
        %v1225 = vmul.f32 %v1214, %v1223
        %v1226 = vmul.f32 %v1216, %v1224
        %v1227 = vpack.c.bf16 %v1225, %v1225
        %v1228 = vpack.c.bf16 %v1226, %v1226
        %v1229 = vpack.c.bf16 %v897, %v897
        %v1230 = vpack.c.bf16 %v900, %v900
        %v1232 = vsel %vm1108, %v1227, 0
        %vm1234 = vcmask 1043456
        %v1236 = vsel %vm1234, %v1229, 0
        %1238 = vmatprep.subr.bf16.mxu0 0
        %1239 = vmatpush1.bf16.msra.mxu0 0
        %1240 = vmatprep.subr.bf16.mxu0 0
        %1241 = vmatpush1.bf16.msra.mxu0 0
        %1242 = vmatprep.subr.bf16.mxu0 0
        %1243 = vmatpush1.bf16.msra.mxu0 0
        %1244 = vmatprep.subr.bf16.mxu0 0
        %1245 = vmatpush1.bf16.msra.mxu0 0
        %1246 = vmatprep.subr.bf16.mxu0 0
        %1247 = vmatpush1.bf16.msra.mxu0 0
        %1248 = vmatprep.subr.bf16.mxu0 0
        %1249 = vmatpush1.bf16.msra.mxu0 0
        %1250 = vmatprep.subr.bf16.mxu0 0
        %1251 = vmatpush1.bf16.msra.mxu0 0
        %1252 = vmatprep.subr.bf16.mxu0 0
        %1253 = vmatpush1.bf16.msra.mxu0 %v1236
        %1254 = vmatprep.subr.bf16.mxu0 0
        %1255 = vmatpush2.bf16.msra.mxu0 0
        %1256 = vmatprep.subr.bf16.mxu0 0
        %1257 = vmatpush2.bf16.msra.mxu0 0
        %1258 = vmatprep.subr.bf16.mxu0 0
        %1259 = vmatpush2.bf16.msra.mxu0 0
        %1260 = vmatprep.subr.bf16.mxu0 0
        %1261 = vmatpush2.bf16.msra.mxu0 0
        %1262 = vmatprep.subr.bf16.mxu0 0
        %1263 = vmatpush2.bf16.msra.mxu0 0
        %1264 = vmatprep.subr.bf16.mxu0 0
        %1265 = vmatpush2.bf16.msra.mxu0 0
        %1266 = vmatprep.subr.bf16.mxu0 0
        %1267 = vmatpush2.bf16.msra.mxu0 0
        %1268 = vmatprep.subr.bf16.mxu0 0
        %1269 = vmatpush2.bf16.msra.mxu0 0
        %1270 = vmatprep.mubr.bf16.mxu0 0
        %1271 = vmatmul.mubr.bf16.gmra.mxu0 %v1232
        %v1272 = vpop.f32.mrf.mxu0
        %v1273 = vadd.f32 0.0, %v1272
        %v1274 = vpop.f32.mrf.mxu0
        %v1275 = vpop.f32.mrf.mxu0
        %v1276 = vpop.f32.mrf.mxu0
        %1277 = vdwg.mxu0
        %v1279 = vsel %vm1108, %v1228, 0
        %v1282 = vsel %vm1234, %v1230, 0
        %1284 = vmatprep.subr.bf16.mxu0 0
        %1285 = vmatpush1.bf16.msra.mxu0 0
        %1286 = vmatprep.subr.bf16.mxu0 0
        %1287 = vmatpush1.bf16.msra.mxu0 0
        %1288 = vmatprep.subr.bf16.mxu0 0
        %1289 = vmatpush1.bf16.msra.mxu0 0
        %1290 = vmatprep.subr.bf16.mxu0 0
        %1291 = vmatpush1.bf16.msra.mxu0 0
        %1292 = vmatprep.subr.bf16.mxu0 0
        %1293 = vmatpush1.bf16.msra.mxu0 0
        %1294 = vmatprep.subr.bf16.mxu0 0
        %1295 = vmatpush1.bf16.msra.mxu0 0
        %1296 = vmatprep.subr.bf16.mxu0 0
        %1297 = vmatpush1.bf16.msra.mxu0 0
        %1298 = vmatprep.subr.bf16.mxu0 0
        %1299 = vmatpush1.bf16.msra.mxu0 %v1282
        %1300 = vmatprep.subr.bf16.mxu0 0
        %1301 = vmatpush2.bf16.msra.mxu0 0
        %1302 = vmatprep.subr.bf16.mxu0 0
        %1303 = vmatpush2.bf16.msra.mxu0 0
        %1304 = vmatprep.subr.bf16.mxu0 0
        %1305 = vmatpush2.bf16.msra.mxu0 0
        %1306 = vmatprep.subr.bf16.mxu0 0
        %1307 = vmatpush2.bf16.msra.mxu0 0
        %1308 = vmatprep.subr.bf16.mxu0 0
        %1309 = vmatpush2.bf16.msra.mxu0 0
        %1310 = vmatprep.subr.bf16.mxu0 0
        %1311 = vmatpush2.bf16.msra.mxu0 0
        %1312 = vmatprep.subr.bf16.mxu0 0
        %1313 = vmatpush2.bf16.msra.mxu0 0
        %1314 = vmatprep.subr.bf16.mxu0 0
        %1315 = vmatpush2.bf16.msra.mxu0 0
        %1316 = vmatprep.mubr.bf16.mxu0 0
        %1317 = vmatmul.mubr.bf16.gmra.mxu0 %v1279
        %v1318 = vpop.f32.mrf.mxu0
        %v1319 = vadd.f32 0.0, %v1318
        %v1320 = vpop.f32.mrf.mxu0
        %v1321 = vpop.f32.mrf.mxu0
        %v1322 = vpop.f32.mrf.mxu0
        %1323 = vdwg.mxu0
        %1325 = vrot.lane.b32.xlu0 %v1104, 120
        %v1326 = vpop.permute.xlu0 %1325
        %1328 = vrot.lane.b32.xlu0 %v1106, 120
        %v1329 = vpop.permute.xlu0 %1328
        %v1331 = vsel %vm1108, %v1326, 0
        %v1334 = vsel %vm1108, %v1329, 0
        %1336 = vmatprep.subr.bf16.mxu0 0
        %1337 = vmatpush1.bf16.xpose.msra.mxu0 0
        %1338 = vmatprep.subr.bf16.mxu0 0
        %1339 = vmatpush1.bf16.xpose.msra.mxu0 0
        %1340 = vmatprep.subr.bf16.mxu0 0
        %1341 = vmatpush1.bf16.xpose.msra.mxu0 0
        %1342 = vmatprep.subr.bf16.mxu0 0
        %1343 = vmatpush1.bf16.xpose.msra.mxu0 0
        %1344 = vmatprep.subr.bf16.mxu0 0
        %1345 = vmatpush1.bf16.xpose.msra.mxu0 0
        %1346 = vmatprep.subr.bf16.mxu0 0
        %1347 = vmatpush1.bf16.xpose.msra.mxu0 0
        %1348 = vmatprep.subr.bf16.mxu0 0
        %1349 = vmatpush1.bf16.xpose.msra.mxu0 0
        %1350 = vmatprep.subr.bf16.mxu0 0
        %1351 = vmatpush1.bf16.xpose.msra.mxu0 %v1334
        %1352 = vmatprep.subr.bf16.mxu0 0
        %1353 = vmatpush2.bf16.xpose.msra.mxu0 0
        %1354 = vmatprep.subr.bf16.mxu0 0
        %1355 = vmatpush2.bf16.xpose.msra.mxu0 0
        %1356 = vmatprep.subr.bf16.mxu0 0
        %1357 = vmatpush2.bf16.xpose.msra.mxu0 0
        %1358 = vmatprep.subr.bf16.mxu0 0
        %1359 = vmatpush2.bf16.xpose.msra.mxu0 0
        %1360 = vmatprep.subr.bf16.mxu0 0
        %1361 = vmatpush2.bf16.xpose.msra.mxu0 0
        %1362 = vmatprep.subr.bf16.mxu0 0
        %1363 = vmatpush2.bf16.xpose.msra.mxu0 0
        %1364 = vmatprep.subr.bf16.mxu0 0
        %1365 = vmatpush2.bf16.xpose.msra.mxu0 0
        %1366 = vmatprep.subr.bf16.mxu0 0
        %1367 = vmatpush2.bf16.xpose.msra.mxu0 0
        %1368 = vmatprep.mubr.bf16.mxu0 0
        %1369 = vmatmul.mubr.bf16.gmra.mxu0 %v1331
        %v1370 = vpop.f32.mrf.mxu0
        %v1371 = vadd.f32 0.0, %v1370
        %v1372 = vpop.f32.mrf.mxu0
        %v1373 = vpop.f32.mrf.mxu0
        %v1374 = vpop.f32.mrf.mxu0
        %1375 = vdwg.mxu0
        %1377 = vrot.lane.b32.xlu0 %v1105, 120
        %v1378 = vpop.permute.xlu0 %1377
        %1380 = vrot.lane.b32.xlu0 %v1107, 120
        %v1381 = vpop.permute.xlu0 %1380
        %v1383 = vsel %vm1108, %v1378, 0
        %v1386 = vsel %vm1108, %v1381, 0
        %1388 = vmatprep.subr.bf16.mxu0 0
        %1389 = vmatpush1.bf16.xpose.msra.mxu0 0
        %1390 = vmatprep.subr.bf16.mxu0 0
        %1391 = vmatpush1.bf16.xpose.msra.mxu0 0
        %1392 = vmatprep.subr.bf16.mxu0 0
        %1393 = vmatpush1.bf16.xpose.msra.mxu0 0
        %1394 = vmatprep.subr.bf16.mxu0 0
        %1395 = vmatpush1.bf16.xpose.msra.mxu0 0
        %1396 = vmatprep.subr.bf16.mxu0 0
        %1397 = vmatpush1.bf16.xpose.msra.mxu0 0
        %1398 = vmatprep.subr.bf16.mxu0 0
        %1399 = vmatpush1.bf16.xpose.msra.mxu0 0
        %1400 = vmatprep.subr.bf16.mxu0 0
        %1401 = vmatpush1.bf16.xpose.msra.mxu0 0
        %1402 = vmatprep.subr.bf16.mxu0 0
        %1403 = vmatpush1.bf16.xpose.msra.mxu0 %v1386
        %1404 = vmatprep.subr.bf16.mxu0 0
        %1405 = vmatpush2.bf16.xpose.msra.mxu0 0
        %1406 = vmatprep.subr.bf16.mxu0 0
        %1407 = vmatpush2.bf16.xpose.msra.mxu0 0
        %1408 = vmatprep.subr.bf16.mxu0 0
        %1409 = vmatpush2.bf16.xpose.msra.mxu0 0
        %1410 = vmatprep.subr.bf16.mxu0 0
        %1411 = vmatpush2.bf16.xpose.msra.mxu0 0
        %1412 = vmatprep.subr.bf16.mxu0 0
        %1413 = vmatpush2.bf16.xpose.msra.mxu0 0
        %1414 = vmatprep.subr.bf16.mxu0 0
        %1415 = vmatpush2.bf16.xpose.msra.mxu0 0
        %1416 = vmatprep.subr.bf16.mxu0 0
        %1417 = vmatpush2.bf16.xpose.msra.mxu0 0
        %1418 = vmatprep.subr.bf16.mxu0 0
        %1419 = vmatpush2.bf16.xpose.msra.mxu0 0
        %1420 = vmatprep.mubr.bf16.mxu0 0
        %1421 = vmatmul.mubr.bf16.gmra.mxu0 %v1383
        %v1422 = vpop.f32.mrf.mxu0
        %v1423 = vadd.f32 0.0, %v1422
        %v1424 = vpop.f32.mrf.mxu0
        %v1425 = vpop.f32.mrf.mxu0
        %v1426 = vpop.f32.mrf.mxu0
        %1427 = vdwg.mxu0
        %v1428 = vmul.f32 %v1371, 0.35355338
        %v1429 = vmul.f32 %v1423, 0.35355338
        %v1430 = vadd.f32 %v1428, %v1041
        %v1431 = vadd.f32 %v1429, %v1042
        %v1432 = vsel %vm1108, %v1430, -inf
        %1433 = vmax.xlane.f32.xlu0 %v1432
        %v1434 = vpop.xlane.xlu0 %1433
        %v1435 = vsel %vm1108, %v1431, -inf
        %1436 = vmax.xlane.f32.xlu0 %v1435
        %v1437 = vpop.xlane.xlu0 %1436
        %v1438 = vsub.f32 %v1430, %v1434
        %v1439 = vsub.f32 %v1431, %v1437
        %v1440 = vmul.f32 %v1438, 1.442695
        %v1441 = vpow.pop %v1440
        %v1442 = vmul.f32 %v1439, 1.442695
        %v1443 = vpow.pop %v1442
        %v1444 = vsel %vm1108, %v1441, 0.0
        %1445 = vadd.xlane.f32.xlu0 %v1444
        %v1446 = vpop.xlane.xlu0 %1445
        %v1447 = vsel %vm1108, %v1443, 0.0
        %1448 = vadd.xlane.f32.xlu0 %v1447
        %v1449 = vpop.xlane.xlu0 %1448
        %v1450 = vrcp.pop %v1446
        %v1451 = vrcp.pop %v1449
        %v1452 = vmul.f32 %v1441, %v1450
        %v1453 = vmul.f32 %v1443, %v1451
        %v1454 = vpack.c.bf16 %v1452, %v1452
        %v1455 = vpack.c.bf16 %v1453, %v1453
        %1457 = vrot.lane.b32.xlu0 %v1229, 120
        %v1458 = vpop.permute.xlu0 %1457
        %v1460 = vsel %vm1108, %v1454, 0
        %v1463 = vsel %vm1234, %v1458, 0
        %1465 = vmatprep.subr.bf16.mxu0 0
        %1466 = vmatpush1.bf16.msra.mxu0 0
        %1467 = vmatprep.subr.bf16.mxu0 0
        %1468 = vmatpush1.bf16.msra.mxu0 0
        %1469 = vmatprep.subr.bf16.mxu0 0
        %1470 = vmatpush1.bf16.msra.mxu0 0
        %1471 = vmatprep.subr.bf16.mxu0 0
        %1472 = vmatpush1.bf16.msra.mxu0 0
        %1473 = vmatprep.subr.bf16.mxu0 0
        %1474 = vmatpush1.bf16.msra.mxu0 0
        %1475 = vmatprep.subr.bf16.mxu0 0
        %1476 = vmatpush1.bf16.msra.mxu0 0
        %1477 = vmatprep.subr.bf16.mxu0 0
        %1478 = vmatpush1.bf16.msra.mxu0 0
        %1479 = vmatprep.subr.bf16.mxu0 0
        %1480 = vmatpush1.bf16.msra.mxu0 %v1463
        %1481 = vmatprep.subr.bf16.mxu0 0
        %1482 = vmatpush2.bf16.msra.mxu0 0
        %1483 = vmatprep.subr.bf16.mxu0 0
        %1484 = vmatpush2.bf16.msra.mxu0 0
        %1485 = vmatprep.subr.bf16.mxu0 0
        %1486 = vmatpush2.bf16.msra.mxu0 0
        %1487 = vmatprep.subr.bf16.mxu0 0
        %1488 = vmatpush2.bf16.msra.mxu0 0
        %1489 = vmatprep.subr.bf16.mxu0 0
        %1490 = vmatpush2.bf16.msra.mxu0 0
        %1491 = vmatprep.subr.bf16.mxu0 0
        %1492 = vmatpush2.bf16.msra.mxu0 0
        %1493 = vmatprep.subr.bf16.mxu0 0
        %1494 = vmatpush2.bf16.msra.mxu0 0
        %1495 = vmatprep.subr.bf16.mxu0 0
        %1496 = vmatpush2.bf16.msra.mxu0 0
        %1497 = vmatprep.mubr.bf16.mxu0 0
        %1498 = vmatmul.mubr.bf16.gmra.mxu0 %v1460
        %v1499 = vpop.f32.mrf.mxu0
        %v1500 = vadd.f32 0.0, %v1499
        %v1501 = vpop.f32.mrf.mxu0
        %v1502 = vpop.f32.mrf.mxu0
        %v1503 = vpop.f32.mrf.mxu0
        %1504 = vdwg.mxu0
        %1506 = vrot.lane.b32.xlu0 %v1230, 120
        %v1507 = vpop.permute.xlu0 %1506
        %v1509 = vsel %vm1108, %v1455, 0
        %v1512 = vsel %vm1234, %v1507, 0
        %1514 = vmatprep.subr.bf16.mxu0 0
        %1515 = vmatpush1.bf16.msra.mxu0 0
        %1516 = vmatprep.subr.bf16.mxu0 0
        %1517 = vmatpush1.bf16.msra.mxu0 0
        %1518 = vmatprep.subr.bf16.mxu0 0
        %1519 = vmatpush1.bf16.msra.mxu0 0
        %1520 = vmatprep.subr.bf16.mxu0 0
        %1521 = vmatpush1.bf16.msra.mxu0 0
        %1522 = vmatprep.subr.bf16.mxu0 0
        %1523 = vmatpush1.bf16.msra.mxu0 0
        %1524 = vmatprep.subr.bf16.mxu0 0
        %1525 = vmatpush1.bf16.msra.mxu0 0
        %1526 = vmatprep.subr.bf16.mxu0 0
        %1527 = vmatpush1.bf16.msra.mxu0 0
        %1528 = vmatprep.subr.bf16.mxu0 0
        %1529 = vmatpush1.bf16.msra.mxu0 %v1512
        %1530 = vmatprep.subr.bf16.mxu0 0
        %1531 = vmatpush2.bf16.msra.mxu0 0
        %1532 = vmatprep.subr.bf16.mxu0 0
        %1533 = vmatpush2.bf16.msra.mxu0 0
        %1534 = vmatprep.subr.bf16.mxu0 0
        %1535 = vmatpush2.bf16.msra.mxu0 0
        %1536 = vmatprep.subr.bf16.mxu0 0
        %1537 = vmatpush2.bf16.msra.mxu0 0
        %1538 = vmatprep.subr.bf16.mxu0 0
        %1539 = vmatpush2.bf16.msra.mxu0 0
        %1540 = vmatprep.subr.bf16.mxu0 0
        %1541 = vmatpush2.bf16.msra.mxu0 0
        %1542 = vmatprep.subr.bf16.mxu0 0
        %1543 = vmatpush2.bf16.msra.mxu0 0
        %1544 = vmatprep.subr.bf16.mxu0 0
        %1545 = vmatpush2.bf16.msra.mxu0 0
        %1546 = vmatprep.mubr.bf16.mxu0 0
        %1547 = vmatmul.mubr.bf16.gmra.mxu0 %v1509
        %v1548 = vpop.f32.mrf.mxu0
        %v1549 = vadd.f32 0.0, %v1548
        %v1550 = vpop.f32.mrf.mxu0
        %v1551 = vpop.f32.mrf.mxu0
        %v1552 = vpop.f32.mrf.mxu0
        %1553 = vdwg.mxu0
        %1554 = vrot.lane.b32.xlu0 %v1104, 112
        %v1555 = vpop.permute.xlu0 %1554
        %1556 = vrot.lane.b32.xlu0 %v1106, 112
        %v1557 = vpop.permute.xlu0 %1556
        %v1559 = vsel %vm1108, %v1555, 0
        %v1562 = vsel %vm1108, %v1557, 0
        %1564 = vmatprep.subr.bf16.mxu0 0
        %1565 = vmatpush1.bf16.xpose.msra.mxu0 0
        %1566 = vmatprep.subr.bf16.mxu0 0
        %1567 = vmatpush1.bf16.xpose.msra.mxu0 0
        %1568 = vmatprep.subr.bf16.mxu0 0
        %1569 = vmatpush1.bf16.xpose.msra.mxu0 0
        %1570 = vmatprep.subr.bf16.mxu0 0
        %1571 = vmatpush1.bf16.xpose.msra.mxu0 0
        %1572 = vmatprep.subr.bf16.mxu0 0
        %1573 = vmatpush1.bf16.xpose.msra.mxu0 0
        %1574 = vmatprep.subr.bf16.mxu0 0
        %1575 = vmatpush1.bf16.xpose.msra.mxu0 0
        %1576 = vmatprep.subr.bf16.mxu0 0
        %1577 = vmatpush1.bf16.xpose.msra.mxu0 0
        %1578 = vmatprep.subr.bf16.mxu0 0
        %1579 = vmatpush1.bf16.xpose.msra.mxu0 %v1562
        %1580 = vmatprep.subr.bf16.mxu0 0
        %1581 = vmatpush2.bf16.xpose.msra.mxu0 0
        %1582 = vmatprep.subr.bf16.mxu0 0
        %1583 = vmatpush2.bf16.xpose.msra.mxu0 0
        %1584 = vmatprep.subr.bf16.mxu0 0
        %1585 = vmatpush2.bf16.xpose.msra.mxu0 0
        %1586 = vmatprep.subr.bf16.mxu0 0
        %1587 = vmatpush2.bf16.xpose.msra.mxu0 0
        %1588 = vmatprep.subr.bf16.mxu0 0
        %1589 = vmatpush2.bf16.xpose.msra.mxu0 0
        %1590 = vmatprep.subr.bf16.mxu0 0
        %1591 = vmatpush2.bf16.xpose.msra.mxu0 0
        %1592 = vmatprep.subr.bf16.mxu0 0
        %1593 = vmatpush2.bf16.xpose.msra.mxu0 0
        %1594 = vmatprep.subr.bf16.mxu0 0
        %1595 = vmatpush2.bf16.xpose.msra.mxu0 0
        %1596 = vmatprep.mubr.bf16.mxu0 0
        %1597 = vmatmul.mubr.bf16.gmra.mxu0 %v1559
        %v1598 = vpop.f32.mrf.mxu0
        %v1599 = vadd.f32 0.0, %v1598
        %v1600 = vpop.f32.mrf.mxu0
        %v1601 = vpop.f32.mrf.mxu0
        %v1602 = vpop.f32.mrf.mxu0
        %1603 = vdwg.mxu0
        %1604 = vrot.lane.b32.xlu0 %v1105, 112
        %v1605 = vpop.permute.xlu0 %1604
        %1606 = vrot.lane.b32.xlu0 %v1107, 112
        %v1607 = vpop.permute.xlu0 %1606
        %v1609 = vsel %vm1108, %v1605, 0
        %v1612 = vsel %vm1108, %v1607, 0
        %1614 = vmatprep.subr.bf16.mxu0 0
        %1615 = vmatpush1.bf16.xpose.msra.mxu0 0
        %1616 = vmatprep.subr.bf16.mxu0 0
        %1617 = vmatpush1.bf16.xpose.msra.mxu0 0
        %1618 = vmatprep.subr.bf16.mxu0 0
        %1619 = vmatpush1.bf16.xpose.msra.mxu0 0
        %1620 = vmatprep.subr.bf16.mxu0 0
        %1621 = vmatpush1.bf16.xpose.msra.mxu0 0
        %1622 = vmatprep.subr.bf16.mxu0 0
        %1623 = vmatpush1.bf16.xpose.msra.mxu0 0
        %1624 = vmatprep.subr.bf16.mxu0 0
        %1625 = vmatpush1.bf16.xpose.msra.mxu0 0
        %1626 = vmatprep.subr.bf16.mxu0 0
        %1627 = vmatpush1.bf16.xpose.msra.mxu0 0
        %1628 = vmatprep.subr.bf16.mxu0 0
        %1629 = vmatpush1.bf16.xpose.msra.mxu0 %v1612
        %1630 = vmatprep.subr.bf16.mxu0 0
        %1631 = vmatpush2.bf16.xpose.msra.mxu0 0
        %1632 = vmatprep.subr.bf16.mxu0 0
        %1633 = vmatpush2.bf16.xpose.msra.mxu0 0
        %1634 = vmatprep.subr.bf16.mxu0 0
        %1635 = vmatpush2.bf16.xpose.msra.mxu0 0
        %1636 = vmatprep.subr.bf16.mxu0 0
        %1637 = vmatpush2.bf16.xpose.msra.mxu0 0
        %1638 = vmatprep.subr.bf16.mxu0 0
        %1639 = vmatpush2.bf16.xpose.msra.mxu0 0
        %1640 = vmatprep.subr.bf16.mxu0 0
        %1641 = vmatpush2.bf16.xpose.msra.mxu0 0
        %1642 = vmatprep.subr.bf16.mxu0 0
        %1643 = vmatpush2.bf16.xpose.msra.mxu0 0
        %1644 = vmatprep.subr.bf16.mxu0 0
        %1645 = vmatpush2.bf16.xpose.msra.mxu0 0
        %1646 = vmatprep.mubr.bf16.mxu0 0
        %1647 = vmatmul.mubr.bf16.gmra.mxu0 %v1609
        %v1648 = vpop.f32.mrf.mxu0
        %v1649 = vadd.f32 0.0, %v1648
        %v1650 = vpop.f32.mrf.mxu0
        %v1651 = vpop.f32.mrf.mxu0
        %v1652 = vpop.f32.mrf.mxu0
        %1653 = vdwg.mxu0
        %v1654 = vmul.f32 %v1599, 0.35355338
        %v1655 = vmul.f32 %v1649, 0.35355338
        %v1656 = vadd.f32 %v1654, %v1041
        %v1657 = vadd.f32 %v1655, %v1042
        %v1658 = vsel %vm1108, %v1656, -inf
        %1659 = vmax.xlane.f32.xlu0 %v1658
        %v1660 = vpop.xlane.xlu0 %1659
        %v1661 = vsel %vm1108, %v1657, -inf
        %1662 = vmax.xlane.f32.xlu0 %v1661
        %v1663 = vpop.xlane.xlu0 %1662
        %v1664 = vsub.f32 %v1656, %v1660
        %v1665 = vsub.f32 %v1657, %v1663
        %v1666 = vmul.f32 %v1664, 1.442695
        %v1667 = vpow.pop %v1666
        %v1668 = vmul.f32 %v1665, 1.442695
        %v1669 = vpow.pop %v1668
        %v1670 = vsel %vm1108, %v1667, 0.0
        %1671 = vadd.xlane.f32.xlu0 %v1670
        %v1672 = vpop.xlane.xlu0 %1671
        %v1673 = vsel %vm1108, %v1669, 0.0
        %1674 = vadd.xlane.f32.xlu0 %v1673
        %v1675 = vpop.xlane.xlu0 %1674
        %v1676 = vrcp.pop %v1672
        %v1677 = vrcp.pop %v1675
        %v1678 = vmul.f32 %v1667, %v1676
        %v1679 = vmul.f32 %v1669, %v1677
        %v1680 = vpack.c.bf16 %v1678, %v1678
        %v1681 = vpack.c.bf16 %v1679, %v1679
        %1682 = vrot.lane.b32.xlu0 %v1229, 112
        %v1683 = vpop.permute.xlu0 %1682
        %v1685 = vsel %vm1108, %v1680, 0
        %v1688 = vsel %vm1234, %v1683, 0
        %1690 = vmatprep.subr.bf16.mxu0 0
        %1691 = vmatpush1.bf16.msra.mxu0 0
        %1692 = vmatprep.subr.bf16.mxu0 0
        %1693 = vmatpush1.bf16.msra.mxu0 0
        %1694 = vmatprep.subr.bf16.mxu0 0
        %1695 = vmatpush1.bf16.msra.mxu0 0
        %1696 = vmatprep.subr.bf16.mxu0 0
        %1697 = vmatpush1.bf16.msra.mxu0 0
        %1698 = vmatprep.subr.bf16.mxu0 0
        %1699 = vmatpush1.bf16.msra.mxu0 0
        %1700 = vmatprep.subr.bf16.mxu0 0
        %1701 = vmatpush1.bf16.msra.mxu0 0
        %1702 = vmatprep.subr.bf16.mxu0 0
        %1703 = vmatpush1.bf16.msra.mxu0 0
        %1704 = vmatprep.subr.bf16.mxu0 0
        %1705 = vmatpush1.bf16.msra.mxu0 %v1688
        %1706 = vmatprep.subr.bf16.mxu0 0
        %1707 = vmatpush2.bf16.msra.mxu0 0
        %1708 = vmatprep.subr.bf16.mxu0 0
        %1709 = vmatpush2.bf16.msra.mxu0 0
        %1710 = vmatprep.subr.bf16.mxu0 0
        %1711 = vmatpush2.bf16.msra.mxu0 0
        %1712 = vmatprep.subr.bf16.mxu0 0
        %1713 = vmatpush2.bf16.msra.mxu0 0
        %1714 = vmatprep.subr.bf16.mxu0 0
        %1715 = vmatpush2.bf16.msra.mxu0 0
        %1716 = vmatprep.subr.bf16.mxu0 0
        %1717 = vmatpush2.bf16.msra.mxu0 0
        %1718 = vmatprep.subr.bf16.mxu0 0
        %1719 = vmatpush2.bf16.msra.mxu0 0
        %1720 = vmatprep.subr.bf16.mxu0 0
        %1721 = vmatpush2.bf16.msra.mxu0 0
        %1722 = vmatprep.mubr.bf16.mxu0 0
        %1723 = vmatmul.mubr.bf16.gmra.mxu0 %v1685
        %v1724 = vpop.f32.mrf.mxu0
        %v1725 = vadd.f32 0.0, %v1724
        %v1726 = vpop.f32.mrf.mxu0
        %v1727 = vpop.f32.mrf.mxu0
        %v1728 = vpop.f32.mrf.mxu0
        %1729 = vdwg.mxu0
        %1730 = vrot.lane.b32.xlu0 %v1230, 112
        %v1731 = vpop.permute.xlu0 %1730
        %v1733 = vsel %vm1108, %v1681, 0
        %v1736 = vsel %vm1234, %v1731, 0
        %1738 = vmatprep.subr.bf16.mxu0 0
        %1739 = vmatpush1.bf16.msra.mxu0 0
        %1740 = vmatprep.subr.bf16.mxu0 0
        %1741 = vmatpush1.bf16.msra.mxu0 0
        %1742 = vmatprep.subr.bf16.mxu0 0
        %1743 = vmatpush1.bf16.msra.mxu0 0
        %1744 = vmatprep.subr.bf16.mxu0 0
        %1745 = vmatpush1.bf16.msra.mxu0 0
        %1746 = vmatprep.subr.bf16.mxu0 0
        %1747 = vmatpush1.bf16.msra.mxu0 0
        %1748 = vmatprep.subr.bf16.mxu0 0
        %1749 = vmatpush1.bf16.msra.mxu0 0
        %1750 = vmatprep.subr.bf16.mxu0 0
        %1751 = vmatpush1.bf16.msra.mxu0 0
        %1752 = vmatprep.subr.bf16.mxu0 0
        %1753 = vmatpush1.bf16.msra.mxu0 %v1736
        %1754 = vmatprep.subr.bf16.mxu0 0
        %1755 = vmatpush2.bf16.msra.mxu0 0
        %1756 = vmatprep.subr.bf16.mxu0 0
        %1757 = vmatpush2.bf16.msra.mxu0 0
        %1758 = vmatprep.subr.bf16.mxu0 0
        %1759 = vmatpush2.bf16.msra.mxu0 0
        %1760 = vmatprep.subr.bf16.mxu0 0
        %1761 = vmatpush2.bf16.msra.mxu0 0
        %1762 = vmatprep.subr.bf16.mxu0 0
        %1763 = vmatpush2.bf16.msra.mxu0 0
        %1764 = vmatprep.subr.bf16.mxu0 0
        %1765 = vmatpush2.bf16.msra.mxu0 0
        %1766 = vmatprep.subr.bf16.mxu0 0
        %1767 = vmatpush2.bf16.msra.mxu0 0
        %1768 = vmatprep.subr.bf16.mxu0 0
        %1769 = vmatpush2.bf16.msra.mxu0 0
        %1770 = vmatprep.mubr.bf16.mxu0 0
        %1771 = vmatmul.mubr.bf16.gmra.mxu0 %v1733
        %v1772 = vpop.f32.mrf.mxu0
        %v1773 = vadd.f32 0.0, %v1772
        %v1774 = vpop.f32.mrf.mxu0
        %v1775 = vpop.f32.mrf.mxu0
        %v1776 = vpop.f32.mrf.mxu0
        %1777 = vdwg.mxu0
        %1778 = vrot.lane.b32.xlu0 %v1104, 104
        %v1779 = vpop.permute.xlu0 %1778
        %1780 = vrot.lane.b32.xlu0 %v1106, 104
        %v1781 = vpop.permute.xlu0 %1780
        %v1783 = vsel %vm1108, %v1779, 0
        %v1786 = vsel %vm1108, %v1781, 0
        %1788 = vmatprep.subr.bf16.mxu0 0
        %1789 = vmatpush1.bf16.xpose.msra.mxu0 0
        %1790 = vmatprep.subr.bf16.mxu0 0
        %1791 = vmatpush1.bf16.xpose.msra.mxu0 0
        %1792 = vmatprep.subr.bf16.mxu0 0
        %1793 = vmatpush1.bf16.xpose.msra.mxu0 0
        %1794 = vmatprep.subr.bf16.mxu0 0
        %1795 = vmatpush1.bf16.xpose.msra.mxu0 0
        %1796 = vmatprep.subr.bf16.mxu0 0
        %1797 = vmatpush1.bf16.xpose.msra.mxu0 0
        %1798 = vmatprep.subr.bf16.mxu0 0
        %1799 = vmatpush1.bf16.xpose.msra.mxu0 0
        %1800 = vmatprep.subr.bf16.mxu0 0
        %1801 = vmatpush1.bf16.xpose.msra.mxu0 0
        %1802 = vmatprep.subr.bf16.mxu0 0
        %1803 = vmatpush1.bf16.xpose.msra.mxu0 %v1786
        %1804 = vmatprep.subr.bf16.mxu0 0
        %1805 = vmatpush2.bf16.xpose.msra.mxu0 0
        %1806 = vmatprep.subr.bf16.mxu0 0
        %1807 = vmatpush2.bf16.xpose.msra.mxu0 0
        %1808 = vmatprep.subr.bf16.mxu0 0
        %1809 = vmatpush2.bf16.xpose.msra.mxu0 0
        %1810 = vmatprep.subr.bf16.mxu0 0
        %1811 = vmatpush2.bf16.xpose.msra.mxu0 0
        %1812 = vmatprep.subr.bf16.mxu0 0
        %1813 = vmatpush2.bf16.xpose.msra.mxu0 0
        %1814 = vmatprep.subr.bf16.mxu0 0
        %1815 = vmatpush2.bf16.xpose.msra.mxu0 0
        %1816 = vmatprep.subr.bf16.mxu0 0
        %1817 = vmatpush2.bf16.xpose.msra.mxu0 0
        %1818 = vmatprep.subr.bf16.mxu0 0
        %1819 = vmatpush2.bf16.xpose.msra.mxu0 0
        %1820 = vmatprep.mubr.bf16.mxu0 0
        %1821 = vmatmul.mubr.bf16.gmra.mxu0 %v1783
        %v1822 = vpop.f32.mrf.mxu0
        %v1823 = vadd.f32 0.0, %v1822
        %v1824 = vpop.f32.mrf.mxu0
        %v1825 = vpop.f32.mrf.mxu0
        %v1826 = vpop.f32.mrf.mxu0
        %1827 = vdwg.mxu0
        %1828 = vrot.lane.b32.xlu0 %v1105, 104
        %v1829 = vpop.permute.xlu0 %1828
        %1830 = vrot.lane.b32.xlu0 %v1107, 104
        %v1831 = vpop.permute.xlu0 %1830
        %v1833 = vsel %vm1108, %v1829, 0
        %v1836 = vsel %vm1108, %v1831, 0
        %1838 = vmatprep.subr.bf16.mxu0 0
        %1839 = vmatpush1.bf16.xpose.msra.mxu0 0
        %1840 = vmatprep.subr.bf16.mxu0 0
        %1841 = vmatpush1.bf16.xpose.msra.mxu0 0
        %1842 = vmatprep.subr.bf16.mxu0 0
        %1843 = vmatpush1.bf16.xpose.msra.mxu0 0
        %1844 = vmatprep.subr.bf16.mxu0 0
        %1845 = vmatpush1.bf16.xpose.msra.mxu0 0
        %1846 = vmatprep.subr.bf16.mxu0 0
        %1847 = vmatpush1.bf16.xpose.msra.mxu0 0
        %1848 = vmatprep.subr.bf16.mxu0 0
        %1849 = vmatpush1.bf16.xpose.msra.mxu0 0
        %1850 = vmatprep.subr.bf16.mxu0 0
        %1851 = vmatpush1.bf16.xpose.msra.mxu0 0
        %1852 = vmatprep.subr.bf16.mxu0 0
        %1853 = vmatpush1.bf16.xpose.msra.mxu0 %v1836
        %1854 = vmatprep.subr.bf16.mxu0 0
        %1855 = vmatpush2.bf16.xpose.msra.mxu0 0
        %1856 = vmatprep.subr.bf16.mxu0 0
        %1857 = vmatpush2.bf16.xpose.msra.mxu0 0
        %1858 = vmatprep.subr.bf16.mxu0 0
        %1859 = vmatpush2.bf16.xpose.msra.mxu0 0
        %1860 = vmatprep.subr.bf16.mxu0 0
        %1861 = vmatpush2.bf16.xpose.msra.mxu0 0
        %1862 = vmatprep.subr.bf16.mxu0 0
        %1863 = vmatpush2.bf16.xpose.msra.mxu0 0
        %1864 = vmatprep.subr.bf16.mxu0 0
        %1865 = vmatpush2.bf16.xpose.msra.mxu0 0
        %1866 = vmatprep.subr.bf16.mxu0 0
        %1867 = vmatpush2.bf16.xpose.msra.mxu0 0
        %1868 = vmatprep.subr.bf16.mxu0 0
        %1869 = vmatpush2.bf16.xpose.msra.mxu0 0
        %1870 = vmatprep.mubr.bf16.mxu0 0
        %1871 = vmatmul.mubr.bf16.gmra.mxu0 %v1833
        %v1872 = vpop.f32.mrf.mxu0
        %v1873 = vadd.f32 0.0, %v1872
        %v1874 = vpop.f32.mrf.mxu0
        %v1875 = vpop.f32.mrf.mxu0
        %v1876 = vpop.f32.mrf.mxu0
        %1877 = vdwg.mxu0
        %v1878 = vmul.f32 %v1823, 0.35355338
        %v1879 = vmul.f32 %v1873, 0.35355338
        %v1880 = vadd.f32 %v1878, %v1041
        %v1881 = vadd.f32 %v1879, %v1042
        %v1882 = vsel %vm1108, %v1880, -inf
        %1883 = vmax.xlane.f32.xlu0 %v1882
        %v1884 = vpop.xlane.xlu0 %1883
        %v1885 = vsel %vm1108, %v1881, -inf
        %1886 = vmax.xlane.f32.xlu0 %v1885
        %v1887 = vpop.xlane.xlu0 %1886
        %v1888 = vsub.f32 %v1880, %v1884
        %v1889 = vsub.f32 %v1881, %v1887
        %v1890 = vmul.f32 %v1888, 1.442695
        %v1891 = vpow.pop %v1890
        %v1892 = vmul.f32 %v1889, 1.442695
        %v1893 = vpow.pop %v1892
        %v1894 = vsel %vm1108, %v1891, 0.0
        %1895 = vadd.xlane.f32.xlu0 %v1894
        %v1896 = vpop.xlane.xlu0 %1895
        %v1897 = vsel %vm1108, %v1893, 0.0
        %1898 = vadd.xlane.f32.xlu0 %v1897
        %v1899 = vpop.xlane.xlu0 %1898
        %v1900 = vrcp.pop %v1896
        %v1901 = vrcp.pop %v1899
        %v1902 = vmul.f32 %v1891, %v1900
        %v1903 = vmul.f32 %v1893, %v1901
        %v1904 = vpack.c.bf16 %v1902, %v1902
        %v1905 = vpack.c.bf16 %v1903, %v1903
        %1906 = vrot.lane.b32.xlu0 %v1229, 104
        %v1907 = vpop.permute.xlu0 %1906
        %v1909 = vsel %vm1108, %v1904, 0
        %v1912 = vsel %vm1234, %v1907, 0
        %1914 = vmatprep.subr.bf16.mxu0 0
        %1915 = vmatpush1.bf16.msra.mxu0 0
        %1916 = vmatprep.subr.bf16.mxu0 0
        %1917 = vmatpush1.bf16.msra.mxu0 0
        %1918 = vmatprep.subr.bf16.mxu0 0
        %1919 = vmatpush1.bf16.msra.mxu0 0
        %1920 = vmatprep.subr.bf16.mxu0 0
        %1921 = vmatpush1.bf16.msra.mxu0 0
        %1922 = vmatprep.subr.bf16.mxu0 0
        %1923 = vmatpush1.bf16.msra.mxu0 0
        %1924 = vmatprep.subr.bf16.mxu0 0
        %1925 = vmatpush1.bf16.msra.mxu0 0
        %1926 = vmatprep.subr.bf16.mxu0 0
        %1927 = vmatpush1.bf16.msra.mxu0 0
        %1928 = vmatprep.subr.bf16.mxu0 0
        %1929 = vmatpush1.bf16.msra.mxu0 %v1912
        %1930 = vmatprep.subr.bf16.mxu0 0
        %1931 = vmatpush2.bf16.msra.mxu0 0
        %1932 = vmatprep.subr.bf16.mxu0 0
        %1933 = vmatpush2.bf16.msra.mxu0 0
        %1934 = vmatprep.subr.bf16.mxu0 0
        %1935 = vmatpush2.bf16.msra.mxu0 0
        %1936 = vmatprep.subr.bf16.mxu0 0
        %1937 = vmatpush2.bf16.msra.mxu0 0
        %1938 = vmatprep.subr.bf16.mxu0 0
        %1939 = vmatpush2.bf16.msra.mxu0 0
        %1940 = vmatprep.subr.bf16.mxu0 0
        %1941 = vmatpush2.bf16.msra.mxu0 0
        %1942 = vmatprep.subr.bf16.mxu0 0
        %1943 = vmatpush2.bf16.msra.mxu0 0
        %1944 = vmatprep.subr.bf16.mxu0 0
        %1945 = vmatpush2.bf16.msra.mxu0 0
        %1946 = vmatprep.mubr.bf16.mxu0 0
        %1947 = vmatmul.mubr.bf16.gmra.mxu0 %v1909
        %v1948 = vpop.f32.mrf.mxu0
        %v1949 = vadd.f32 0.0, %v1948
        %v1950 = vpop.f32.mrf.mxu0
        %v1951 = vpop.f32.mrf.mxu0
        %v1952 = vpop.f32.mrf.mxu0
        %1953 = vdwg.mxu0
        %1954 = vrot.lane.b32.xlu0 %v1230, 104
        %v1955 = vpop.permute.xlu0 %1954
        %v1957 = vsel %vm1108, %v1905, 0
        %v1960 = vsel %vm1234, %v1955, 0
        %1962 = vmatprep.subr.bf16.mxu0 0
        %1963 = vmatpush1.bf16.msra.mxu0 0
        %1964 = vmatprep.subr.bf16.mxu0 0
        %1965 = vmatpush1.bf16.msra.mxu0 0
        %1966 = vmatprep.subr.bf16.mxu0 0
        %1967 = vmatpush1.bf16.msra.mxu0 0
        %1968 = vmatprep.subr.bf16.mxu0 0
        %1969 = vmatpush1.bf16.msra.mxu0 0
        %1970 = vmatprep.subr.bf16.mxu0 0
        %1971 = vmatpush1.bf16.msra.mxu0 0
        %1972 = vmatprep.subr.bf16.mxu0 0
        %1973 = vmatpush1.bf16.msra.mxu0 0
        %1974 = vmatprep.subr.bf16.mxu0 0
        %1975 = vmatpush1.bf16.msra.mxu0 0
        %1976 = vmatprep.subr.bf16.mxu0 0
        %1977 = vmatpush1.bf16.msra.mxu0 %v1960
        %1978 = vmatprep.subr.bf16.mxu0 0
        %1979 = vmatpush2.bf16.msra.mxu0 0
        %1980 = vmatprep.subr.bf16.mxu0 0
        %1981 = vmatpush2.bf16.msra.mxu0 0
        %1982 = vmatprep.subr.bf16.mxu0 0
        %1983 = vmatpush2.bf16.msra.mxu0 0
        %1984 = vmatprep.subr.bf16.mxu0 0
        %1985 = vmatpush2.bf16.msra.mxu0 0
        %1986 = vmatprep.subr.bf16.mxu0 0
        %1987 = vmatpush2.bf16.msra.mxu0 0
        %1988 = vmatprep.subr.bf16.mxu0 0
        %1989 = vmatpush2.bf16.msra.mxu0 0
        %1990 = vmatprep.subr.bf16.mxu0 0
        %1991 = vmatpush2.bf16.msra.mxu0 0
        %1992 = vmatprep.subr.bf16.mxu0 0
        %1993 = vmatpush2.bf16.msra.mxu0 0
        %1994 = vmatprep.mubr.bf16.mxu0 0
        %1995 = vmatmul.mubr.bf16.gmra.mxu0 %v1957
        %v1996 = vpop.f32.mrf.mxu0
        %v1997 = vadd.f32 0.0, %v1996
        %v1998 = vpop.f32.mrf.mxu0
        %v1999 = vpop.f32.mrf.mxu0
        %v2000 = vpop.f32.mrf.mxu0
        %2001 = vdwg.mxu0
        %2004 = vrot.lane.b32.xlu0 %v1500, 8
        %v2005 = vpop.permute.xlu0 %2004
        %2006 = vrot.lane.b32.xlu0 %v1549, 8
        %v2007 = vpop.permute.xlu0 %2006
        %2012 = vrot.lane.b32.xlu0 %v1725, 16
        %v2013 = vpop.permute.xlu0 %2012
        %2014 = vrot.lane.b32.xlu0 %v1773, 16
        %v2015 = vpop.permute.xlu0 %2014
        %2020 = vrot.lane.b32.xlu0 %v1949, 24
        %v2021 = vpop.permute.xlu0 %2020
        %2022 = vrot.lane.b32.xlu0 %v1997, 24
        %v2023 = vpop.permute.xlu0 %2022
        %v2026 = vsel %vm1108, %v1273, %v2005
        %v2027 = vsel %vm1108, %v1319, %v2007
        %vm2028 = vcmask 130048
        %v2029 = vsel %vm2028, %v2026, %v2013
        %v2030 = vsel %vm2028, %v2027, %v2015
        %vm2031 = vcmask 195584
        %v2032 = vsel %vm2031, %v2029, %v2021
        %v2033 = vsel %vm2031, %v2030, %v2023
        %v2034 = vpack.c.bf16 %v2033, %v2032
        %v2035 = vlaneseq
        %v2036 = vshrl.u32 %v2035, 7
        %v2037 = vsub.s32 3, %v2036
        %v2038 = vrot.slane %v652, %v2037
        %v2043 = vunpack.c.l.b16 %v666
        %v2044 = vunpack.c.l.b16 %v667
        %v2045 = vunpack.c.l.b16 %v668
        %v2046 = vunpack.c.l.b16 %v669
        %v2047 = vpack.c.b16 %v2044, %v2043
        %v2048 = vpack.c.b16 %v2046, %v2045
        %v2052 = vsel %vm707, %v2034, 0
        %2054 = vmatprep.subr.bf16.mxu0 0
        %2055 = vmatpush1.bf16.msra.mxu0 0
        %2056 = vmatprep.subr.bf16.mxu0 0
        %2057 = vmatpush1.bf16.msra.mxu0 0
        %2058 = vmatprep.subr.bf16.mxu0 0
        %2059 = vmatpush1.bf16.msra.mxu0 0
        %2060 = vmatprep.subr.bf16.mxu0 0
        %2061 = vmatpush1.bf16.msra.mxu0 0
        %2062 = vmatprep.subr.bf16.mxu0 0
        %2063 = vmatpush1.bf16.msra.mxu0 0
        %2064 = vmatprep.subr.bf16.mxu0 0
        %2065 = vmatpush1.bf16.msra.mxu0 0
        %2066 = vmatprep.subr.bf16.mxu0 0
        %2067 = vmatpush1.bf16.msra.mxu0 %v2048
        %2068 = vmatprep.subr.bf16.mxu0 0
        %2069 = vmatpush1.bf16.msra.mxu0 %v2047
        %2070 = vmatprep.subr.bf16.mxu0 0
        %2071 = vmatpush2.bf16.msra.mxu0 0
        %2072 = vmatprep.subr.bf16.mxu0 0
        %2073 = vmatpush2.bf16.msra.mxu0 0
        %2074 = vmatprep.subr.bf16.mxu0 0
        %2075 = vmatpush2.bf16.msra.mxu0 0
        %2076 = vmatprep.subr.bf16.mxu0 0
        %2077 = vmatpush2.bf16.msra.mxu0 0
        %2078 = vmatprep.subr.bf16.mxu0 0
        %2079 = vmatpush2.bf16.msra.mxu0 0
        %2080 = vmatprep.subr.bf16.mxu0 0
        %2081 = vmatpush2.bf16.msra.mxu0 0
        %2082 = vmatprep.subr.bf16.mxu0 0
        %2083 = vmatpush2.bf16.msra.mxu0 0
        %2084 = vmatprep.subr.bf16.mxu0 0
        %2085 = vmatpush2.bf16.msra.mxu0 0
        %2086 = vmatprep.mubr.bf16.mxu0 0
        %2087 = vmatmul.mubr.bf16.gmra.mxu0 %v2052
        %v2088 = vpop.f32.mrf.mxu0
        %v2089 = vadd.f32 %v2038, %v2088
        %v2090 = vpop.f32.mrf.mxu0
        %v2091 = vpop.f32.mrf.mxu0
        %v2092 = vadd.f32 %v2038, %v2091
        %v2093 = vpop.f32.mrf.mxu0
        %2094 = vdwg.mxu0
        %v2095 = vadd.f32 %v643, %v2089
        %v2096 = vadd.f32 %v644, %v2092
        %v2097 = vsel %vm707, %v2095, 0.0
        %2098 = vadd.xlane.f32.xlu0 %v2097
        %v2099 = vpop.xlane.xlu0 %2098
        %v2100 = vsel %vm707, %v2096, 0.0
        %2101 = vadd.xlane.f32.xlu0 %v2100
        %v2102 = vpop.xlane.xlu0 %2101
        %v2103 = vmul.f32 %v2099, %v714
        %v2104 = vmul.f32 %v2102, %v714
        %v2105 = vsub.f32 %v2095, %v2103
        %v2106 = vsub.f32 %v2096, %v2104
        %v2107 = vmul.f32 %v2105, %v2105
        %v2108 = vmul.f32 %v2106, %v2106
        %v2109 = vsel %vm707, %v2107, 0.0
        %2110 = vadd.xlane.f32.xlu0 %v2109
        %v2111 = vpop.xlane.xlu0 %2110
        %v2112 = vsel %vm707, %v2108, 0.0
        %2113 = vadd.xlane.f32.xlu0 %v2112
        %v2114 = vpop.xlane.xlu0 %2113
        %v2115 = vmul.f32 %v2111, %v714
        %v2116 = vmul.f32 %v2114, %v714
        %v2117 = vadd.f32 %v2115, 1e-05
        %v2118 = vadd.f32 %v2116, 1e-05
        %v2119 = vrsqrt.pop %v2117
        %v2120 = vrsqrt.pop %v2118
        %v2121 = vmul.f32 %v2105, %v2119
        %v2122 = vmul.f32 %v2106, %v2120
        %v2123 = vlaneseq
        %v2124 = vshrl.u32 %v2123, 7
        %v2125 = vsub.s32 4, %v2124
        %v2126 = vrot.slane %v651, %v2125
        %v2127 = vmul.f32 %v2121, %v2126
        %v2128 = vmul.f32 %v2122, %v2126
        %v2129 = vlaneseq
        %v2130 = vshrl.u32 %v2129, 7
        %v2131 = vsub.s32 5, %v2130
        %v2132 = vrot.slane %v651, %v2131
        %v2133 = vadd.f32 %v2127, %v2132
        %v2134 = vadd.f32 %v2128, %v2132
        %v2135 = vpack.c.bf16 %v2134, %v2133
        %v2136 = vlaneseq
        %v2137 = vshrl.u32 %v2136, 7
        %v2138 = vsub.s32 4, %v2137
        %v2139 = vrot.slane %v652, %v2138
        %v2144 = vunpack.c.l.b16 %v670
        %v2145 = vunpack.c.l.b16 %v671
        %v2146 = vunpack.c.l.b16 %v672
        %v2147 = vunpack.c.l.b16 %v673
        %v2148 = vpack.c.b16 %v2145, %v2144
        %v2149 = vpack.c.b16 %v2147, %v2146
        %v2153 = vsel %vm707, %v2135, 0
        %2155 = vmatprep.subr.bf16.mxu0 0
        %2156 = vmatpush1.bf16.msra.mxu0 0
        %2157 = vmatprep.subr.bf16.mxu0 0
        %2158 = vmatpush1.bf16.msra.mxu0 0
        %2159 = vmatprep.subr.bf16.mxu0 0
        %2160 = vmatpush1.bf16.msra.mxu0 0
        %2161 = vmatprep.subr.bf16.mxu0 0
        %2162 = vmatpush1.bf16.msra.mxu0 0
        %2163 = vmatprep.subr.bf16.mxu0 0
        %2164 = vmatpush1.bf16.msra.mxu0 0
        %2165 = vmatprep.subr.bf16.mxu0 0
        %2166 = vmatpush1.bf16.msra.mxu0 0
        %2167 = vmatprep.subr.bf16.mxu0 0
        %2168 = vmatpush1.bf16.msra.mxu0 %v2149
        %2169 = vmatprep.subr.bf16.mxu0 0
        %2170 = vmatpush1.bf16.msra.mxu0 %v2148
        %2171 = vmatprep.subr.bf16.mxu0 0
        %2172 = vmatpush2.bf16.msra.mxu0 0
        %2173 = vmatprep.subr.bf16.mxu0 0
        %2174 = vmatpush2.bf16.msra.mxu0 0
        %2175 = vmatprep.subr.bf16.mxu0 0
        %2176 = vmatpush2.bf16.msra.mxu0 0
        %2177 = vmatprep.subr.bf16.mxu0 0
        %2178 = vmatpush2.bf16.msra.mxu0 0
        %2179 = vmatprep.subr.bf16.mxu0 0
        %2180 = vmatpush2.bf16.msra.mxu0 0
        %2181 = vmatprep.subr.bf16.mxu0 0
        %2182 = vmatpush2.bf16.msra.mxu0 0
        %2183 = vmatprep.subr.bf16.mxu0 0
        %2184 = vmatpush2.bf16.msra.mxu0 0
        %2185 = vmatprep.subr.bf16.mxu0 0
        %2186 = vmatpush2.bf16.msra.mxu0 0
        %2187 = vmatprep.mubr.bf16.mxu0 0
        %2188 = vmatmul.mubr.bf16.gmra.mxu0 %v2153
        %v2189 = vpop.f32.mrf.mxu0
        %v2190 = vadd.f32 %v2139, %v2189
        %v2191 = vpop.f32.mrf.mxu0
        %v2192 = vpop.f32.mrf.mxu0
        %v2193 = vadd.f32 %v2139, %v2192
        %v2194 = vpop.f32.mrf.mxu0
        %2195 = vdwg.mxu0
        %v2196 = vpack.c.bf16 %v2190, %v2190
        %v2197 = vpack.c.bf16 %v2193, %v2193
        %v2198 = vpack.c.bf16 %v965, %v962
        %v2199 = vpack.c.bf16 %v973, %v970
        %v2201 = vsel %vm1108, %v2196, 0
        %v2204 = vsel %vm1108, %v2198, 0
        %2206 = vmatprep.subr.bf16.mxu0 0
        %2207 = vmatpush1.bf16.xpose.msra.mxu0 0
        %2208 = vmatprep.subr.bf16.mxu0 0
        %2209 = vmatpush1.bf16.xpose.msra.mxu0 0
        %2210 = vmatprep.subr.bf16.mxu0 0
        %2211 = vmatpush1.bf16.xpose.msra.mxu0 0
        %2212 = vmatprep.subr.bf16.mxu0 0
        %2213 = vmatpush1.bf16.xpose.msra.mxu0 0
        %2214 = vmatprep.subr.bf16.mxu0 0
        %2215 = vmatpush1.bf16.xpose.msra.mxu0 0
        %2216 = vmatprep.subr.bf16.mxu0 0
        %2217 = vmatpush1.bf16.xpose.msra.mxu0 0
        %2218 = vmatprep.subr.bf16.mxu0 0
        %2219 = vmatpush1.bf16.xpose.msra.mxu0 0
        %2220 = vmatprep.subr.bf16.mxu0 0
        %2221 = vmatpush1.bf16.xpose.msra.mxu0 %v2204
        %2222 = vmatprep.subr.bf16.mxu0 0
        %2223 = vmatpush2.bf16.xpose.msra.mxu0 0
        %2224 = vmatprep.subr.bf16.mxu0 0
        %2225 = vmatpush2.bf16.xpose.msra.mxu0 0
        %2226 = vmatprep.subr.bf16.mxu0 0
        %2227 = vmatpush2.bf16.xpose.msra.mxu0 0
        %2228 = vmatprep.subr.bf16.mxu0 0
        %2229 = vmatpush2.bf16.xpose.msra.mxu0 0
        %2230 = vmatprep.subr.bf16.mxu0 0
        %2231 = vmatpush2.bf16.xpose.msra.mxu0 0
        %2232 = vmatprep.subr.bf16.mxu0 0
        %2233 = vmatpush2.bf16.xpose.msra.mxu0 0
        %2234 = vmatprep.subr.bf16.mxu0 0
        %2235 = vmatpush2.bf16.xpose.msra.mxu0 0
        %2236 = vmatprep.subr.bf16.mxu0 0
        %2237 = vmatpush2.bf16.xpose.msra.mxu0 0
        %2238 = vmatprep.mubr.bf16.mxu0 0
        %2239 = vmatmul.mubr.bf16.gmra.mxu0 %v2201
        %v2240 = vpop.f32.mrf.mxu0
        %v2241 = vadd.f32 0.0, %v2240
        %v2242 = vpop.f32.mrf.mxu0
        %v2243 = vpop.f32.mrf.mxu0
        %v2244 = vpop.f32.mrf.mxu0
        %2245 = vdwg.mxu0
        %v2247 = vsel %vm1108, %v2197, 0
        %v2250 = vsel %vm1108, %v2199, 0
        %2252 = vmatprep.subr.bf16.mxu0 0
        %2253 = vmatpush1.bf16.xpose.msra.mxu0 0
        %2254 = vmatprep.subr.bf16.mxu0 0
        %2255 = vmatpush1.bf16.xpose.msra.mxu0 0
        %2256 = vmatprep.subr.bf16.mxu0 0
        %2257 = vmatpush1.bf16.xpose.msra.mxu0 0
        %2258 = vmatprep.subr.bf16.mxu0 0
        %2259 = vmatpush1.bf16.xpose.msra.mxu0 0
        %2260 = vmatprep.subr.bf16.mxu0 0
        %2261 = vmatpush1.bf16.xpose.msra.mxu0 0
        %2262 = vmatprep.subr.bf16.mxu0 0
        %2263 = vmatpush1.bf16.xpose.msra.mxu0 0
        %2264 = vmatprep.subr.bf16.mxu0 0
        %2265 = vmatpush1.bf16.xpose.msra.mxu0 0
        %2266 = vmatprep.subr.bf16.mxu0 0
        %2267 = vmatpush1.bf16.xpose.msra.mxu0 %v2250
        %2268 = vmatprep.subr.bf16.mxu0 0
        %2269 = vmatpush2.bf16.xpose.msra.mxu0 0
        %2270 = vmatprep.subr.bf16.mxu0 0
        %2271 = vmatpush2.bf16.xpose.msra.mxu0 0
        %2272 = vmatprep.subr.bf16.mxu0 0
        %2273 = vmatpush2.bf16.xpose.msra.mxu0 0
        %2274 = vmatprep.subr.bf16.mxu0 0
        %2275 = vmatpush2.bf16.xpose.msra.mxu0 0
        %2276 = vmatprep.subr.bf16.mxu0 0
        %2277 = vmatpush2.bf16.xpose.msra.mxu0 0
        %2278 = vmatprep.subr.bf16.mxu0 0
        %2279 = vmatpush2.bf16.xpose.msra.mxu0 0
        %2280 = vmatprep.subr.bf16.mxu0 0
        %2281 = vmatpush2.bf16.xpose.msra.mxu0 0
        %2282 = vmatprep.subr.bf16.mxu0 0
        %2283 = vmatpush2.bf16.xpose.msra.mxu0 0
        %2284 = vmatprep.mubr.bf16.mxu0 0
        %2285 = vmatmul.mubr.bf16.gmra.mxu0 %v2247
        %v2286 = vpop.f32.mrf.mxu0
        %v2287 = vadd.f32 0.0, %v2286
        %v2288 = vpop.f32.mrf.mxu0
        %v2289 = vpop.f32.mrf.mxu0
        %v2290 = vpop.f32.mrf.mxu0
        %2291 = vdwg.mxu0
        %v2292 = vmul.f32 %v2241, 0.35355338
        %v2293 = vmul.f32 %v2287, 0.35355338
        %v2294 = vsel %vm2028, %v2292, -inf
        %2295 = vmax.xlane.f32.xlu0 %v2294
        %v2296 = vpop.xlane.xlu0 %2295
        %v2297 = vsel %vm2028, %v2293, -inf
        %2298 = vmax.xlane.f32.xlu0 %v2297
        %v2299 = vpop.xlane.xlu0 %2298
        %v2300 = vsub.f32 %v2292, %v2296
        %v2301 = vsub.f32 %v2293, %v2299
        %v2302 = vmul.f32 %v2300, 1.442695
        %v2303 = vpow.pop %v2302
        %v2304 = vmul.f32 %v2301, 1.442695
        %v2305 = vpow.pop %v2304
        %v2306 = vsel %vm2028, %v2303, 0.0
        %2307 = vadd.xlane.f32.xlu0 %v2306
        %v2308 = vpop.xlane.xlu0 %2307
        %v2309 = vsel %vm2028, %v2305, 0.0
        %2310 = vadd.xlane.f32.xlu0 %v2309
        %v2311 = vpop.xlane.xlu0 %2310
        %v2312 = vrcp.pop %v2308
        %v2313 = vrcp.pop %v2311
        %v2314 = vmul.f32 %v2303, %v2312
        %v2315 = vmul.f32 %v2305, %v2313
        %v2316 = vpack.c.bf16 %v2314, %v2314
        %v2317 = vpack.c.bf16 %v2315, %v2315
        %v2318 = vpack.c.bf16 %v1030, %v1027
        %v2319 = vpack.c.bf16 %v1038, %v1035
        %v2321 = vsel %vm2028, %v2316, 0
        %2323 = vmatprep.subr.bf16.mxu0 0
        %2324 = vmatpush1.bf16.msra.mxu0 0
        %2325 = vmatprep.subr.bf16.mxu0 0
        %2326 = vmatpush1.bf16.msra.mxu0 0
        %2327 = vmatprep.subr.bf16.mxu0 0
        %2328 = vmatpush1.bf16.msra.mxu0 0
        %2329 = vmatprep.subr.bf16.mxu0 0
        %2330 = vmatpush1.bf16.msra.mxu0 0
        %2331 = vmatprep.subr.bf16.mxu0 0
        %2332 = vmatpush1.bf16.msra.mxu0 0
        %2333 = vmatprep.subr.bf16.mxu0 0
        %2334 = vmatpush1.bf16.msra.mxu0 0
        %2335 = vmatprep.subr.bf16.mxu0 0
        %2336 = vmatpush1.bf16.msra.mxu0 0
        %2337 = vmatprep.subr.bf16.mxu0 0
        %2338 = vmatpush1.bf16.msra.mxu0 %v2318
        %2339 = vmatprep.subr.bf16.mxu0 0
        %2340 = vmatpush2.bf16.msra.mxu0 0
        %2341 = vmatprep.subr.bf16.mxu0 0
        %2342 = vmatpush2.bf16.msra.mxu0 0
        %2343 = vmatprep.subr.bf16.mxu0 0
        %2344 = vmatpush2.bf16.msra.mxu0 0
        %2345 = vmatprep.subr.bf16.mxu0 0
        %2346 = vmatpush2.bf16.msra.mxu0 0
        %2347 = vmatprep.subr.bf16.mxu0 0
        %2348 = vmatpush2.bf16.msra.mxu0 0
        %2349 = vmatprep.subr.bf16.mxu0 0
        %2350 = vmatpush2.bf16.msra.mxu0 0
        %2351 = vmatprep.subr.bf16.mxu0 0
        %2352 = vmatpush2.bf16.msra.mxu0 0
        %2353 = vmatprep.subr.bf16.mxu0 0
        %2354 = vmatpush2.bf16.msra.mxu0 0
        %2355 = vmatprep.mubr.bf16.mxu0 0
        %2356 = vmatmul.mubr.bf16.gmra.mxu0 %v2321
        %v2357 = vpop.f32.mrf.mxu0
        %v2358 = vadd.f32 0.0, %v2357
        %v2359 = vpop.f32.mrf.mxu0
        %v2360 = vpop.f32.mrf.mxu0
        %v2361 = vpop.f32.mrf.mxu0
        %2362 = vdwg.mxu0
        %v2364 = vsel %vm2028, %v2317, 0
        %2366 = vmatprep.subr.bf16.mxu0 0
        %2367 = vmatpush1.bf16.msra.mxu0 0
        %2368 = vmatprep.subr.bf16.mxu0 0
        %2369 = vmatpush1.bf16.msra.mxu0 0
        %2370 = vmatprep.subr.bf16.mxu0 0
        %2371 = vmatpush1.bf16.msra.mxu0 0
        %2372 = vmatprep.subr.bf16.mxu0 0
        %2373 = vmatpush1.bf16.msra.mxu0 0
        %2374 = vmatprep.subr.bf16.mxu0 0
        %2375 = vmatpush1.bf16.msra.mxu0 0
        %2376 = vmatprep.subr.bf16.mxu0 0
        %2377 = vmatpush1.bf16.msra.mxu0 0
        %2378 = vmatprep.subr.bf16.mxu0 0
        %2379 = vmatpush1.bf16.msra.mxu0 0
        %2380 = vmatprep.subr.bf16.mxu0 0
        %2381 = vmatpush1.bf16.msra.mxu0 %v2319
        %2382 = vmatprep.subr.bf16.mxu0 0
        %2383 = vmatpush2.bf16.msra.mxu0 0
        %2384 = vmatprep.subr.bf16.mxu0 0
        %2385 = vmatpush2.bf16.msra.mxu0 0
        %2386 = vmatprep.subr.bf16.mxu0 0
        %2387 = vmatpush2.bf16.msra.mxu0 0
        %2388 = vmatprep.subr.bf16.mxu0 0
        %2389 = vmatpush2.bf16.msra.mxu0 0
        %2390 = vmatprep.subr.bf16.mxu0 0
        %2391 = vmatpush2.bf16.msra.mxu0 0
        %2392 = vmatprep.subr.bf16.mxu0 0
        %2393 = vmatpush2.bf16.msra.mxu0 0
        %2394 = vmatprep.subr.bf16.mxu0 0
        %2395 = vmatpush2.bf16.msra.mxu0 0
        %2396 = vmatprep.subr.bf16.mxu0 0
        %2397 = vmatpush2.bf16.msra.mxu0 0
        %2398 = vmatprep.mubr.bf16.mxu0 0
        %2399 = vmatmul.mubr.bf16.gmra.mxu0 %v2364
        %v2400 = vpop.f32.mrf.mxu0
        %v2401 = vadd.f32 0.0, %v2400
        %v2402 = vpop.f32.mrf.mxu0
        %v2403 = vpop.f32.mrf.mxu0
        %v2404 = vpop.f32.mrf.mxu0
        %2405 = vdwg.mxu0
        %2407 = vrot.lane.b32.xlu0 %v2196, 120
        %v2408 = vpop.permute.xlu0 %2407
        %2410 = vrot.lane.b32.xlu0 %v2198, 120
        %v2411 = vpop.permute.xlu0 %2410
        %v2413 = vsel %vm1108, %v2408, 0
        %v2416 = vsel %vm1108, %v2411, 0
        %2418 = vmatprep.subr.bf16.mxu0 0
        %2419 = vmatpush1.bf16.xpose.msra.mxu0 0
        %2420 = vmatprep.subr.bf16.mxu0 0
        %2421 = vmatpush1.bf16.xpose.msra.mxu0 0
        %2422 = vmatprep.subr.bf16.mxu0 0
        %2423 = vmatpush1.bf16.xpose.msra.mxu0 0
        %2424 = vmatprep.subr.bf16.mxu0 0
        %2425 = vmatpush1.bf16.xpose.msra.mxu0 0
        %2426 = vmatprep.subr.bf16.mxu0 0
        %2427 = vmatpush1.bf16.xpose.msra.mxu0 0
        %2428 = vmatprep.subr.bf16.mxu0 0
        %2429 = vmatpush1.bf16.xpose.msra.mxu0 0
        %2430 = vmatprep.subr.bf16.mxu0 0
        %2431 = vmatpush1.bf16.xpose.msra.mxu0 0
        %2432 = vmatprep.subr.bf16.mxu0 0
        %2433 = vmatpush1.bf16.xpose.msra.mxu0 %v2416
        %2434 = vmatprep.subr.bf16.mxu0 0
        %2435 = vmatpush2.bf16.xpose.msra.mxu0 0
        %2436 = vmatprep.subr.bf16.mxu0 0
        %2437 = vmatpush2.bf16.xpose.msra.mxu0 0
        %2438 = vmatprep.subr.bf16.mxu0 0
        %2439 = vmatpush2.bf16.xpose.msra.mxu0 0
        %2440 = vmatprep.subr.bf16.mxu0 0
        %2441 = vmatpush2.bf16.xpose.msra.mxu0 0
        %2442 = vmatprep.subr.bf16.mxu0 0
        %2443 = vmatpush2.bf16.xpose.msra.mxu0 0
        %2444 = vmatprep.subr.bf16.mxu0 0
        %2445 = vmatpush2.bf16.xpose.msra.mxu0 0
        %2446 = vmatprep.subr.bf16.mxu0 0
        %2447 = vmatpush2.bf16.xpose.msra.mxu0 0
        %2448 = vmatprep.subr.bf16.mxu0 0
        %2449 = vmatpush2.bf16.xpose.msra.mxu0 0
        %2450 = vmatprep.mubr.bf16.mxu0 0
        %2451 = vmatmul.mubr.bf16.gmra.mxu0 %v2413
        %v2452 = vpop.f32.mrf.mxu0
        %v2453 = vadd.f32 0.0, %v2452
        %v2454 = vpop.f32.mrf.mxu0
        %v2455 = vpop.f32.mrf.mxu0
        %v2456 = vpop.f32.mrf.mxu0
        %2457 = vdwg.mxu0
        %2459 = vrot.lane.b32.xlu0 %v2197, 120
        %v2460 = vpop.permute.xlu0 %2459
        %2462 = vrot.lane.b32.xlu0 %v2199, 120
        %v2463 = vpop.permute.xlu0 %2462
        %v2465 = vsel %vm1108, %v2460, 0
        %v2468 = vsel %vm1108, %v2463, 0
        %2470 = vmatprep.subr.bf16.mxu0 0
        %2471 = vmatpush1.bf16.xpose.msra.mxu0 0
        %2472 = vmatprep.subr.bf16.mxu0 0
        %2473 = vmatpush1.bf16.xpose.msra.mxu0 0
        %2474 = vmatprep.subr.bf16.mxu0 0
        %2475 = vmatpush1.bf16.xpose.msra.mxu0 0
        %2476 = vmatprep.subr.bf16.mxu0 0
        %2477 = vmatpush1.bf16.xpose.msra.mxu0 0
        %2478 = vmatprep.subr.bf16.mxu0 0
        %2479 = vmatpush1.bf16.xpose.msra.mxu0 0
        %2480 = vmatprep.subr.bf16.mxu0 0
        %2481 = vmatpush1.bf16.xpose.msra.mxu0 0
        %2482 = vmatprep.subr.bf16.mxu0 0
        %2483 = vmatpush1.bf16.xpose.msra.mxu0 0
        %2484 = vmatprep.subr.bf16.mxu0 0
        %2485 = vmatpush1.bf16.xpose.msra.mxu0 %v2468
        %2486 = vmatprep.subr.bf16.mxu0 0
        %2487 = vmatpush2.bf16.xpose.msra.mxu0 0
        %2488 = vmatprep.subr.bf16.mxu0 0
        %2489 = vmatpush2.bf16.xpose.msra.mxu0 0
        %2490 = vmatprep.subr.bf16.mxu0 0
        %2491 = vmatpush2.bf16.xpose.msra.mxu0 0
        %2492 = vmatprep.subr.bf16.mxu0 0
        %2493 = vmatpush2.bf16.xpose.msra.mxu0 0
        %2494 = vmatprep.subr.bf16.mxu0 0
        %2495 = vmatpush2.bf16.xpose.msra.mxu0 0
        %2496 = vmatprep.subr.bf16.mxu0 0
        %2497 = vmatpush2.bf16.xpose.msra.mxu0 0
        %2498 = vmatprep.subr.bf16.mxu0 0
        %2499 = vmatpush2.bf16.xpose.msra.mxu0 0
        %2500 = vmatprep.subr.bf16.mxu0 0
        %2501 = vmatpush2.bf16.xpose.msra.mxu0 0
        %2502 = vmatprep.mubr.bf16.mxu0 0
        %2503 = vmatmul.mubr.bf16.gmra.mxu0 %v2465
        %v2504 = vpop.f32.mrf.mxu0
        %v2505 = vadd.f32 0.0, %v2504
        %v2506 = vpop.f32.mrf.mxu0
        %v2507 = vpop.f32.mrf.mxu0
        %v2508 = vpop.f32.mrf.mxu0
        %2509 = vdwg.mxu0
        %v2510 = vmul.f32 %v2453, 0.35355338
        %v2511 = vmul.f32 %v2505, 0.35355338
        %v2512 = vsel %vm2028, %v2510, -inf
        %2513 = vmax.xlane.f32.xlu0 %v2512
        %v2514 = vpop.xlane.xlu0 %2513
        %v2515 = vsel %vm2028, %v2511, -inf
        %2516 = vmax.xlane.f32.xlu0 %v2515
        %v2517 = vpop.xlane.xlu0 %2516
        %v2518 = vsub.f32 %v2510, %v2514
        %v2519 = vsub.f32 %v2511, %v2517
        %v2520 = vmul.f32 %v2518, 1.442695
        %v2521 = vpow.pop %v2520
        %v2522 = vmul.f32 %v2519, 1.442695
        %v2523 = vpow.pop %v2522
        %v2524 = vsel %vm2028, %v2521, 0.0
        %2525 = vadd.xlane.f32.xlu0 %v2524
        %v2526 = vpop.xlane.xlu0 %2525
        %v2527 = vsel %vm2028, %v2523, 0.0
        %2528 = vadd.xlane.f32.xlu0 %v2527
        %v2529 = vpop.xlane.xlu0 %2528
        %v2530 = vrcp.pop %v2526
        %v2531 = vrcp.pop %v2529
        %v2532 = vmul.f32 %v2521, %v2530
        %v2533 = vmul.f32 %v2523, %v2531
        %v2534 = vpack.c.bf16 %v2532, %v2532
        %v2535 = vpack.c.bf16 %v2533, %v2533
        %2537 = vrot.lane.b32.xlu0 %v2318, 120
        %v2538 = vpop.permute.xlu0 %2537
        %v2541 = vsel %vm2028, %v2534, 0
        %2543 = vmatprep.subr.bf16.mxu0 0
        %2544 = vmatpush1.bf16.msra.mxu0 0
        %2545 = vmatprep.subr.bf16.mxu0 0
        %2546 = vmatpush1.bf16.msra.mxu0 0
        %2547 = vmatprep.subr.bf16.mxu0 0
        %2548 = vmatpush1.bf16.msra.mxu0 0
        %2549 = vmatprep.subr.bf16.mxu0 0
        %2550 = vmatpush1.bf16.msra.mxu0 0
        %2551 = vmatprep.subr.bf16.mxu0 0
        %2552 = vmatpush1.bf16.msra.mxu0 0
        %2553 = vmatprep.subr.bf16.mxu0 0
        %2554 = vmatpush1.bf16.msra.mxu0 0
        %2555 = vmatprep.subr.bf16.mxu0 0
        %2556 = vmatpush1.bf16.msra.mxu0 0
        %2557 = vmatprep.subr.bf16.mxu0 0
        %2558 = vmatpush1.bf16.msra.mxu0 %v2538
        %2559 = vmatprep.subr.bf16.mxu0 0
        %2560 = vmatpush2.bf16.msra.mxu0 0
        %2561 = vmatprep.subr.bf16.mxu0 0
        %2562 = vmatpush2.bf16.msra.mxu0 0
        %2563 = vmatprep.subr.bf16.mxu0 0
        %2564 = vmatpush2.bf16.msra.mxu0 0
        %2565 = vmatprep.subr.bf16.mxu0 0
        %2566 = vmatpush2.bf16.msra.mxu0 0
        %2567 = vmatprep.subr.bf16.mxu0 0
        %2568 = vmatpush2.bf16.msra.mxu0 0
        %2569 = vmatprep.subr.bf16.mxu0 0
        %2570 = vmatpush2.bf16.msra.mxu0 0
        %2571 = vmatprep.subr.bf16.mxu0 0
        %2572 = vmatpush2.bf16.msra.mxu0 0
        %2573 = vmatprep.subr.bf16.mxu0 0
        %2574 = vmatpush2.bf16.msra.mxu0 0
        %2575 = vmatprep.mubr.bf16.mxu0 0
        %2576 = vmatmul.mubr.bf16.gmra.mxu0 %v2541
        %v2577 = vpop.f32.mrf.mxu0
        %v2578 = vadd.f32 0.0, %v2577
        %v2579 = vpop.f32.mrf.mxu0
        %v2580 = vpop.f32.mrf.mxu0
        %v2581 = vpop.f32.mrf.mxu0
        %2582 = vdwg.mxu0
        %2584 = vrot.lane.b32.xlu0 %v2319, 120
        %v2585 = vpop.permute.xlu0 %2584
        %v2588 = vsel %vm2028, %v2535, 0
        %2590 = vmatprep.subr.bf16.mxu0 0
        %2591 = vmatpush1.bf16.msra.mxu0 0
        %2592 = vmatprep.subr.bf16.mxu0 0
        %2593 = vmatpush1.bf16.msra.mxu0 0
        %2594 = vmatprep.subr.bf16.mxu0 0
        %2595 = vmatpush1.bf16.msra.mxu0 0
        %2596 = vmatprep.subr.bf16.mxu0 0
        %2597 = vmatpush1.bf16.msra.mxu0 0
        %2598 = vmatprep.subr.bf16.mxu0 0
        %2599 = vmatpush1.bf16.msra.mxu0 0
        %2600 = vmatprep.subr.bf16.mxu0 0
        %2601 = vmatpush1.bf16.msra.mxu0 0
        %2602 = vmatprep.subr.bf16.mxu0 0
        %2603 = vmatpush1.bf16.msra.mxu0 0
        %2604 = vmatprep.subr.bf16.mxu0 0
        %2605 = vmatpush1.bf16.msra.mxu0 %v2585
        %2606 = vmatprep.subr.bf16.mxu0 0
        %2607 = vmatpush2.bf16.msra.mxu0 0
        %2608 = vmatprep.subr.bf16.mxu0 0
        %2609 = vmatpush2.bf16.msra.mxu0 0
        %2610 = vmatprep.subr.bf16.mxu0 0
        %2611 = vmatpush2.bf16.msra.mxu0 0
        %2612 = vmatprep.subr.bf16.mxu0 0
        %2613 = vmatpush2.bf16.msra.mxu0 0
        %2614 = vmatprep.subr.bf16.mxu0 0
        %2615 = vmatpush2.bf16.msra.mxu0 0
        %2616 = vmatprep.subr.bf16.mxu0 0
        %2617 = vmatpush2.bf16.msra.mxu0 0
        %2618 = vmatprep.subr.bf16.mxu0 0
        %2619 = vmatpush2.bf16.msra.mxu0 0
        %2620 = vmatprep.subr.bf16.mxu0 0
        %2621 = vmatpush2.bf16.msra.mxu0 0
        %2622 = vmatprep.mubr.bf16.mxu0 0
        %2623 = vmatmul.mubr.bf16.gmra.mxu0 %v2588
        %v2624 = vpop.f32.mrf.mxu0
        %v2625 = vadd.f32 0.0, %v2624
        %v2626 = vpop.f32.mrf.mxu0
        %v2627 = vpop.f32.mrf.mxu0
        %v2628 = vpop.f32.mrf.mxu0
        %2629 = vdwg.mxu0
        %2630 = vrot.lane.b32.xlu0 %v2196, 112
        %v2631 = vpop.permute.xlu0 %2630
        %2632 = vrot.lane.b32.xlu0 %v2198, 112
        %v2633 = vpop.permute.xlu0 %2632
        %v2635 = vsel %vm1108, %v2631, 0
        %v2638 = vsel %vm1108, %v2633, 0
        %2640 = vmatprep.subr.bf16.mxu0 0
        %2641 = vmatpush1.bf16.xpose.msra.mxu0 0
        %2642 = vmatprep.subr.bf16.mxu0 0
        %2643 = vmatpush1.bf16.xpose.msra.mxu0 0
        %2644 = vmatprep.subr.bf16.mxu0 0
        %2645 = vmatpush1.bf16.xpose.msra.mxu0 0
        %2646 = vmatprep.subr.bf16.mxu0 0
        %2647 = vmatpush1.bf16.xpose.msra.mxu0 0
        %2648 = vmatprep.subr.bf16.mxu0 0
        %2649 = vmatpush1.bf16.xpose.msra.mxu0 0
        %2650 = vmatprep.subr.bf16.mxu0 0
        %2651 = vmatpush1.bf16.xpose.msra.mxu0 0
        %2652 = vmatprep.subr.bf16.mxu0 0
        %2653 = vmatpush1.bf16.xpose.msra.mxu0 0
        %2654 = vmatprep.subr.bf16.mxu0 0
        %2655 = vmatpush1.bf16.xpose.msra.mxu0 %v2638
        %2656 = vmatprep.subr.bf16.mxu0 0
        %2657 = vmatpush2.bf16.xpose.msra.mxu0 0
        %2658 = vmatprep.subr.bf16.mxu0 0
        %2659 = vmatpush2.bf16.xpose.msra.mxu0 0
        %2660 = vmatprep.subr.bf16.mxu0 0
        %2661 = vmatpush2.bf16.xpose.msra.mxu0 0
        %2662 = vmatprep.subr.bf16.mxu0 0
        %2663 = vmatpush2.bf16.xpose.msra.mxu0 0
        %2664 = vmatprep.subr.bf16.mxu0 0
        %2665 = vmatpush2.bf16.xpose.msra.mxu0 0
        %2666 = vmatprep.subr.bf16.mxu0 0
        %2667 = vmatpush2.bf16.xpose.msra.mxu0 0
        %2668 = vmatprep.subr.bf16.mxu0 0
        %2669 = vmatpush2.bf16.xpose.msra.mxu0 0
        %2670 = vmatprep.subr.bf16.mxu0 0
        %2671 = vmatpush2.bf16.xpose.msra.mxu0 0
        %2672 = vmatprep.mubr.bf16.mxu0 0
        %2673 = vmatmul.mubr.bf16.gmra.mxu0 %v2635
        %v2674 = vpop.f32.mrf.mxu0
        %v2675 = vadd.f32 0.0, %v2674
        %v2676 = vpop.f32.mrf.mxu0
        %v2677 = vpop.f32.mrf.mxu0
        %v2678 = vpop.f32.mrf.mxu0
        %2679 = vdwg.mxu0
        %2680 = vrot.lane.b32.xlu0 %v2197, 112
        %v2681 = vpop.permute.xlu0 %2680
        %2682 = vrot.lane.b32.xlu0 %v2199, 112
        %v2683 = vpop.permute.xlu0 %2682
        %v2685 = vsel %vm1108, %v2681, 0
        %v2688 = vsel %vm1108, %v2683, 0
        %2690 = vmatprep.subr.bf16.mxu0 0
        %2691 = vmatpush1.bf16.xpose.msra.mxu0 0
        %2692 = vmatprep.subr.bf16.mxu0 0
        %2693 = vmatpush1.bf16.xpose.msra.mxu0 0
        %2694 = vmatprep.subr.bf16.mxu0 0
        %2695 = vmatpush1.bf16.xpose.msra.mxu0 0
        %2696 = vmatprep.subr.bf16.mxu0 0
        %2697 = vmatpush1.bf16.xpose.msra.mxu0 0
        %2698 = vmatprep.subr.bf16.mxu0 0
        %2699 = vmatpush1.bf16.xpose.msra.mxu0 0
        %2700 = vmatprep.subr.bf16.mxu0 0
        %2701 = vmatpush1.bf16.xpose.msra.mxu0 0
        %2702 = vmatprep.subr.bf16.mxu0 0
        %2703 = vmatpush1.bf16.xpose.msra.mxu0 0
        %2704 = vmatprep.subr.bf16.mxu0 0
        %2705 = vmatpush1.bf16.xpose.msra.mxu0 %v2688
        %2706 = vmatprep.subr.bf16.mxu0 0
        %2707 = vmatpush2.bf16.xpose.msra.mxu0 0
        %2708 = vmatprep.subr.bf16.mxu0 0
        %2709 = vmatpush2.bf16.xpose.msra.mxu0 0
        %2710 = vmatprep.subr.bf16.mxu0 0
        %2711 = vmatpush2.bf16.xpose.msra.mxu0 0
        %2712 = vmatprep.subr.bf16.mxu0 0
        %2713 = vmatpush2.bf16.xpose.msra.mxu0 0
        %2714 = vmatprep.subr.bf16.mxu0 0
        %2715 = vmatpush2.bf16.xpose.msra.mxu0 0
        %2716 = vmatprep.subr.bf16.mxu0 0
        %2717 = vmatpush2.bf16.xpose.msra.mxu0 0
        %2718 = vmatprep.subr.bf16.mxu0 0
        %2719 = vmatpush2.bf16.xpose.msra.mxu0 0
        %2720 = vmatprep.subr.bf16.mxu0 0
        %2721 = vmatpush2.bf16.xpose.msra.mxu0 0
        %2722 = vmatprep.mubr.bf16.mxu0 0
        %2723 = vmatmul.mubr.bf16.gmra.mxu0 %v2685
        %v2724 = vpop.f32.mrf.mxu0
        %v2725 = vadd.f32 0.0, %v2724
        %v2726 = vpop.f32.mrf.mxu0
        %v2727 = vpop.f32.mrf.mxu0
        %v2728 = vpop.f32.mrf.mxu0
        %2729 = vdwg.mxu0
        %v2730 = vmul.f32 %v2675, 0.35355338
        %v2731 = vmul.f32 %v2725, 0.35355338
        %v2732 = vsel %vm2028, %v2730, -inf
        %2733 = vmax.xlane.f32.xlu0 %v2732
        %v2734 = vpop.xlane.xlu0 %2733
        %v2735 = vsel %vm2028, %v2731, -inf
        %2736 = vmax.xlane.f32.xlu0 %v2735
        %v2737 = vpop.xlane.xlu0 %2736
        %v2738 = vsub.f32 %v2730, %v2734
        %v2739 = vsub.f32 %v2731, %v2737
        %v2740 = vmul.f32 %v2738, 1.442695
        %v2741 = vpow.pop %v2740
        %v2742 = vmul.f32 %v2739, 1.442695
        %v2743 = vpow.pop %v2742
        %v2744 = vsel %vm2028, %v2741, 0.0
        %2745 = vadd.xlane.f32.xlu0 %v2744
        %v2746 = vpop.xlane.xlu0 %2745
        %v2747 = vsel %vm2028, %v2743, 0.0
        %2748 = vadd.xlane.f32.xlu0 %v2747
        %v2749 = vpop.xlane.xlu0 %2748
        %v2750 = vrcp.pop %v2746
        %v2751 = vrcp.pop %v2749
        %v2752 = vmul.f32 %v2741, %v2750
        %v2753 = vmul.f32 %v2743, %v2751
        %v2754 = vpack.c.bf16 %v2752, %v2752
        %v2755 = vpack.c.bf16 %v2753, %v2753
        %2756 = vrot.lane.b32.xlu0 %v2318, 112
        %v2757 = vpop.permute.xlu0 %2756
        %v2760 = vsel %vm2028, %v2754, 0
        %2762 = vmatprep.subr.bf16.mxu0 0
        %2763 = vmatpush1.bf16.msra.mxu0 0
        %2764 = vmatprep.subr.bf16.mxu0 0
        %2765 = vmatpush1.bf16.msra.mxu0 0
        %2766 = vmatprep.subr.bf16.mxu0 0
        %2767 = vmatpush1.bf16.msra.mxu0 0
        %2768 = vmatprep.subr.bf16.mxu0 0
        %2769 = vmatpush1.bf16.msra.mxu0 0
        %2770 = vmatprep.subr.bf16.mxu0 0
        %2771 = vmatpush1.bf16.msra.mxu0 0
        %2772 = vmatprep.subr.bf16.mxu0 0
        %2773 = vmatpush1.bf16.msra.mxu0 0
        %2774 = vmatprep.subr.bf16.mxu0 0
        %2775 = vmatpush1.bf16.msra.mxu0 0
        %2776 = vmatprep.subr.bf16.mxu0 0
        %2777 = vmatpush1.bf16.msra.mxu0 %v2757
        %2778 = vmatprep.subr.bf16.mxu0 0
        %2779 = vmatpush2.bf16.msra.mxu0 0
        %2780 = vmatprep.subr.bf16.mxu0 0
        %2781 = vmatpush2.bf16.msra.mxu0 0
        %2782 = vmatprep.subr.bf16.mxu0 0
        %2783 = vmatpush2.bf16.msra.mxu0 0
        %2784 = vmatprep.subr.bf16.mxu0 0
        %2785 = vmatpush2.bf16.msra.mxu0 0
        %2786 = vmatprep.subr.bf16.mxu0 0
        %2787 = vmatpush2.bf16.msra.mxu0 0
        %2788 = vmatprep.subr.bf16.mxu0 0
        %2789 = vmatpush2.bf16.msra.mxu0 0
        %2790 = vmatprep.subr.bf16.mxu0 0
        %2791 = vmatpush2.bf16.msra.mxu0 0
        %2792 = vmatprep.subr.bf16.mxu0 0
        %2793 = vmatpush2.bf16.msra.mxu0 0
        %2794 = vmatprep.mubr.bf16.mxu0 0
        %2795 = vmatmul.mubr.bf16.gmra.mxu0 %v2760
        %v2796 = vpop.f32.mrf.mxu0
        %v2797 = vadd.f32 0.0, %v2796
        %v2798 = vpop.f32.mrf.mxu0
        %v2799 = vpop.f32.mrf.mxu0
        %v2800 = vpop.f32.mrf.mxu0
        %2801 = vdwg.mxu0
        %2802 = vrot.lane.b32.xlu0 %v2319, 112
        %v2803 = vpop.permute.xlu0 %2802
        %v2806 = vsel %vm2028, %v2755, 0
        %2808 = vmatprep.subr.bf16.mxu0 0
        %2809 = vmatpush1.bf16.msra.mxu0 0
        %2810 = vmatprep.subr.bf16.mxu0 0
        %2811 = vmatpush1.bf16.msra.mxu0 0
        %2812 = vmatprep.subr.bf16.mxu0 0
        %2813 = vmatpush1.bf16.msra.mxu0 0
        %2814 = vmatprep.subr.bf16.mxu0 0
        %2815 = vmatpush1.bf16.msra.mxu0 0
        %2816 = vmatprep.subr.bf16.mxu0 0
        %2817 = vmatpush1.bf16.msra.mxu0 0
        %2818 = vmatprep.subr.bf16.mxu0 0
        %2819 = vmatpush1.bf16.msra.mxu0 0
        %2820 = vmatprep.subr.bf16.mxu0 0
        %2821 = vmatpush1.bf16.msra.mxu0 0
        %2822 = vmatprep.subr.bf16.mxu0 0
        %2823 = vmatpush1.bf16.msra.mxu0 %v2803
        %2824 = vmatprep.subr.bf16.mxu0 0
        %2825 = vmatpush2.bf16.msra.mxu0 0
        %2826 = vmatprep.subr.bf16.mxu0 0
        %2827 = vmatpush2.bf16.msra.mxu0 0
        %2828 = vmatprep.subr.bf16.mxu0 0
        %2829 = vmatpush2.bf16.msra.mxu0 0
        %2830 = vmatprep.subr.bf16.mxu0 0
        %2831 = vmatpush2.bf16.msra.mxu0 0
        %2832 = vmatprep.subr.bf16.mxu0 0
        %2833 = vmatpush2.bf16.msra.mxu0 0
        %2834 = vmatprep.subr.bf16.mxu0 0
        %2835 = vmatpush2.bf16.msra.mxu0 0
        %2836 = vmatprep.subr.bf16.mxu0 0
        %2837 = vmatpush2.bf16.msra.mxu0 0
        %2838 = vmatprep.subr.bf16.mxu0 0
        %2839 = vmatpush2.bf16.msra.mxu0 0
        %2840 = vmatprep.mubr.bf16.mxu0 0
        %2841 = vmatmul.mubr.bf16.gmra.mxu0 %v2806
        %v2842 = vpop.f32.mrf.mxu0
        %v2843 = vadd.f32 0.0, %v2842
        %v2844 = vpop.f32.mrf.mxu0
        %v2845 = vpop.f32.mrf.mxu0
        %v2846 = vpop.f32.mrf.mxu0
        %2847 = vdwg.mxu0
        %2848 = vrot.lane.b32.xlu0 %v2196, 104
        %v2849 = vpop.permute.xlu0 %2848
        %2850 = vrot.lane.b32.xlu0 %v2198, 104
        %v2851 = vpop.permute.xlu0 %2850
        %v2853 = vsel %vm1108, %v2849, 0
        %v2856 = vsel %vm1108, %v2851, 0
        %2858 = vmatprep.subr.bf16.mxu0 0
        %2859 = vmatpush1.bf16.xpose.msra.mxu0 0
        %2860 = vmatprep.subr.bf16.mxu0 0
        %2861 = vmatpush1.bf16.xpose.msra.mxu0 0
        %2862 = vmatprep.subr.bf16.mxu0 0
        %2863 = vmatpush1.bf16.xpose.msra.mxu0 0
        %2864 = vmatprep.subr.bf16.mxu0 0
        %2865 = vmatpush1.bf16.xpose.msra.mxu0 0
        %2866 = vmatprep.subr.bf16.mxu0 0
        %2867 = vmatpush1.bf16.xpose.msra.mxu0 0
        %2868 = vmatprep.subr.bf16.mxu0 0
        %2869 = vmatpush1.bf16.xpose.msra.mxu0 0
        %2870 = vmatprep.subr.bf16.mxu0 0
        %2871 = vmatpush1.bf16.xpose.msra.mxu0 0
        %2872 = vmatprep.subr.bf16.mxu0 0
        %2873 = vmatpush1.bf16.xpose.msra.mxu0 %v2856
        %2874 = vmatprep.subr.bf16.mxu0 0
        %2875 = vmatpush2.bf16.xpose.msra.mxu0 0
        %2876 = vmatprep.subr.bf16.mxu0 0
        %2877 = vmatpush2.bf16.xpose.msra.mxu0 0
        %2878 = vmatprep.subr.bf16.mxu0 0
        %2879 = vmatpush2.bf16.xpose.msra.mxu0 0
        %2880 = vmatprep.subr.bf16.mxu0 0
        %2881 = vmatpush2.bf16.xpose.msra.mxu0 0
        %2882 = vmatprep.subr.bf16.mxu0 0
        %2883 = vmatpush2.bf16.xpose.msra.mxu0 0
        %2884 = vmatprep.subr.bf16.mxu0 0
        %2885 = vmatpush2.bf16.xpose.msra.mxu0 0
        %2886 = vmatprep.subr.bf16.mxu0 0
        %2887 = vmatpush2.bf16.xpose.msra.mxu0 0
        %2888 = vmatprep.subr.bf16.mxu0 0
        %2889 = vmatpush2.bf16.xpose.msra.mxu0 0
        %2890 = vmatprep.mubr.bf16.mxu0 0
        %2891 = vmatmul.mubr.bf16.gmra.mxu0 %v2853
        %v2892 = vpop.f32.mrf.mxu0
        %v2893 = vadd.f32 0.0, %v2892
        %v2894 = vpop.f32.mrf.mxu0
        %v2895 = vpop.f32.mrf.mxu0
        %v2896 = vpop.f32.mrf.mxu0
        %2897 = vdwg.mxu0
        %2898 = vrot.lane.b32.xlu0 %v2197, 104
        %v2899 = vpop.permute.xlu0 %2898
        %2900 = vrot.lane.b32.xlu0 %v2199, 104
        %v2901 = vpop.permute.xlu0 %2900
        %v2903 = vsel %vm1108, %v2899, 0
        %v2906 = vsel %vm1108, %v2901, 0
        %2908 = vmatprep.subr.bf16.mxu0 0
        %2909 = vmatpush1.bf16.xpose.msra.mxu0 0
        %2910 = vmatprep.subr.bf16.mxu0 0
        %2911 = vmatpush1.bf16.xpose.msra.mxu0 0
        %2912 = vmatprep.subr.bf16.mxu0 0
        %2913 = vmatpush1.bf16.xpose.msra.mxu0 0
        %2914 = vmatprep.subr.bf16.mxu0 0
        %2915 = vmatpush1.bf16.xpose.msra.mxu0 0
        %2916 = vmatprep.subr.bf16.mxu0 0
        %2917 = vmatpush1.bf16.xpose.msra.mxu0 0
        %2918 = vmatprep.subr.bf16.mxu0 0
        %2919 = vmatpush1.bf16.xpose.msra.mxu0 0
        %2920 = vmatprep.subr.bf16.mxu0 0
        %2921 = vmatpush1.bf16.xpose.msra.mxu0 0
        %2922 = vmatprep.subr.bf16.mxu0 0
        %2923 = vmatpush1.bf16.xpose.msra.mxu0 %v2906
        %2924 = vmatprep.subr.bf16.mxu0 0
        %2925 = vmatpush2.bf16.xpose.msra.mxu0 0
        %2926 = vmatprep.subr.bf16.mxu0 0
        %2927 = vmatpush2.bf16.xpose.msra.mxu0 0
        %2928 = vmatprep.subr.bf16.mxu0 0
        %2929 = vmatpush2.bf16.xpose.msra.mxu0 0
        %2930 = vmatprep.subr.bf16.mxu0 0
        %2931 = vmatpush2.bf16.xpose.msra.mxu0 0
        %2932 = vmatprep.subr.bf16.mxu0 0
        %2933 = vmatpush2.bf16.xpose.msra.mxu0 0
        %2934 = vmatprep.subr.bf16.mxu0 0
        %2935 = vmatpush2.bf16.xpose.msra.mxu0 0
        %2936 = vmatprep.subr.bf16.mxu0 0
        %2937 = vmatpush2.bf16.xpose.msra.mxu0 0
        %2938 = vmatprep.subr.bf16.mxu0 0
        %2939 = vmatpush2.bf16.xpose.msra.mxu0 0
        %2940 = vmatprep.mubr.bf16.mxu0 0
        %2941 = vmatmul.mubr.bf16.gmra.mxu0 %v2903
        %v2942 = vpop.f32.mrf.mxu0
        %v2943 = vadd.f32 0.0, %v2942
        %v2944 = vpop.f32.mrf.mxu0
        %v2945 = vpop.f32.mrf.mxu0
        %v2946 = vpop.f32.mrf.mxu0
        %2947 = vdwg.mxu0
        %v2948 = vmul.f32 %v2893, 0.35355338
        %v2949 = vmul.f32 %v2943, 0.35355338
        %v2950 = vsel %vm2028, %v2948, -inf
        %2951 = vmax.xlane.f32.xlu0 %v2950
        %v2952 = vpop.xlane.xlu0 %2951
        %v2953 = vsel %vm2028, %v2949, -inf
        %2954 = vmax.xlane.f32.xlu0 %v2953
        %v2955 = vpop.xlane.xlu0 %2954
        %v2956 = vsub.f32 %v2948, %v2952
        %v2957 = vsub.f32 %v2949, %v2955
        %v2958 = vmul.f32 %v2956, 1.442695
        %v2959 = vpow.pop %v2958
        %v2960 = vmul.f32 %v2957, 1.442695
        %v2961 = vpow.pop %v2960
        %v2962 = vsel %vm2028, %v2959, 0.0
        %2963 = vadd.xlane.f32.xlu0 %v2962
        %v2964 = vpop.xlane.xlu0 %2963
        %v2965 = vsel %vm2028, %v2961, 0.0
        %2966 = vadd.xlane.f32.xlu0 %v2965
        %v2967 = vpop.xlane.xlu0 %2966
        %v2968 = vrcp.pop %v2964
        %v2969 = vrcp.pop %v2967
        %v2970 = vmul.f32 %v2959, %v2968
        %v2971 = vmul.f32 %v2961, %v2969
        %v2972 = vpack.c.bf16 %v2970, %v2970
        %v2973 = vpack.c.bf16 %v2971, %v2971
        %2974 = vrot.lane.b32.xlu0 %v2318, 104
        %v2975 = vpop.permute.xlu0 %2974
        %v2978 = vsel %vm2028, %v2972, 0
        %2980 = vmatprep.subr.bf16.mxu0 0
        %2981 = vmatpush1.bf16.msra.mxu0 0
        %2982 = vmatprep.subr.bf16.mxu0 0
        %2983 = vmatpush1.bf16.msra.mxu0 0
        %2984 = vmatprep.subr.bf16.mxu0 0
        %2985 = vmatpush1.bf16.msra.mxu0 0
        %2986 = vmatprep.subr.bf16.mxu0 0
        %2987 = vmatpush1.bf16.msra.mxu0 0
        %2988 = vmatprep.subr.bf16.mxu0 0
        %2989 = vmatpush1.bf16.msra.mxu0 0
        %2990 = vmatprep.subr.bf16.mxu0 0
        %2991 = vmatpush1.bf16.msra.mxu0 0
        %2992 = vmatprep.subr.bf16.mxu0 0
        %2993 = vmatpush1.bf16.msra.mxu0 0
        %2994 = vmatprep.subr.bf16.mxu0 0
        %2995 = vmatpush1.bf16.msra.mxu0 %v2975
        %2996 = vmatprep.subr.bf16.mxu0 0
        %2997 = vmatpush2.bf16.msra.mxu0 0
        %2998 = vmatprep.subr.bf16.mxu0 0
        %2999 = vmatpush2.bf16.msra.mxu0 0
        %3000 = vmatprep.subr.bf16.mxu0 0
        %3001 = vmatpush2.bf16.msra.mxu0 0
        %3002 = vmatprep.subr.bf16.mxu0 0
        %3003 = vmatpush2.bf16.msra.mxu0 0
        %3004 = vmatprep.subr.bf16.mxu0 0
        %3005 = vmatpush2.bf16.msra.mxu0 0
        %3006 = vmatprep.subr.bf16.mxu0 0
        %3007 = vmatpush2.bf16.msra.mxu0 0
        %3008 = vmatprep.subr.bf16.mxu0 0
        %3009 = vmatpush2.bf16.msra.mxu0 0
        %3010 = vmatprep.subr.bf16.mxu0 0
        %3011 = vmatpush2.bf16.msra.mxu0 0
        %3012 = vmatprep.mubr.bf16.mxu0 0
        %3013 = vmatmul.mubr.bf16.gmra.mxu0 %v2978
        %v3014 = vpop.f32.mrf.mxu0
        %v3015 = vadd.f32 0.0, %v3014
        %v3016 = vpop.f32.mrf.mxu0
        %v3017 = vpop.f32.mrf.mxu0
        %v3018 = vpop.f32.mrf.mxu0
        %3019 = vdwg.mxu0
        %3020 = vrot.lane.b32.xlu0 %v2319, 104
        %v3021 = vpop.permute.xlu0 %3020
        %v3024 = vsel %vm2028, %v2973, 0
        %3026 = vmatprep.subr.bf16.mxu0 0
        %3027 = vmatpush1.bf16.msra.mxu0 0
        %3028 = vmatprep.subr.bf16.mxu0 0
        %3029 = vmatpush1.bf16.msra.mxu0 0
        %3030 = vmatprep.subr.bf16.mxu0 0
        %3031 = vmatpush1.bf16.msra.mxu0 0
        %3032 = vmatprep.subr.bf16.mxu0 0
        %3033 = vmatpush1.bf16.msra.mxu0 0
        %3034 = vmatprep.subr.bf16.mxu0 0
        %3035 = vmatpush1.bf16.msra.mxu0 0
        %3036 = vmatprep.subr.bf16.mxu0 0
        %3037 = vmatpush1.bf16.msra.mxu0 0
        %3038 = vmatprep.subr.bf16.mxu0 0
        %3039 = vmatpush1.bf16.msra.mxu0 0
        %3040 = vmatprep.subr.bf16.mxu0 0
        %3041 = vmatpush1.bf16.msra.mxu0 %v3021
        %3042 = vmatprep.subr.bf16.mxu0 0
        %3043 = vmatpush2.bf16.msra.mxu0 0
        %3044 = vmatprep.subr.bf16.mxu0 0
        %3045 = vmatpush2.bf16.msra.mxu0 0
        %3046 = vmatprep.subr.bf16.mxu0 0
        %3047 = vmatpush2.bf16.msra.mxu0 0
        %3048 = vmatprep.subr.bf16.mxu0 0
        %3049 = vmatpush2.bf16.msra.mxu0 0
        %3050 = vmatprep.subr.bf16.mxu0 0
        %3051 = vmatpush2.bf16.msra.mxu0 0
        %3052 = vmatprep.subr.bf16.mxu0 0
        %3053 = vmatpush2.bf16.msra.mxu0 0
        %3054 = vmatprep.subr.bf16.mxu0 0
        %3055 = vmatpush2.bf16.msra.mxu0 0
        %3056 = vmatprep.subr.bf16.mxu0 0
        %3057 = vmatpush2.bf16.msra.mxu0 0
        %3058 = vmatprep.mubr.bf16.mxu0 0
        %3059 = vmatmul.mubr.bf16.gmra.mxu0 %v3024
        %v3060 = vpop.f32.mrf.mxu0
        %v3061 = vadd.f32 0.0, %v3060
        %v3062 = vpop.f32.mrf.mxu0
        %v3063 = vpop.f32.mrf.mxu0
        %v3064 = vpop.f32.mrf.mxu0
        %3065 = vdwg.mxu0
        %3068 = vrot.lane.b32.xlu0 %v2578, 8
        %v3069 = vpop.permute.xlu0 %3068
        %3070 = vrot.lane.b32.xlu0 %v2625, 8
        %v3071 = vpop.permute.xlu0 %3070
        %3076 = vrot.lane.b32.xlu0 %v2797, 16
        %v3077 = vpop.permute.xlu0 %3076
        %3078 = vrot.lane.b32.xlu0 %v2843, 16
        %v3079 = vpop.permute.xlu0 %3078
        %3084 = vrot.lane.b32.xlu0 %v3015, 24
        %v3085 = vpop.permute.xlu0 %3084
        %3086 = vrot.lane.b32.xlu0 %v3061, 24
        %v3087 = vpop.permute.xlu0 %3086
        %v3090 = vsel %vm1108, %v2358, %v3069
        %v3091 = vsel %vm1108, %v2401, %v3071
        %v3092 = vsel %vm2028, %v3090, %v3077
        %v3093 = vsel %vm2028, %v3091, %v3079
        %v3094 = vsel %vm2031, %v3092, %v3085
        %v3095 = vsel %vm2031, %v3093, %v3087
        %v3096 = vpack.c.bf16 %v3095, %v3094
        %v3097 = vlaneseq
        %v3098 = vshrl.u32 %v3097, 7
        %v3099 = vsub.s32 7, %v3098
        %v3100 = vrot.slane %v652, %v3099
        %v3105 = vunpack.c.l.b16 %v682
        %v3106 = vunpack.c.l.b16 %v683
        %v3107 = vunpack.c.l.b16 %v684
        %v3108 = vunpack.c.l.b16 %v685
        %v3109 = vpack.c.b16 %v3106, %v3105
        %v3110 = vpack.c.b16 %v3108, %v3107
        %v3114 = vsel %vm707, %v3096, 0
        %3116 = vmatprep.subr.bf16.mxu0 0
        %3117 = vmatpush1.bf16.msra.mxu0 0
        %3118 = vmatprep.subr.bf16.mxu0 0
        %3119 = vmatpush1.bf16.msra.mxu0 0
        %3120 = vmatprep.subr.bf16.mxu0 0
        %3121 = vmatpush1.bf16.msra.mxu0 0
        %3122 = vmatprep.subr.bf16.mxu0 0
        %3123 = vmatpush1.bf16.msra.mxu0 0
        %3124 = vmatprep.subr.bf16.mxu0 0
        %3125 = vmatpush1.bf16.msra.mxu0 0
        %3126 = vmatprep.subr.bf16.mxu0 0
        %3127 = vmatpush1.bf16.msra.mxu0 0
        %3128 = vmatprep.subr.bf16.mxu0 0
        %3129 = vmatpush1.bf16.msra.mxu0 %v3110
        %3130 = vmatprep.subr.bf16.mxu0 0
        %3131 = vmatpush1.bf16.msra.mxu0 %v3109
        %3132 = vmatprep.subr.bf16.mxu0 0
        %3133 = vmatpush2.bf16.msra.mxu0 0
        %3134 = vmatprep.subr.bf16.mxu0 0
        %3135 = vmatpush2.bf16.msra.mxu0 0
        %3136 = vmatprep.subr.bf16.mxu0 0
        %3137 = vmatpush2.bf16.msra.mxu0 0
        %3138 = vmatprep.subr.bf16.mxu0 0
        %3139 = vmatpush2.bf16.msra.mxu0 0
        %3140 = vmatprep.subr.bf16.mxu0 0
        %3141 = vmatpush2.bf16.msra.mxu0 0
        %3142 = vmatprep.subr.bf16.mxu0 0
        %3143 = vmatpush2.bf16.msra.mxu0 0
        %3144 = vmatprep.subr.bf16.mxu0 0
        %3145 = vmatpush2.bf16.msra.mxu0 0
        %3146 = vmatprep.subr.bf16.mxu0 0
        %3147 = vmatpush2.bf16.msra.mxu0 0
        %3148 = vmatprep.mubr.bf16.mxu0 0
        %3149 = vmatmul.mubr.bf16.gmra.mxu0 %v3114
        %v3150 = vpop.f32.mrf.mxu0
        %v3151 = vadd.f32 %v3100, %v3150
        %v3152 = vpop.f32.mrf.mxu0
        %v3153 = vpop.f32.mrf.mxu0
        %v3154 = vadd.f32 %v3100, %v3153
        %v3155 = vpop.f32.mrf.mxu0
        %3156 = vdwg.mxu0
        %v3157 = vadd.f32 %v2095, %v3151
        %v3158 = vadd.f32 %v2096, %v3154
        %v3159 = vsel %vm707, %v3157, 0.0
        %3160 = vadd.xlane.f32.xlu0 %v3159
        %v3161 = vpop.xlane.xlu0 %3160
        %v3162 = vsel %vm707, %v3158, 0.0
        %3163 = vadd.xlane.f32.xlu0 %v3162
        %v3164 = vpop.xlane.xlu0 %3163
        %v3165 = vmul.f32 %v3161, %v714
        %v3166 = vmul.f32 %v3164, %v714
        %v3167 = vsub.f32 %v3157, %v3165
        %v3168 = vsub.f32 %v3158, %v3166
        %v3169 = vmul.f32 %v3167, %v3167
        %v3170 = vmul.f32 %v3168, %v3168
        %v3171 = vsel %vm707, %v3169, 0.0
        %3172 = vadd.xlane.f32.xlu0 %v3171
        %v3173 = vpop.xlane.xlu0 %3172
        %v3174 = vsel %vm707, %v3170, 0.0
        %3175 = vadd.xlane.f32.xlu0 %v3174
        %v3176 = vpop.xlane.xlu0 %3175
        %v3177 = vmul.f32 %v3173, %v714
        %v3178 = vmul.f32 %v3176, %v714
        %v3179 = vadd.f32 %v3177, 1e-05
        %v3180 = vadd.f32 %v3178, 1e-05
        %v3181 = vrsqrt.pop %v3179
        %v3182 = vrsqrt.pop %v3180
        %v3183 = vmul.f32 %v3167, %v3181
        %v3184 = vmul.f32 %v3168, %v3182
        %v3185 = vlaneseq
        %v3186 = vshrl.u32 %v3185, 7
        %v3187 = vsub.s32 6, %v3186
        %v3188 = vrot.slane %v651, %v3187
        %v3189 = vmul.f32 %v3183, %v3188
        %v3190 = vmul.f32 %v3184, %v3188
        %v3191 = vlaneseq
        %v3192 = vshrl.u32 %v3191, 7
        %v3193 = vsub.s32 7, %v3192
        %v3194 = vrot.slane %v651, %v3193
        %v3195 = vadd.f32 %v3189, %v3194
        %v3196 = vadd.f32 %v3190, %v3194
        %v3197 = vpack.c.bf16 %v3196, %v3195
        %v3199 = vlaneseq
        %v3200 = vshrl.u32 %v3199, 7
        %v3201 = vsub.s32 0, %v3200
        %v3202 = vrot.slane %v690, %v3201
        %v3208 = vunpack.c.l.b16 %v686
        %v3209 = vunpack.c.l.b16 %v687
        %v3210 = vunpack.c.l.b16 %v688
        %v3211 = vunpack.c.l.b16 %v689
        %v3212 = vpack.c.b16 %v3209, %v3208
        %v3213 = vpack.c.b16 %v3211, %v3210
        %v3217 = vsel %vm707, %v3197, 0
        %3219 = vmatprep.subr.bf16.mxu0 0
        %3220 = vmatpush1.bf16.msra.mxu0 0
        %3221 = vmatprep.subr.bf16.mxu0 0
        %3222 = vmatpush1.bf16.msra.mxu0 0
        %3223 = vmatprep.subr.bf16.mxu0 0
        %3224 = vmatpush1.bf16.msra.mxu0 0
        %3225 = vmatprep.subr.bf16.mxu0 0
        %3226 = vmatpush1.bf16.msra.mxu0 0
        %3227 = vmatprep.subr.bf16.mxu0 0
        %3228 = vmatpush1.bf16.msra.mxu0 0
        %3229 = vmatprep.subr.bf16.mxu0 0
        %3230 = vmatpush1.bf16.msra.mxu0 0
        %3231 = vmatprep.subr.bf16.mxu0 0
        %3232 = vmatpush1.bf16.msra.mxu0 %v3213
        %3233 = vmatprep.subr.bf16.mxu0 0
        %3234 = vmatpush1.bf16.msra.mxu0 %v3212
        %3235 = vmatprep.subr.bf16.mxu0 0
        %3236 = vmatpush2.bf16.msra.mxu0 0
        %3237 = vmatprep.subr.bf16.mxu0 0
        %3238 = vmatpush2.bf16.msra.mxu0 0
        %3239 = vmatprep.subr.bf16.mxu0 0
        %3240 = vmatpush2.bf16.msra.mxu0 0
        %3241 = vmatprep.subr.bf16.mxu0 0
        %3242 = vmatpush2.bf16.msra.mxu0 0
        %3243 = vmatprep.subr.bf16.mxu0 0
        %3244 = vmatpush2.bf16.msra.mxu0 0
        %3245 = vmatprep.subr.bf16.mxu0 0
        %3246 = vmatpush2.bf16.msra.mxu0 0
        %3247 = vmatprep.subr.bf16.mxu0 0
        %3248 = vmatpush2.bf16.msra.mxu0 0
        %3249 = vmatprep.subr.bf16.mxu0 0
        %3250 = vmatpush2.bf16.msra.mxu0 0
        %3251 = vmatprep.mubr.bf16.mxu0 0
        %3252 = vmatmul.mubr.bf16.gmra.mxu0 %v3217
        %v3253 = vpop.f32.mrf.mxu0
        %v3254 = vadd.f32 %v3202, %v3253
        %v3255 = vpop.f32.mrf.mxu0
        %v3256 = vpop.f32.mrf.mxu0
        %v3257 = vadd.f32 %v3202, %v3256
        %v3258 = vpop.f32.mrf.mxu0
        %3259 = vdwg.mxu0
        %v3260 = vmul.f32 %v3254, 0.5
        %v3261 = vmul.f32 %v3257, 0.5
        %v3262 = vmul.f32 %v3254, 0.70710677
        %v3263 = vmul.f32 %v3257, 0.70710677
        %vm3264 = vcmp.ge.f32.partialorder %v3262, 0.0
        %vm3265 = vcmp.ge.f32.partialorder %v3263, 0.0
        %v3266 = vsel %vm3264, 1.0, -1.0
        %v3267 = vsel %vm3265, 1.0, -1.0
        %v3268 = vand.u32 2147483647, %v3262
        %v3269 = vand.u32 2147483647, %v3263
        %v3270 = vmul.f32 %v3268, 0.3275911
        %v3271 = vmul.f32 %v3269, 0.3275911
        %v3272 = vadd.f32 %v3270, 1.0
        %v3273 = vadd.f32 %v3271, 1.0
        %v3274 = vrcp.pop %v3272
        %v3275 = vmul.f32 1.0, %v3274
        %v3276 = vrcp.pop %v3273
        %v3277 = vmul.f32 1.0, %v3276
        %v3278 = vmul.f32 %v3275, 1.0614054
        %v3279 = vmul.f32 %v3277, 1.0614054
        %v3280 = vadd.f32 %v3278, -1.4531521
        %v3281 = vadd.f32 %v3279, -1.4531521
        %v3282 = vmul.f32 %v3280, %v3275
        %v3283 = vmul.f32 %v3281, %v3277
        %v3284 = vadd.f32 %v3282, 1.4214138
        %v3285 = vadd.f32 %v3283, 1.4214138
        %v3286 = vmul.f32 %v3284, %v3275
        %v3287 = vmul.f32 %v3285, %v3277
        %v3288 = vadd.f32 %v3286, -0.28449672
        %v3289 = vadd.f32 %v3287, -0.28449672
        %v3290 = vmul.f32 %v3288, %v3275
        %v3291 = vmul.f32 %v3289, %v3277
        %v3292 = vadd.f32 %v3290, 0.2548296
        %v3293 = vadd.f32 %v3291, 0.2548296
        %v3294 = vmul.f32 %v3292, %v3275
        %v3295 = vmul.f32 %v3293, %v3277
        %v3296 = vsub.f32 0.0, %v3268
        %v3297 = vsub.f32 0.0, %v3269
        %v3298 = vmul.f32 %v3296, %v3268
        %v3299 = vmul.f32 %v3297, %v3269
        %v3300 = vmul.f32 %v3298, 1.442695
        %v3301 = vpow.pop %v3300
        %v3302 = vmul.f32 %v3299, 1.442695
        %v3303 = vpow.pop %v3302
        %v3304 = vmul.f32 %v3294, %v3301
        %v3305 = vmul.f32 %v3295, %v3303
        %v3306 = vsub.f32 1.0, %v3304
        %v3307 = vsub.f32 1.0, %v3305
        %v3308 = vmul.f32 %v3266, %v3306
        %v3309 = vmul.f32 %v3267, %v3307
        %v3310 = vadd.f32 %v3308, 1.0
        %v3311 = vadd.f32 %v3309, 1.0
        %v3312 = vmul.f32 %v3260, %v3310
        %v3313 = vmul.f32 %v3261, %v3311
        %v3314 = vpack.c.bf16 %v3313, %v3312
        %v3315 = vlaneseq
        %v3316 = vshrl.u32 %v3315, 7
        %v3317 = vsub.s32 0, %v3316
        %v3318 = vrot.slane %v653, %v3317
        %v3335 = vunpack.c.l.b16 %v691
        %v3336 = vunpack.c.l.b16 %v692
        %v3337 = vunpack.c.l.b16 %v693
        %v3338 = vunpack.c.l.b16 %v694
        %v3339 = vunpack.c.l.b16 %v695
        %v3340 = vunpack.c.l.b16 %v696
        %v3341 = vunpack.c.l.b16 %v697
        %v3342 = vunpack.c.l.b16 %v698
        %v3343 = vunpack.c.l.b16 %v699
        %v3344 = vunpack.c.l.b16 %v700
        %v3345 = vunpack.c.l.b16 %v701
        %v3346 = vunpack.c.l.b16 %v702
        %v3347 = vunpack.c.l.b16 %v703
        %v3348 = vunpack.c.l.b16 %v704
        %v3349 = vunpack.c.l.b16 %v705
        %v3350 = vunpack.c.l.b16 %v706
        %v3351 = vpack.c.b16 %v3336, %v3335
        %v3352 = vpack.c.b16 %v3338, %v3337
        %v3353 = vpack.c.b16 %v3340, %v3339
        %v3354 = vpack.c.b16 %v3342, %v3341
        %v3355 = vpack.c.b16 %v3344, %v3343
        %v3356 = vpack.c.b16 %v3346, %v3345
        %v3357 = vpack.c.b16 %v3348, %v3347
        %v3358 = vpack.c.b16 %v3350, %v3349
        %3367 = vmatprep.subr.bf16.mxu0 0
        %3368 = vmatpush1.bf16.msra.mxu0 %v3358
        %3369 = vmatprep.subr.bf16.mxu0 0
        %3370 = vmatpush1.bf16.msra.mxu0 %v3357
        %3371 = vmatprep.subr.bf16.mxu0 0
        %3372 = vmatpush1.bf16.msra.mxu0 %v3356
        %3373 = vmatprep.subr.bf16.mxu0 0
        %3374 = vmatpush1.bf16.msra.mxu0 %v3355
        %3375 = vmatprep.subr.bf16.mxu0 0
        %3376 = vmatpush1.bf16.msra.mxu0 %v3354
        %3377 = vmatprep.subr.bf16.mxu0 0
        %3378 = vmatpush1.bf16.msra.mxu0 %v3353
        %3379 = vmatprep.subr.bf16.mxu0 0
        %3380 = vmatpush1.bf16.msra.mxu0 %v3352
        %3381 = vmatprep.subr.bf16.mxu0 0
        %3382 = vmatpush1.bf16.msra.mxu0 %v3351
        %3383 = vmatprep.subr.bf16.mxu0 0
        %3384 = vmatpush2.bf16.msra.mxu0 0
        %3385 = vmatprep.subr.bf16.mxu0 0
        %3386 = vmatpush2.bf16.msra.mxu0 0
        %3387 = vmatprep.subr.bf16.mxu0 0
        %3388 = vmatpush2.bf16.msra.mxu0 0
        %3389 = vmatprep.subr.bf16.mxu0 0
        %3390 = vmatpush2.bf16.msra.mxu0 0
        %3391 = vmatprep.subr.bf16.mxu0 0
        %3392 = vmatpush2.bf16.msra.mxu0 0
        %3393 = vmatprep.subr.bf16.mxu0 0
        %3394 = vmatpush2.bf16.msra.mxu0 0
        %3395 = vmatprep.subr.bf16.mxu0 0
        %3396 = vmatpush2.bf16.msra.mxu0 0
        %3397 = vmatprep.subr.bf16.mxu0 0
        %3398 = vmatpush2.bf16.msra.mxu0 0
        %3399 = vmatprep.mubr.bf16.mxu0 0
        %3400 = vmatmul.mubr.bf16.gmra.mxu0 %v3314
        %v3401 = vpop.f32.mrf.mxu0
        %v3402 = vadd.f32 %v3318, %v3401
        %v3403 = vpop.f32.mrf.mxu0
        %v3404 = vpop.f32.mrf.mxu0
        %v3405 = vadd.f32 %v3318, %v3404
        %v3406 = vpop.f32.mrf.mxu0
        %3407 = vdwg.mxu0
        %v3408 = vadd.f32 %v3157, %v3402
        %v3409 = vadd.f32 %v3158, %v3405
        %3410 = vst.msk [vmem:[#allocation2] sm:$0xff] %vm707, %v3408
        %3411 = vst.msk [vmem:[#allocation2 + $0x8] sm:$0xff] %vm707, %v3409
        %p3412 = scmp.lt.s32.totalorder %s33, 1
        // Predicated region
        $region89: #{decoder_forward.1} parent=63 // pred_check
          %p3413 = pneg %p3412
        $region90: #{decoder_forward.1} parent=63 // pred_check_branch
          %3415 = sbr.rel (%p3413) target = $region92
        $region91: #{decoder_forward.1} parent=63 // pred_region
          %v3416 = vld [vmem:[%s611] sm:$0xff]
          %v3417 = vld [vmem:[%s611 + $0x8] sm:$0xff]
          %3418 = vmatprep.subr.bf16.mxu0 0
          %3419 = vmatpush1.bf16.msra.mxu0 0
          %3420 = vmatprep.subr.bf16.mxu0 0
          %3421 = vmatpush1.bf16.msra.mxu0 0
          %3422 = vmatprep.subr.bf16.mxu0 0
          %3423 = vmatpush1.bf16.msra.mxu0 0
          %3424 = vmatprep.subr.bf16.mxu0 0
          %3425 = vmatpush1.bf16.msra.mxu0 0
          %3426 = vmatprep.subr.bf16.mxu0 0
          %3427 = vmatpush1.bf16.msra.mxu0 0
          %3428 = vmatprep.subr.bf16.mxu0 0
          %3429 = vmatpush1.bf16.msra.mxu0 0
          %3430 = vmatprep.subr.bf16.mxu0 0
          %3431 = vmatpush1.bf16.msra.mxu0 %v1057
          %3432 = vmatprep.subr.bf16.mxu0 0
          %3433 = vmatpush1.bf16.msra.mxu0 %v1056
          %3434 = vmatprep.subr.bf16.mxu0 0
          %3435 = vmatpush2.bf16.msra.mxu0 0
          %3436 = vmatprep.subr.bf16.mxu0 0
          %3437 = vmatpush2.bf16.msra.mxu0 0
          %3438 = vmatprep.subr.bf16.mxu0 0
          %3439 = vmatpush2.bf16.msra.mxu0 0
          %3440 = vmatprep.subr.bf16.mxu0 0
          %3441 = vmatpush2.bf16.msra.mxu0 0
          %3442 = vmatprep.subr.bf16.mxu0 0
          %3443 = vmatpush2.bf16.msra.mxu0 0
          %3444 = vmatprep.subr.bf16.mxu0 0
          %3445 = vmatpush2.bf16.msra.mxu0 0
          %3446 = vmatprep.subr.bf16.mxu0 0
          %3447 = vmatpush2.bf16.msra.mxu0 0
          %3448 = vmatprep.subr.bf16.mxu0 0
          %3449 = vmatpush2.bf16.msra.mxu0 0
          %3450 = vmatprep.mubr.bf16.mxu0 0
          %3451 = vmatmul.mubr.bf16.gmra.mxu0 %v803
          %v3452 = vpop.f32.mrf.mxu0
          %v3453 = vadd.f32 %v1047, %v3452
          %v3454 = vpop.f32.mrf.mxu0
          %v3455 = vpop.f32.mrf.mxu0
          %v3456 = vadd.f32 %v1047, %v3455
          %v3457 = vpop.f32.mrf.mxu0
          %3458 = vdwg.mxu0
          %v3459 = vpack.c.bf16 %v3453, %v3453
          %v3460 = vpack.c.bf16 %v3456, %v3456
          %v3462 = vsel %vm1108, %v3459, 0
          %3464 = vmatprep.subr.bf16.mxu0 0
          %3465 = vmatpush1.bf16.xpose.msra.mxu0 0
          %3466 = vmatprep.subr.bf16.mxu0 0
          %3467 = vmatpush1.bf16.xpose.msra.mxu0 0
          %3468 = vmatprep.subr.bf16.mxu0 0
          %3469 = vmatpush1.bf16.xpose.msra.mxu0 0
          %3470 = vmatprep.subr.bf16.mxu0 0
          %3471 = vmatpush1.bf16.xpose.msra.mxu0 0
          %3472 = vmatprep.subr.bf16.mxu0 0
          %3473 = vmatpush1.bf16.xpose.msra.mxu0 0
          %3474 = vmatprep.subr.bf16.mxu0 0
          %3475 = vmatpush1.bf16.xpose.msra.mxu0 0
          %3476 = vmatprep.subr.bf16.mxu0 0
          %3477 = vmatpush1.bf16.xpose.msra.mxu0 0
          %3478 = vmatprep.subr.bf16.mxu0 0
          %3479 = vmatpush1.bf16.xpose.msra.mxu0 %v1113
          %3480 = vmatprep.subr.bf16.mxu0 0
          %3481 = vmatpush2.bf16.xpose.msra.mxu0 0
          %3482 = vmatprep.subr.bf16.mxu0 0
          %3483 = vmatpush2.bf16.xpose.msra.mxu0 0
          %3484 = vmatprep.subr.bf16.mxu0 0
          %3485 = vmatpush2.bf16.xpose.msra.mxu0 0
          %3486 = vmatprep.subr.bf16.mxu0 0
          %3487 = vmatpush2.bf16.xpose.msra.mxu0 0
          %3488 = vmatprep.subr.bf16.mxu0 0
          %3489 = vmatpush2.bf16.xpose.msra.mxu0 0
          %3490 = vmatprep.subr.bf16.mxu0 0
          %3491 = vmatpush2.bf16.xpose.msra.mxu0 0
          %3492 = vmatprep.subr.bf16.mxu0 0
          %3493 = vmatpush2.bf16.xpose.msra.mxu0 0
          %3494 = vmatprep.subr.bf16.mxu0 0
          %3495 = vmatpush2.bf16.xpose.msra.mxu0 0
          %3496 = vmatprep.mubr.bf16.mxu0 0
          %3497 = vmatmul.mubr.bf16.gmra.mxu0 %v3462
          %v3498 = vpop.f32.mrf.mxu0
          %v3499 = vadd.f32 0.0, %v3498
          %v3500 = vpop.f32.mrf.mxu0
          %v3501 = vpop.f32.mrf.mxu0
          %v3502 = vpop.f32.mrf.mxu0
          %3503 = vdwg.mxu0
          %v3505 = vsel %vm1108, %v3460, 0
          %3507 = vmatprep.subr.bf16.mxu0 0
          %3508 = vmatpush1.bf16.xpose.msra.mxu0 0
          %3509 = vmatprep.subr.bf16.mxu0 0
          %3510 = vmatpush1.bf16.xpose.msra.mxu0 0
          %3511 = vmatprep.subr.bf16.mxu0 0
          %3512 = vmatpush1.bf16.xpose.msra.mxu0 0
          %3513 = vmatprep.subr.bf16.mxu0 0
          %3514 = vmatpush1.bf16.xpose.msra.mxu0 0
          %3515 = vmatprep.subr.bf16.mxu0 0
          %3516 = vmatpush1.bf16.xpose.msra.mxu0 0
          %3517 = vmatprep.subr.bf16.mxu0 0
          %3518 = vmatpush1.bf16.xpose.msra.mxu0 0
          %3519 = vmatprep.subr.bf16.mxu0 0
          %3520 = vmatpush1.bf16.xpose.msra.mxu0 0
          %3521 = vmatprep.subr.bf16.mxu0 0
          %3522 = vmatpush1.bf16.xpose.msra.mxu0 %v1159
          %3523 = vmatprep.subr.bf16.mxu0 0
          %3524 = vmatpush2.bf16.xpose.msra.mxu0 0
          %3525 = vmatprep.subr.bf16.mxu0 0
          %3526 = vmatpush2.bf16.xpose.msra.mxu0 0
          %3527 = vmatprep.subr.bf16.mxu0 0
          %3528 = vmatpush2.bf16.xpose.msra.mxu0 0
          %3529 = vmatprep.subr.bf16.mxu0 0
          %3530 = vmatpush2.bf16.xpose.msra.mxu0 0
          %3531 = vmatprep.subr.bf16.mxu0 0
          %3532 = vmatpush2.bf16.xpose.msra.mxu0 0
          %3533 = vmatprep.subr.bf16.mxu0 0
          %3534 = vmatpush2.bf16.xpose.msra.mxu0 0
          %3535 = vmatprep.subr.bf16.mxu0 0
          %3536 = vmatpush2.bf16.xpose.msra.mxu0 0
          %3537 = vmatprep.subr.bf16.mxu0 0
          %3538 = vmatpush2.bf16.xpose.msra.mxu0 0
          %3539 = vmatprep.mubr.bf16.mxu0 0
          %3540 = vmatmul.mubr.bf16.gmra.mxu0 %v3505
          %v3541 = vpop.f32.mrf.mxu0
          %v3542 = vadd.f32 0.0, %v3541
          %v3543 = vpop.f32.mrf.mxu0
          %v3544 = vpop.f32.mrf.mxu0
          %v3545 = vpop.f32.mrf.mxu0
          %3546 = vdwg.mxu0
          %v3547 = vmul.f32 %v3499, 0.35355338
          %v3548 = vmul.f32 %v3542, 0.35355338
          %v3549 = vadd.f32 %v3547, %v3416
          %v3550 = vadd.f32 %v3548, %v3417
          %v3551 = vsel %vm1108, %v3549, -inf
          %3552 = vmax.xlane.f32.xlu0 %v3551
          %v3553 = vpop.xlane.xlu0 %3552
          %v3554 = vsel %vm1108, %v3550, -inf
          %3555 = vmax.xlane.f32.xlu0 %v3554
          %v3556 = vpop.xlane.xlu0 %3555
          %v3557 = vsub.f32 %v3549, %v3553
          %v3558 = vsub.f32 %v3550, %v3556
          %v3559 = vmul.f32 %v3557, 1.442695
          %v3560 = vpow.pop %v3559
          %v3561 = vmul.f32 %v3558, 1.442695
          %v3562 = vpow.pop %v3561
          %v3563 = vsel %vm1108, %v3560, 0.0
          %3564 = vadd.xlane.f32.xlu0 %v3563
          %v3565 = vpop.xlane.xlu0 %3564
          %v3566 = vsel %vm1108, %v3562, 0.0
          %3567 = vadd.xlane.f32.xlu0 %v3566
          %v3568 = vpop.xlane.xlu0 %3567
          %v3569 = vrcp.pop %v3565
          %v3570 = vrcp.pop %v3568
          %v3571 = vmul.f32 %v3560, %v3569
          %v3572 = vmul.f32 %v3562, %v3570
          %v3573 = vpack.c.bf16 %v3571, %v3571
          %v3574 = vpack.c.bf16 %v3572, %v3572
          %v3576 = vsel %vm1108, %v3573, 0
          %3578 = vmatprep.subr.bf16.mxu0 0
          %3579 = vmatpush1.bf16.msra.mxu0 0
          %3580 = vmatprep.subr.bf16.mxu0 0
          %3581 = vmatpush1.bf16.msra.mxu0 0
          %3582 = vmatprep.subr.bf16.mxu0 0
          %3583 = vmatpush1.bf16.msra.mxu0 0
          %3584 = vmatprep.subr.bf16.mxu0 0
          %3585 = vmatpush1.bf16.msra.mxu0 0
          %3586 = vmatprep.subr.bf16.mxu0 0
          %3587 = vmatpush1.bf16.msra.mxu0 0
          %3588 = vmatprep.subr.bf16.mxu0 0
          %3589 = vmatpush1.bf16.msra.mxu0 0
          %3590 = vmatprep.subr.bf16.mxu0 0
          %3591 = vmatpush1.bf16.msra.mxu0 0
          %3592 = vmatprep.subr.bf16.mxu0 0
          %3593 = vmatpush1.bf16.msra.mxu0 %v1236
          %3594 = vmatprep.subr.bf16.mxu0 0
          %3595 = vmatpush2.bf16.msra.mxu0 0
          %3596 = vmatprep.subr.bf16.mxu0 0
          %3597 = vmatpush2.bf16.msra.mxu0 0
          %3598 = vmatprep.subr.bf16.mxu0 0
          %3599 = vmatpush2.bf16.msra.mxu0 0
          %3600 = vmatprep.subr.bf16.mxu0 0
          %3601 = vmatpush2.bf16.msra.mxu0 0
          %3602 = vmatprep.subr.bf16.mxu0 0
          %3603 = vmatpush2.bf16.msra.mxu0 0
          %3604 = vmatprep.subr.bf16.mxu0 0
          %3605 = vmatpush2.bf16.msra.mxu0 0
          %3606 = vmatprep.subr.bf16.mxu0 0
          %3607 = vmatpush2.bf16.msra.mxu0 0
          %3608 = vmatprep.subr.bf16.mxu0 0
          %3609 = vmatpush2.bf16.msra.mxu0 0
          %3610 = vmatprep.mubr.bf16.mxu0 0
          %3611 = vmatmul.mubr.bf16.gmra.mxu0 %v3576
          %v3612 = vpop.f32.mrf.mxu0
          %v3613 = vadd.f32 0.0, %v3612
          %v3614 = vpop.f32.mrf.mxu0
          %v3615 = vpop.f32.mrf.mxu0
          %v3616 = vpop.f32.mrf.mxu0
          %3617 = vdwg.mxu0
          %v3619 = vsel %vm1108, %v3574, 0
          %3621 = vmatprep.subr.bf16.mxu0 0
          %3622 = vmatpush1.bf16.msra.mxu0 0
          %3623 = vmatprep.subr.bf16.mxu0 0
          %3624 = vmatpush1.bf16.msra.mxu0 0
          %3625 = vmatprep.subr.bf16.mxu0 0
          %3626 = vmatpush1.bf16.msra.mxu0 0
          %3627 = vmatprep.subr.bf16.mxu0 0
          %3628 = vmatpush1.bf16.msra.mxu0 0
          %3629 = vmatprep.subr.bf16.mxu0 0
          %3630 = vmatpush1.bf16.msra.mxu0 0
          %3631 = vmatprep.subr.bf16.mxu0 0
          %3632 = vmatpush1.bf16.msra.mxu0 0
          %3633 = vmatprep.subr.bf16.mxu0 0
          %3634 = vmatpush1.bf16.msra.mxu0 0
          %3635 = vmatprep.subr.bf16.mxu0 0
          %3636 = vmatpush1.bf16.msra.mxu0 %v1282
          %3637 = vmatprep.subr.bf16.mxu0 0
          %3638 = vmatpush2.bf16.msra.mxu0 0
          %3639 = vmatprep.subr.bf16.mxu0 0
          %3640 = vmatpush2.bf16.msra.mxu0 0
          %3641 = vmatprep.subr.bf16.mxu0 0
          %3642 = vmatpush2.bf16.msra.mxu0 0
          %3643 = vmatprep.subr.bf16.mxu0 0
          %3644 = vmatpush2.bf16.msra.mxu0 0
          %3645 = vmatprep.subr.bf16.mxu0 0
          %3646 = vmatpush2.bf16.msra.mxu0 0
          %3647 = vmatprep.subr.bf16.mxu0 0
          %3648 = vmatpush2.bf16.msra.mxu0 0
          %3649 = vmatprep.subr.bf16.mxu0 0
          %3650 = vmatpush2.bf16.msra.mxu0 0
          %3651 = vmatprep.subr.bf16.mxu0 0
          %3652 = vmatpush2.bf16.msra.mxu0 0
          %3653 = vmatprep.mubr.bf16.mxu0 0
          %3654 = vmatmul.mubr.bf16.gmra.mxu0 %v3619
          %v3655 = vpop.f32.mrf.mxu0
          %v3656 = vadd.f32 0.0, %v3655
          %v3657 = vpop.f32.mrf.mxu0
          %v3658 = vpop.f32.mrf.mxu0
          %v3659 = vpop.f32.mrf.mxu0
          %3660 = vdwg.mxu0
          %3662 = vrot.lane.b32.xlu0 %v3459, 120
          %v3663 = vpop.permute.xlu0 %3662
          %v3665 = vsel %vm1108, %v3663, 0
          %3667 = vmatprep.subr.bf16.mxu0 0
          %3668 = vmatpush1.bf16.xpose.msra.mxu0 0
          %3669 = vmatprep.subr.bf16.mxu0 0
          %3670 = vmatpush1.bf16.xpose.msra.mxu0 0
          %3671 = vmatprep.subr.bf16.mxu0 0
          %3672 = vmatpush1.bf16.xpose.msra.mxu0 0
          %3673 = vmatprep.subr.bf16.mxu0 0
          %3674 = vmatpush1.bf16.xpose.msra.mxu0 0
          %3675 = vmatprep.subr.bf16.mxu0 0
          %3676 = vmatpush1.bf16.xpose.msra.mxu0 0
          %3677 = vmatprep.subr.bf16.mxu0 0
          %3678 = vmatpush1.bf16.xpose.msra.mxu0 0
          %3679 = vmatprep.subr.bf16.mxu0 0
          %3680 = vmatpush1.bf16.xpose.msra.mxu0 0
          %3681 = vmatprep.subr.bf16.mxu0 0
          %3682 = vmatpush1.bf16.xpose.msra.mxu0 %v1334
          %3683 = vmatprep.subr.bf16.mxu0 0
          %3684 = vmatpush2.bf16.xpose.msra.mxu0 0
          %3685 = vmatprep.subr.bf16.mxu0 0
          %3686 = vmatpush2.bf16.xpose.msra.mxu0 0
          %3687 = vmatprep.subr.bf16.mxu0 0
          %3688 = vmatpush2.bf16.xpose.msra.mxu0 0
          %3689 = vmatprep.subr.bf16.mxu0 0
          %3690 = vmatpush2.bf16.xpose.msra.mxu0 0
          %3691 = vmatprep.subr.bf16.mxu0 0
          %3692 = vmatpush2.bf16.xpose.msra.mxu0 0
          %3693 = vmatprep.subr.bf16.mxu0 0
          %3694 = vmatpush2.bf16.xpose.msra.mxu0 0
          %3695 = vmatprep.subr.bf16.mxu0 0
          %3696 = vmatpush2.bf16.xpose.msra.mxu0 0
          %3697 = vmatprep.subr.bf16.mxu0 0
          %3698 = vmatpush2.bf16.xpose.msra.mxu0 0
          %3699 = vmatprep.mubr.bf16.mxu0 0
          %3700 = vmatmul.mubr.bf16.gmra.mxu0 %v3665
          %v3701 = vpop.f32.mrf.mxu0
          %v3702 = vadd.f32 0.0, %v3701
          %v3703 = vpop.f32.mrf.mxu0
          %v3704 = vpop.f32.mrf.mxu0
          %v3705 = vpop.f32.mrf.mxu0
          %3706 = vdwg.mxu0
          %3708 = vrot.lane.b32.xlu0 %v3460, 120
          %v3709 = vpop.permute.xlu0 %3708
          %v3711 = vsel %vm1108, %v3709, 0
          %3713 = vmatprep.subr.bf16.mxu0 0
          %3714 = vmatpush1.bf16.xpose.msra.mxu0 0
          %3715 = vmatprep.subr.bf16.mxu0 0
          %3716 = vmatpush1.bf16.xpose.msra.mxu0 0
          %3717 = vmatprep.subr.bf16.mxu0 0
          %3718 = vmatpush1.bf16.xpose.msra.mxu0 0
          %3719 = vmatprep.subr.bf16.mxu0 0
          %3720 = vmatpush1.bf16.xpose.msra.mxu0 0
          %3721 = vmatprep.subr.bf16.mxu0 0
          %3722 = vmatpush1.bf16.xpose.msra.mxu0 0
          %3723 = vmatprep.subr.bf16.mxu0 0
          %3724 = vmatpush1.bf16.xpose.msra.mxu0 0
          %3725 = vmatprep.subr.bf16.mxu0 0
          %3726 = vmatpush1.bf16.xpose.msra.mxu0 0
          %3727 = vmatprep.subr.bf16.mxu0 0
          %3728 = vmatpush1.bf16.xpose.msra.mxu0 %v1386
          %3729 = vmatprep.subr.bf16.mxu0 0
          %3730 = vmatpush2.bf16.xpose.msra.mxu0 0
          %3731 = vmatprep.subr.bf16.mxu0 0
          %3732 = vmatpush2.bf16.xpose.msra.mxu0 0
          %3733 = vmatprep.subr.bf16.mxu0 0
          %3734 = vmatpush2.bf16.xpose.msra.mxu0 0
          %3735 = vmatprep.subr.bf16.mxu0 0
          %3736 = vmatpush2.bf16.xpose.msra.mxu0 0
          %3737 = vmatprep.subr.bf16.mxu0 0
          %3738 = vmatpush2.bf16.xpose.msra.mxu0 0
          %3739 = vmatprep.subr.bf16.mxu0 0
          %3740 = vmatpush2.bf16.xpose.msra.mxu0 0
          %3741 = vmatprep.subr.bf16.mxu0 0
          %3742 = vmatpush2.bf16.xpose.msra.mxu0 0
          %3743 = vmatprep.subr.bf16.mxu0 0
          %3744 = vmatpush2.bf16.xpose.msra.mxu0 0
          %3745 = vmatprep.mubr.bf16.mxu0 0
          %3746 = vmatmul.mubr.bf16.gmra.mxu0 %v3711
          %v3747 = vpop.f32.mrf.mxu0
          %v3748 = vadd.f32 0.0, %v3747
          %v3749 = vpop.f32.mrf.mxu0
          %v3750 = vpop.f32.mrf.mxu0
          %v3751 = vpop.f32.mrf.mxu0
          %3752 = vdwg.mxu0
          %v3753 = vmul.f32 %v3702, 0.35355338
          %v3754 = vmul.f32 %v3748, 0.35355338
          %v3755 = vadd.f32 %v3753, %v3416
          %v3756 = vadd.f32 %v3754, %v3417
          %v3757 = vsel %vm1108, %v3755, -inf
          %3758 = vmax.xlane.f32.xlu0 %v3757
          %v3759 = vpop.xlane.xlu0 %3758
          %v3760 = vsel %vm1108, %v3756, -inf
          %3761 = vmax.xlane.f32.xlu0 %v3760
          %v3762 = vpop.xlane.xlu0 %3761
          %v3763 = vsub.f32 %v3755, %v3759
          %v3764 = vsub.f32 %v3756, %v3762
          %v3765 = vmul.f32 %v3763, 1.442695
          %v3766 = vpow.pop %v3765
          %v3767 = vmul.f32 %v3764, 1.442695
          %v3768 = vpow.pop %v3767
          %v3769 = vsel %vm1108, %v3766, 0.0
          %3770 = vadd.xlane.f32.xlu0 %v3769
          %v3771 = vpop.xlane.xlu0 %3770
          %v3772 = vsel %vm1108, %v3768, 0.0
          %3773 = vadd.xlane.f32.xlu0 %v3772
          %v3774 = vpop.xlane.xlu0 %3773
          %v3775 = vrcp.pop %v3771
          %v3776 = vrcp.pop %v3774
          %v3777 = vmul.f32 %v3766, %v3775
          %v3778 = vmul.f32 %v3768, %v3776
          %v3779 = vpack.c.bf16 %v3777, %v3777
          %v3780 = vpack.c.bf16 %v3778, %v3778
          %v3782 = vsel %vm1108, %v3779, 0
          %3784 = vmatprep.subr.bf16.mxu0 0
          %3785 = vmatpush1.bf16.msra.mxu0 0
          %3786 = vmatprep.subr.bf16.mxu0 0
          %3787 = vmatpush1.bf16.msra.mxu0 0
          %3788 = vmatprep.subr.bf16.mxu0 0
          %3789 = vmatpush1.bf16.msra.mxu0 0
          %3790 = vmatprep.subr.bf16.mxu0 0
          %3791 = vmatpush1.bf16.msra.mxu0 0
          %3792 = vmatprep.subr.bf16.mxu0 0
          %3793 = vmatpush1.bf16.msra.mxu0 0
          %3794 = vmatprep.subr.bf16.mxu0 0
          %3795 = vmatpush1.bf16.msra.mxu0 0
          %3796 = vmatprep.subr.bf16.mxu0 0
          %3797 = vmatpush1.bf16.msra.mxu0 0
          %3798 = vmatprep.subr.bf16.mxu0 0
          %3799 = vmatpush1.bf16.msra.mxu0 %v1463
          %3800 = vmatprep.subr.bf16.mxu0 0
          %3801 = vmatpush2.bf16.msra.mxu0 0
          %3802 = vmatprep.subr.bf16.mxu0 0
          %3803 = vmatpush2.bf16.msra.mxu0 0
          %3804 = vmatprep.subr.bf16.mxu0 0
          %3805 = vmatpush2.bf16.msra.mxu0 0
          %3806 = vmatprep.subr.bf16.mxu0 0
          %3807 = vmatpush2.bf16.msra.mxu0 0
          %3808 = vmatprep.subr.bf16.mxu0 0
          %3809 = vmatpush2.bf16.msra.mxu0 0
          %3810 = vmatprep.subr.bf16.mxu0 0
          %3811 = vmatpush2.bf16.msra.mxu0 0
          %3812 = vmatprep.subr.bf16.mxu0 0
          %3813 = vmatpush2.bf16.msra.mxu0 0
          %3814 = vmatprep.subr.bf16.mxu0 0
          %3815 = vmatpush2.bf16.msra.mxu0 0
          %3816 = vmatprep.mubr.bf16.mxu0 0
          %3817 = vmatmul.mubr.bf16.gmra.mxu0 %v3782
          %v3818 = vpop.f32.mrf.mxu0
          %v3819 = vadd.f32 0.0, %v3818
          %v3820 = vpop.f32.mrf.mxu0
          %v3821 = vpop.f32.mrf.mxu0
          %v3822 = vpop.f32.mrf.mxu0
          %3823 = vdwg.mxu0
          %v3825 = vsel %vm1108, %v3780, 0
          %3827 = vmatprep.subr.bf16.mxu0 0
          %3828 = vmatpush1.bf16.msra.mxu0 0
          %3829 = vmatprep.subr.bf16.mxu0 0
          %3830 = vmatpush1.bf16.msra.mxu0 0
          %3831 = vmatprep.subr.bf16.mxu0 0
          %3832 = vmatpush1.bf16.msra.mxu0 0
          %3833 = vmatprep.subr.bf16.mxu0 0
          %3834 = vmatpush1.bf16.msra.mxu0 0
          %3835 = vmatprep.subr.bf16.mxu0 0
          %3836 = vmatpush1.bf16.msra.mxu0 0
          %3837 = vmatprep.subr.bf16.mxu0 0
          %3838 = vmatpush1.bf16.msra.mxu0 0
          %3839 = vmatprep.subr.bf16.mxu0 0
          %3840 = vmatpush1.bf16.msra.mxu0 0
          %3841 = vmatprep.subr.bf16.mxu0 0
          %3842 = vmatpush1.bf16.msra.mxu0 %v1512
          %3843 = vmatprep.subr.bf16.mxu0 0
          %3844 = vmatpush2.bf16.msra.mxu0 0
          %3845 = vmatprep.subr.bf16.mxu0 0
          %3846 = vmatpush2.bf16.msra.mxu0 0
          %3847 = vmatprep.subr.bf16.mxu0 0
          %3848 = vmatpush2.bf16.msra.mxu0 0
          %3849 = vmatprep.subr.bf16.mxu0 0
          %3850 = vmatpush2.bf16.msra.mxu0 0
          %3851 = vmatprep.subr.bf16.mxu0 0
          %3852 = vmatpush2.bf16.msra.mxu0 0
          %3853 = vmatprep.subr.bf16.mxu0 0
          %3854 = vmatpush2.bf16.msra.mxu0 0
          %3855 = vmatprep.subr.bf16.mxu0 0
          %3856 = vmatpush2.bf16.msra.mxu0 0
          %3857 = vmatprep.subr.bf16.mxu0 0
          %3858 = vmatpush2.bf16.msra.mxu0 0
          %3859 = vmatprep.mubr.bf16.mxu0 0
          %3860 = vmatmul.mubr.bf16.gmra.mxu0 %v3825
          %v3861 = vpop.f32.mrf.mxu0
          %v3862 = vadd.f32 0.0, %v3861
          %v3863 = vpop.f32.mrf.mxu0
          %v3864 = vpop.f32.mrf.mxu0
          %v3865 = vpop.f32.mrf.mxu0
          %3866 = vdwg.mxu0
          %3867 = vrot.lane.b32.xlu0 %v3459, 112
          %v3868 = vpop.permute.xlu0 %3867
          %v3870 = vsel %vm1108, %v3868, 0
          %3872 = vmatprep.subr.bf16.mxu0 0
          %3873 = vmatpush1.bf16.xpose.msra.mxu0 0
          %3874 = vmatprep.subr.bf16.mxu0 0
          %3875 = vmatpush1.bf16.xpose.msra.mxu0 0
          %3876 = vmatprep.subr.bf16.mxu0 0
          %3877 = vmatpush1.bf16.xpose.msra.mxu0 0
          %3878 = vmatprep.subr.bf16.mxu0 0
          %3879 = vmatpush1.bf16.xpose.msra.mxu0 0
          %3880 = vmatprep.subr.bf16.mxu0 0
          %3881 = vmatpush1.bf16.xpose.msra.mxu0 0
          %3882 = vmatprep.subr.bf16.mxu0 0
          %3883 = vmatpush1.bf16.xpose.msra.mxu0 0
          %3884 = vmatprep.subr.bf16.mxu0 0
          %3885 = vmatpush1.bf16.xpose.msra.mxu0 0
          %3886 = vmatprep.subr.bf16.mxu0 0
          %3887 = vmatpush1.bf16.xpose.msra.mxu0 %v1562
          %3888 = vmatprep.subr.bf16.mxu0 0
          %3889 = vmatpush2.bf16.xpose.msra.mxu0 0
          %3890 = vmatprep.subr.bf16.mxu0 0
          %3891 = vmatpush2.bf16.xpose.msra.mxu0 0
          %3892 = vmatprep.subr.bf16.mxu0 0
          %3893 = vmatpush2.bf16.xpose.msra.mxu0 0
          %3894 = vmatprep.subr.bf16.mxu0 0
          %3895 = vmatpush2.bf16.xpose.msra.mxu0 0
          %3896 = vmatprep.subr.bf16.mxu0 0
          %3897 = vmatpush2.bf16.xpose.msra.mxu0 0
          %3898 = vmatprep.subr.bf16.mxu0 0
          %3899 = vmatpush2.bf16.xpose.msra.mxu0 0
          %3900 = vmatprep.subr.bf16.mxu0 0
          %3901 = vmatpush2.bf16.xpose.msra.mxu0 0
          %3902 = vmatprep.subr.bf16.mxu0 0
          %3903 = vmatpush2.bf16.xpose.msra.mxu0 0
          %3904 = vmatprep.mubr.bf16.mxu0 0
          %3905 = vmatmul.mubr.bf16.gmra.mxu0 %v3870
          %v3906 = vpop.f32.mrf.mxu0
          %v3907 = vadd.f32 0.0, %v3906
          %v3908 = vpop.f32.mrf.mxu0
          %v3909 = vpop.f32.mrf.mxu0
          %v3910 = vpop.f32.mrf.mxu0
          %3911 = vdwg.mxu0
          %3912 = vrot.lane.b32.xlu0 %v3460, 112
          %v3913 = vpop.permute.xlu0 %3912
          %v3915 = vsel %vm1108, %v3913, 0
          %3917 = vmatprep.subr.bf16.mxu0 0
          %3918 = vmatpush1.bf16.xpose.msra.mxu0 0
          %3919 = vmatprep.subr.bf16.mxu0 0
          %3920 = vmatpush1.bf16.xpose.msra.mxu0 0
          %3921 = vmatprep.subr.bf16.mxu0 0
          %3922 = vmatpush1.bf16.xpose.msra.mxu0 0
          %3923 = vmatprep.subr.bf16.mxu0 0
          %3924 = vmatpush1.bf16.xpose.msra.mxu0 0
          %3925 = vmatprep.subr.bf16.mxu0 0
          %3926 = vmatpush1.bf16.xpose.msra.mxu0 0
          %3927 = vmatprep.subr.bf16.mxu0 0
          %3928 = vmatpush1.bf16.xpose.msra.mxu0 0
          %3929 = vmatprep.subr.bf16.mxu0 0
          %3930 = vmatpush1.bf16.xpose.msra.mxu0 0
          %3931 = vmatprep.subr.bf16.mxu0 0
          %3932 = vmatpush1.bf16.xpose.msra.mxu0 %v1612
          %3933 = vmatprep.subr.bf16.mxu0 0
          %3934 = vmatpush2.bf16.xpose.msra.mxu0 0
          %3935 = vmatprep.subr.bf16.mxu0 0
          %3936 = vmatpush2.bf16.xpose.msra.mxu0 0
          %3937 = vmatprep.subr.bf16.mxu0 0
          %3938 = vmatpush2.bf16.xpose.msra.mxu0 0
          %3939 = vmatprep.subr.bf16.mxu0 0
          %3940 = vmatpush2.bf16.xpose.msra.mxu0 0
          %3941 = vmatprep.subr.bf16.mxu0 0
          %3942 = vmatpush2.bf16.xpose.msra.mxu0 0
          %3943 = vmatprep.subr.bf16.mxu0 0
          %3944 = vmatpush2.bf16.xpose.msra.mxu0 0
          %3945 = vmatprep.subr.bf16.mxu0 0
          %3946 = vmatpush2.bf16.xpose.msra.mxu0 0
          %3947 = vmatprep.subr.bf16.mxu0 0
          %3948 = vmatpush2.bf16.xpose.msra.mxu0 0
          %3949 = vmatprep.mubr.bf16.mxu0 0
          %3950 = vmatmul.mubr.bf16.gmra.mxu0 %v3915
          %v3951 = vpop.f32.mrf.mxu0
          %v3952 = vadd.f32 0.0, %v3951
          %v3953 = vpop.f32.mrf.mxu0
          %v3954 = vpop.f32.mrf.mxu0
          %v3955 = vpop.f32.mrf.mxu0
          %3956 = vdwg.mxu0
          %v3957 = vmul.f32 %v3907, 0.35355338
          %v3958 = vmul.f32 %v3952, 0.35355338
          %v3959 = vadd.f32 %v3957, %v3416
          %v3960 = vadd.f32 %v3958, %v3417
          %v3961 = vsel %vm1108, %v3959, -inf
          %3962 = vmax.xlane.f32.xlu0 %v3961
          %v3963 = vpop.xlane.xlu0 %3962
          %v3964 = vsel %vm1108, %v3960, -inf
          %3965 = vmax.xlane.f32.xlu0 %v3964
          %v3966 = vpop.xlane.xlu0 %3965
          %v3967 = vsub.f32 %v3959, %v3963
          %v3968 = vsub.f32 %v3960, %v3966
          %v3969 = vmul.f32 %v3967, 1.442695
          %v3970 = vpow.pop %v3969
          %v3971 = vmul.f32 %v3968, 1.442695
          %v3972 = vpow.pop %v3971
          %v3973 = vsel %vm1108, %v3970, 0.0
          %3974 = vadd.xlane.f32.xlu0 %v3973
          %v3975 = vpop.xlane.xlu0 %3974
          %v3976 = vsel %vm1108, %v3972, 0.0
          %3977 = vadd.xlane.f32.xlu0 %v3976
          %v3978 = vpop.xlane.xlu0 %3977
          %v3979 = vrcp.pop %v3975
          %v3980 = vrcp.pop %v3978
          %v3981 = vmul.f32 %v3970, %v3979
          %v3982 = vmul.f32 %v3972, %v3980
          %v3983 = vpack.c.bf16 %v3981, %v3981
          %v3984 = vpack.c.bf16 %v3982, %v3982
          %v3986 = vsel %vm1108, %v3983, 0
          %3988 = vmatprep.subr.bf16.mxu0 0
          %3989 = vmatpush1.bf16.msra.mxu0 0
          %3990 = vmatprep.subr.bf16.mxu0 0
          %3991 = vmatpush1.bf16.msra.mxu0 0
          %3992 = vmatprep.subr.bf16.mxu0 0
          %3993 = vmatpush1.bf16.msra.mxu0 0
          %3994 = vmatprep.subr.bf16.mxu0 0
          %3995 = vmatpush1.bf16.msra.mxu0 0
          %3996 = vmatprep.subr.bf16.mxu0 0
          %3997 = vmatpush1.bf16.msra.mxu0 0
          %3998 = vmatprep.subr.bf16.mxu0 0
          %3999 = vmatpush1.bf16.msra.mxu0 0
          %4000 = vmatprep.subr.bf16.mxu0 0
          %4001 = vmatpush1.bf16.msra.mxu0 0
          %4002 = vmatprep.subr.bf16.mxu0 0
          %4003 = vmatpush1.bf16.msra.mxu0 %v1688
          %4004 = vmatprep.subr.bf16.mxu0 0
          %4005 = vmatpush2.bf16.msra.mxu0 0
          %4006 = vmatprep.subr.bf16.mxu0 0
          %4007 = vmatpush2.bf16.msra.mxu0 0
          %4008 = vmatprep.subr.bf16.mxu0 0
          %4009 = vmatpush2.bf16.msra.mxu0 0
          %4010 = vmatprep.subr.bf16.mxu0 0
          %4011 = vmatpush2.bf16.msra.mxu0 0
          %4012 = vmatprep.subr.bf16.mxu0 0
          %4013 = vmatpush2.bf16.msra.mxu0 0
          %4014 = vmatprep.subr.bf16.mxu0 0
          %4015 = vmatpush2.bf16.msra.mxu0 0
          %4016 = vmatprep.subr.bf16.mxu0 0
          %4017 = vmatpush2.bf16.msra.mxu0 0
          %4018 = vmatprep.subr.bf16.mxu0 0
          %4019 = vmatpush2.bf16.msra.mxu0 0
          %4020 = vmatprep.mubr.bf16.mxu0 0
          %4021 = vmatmul.mubr.bf16.gmra.mxu0 %v3986
          %v4022 = vpop.f32.mrf.mxu0
          %v4023 = vadd.f32 0.0, %v4022
          %v4024 = vpop.f32.mrf.mxu0
          %v4025 = vpop.f32.mrf.mxu0
          %v4026 = vpop.f32.mrf.mxu0
          %4027 = vdwg.mxu0
          %v4029 = vsel %vm1108, %v3984, 0
          %4031 = vmatprep.subr.bf16.mxu0 0
          %4032 = vmatpush1.bf16.msra.mxu0 0
          %4033 = vmatprep.subr.bf16.mxu0 0
          %4034 = vmatpush1.bf16.msra.mxu0 0
          %4035 = vmatprep.subr.bf16.mxu0 0
          %4036 = vmatpush1.bf16.msra.mxu0 0
          %4037 = vmatprep.subr.bf16.mxu0 0
          %4038 = vmatpush1.bf16.msra.mxu0 0
          %4039 = vmatprep.subr.bf16.mxu0 0
          %4040 = vmatpush1.bf16.msra.mxu0 0
          %4041 = vmatprep.subr.bf16.mxu0 0
          %4042 = vmatpush1.bf16.msra.mxu0 0
          %4043 = vmatprep.subr.bf16.mxu0 0
          %4044 = vmatpush1.bf16.msra.mxu0 0
          %4045 = vmatprep.subr.bf16.mxu0 0
          %4046 = vmatpush1.bf16.msra.mxu0 %v1736
          %4047 = vmatprep.subr.bf16.mxu0 0
          %4048 = vmatpush2.bf16.msra.mxu0 0
          %4049 = vmatprep.subr.bf16.mxu0 0
          %4050 = vmatpush2.bf16.msra.mxu0 0
          %4051 = vmatprep.subr.bf16.mxu0 0
          %4052 = vmatpush2.bf16.msra.mxu0 0
          %4053 = vmatprep.subr.bf16.mxu0 0
          %4054 = vmatpush2.bf16.msra.mxu0 0
          %4055 = vmatprep.subr.bf16.mxu0 0
          %4056 = vmatpush2.bf16.msra.mxu0 0
          %4057 = vmatprep.subr.bf16.mxu0 0
          %4058 = vmatpush2.bf16.msra.mxu0 0
          %4059 = vmatprep.subr.bf16.mxu0 0
          %4060 = vmatpush2.bf16.msra.mxu0 0
          %4061 = vmatprep.subr.bf16.mxu0 0
          %4062 = vmatpush2.bf16.msra.mxu0 0
          %4063 = vmatprep.mubr.bf16.mxu0 0
          %4064 = vmatmul.mubr.bf16.gmra.mxu0 %v4029
          %v4065 = vpop.f32.mrf.mxu0
          %v4066 = vadd.f32 0.0, %v4065
          %v4067 = vpop.f32.mrf.mxu0
          %v4068 = vpop.f32.mrf.mxu0
          %v4069 = vpop.f32.mrf.mxu0
          %4070 = vdwg.mxu0
          %4071 = vrot.lane.b32.xlu0 %v3459, 104
          %v4072 = vpop.permute.xlu0 %4071
          %v4074 = vsel %vm1108, %v4072, 0
          %4076 = vmatprep.subr.bf16.mxu0 0
          %4077 = vmatpush1.bf16.xpose.msra.mxu0 0
          %4078 = vmatprep.subr.bf16.mxu0 0
          %4079 = vmatpush1.bf16.xpose.msra.mxu0 0
          %4080 = vmatprep.subr.bf16.mxu0 0
          %4081 = vmatpush1.bf16.xpose.msra.mxu0 0
          %4082 = vmatprep.subr.bf16.mxu0 0
          %4083 = vmatpush1.bf16.xpose.msra.mxu0 0
          %4084 = vmatprep.subr.bf16.mxu0 0
          %4085 = vmatpush1.bf16.xpose.msra.mxu0 0
          %4086 = vmatprep.subr.bf16.mxu0 0
          %4087 = vmatpush1.bf16.xpose.msra.mxu0 0
          %4088 = vmatprep.subr.bf16.mxu0 0
          %4089 = vmatpush1.bf16.xpose.msra.mxu0 0
          %4090 = vmatprep.subr.bf16.mxu0 0
          %4091 = vmatpush1.bf16.xpose.msra.mxu0 %v1786
          %4092 = vmatprep.subr.bf16.mxu0 0
          %4093 = vmatpush2.bf16.xpose.msra.mxu0 0
          %4094 = vmatprep.subr.bf16.mxu0 0
          %4095 = vmatpush2.bf16.xpose.msra.mxu0 0
          %4096 = vmatprep.subr.bf16.mxu0 0
          %4097 = vmatpush2.bf16.xpose.msra.mxu0 0
          %4098 = vmatprep.subr.bf16.mxu0 0
          %4099 = vmatpush2.bf16.xpose.msra.mxu0 0
          %4100 = vmatprep.subr.bf16.mxu0 0
          %4101 = vmatpush2.bf16.xpose.msra.mxu0 0
          %4102 = vmatprep.subr.bf16.mxu0 0
          %4103 = vmatpush2.bf16.xpose.msra.mxu0 0
          %4104 = vmatprep.subr.bf16.mxu0 0
          %4105 = vmatpush2.bf16.xpose.msra.mxu0 0
          %4106 = vmatprep.subr.bf16.mxu0 0
          %4107 = vmatpush2.bf16.xpose.msra.mxu0 0
          %4108 = vmatprep.mubr.bf16.mxu0 0
          %4109 = vmatmul.mubr.bf16.gmra.mxu0 %v4074
          %v4110 = vpop.f32.mrf.mxu0
          %v4111 = vadd.f32 0.0, %v4110
          %v4112 = vpop.f32.mrf.mxu0
          %v4113 = vpop.f32.mrf.mxu0
          %v4114 = vpop.f32.mrf.mxu0
          %4115 = vdwg.mxu0
          %4116 = vrot.lane.b32.xlu0 %v3460, 104
          %v4117 = vpop.permute.xlu0 %4116
          %v4119 = vsel %vm1108, %v4117, 0
          %4121 = vmatprep.subr.bf16.mxu0 0
          %4122 = vmatpush1.bf16.xpose.msra.mxu0 0
          %4123 = vmatprep.subr.bf16.mxu0 0
          %4124 = vmatpush1.bf16.xpose.msra.mxu0 0
          %4125 = vmatprep.subr.bf16.mxu0 0
          %4126 = vmatpush1.bf16.xpose.msra.mxu0 0
          %4127 = vmatprep.subr.bf16.mxu0 0
          %4128 = vmatpush1.bf16.xpose.msra.mxu0 0
          %4129 = vmatprep.subr.bf16.mxu0 0
          %4130 = vmatpush1.bf16.xpose.msra.mxu0 0
          %4131 = vmatprep.subr.bf16.mxu0 0
          %4132 = vmatpush1.bf16.xpose.msra.mxu0 0
          %4133 = vmatprep.subr.bf16.mxu0 0
          %4134 = vmatpush1.bf16.xpose.msra.mxu0 0
          %4135 = vmatprep.subr.bf16.mxu0 0
          %4136 = vmatpush1.bf16.xpose.msra.mxu0 %v1836
          %4137 = vmatprep.subr.bf16.mxu0 0
          %4138 = vmatpush2.bf16.xpose.msra.mxu0 0
          %4139 = vmatprep.subr.bf16.mxu0 0
          %4140 = vmatpush2.bf16.xpose.msra.mxu0 0
          %4141 = vmatprep.subr.bf16.mxu0 0
          %4142 = vmatpush2.bf16.xpose.msra.mxu0 0
          %4143 = vmatprep.subr.bf16.mxu0 0
          %4144 = vmatpush2.bf16.xpose.msra.mxu0 0
          %4145 = vmatprep.subr.bf16.mxu0 0
          %4146 = vmatpush2.bf16.xpose.msra.mxu0 0
          %4147 = vmatprep.subr.bf16.mxu0 0
          %4148 = vmatpush2.bf16.xpose.msra.mxu0 0
          %4149 = vmatprep.subr.bf16.mxu0 0
          %4150 = vmatpush2.bf16.xpose.msra.mxu0 0
          %4151 = vmatprep.subr.bf16.mxu0 0
          %4152 = vmatpush2.bf16.xpose.msra.mxu0 0
          %4153 = vmatprep.mubr.bf16.mxu0 0
          %4154 = vmatmul.mubr.bf16.gmra.mxu0 %v4119
          %v4155 = vpop.f32.mrf.mxu0
          %v4156 = vadd.f32 0.0, %v4155
          %v4157 = vpop.f32.mrf.mxu0
          %v4158 = vpop.f32.mrf.mxu0
          %v4159 = vpop.f32.mrf.mxu0
          %4160 = vdwg.mxu0
          %v4161 = vmul.f32 %v4111, 0.35355338
          %v4162 = vmul.f32 %v4156, 0.35355338
          %v4163 = vadd.f32 %v4161, %v3416
          %v4164 = vadd.f32 %v4162, %v3417
          %v4165 = vsel %vm1108, %v4163, -inf
          %4166 = vmax.xlane.f32.xlu0 %v4165
          %v4167 = vpop.xlane.xlu0 %4166
          %v4168 = vsel %vm1108, %v4164, -inf
          %4169 = vmax.xlane.f32.xlu0 %v4168
          %v4170 = vpop.xlane.xlu0 %4169
          %v4171 = vsub.f32 %v4163, %v4167
          %v4172 = vsub.f32 %v4164, %v4170
          %v4173 = vmul.f32 %v4171, 1.442695
          %v4174 = vpow.pop %v4173
          %v4175 = vmul.f32 %v4172, 1.442695
          %v4176 = vpow.pop %v4175
          %v4177 = vsel %vm1108, %v4174, 0.0
          %4178 = vadd.xlane.f32.xlu0 %v4177
          %v4179 = vpop.xlane.xlu0 %4178
          %v4180 = vsel %vm1108, %v4176, 0.0
          %4181 = vadd.xlane.f32.xlu0 %v4180
          %v4182 = vpop.xlane.xlu0 %4181
          %v4183 = vrcp.pop %v4179
          %v4184 = vrcp.pop %v4182
          %v4185 = vmul.f32 %v4174, %v4183
          %v4186 = vmul.f32 %v4176, %v4184
          %v4187 = vpack.c.bf16 %v4185, %v4185
          %v4188 = vpack.c.bf16 %v4186, %v4186
          %v4190 = vsel %vm1108, %v4187, 0
          %4192 = vmatprep.subr.bf16.mxu0 0
          %4193 = vmatpush1.bf16.msra.mxu0 0
          %4194 = vmatprep.subr.bf16.mxu0 0
          %4195 = vmatpush1.bf16.msra.mxu0 0
          %4196 = vmatprep.subr.bf16.mxu0 0
          %4197 = vmatpush1.bf16.msra.mxu0 0
          %4198 = vmatprep.subr.bf16.mxu0 0
          %4199 = vmatpush1.bf16.msra.mxu0 0
          %4200 = vmatprep.subr.bf16.mxu0 0
          %4201 = vmatpush1.bf16.msra.mxu0 0
          %4202 = vmatprep.subr.bf16.mxu0 0
          %4203 = vmatpush1.bf16.msra.mxu0 0
          %4204 = vmatprep.subr.bf16.mxu0 0
          %4205 = vmatpush1.bf16.msra.mxu0 0
          %4206 = vmatprep.subr.bf16.mxu0 0
          %4207 = vmatpush1.bf16.msra.mxu0 %v1912
          %4208 = vmatprep.subr.bf16.mxu0 0
          %4209 = vmatpush2.bf16.msra.mxu0 0
          %4210 = vmatprep.subr.bf16.mxu0 0
          %4211 = vmatpush2.bf16.msra.mxu0 0
          %4212 = vmatprep.subr.bf16.mxu0 0
          %4213 = vmatpush2.bf16.msra.mxu0 0
          %4214 = vmatprep.subr.bf16.mxu0 0
          %4215 = vmatpush2.bf16.msra.mxu0 0
          %4216 = vmatprep.subr.bf16.mxu0 0
          %4217 = vmatpush2.bf16.msra.mxu0 0
          %4218 = vmatprep.subr.bf16.mxu0 0
          %4219 = vmatpush2.bf16.msra.mxu0 0
          %4220 = vmatprep.subr.bf16.mxu0 0
          %4221 = vmatpush2.bf16.msra.mxu0 0
          %4222 = vmatprep.subr.bf16.mxu0 0
          %4223 = vmatpush2.bf16.msra.mxu0 0
          %4224 = vmatprep.mubr.bf16.mxu0 0
          %4225 = vmatmul.mubr.bf16.gmra.mxu0 %v4190
          %v4226 = vpop.f32.mrf.mxu0
          %v4227 = vadd.f32 0.0, %v4226
          %v4228 = vpop.f32.mrf.mxu0
          %v4229 = vpop.f32.mrf.mxu0
          %v4230 = vpop.f32.mrf.mxu0
          %4231 = vdwg.mxu0
          %v4233 = vsel %vm1108, %v4188, 0
          %4235 = vmatprep.subr.bf16.mxu0 0
          %4236 = vmatpush1.bf16.msra.mxu0 0
          %4237 = vmatprep.subr.bf16.mxu0 0
          %4238 = vmatpush1.bf16.msra.mxu0 0
          %4239 = vmatprep.subr.bf16.mxu0 0
          %4240 = vmatpush1.bf16.msra.mxu0 0
          %4241 = vmatprep.subr.bf16.mxu0 0
          %4242 = vmatpush1.bf16.msra.mxu0 0
          %4243 = vmatprep.subr.bf16.mxu0 0
          %4244 = vmatpush1.bf16.msra.mxu0 0
          %4245 = vmatprep.subr.bf16.mxu0 0
          %4246 = vmatpush1.bf16.msra.mxu0 0
          %4247 = vmatprep.subr.bf16.mxu0 0
          %4248 = vmatpush1.bf16.msra.mxu0 0
          %4249 = vmatprep.subr.bf16.mxu0 0
          %4250 = vmatpush1.bf16.msra.mxu0 %v1960
          %4251 = vmatprep.subr.bf16.mxu0 0
          %4252 = vmatpush2.bf16.msra.mxu0 0
          %4253 = vmatprep.subr.bf16.mxu0 0
          %4254 = vmatpush2.bf16.msra.mxu0 0
          %4255 = vmatprep.subr.bf16.mxu0 0
          %4256 = vmatpush2.bf16.msra.mxu0 0
          %4257 = vmatprep.subr.bf16.mxu0 0
          %4258 = vmatpush2.bf16.msra.mxu0 0
          %4259 = vmatprep.subr.bf16.mxu0 0
          %4260 = vmatpush2.bf16.msra.mxu0 0
          %4261 = vmatprep.subr.bf16.mxu0 0
          %4262 = vmatpush2.bf16.msra.mxu0 0
          %4263 = vmatprep.subr.bf16.mxu0 0
          %4264 = vmatpush2.bf16.msra.mxu0 0
          %4265 = vmatprep.subr.bf16.mxu0 0
          %4266 = vmatpush2.bf16.msra.mxu0 0
          %4267 = vmatprep.mubr.bf16.mxu0 0
          %4268 = vmatmul.mubr.bf16.gmra.mxu0 %v4233
          %v4269 = vpop.f32.mrf.mxu0
          %v4270 = vadd.f32 0.0, %v4269
          %v4271 = vpop.f32.mrf.mxu0
          %v4272 = vpop.f32.mrf.mxu0
          %v4273 = vpop.f32.mrf.mxu0
          %4274 = vdwg.mxu0
          %4277 = vrot.lane.b32.xlu0 %v3819, 8
          %v4278 = vpop.permute.xlu0 %4277
          %4279 = vrot.lane.b32.xlu0 %v3862, 8
          %v4280 = vpop.permute.xlu0 %4279
          %4285 = vrot.lane.b32.xlu0 %v4023, 16
          %v4286 = vpop.permute.xlu0 %4285
          %4287 = vrot.lane.b32.xlu0 %v4066, 16
          %v4288 = vpop.permute.xlu0 %4287
          %4293 = vrot.lane.b32.xlu0 %v4227, 24
          %v4294 = vpop.permute.xlu0 %4293
          %4295 = vrot.lane.b32.xlu0 %v4270, 24
          %v4296 = vpop.permute.xlu0 %4295
          %v4299 = vsel %vm1108, %v3613, %v4278
          %v4300 = vsel %vm1108, %v3656, %v4280
          %v4301 = vsel %vm2028, %v4299, %v4286
          %v4302 = vsel %vm2028, %v4300, %v4288
          %v4303 = vsel %vm2031, %v4301, %v4294
          %v4304 = vsel %vm2031, %v4302, %v4296
          %v4305 = vpack.c.bf16 %v4304, %v4303
          %v4307 = vsel %vm707, %v4305, 0
          %4309 = vmatprep.subr.bf16.mxu0 0
          %4310 = vmatpush1.bf16.msra.mxu0 0
          %4311 = vmatprep.subr.bf16.mxu0 0
          %4312 = vmatpush1.bf16.msra.mxu0 0
          %4313 = vmatprep.subr.bf16.mxu0 0
          %4314 = vmatpush1.bf16.msra.mxu0 0
          %4315 = vmatprep.subr.bf16.mxu0 0
          %4316 = vmatpush1.bf16.msra.mxu0 0
          %4317 = vmatprep.subr.bf16.mxu0 0
          %4318 = vmatpush1.bf16.msra.mxu0 0
          %4319 = vmatprep.subr.bf16.mxu0 0
          %4320 = vmatpush1.bf16.msra.mxu0 0
          %4321 = vmatprep.subr.bf16.mxu0 0
          %4322 = vmatpush1.bf16.msra.mxu0 %v2048
          %4323 = vmatprep.subr.bf16.mxu0 0
          %4324 = vmatpush1.bf16.msra.mxu0 %v2047
          %4325 = vmatprep.subr.bf16.mxu0 0
          %4326 = vmatpush2.bf16.msra.mxu0 0
          %4327 = vmatprep.subr.bf16.mxu0 0
          %4328 = vmatpush2.bf16.msra.mxu0 0
          %4329 = vmatprep.subr.bf16.mxu0 0
          %4330 = vmatpush2.bf16.msra.mxu0 0
          %4331 = vmatprep.subr.bf16.mxu0 0
          %4332 = vmatpush2.bf16.msra.mxu0 0
          %4333 = vmatprep.subr.bf16.mxu0 0
          %4334 = vmatpush2.bf16.msra.mxu0 0
          %4335 = vmatprep.subr.bf16.mxu0 0
          %4336 = vmatpush2.bf16.msra.mxu0 0
          %4337 = vmatprep.subr.bf16.mxu0 0
          %4338 = vmatpush2.bf16.msra.mxu0 0
          %4339 = vmatprep.subr.bf16.mxu0 0
          %4340 = vmatpush2.bf16.msra.mxu0 0
          %4341 = vmatprep.mubr.bf16.mxu0 0
          %4342 = vmatmul.mubr.bf16.gmra.mxu0 %v4307
          %v4343 = vpop.f32.mrf.mxu0
          %v4344 = vadd.f32 %v2038, %v4343
          %v4345 = vpop.f32.mrf.mxu0
          %v4346 = vpop.f32.mrf.mxu0
          %v4347 = vadd.f32 %v2038, %v4346
          %v4348 = vpop.f32.mrf.mxu0
          %4349 = vdwg.mxu0
          %v4350 = vadd.f32 %v645, %v4344
          %v4351 = vadd.f32 %v646, %v4347
          %v4352 = vsel %vm707, %v4350, 0.0
          %4353 = vadd.xlane.f32.xlu0 %v4352
          %v4354 = vpop.xlane.xlu0 %4353
          %v4355 = vsel %vm707, %v4351, 0.0
          %4356 = vadd.xlane.f32.xlu0 %v4355
          %v4357 = vpop.xlane.xlu0 %4356
          %v4358 = vmul.f32 %v4354, %v714
          %v4359 = vmul.f32 %v4357, %v714
          %v4360 = vsub.f32 %v4350, %v4358
          %v4361 = vsub.f32 %v4351, %v4359
          %v4362 = vmul.f32 %v4360, %v4360
          %v4363 = vmul.f32 %v4361, %v4361
          %v4364 = vsel %vm707, %v4362, 0.0
          %4365 = vadd.xlane.f32.xlu0 %v4364
          %v4366 = vpop.xlane.xlu0 %4365
          %v4367 = vsel %vm707, %v4363, 0.0
          %4368 = vadd.xlane.f32.xlu0 %v4367
          %v4369 = vpop.xlane.xlu0 %4368
          %v4370 = vmul.f32 %v4366, %v714
          %v4371 = vmul.f32 %v4369, %v714
          %v4372 = vadd.f32 %v4370, 1e-05
          %v4373 = vadd.f32 %v4371, 1e-05
          %v4374 = vrsqrt.pop %v4372
          %v4375 = vrsqrt.pop %v4373
          %v4376 = vmul.f32 %v4360, %v4374
          %v4377 = vmul.f32 %v4361, %v4375
          %v4378 = vmul.f32 %v4376, %v2126
          %v4379 = vmul.f32 %v4377, %v2126
          %v4380 = vadd.f32 %v4378, %v2132
          %v4381 = vadd.f32 %v4379, %v2132
          %v4382 = vpack.c.bf16 %v4381, %v4380
          %v4384 = vsel %vm707, %v4382, 0
          %4386 = vmatprep.subr.bf16.mxu0 0
          %4387 = vmatpush1.bf16.msra.mxu0 0
          %4388 = vmatprep.subr.bf16.mxu0 0
          %4389 = vmatpush1.bf16.msra.mxu0 0
          %4390 = vmatprep.subr.bf16.mxu0 0
          %4391 = vmatpush1.bf16.msra.mxu0 0
          %4392 = vmatprep.subr.bf16.mxu0 0
          %4393 = vmatpush1.bf16.msra.mxu0 0
          %4394 = vmatprep.subr.bf16.mxu0 0
          %4395 = vmatpush1.bf16.msra.mxu0 0
          %4396 = vmatprep.subr.bf16.mxu0 0
          %4397 = vmatpush1.bf16.msra.mxu0 0
          %4398 = vmatprep.subr.bf16.mxu0 0
          %4399 = vmatpush1.bf16.msra.mxu0 %v2149
          %4400 = vmatprep.subr.bf16.mxu0 0
          %4401 = vmatpush1.bf16.msra.mxu0 %v2148
          %4402 = vmatprep.subr.bf16.mxu0 0
          %4403 = vmatpush2.bf16.msra.mxu0 0
          %4404 = vmatprep.subr.bf16.mxu0 0
          %4405 = vmatpush2.bf16.msra.mxu0 0
          %4406 = vmatprep.subr.bf16.mxu0 0
          %4407 = vmatpush2.bf16.msra.mxu0 0
          %4408 = vmatprep.subr.bf16.mxu0 0
          %4409 = vmatpush2.bf16.msra.mxu0 0
          %4410 = vmatprep.subr.bf16.mxu0 0
          %4411 = vmatpush2.bf16.msra.mxu0 0
          %4412 = vmatprep.subr.bf16.mxu0 0
          %4413 = vmatpush2.bf16.msra.mxu0 0
          %4414 = vmatprep.subr.bf16.mxu0 0
          %4415 = vmatpush2.bf16.msra.mxu0 0
          %4416 = vmatprep.subr.bf16.mxu0 0
          %4417 = vmatpush2.bf16.msra.mxu0 0
          %4418 = vmatprep.mubr.bf16.mxu0 0
          %4419 = vmatmul.mubr.bf16.gmra.mxu0 %v4384
          %v4420 = vpop.f32.mrf.mxu0
          %v4421 = vadd.f32 %v2139, %v4420
          %v4422 = vpop.f32.mrf.mxu0
          %v4423 = vpop.f32.mrf.mxu0
          %v4424 = vadd.f32 %v2139, %v4423
          %v4425 = vpop.f32.mrf.mxu0
          %4426 = vdwg.mxu0
          %v4427 = vpack.c.bf16 %v4421, %v4421
          %v4428 = vpack.c.bf16 %v4424, %v4424
          %v4430 = vsel %vm1108, %v4427, 0
          %4432 = vmatprep.subr.bf16.mxu0 0
          %4433 = vmatpush1.bf16.xpose.msra.mxu0 0
          %4434 = vmatprep.subr.bf16.mxu0 0
          %4435 = vmatpush1.bf16.xpose.msra.mxu0 0
          %4436 = vmatprep.subr.bf16.mxu0 0
          %4437 = vmatpush1.bf16.xpose.msra.mxu0 0
          %4438 = vmatprep.subr.bf16.mxu0 0
          %4439 = vmatpush1.bf16.xpose.msra.mxu0 0
          %4440 = vmatprep.subr.bf16.mxu0 0
          %4441 = vmatpush1.bf16.xpose.msra.mxu0 0
          %4442 = vmatprep.subr.bf16.mxu0 0
          %4443 = vmatpush1.bf16.xpose.msra.mxu0 0
          %4444 = vmatprep.subr.bf16.mxu0 0
          %4445 = vmatpush1.bf16.xpose.msra.mxu0 0
          %4446 = vmatprep.subr.bf16.mxu0 0
          %4447 = vmatpush1.bf16.xpose.msra.mxu0 %v2204
          %4448 = vmatprep.subr.bf16.mxu0 0
          %4449 = vmatpush2.bf16.xpose.msra.mxu0 0
          %4450 = vmatprep.subr.bf16.mxu0 0
          %4451 = vmatpush2.bf16.xpose.msra.mxu0 0
          %4452 = vmatprep.subr.bf16.mxu0 0
          %4453 = vmatpush2.bf16.xpose.msra.mxu0 0
          %4454 = vmatprep.subr.bf16.mxu0 0
          %4455 = vmatpush2.bf16.xpose.msra.mxu0 0
          %4456 = vmatprep.subr.bf16.mxu0 0
          %4457 = vmatpush2.bf16.xpose.msra.mxu0 0
          %4458 = vmatprep.subr.bf16.mxu0 0
          %4459 = vmatpush2.bf16.xpose.msra.mxu0 0
          %4460 = vmatprep.subr.bf16.mxu0 0
          %4461 = vmatpush2.bf16.xpose.msra.mxu0 0
          %4462 = vmatprep.subr.bf16.mxu0 0
          %4463 = vmatpush2.bf16.xpose.msra.mxu0 0
          %4464 = vmatprep.mubr.bf16.mxu0 0
          %4465 = vmatmul.mubr.bf16.gmra.mxu0 %v4430
          %v4466 = vpop.f32.mrf.mxu0
          %v4467 = vadd.f32 0.0, %v4466
          %v4468 = vpop.f32.mrf.mxu0
          %v4469 = vpop.f32.mrf.mxu0
          %v4470 = vpop.f32.mrf.mxu0
          %4471 = vdwg.mxu0
          %v4473 = vsel %vm1108, %v4428, 0
          %4475 = vmatprep.subr.bf16.mxu0 0
          %4476 = vmatpush1.bf16.xpose.msra.mxu0 0
          %4477 = vmatprep.subr.bf16.mxu0 0
          %4478 = vmatpush1.bf16.xpose.msra.mxu0 0
          %4479 = vmatprep.subr.bf16.mxu0 0
          %4480 = vmatpush1.bf16.xpose.msra.mxu0 0
          %4481 = vmatprep.subr.bf16.mxu0 0
          %4482 = vmatpush1.bf16.xpose.msra.mxu0 0
          %4483 = vmatprep.subr.bf16.mxu0 0
          %4484 = vmatpush1.bf16.xpose.msra.mxu0 0
          %4485 = vmatprep.subr.bf16.mxu0 0
          %4486 = vmatpush1.bf16.xpose.msra.mxu0 0
          %4487 = vmatprep.subr.bf16.mxu0 0
          %4488 = vmatpush1.bf16.xpose.msra.mxu0 0
          %4489 = vmatprep.subr.bf16.mxu0 0
          %4490 = vmatpush1.bf16.xpose.msra.mxu0 %v2250
          %4491 = vmatprep.subr.bf16.mxu0 0
          %4492 = vmatpush2.bf16.xpose.msra.mxu0 0
          %4493 = vmatprep.subr.bf16.mxu0 0
          %4494 = vmatpush2.bf16.xpose.msra.mxu0 0
          %4495 = vmatprep.subr.bf16.mxu0 0
          %4496 = vmatpush2.bf16.xpose.msra.mxu0 0
          %4497 = vmatprep.subr.bf16.mxu0 0
          %4498 = vmatpush2.bf16.xpose.msra.mxu0 0
          %4499 = vmatprep.subr.bf16.mxu0 0
          %4500 = vmatpush2.bf16.xpose.msra.mxu0 0
          %4501 = vmatprep.subr.bf16.mxu0 0
          %4502 = vmatpush2.bf16.xpose.msra.mxu0 0
          %4503 = vmatprep.subr.bf16.mxu0 0
          %4504 = vmatpush2.bf16.xpose.msra.mxu0 0
          %4505 = vmatprep.subr.bf16.mxu0 0
          %4506 = vmatpush2.bf16.xpose.msra.mxu0 0
          %4507 = vmatprep.mubr.bf16.mxu0 0
          %4508 = vmatmul.mubr.bf16.gmra.mxu0 %v4473
          %v4509 = vpop.f32.mrf.mxu0
          %v4510 = vadd.f32 0.0, %v4509
          %v4511 = vpop.f32.mrf.mxu0
          %v4512 = vpop.f32.mrf.mxu0
          %v4513 = vpop.f32.mrf.mxu0
          %4514 = vdwg.mxu0
          %v4515 = vmul.f32 %v4467, 0.35355338
          %v4516 = vmul.f32 %v4510, 0.35355338
          %v4517 = vsel %vm2028, %v4515, -inf
          %4518 = vmax.xlane.f32.xlu0 %v4517
          %v4519 = vpop.xlane.xlu0 %4518
          %v4520 = vsel %vm2028, %v4516, -inf
          %4521 = vmax.xlane.f32.xlu0 %v4520
          %v4522 = vpop.xlane.xlu0 %4521
          %v4523 = vsub.f32 %v4515, %v4519
          %v4524 = vsub.f32 %v4516, %v4522
          %v4525 = vmul.f32 %v4523, 1.442695
          %v4526 = vpow.pop %v4525
          %v4527 = vmul.f32 %v4524, 1.442695
          %v4528 = vpow.pop %v4527
          %v4529 = vsel %vm2028, %v4526, 0.0
          %4530 = vadd.xlane.f32.xlu0 %v4529
          %v4531 = vpop.xlane.xlu0 %4530
          %v4532 = vsel %vm2028, %v4528, 0.0
          %4533 = vadd.xlane.f32.xlu0 %v4532
          %v4534 = vpop.xlane.xlu0 %4533
          %v4535 = vrcp.pop %v4531
          %v4536 = vrcp.pop %v4534
          %v4537 = vmul.f32 %v4526, %v4535
          %v4538 = vmul.f32 %v4528, %v4536
          %v4539 = vpack.c.bf16 %v4537, %v4537
          %v4540 = vpack.c.bf16 %v4538, %v4538
          %v4542 = vsel %vm2028, %v4539, 0
          %4544 = vmatprep.subr.bf16.mxu0 0
          %4545 = vmatpush1.bf16.msra.mxu0 0
          %4546 = vmatprep.subr.bf16.mxu0 0
          %4547 = vmatpush1.bf16.msra.mxu0 0
          %4548 = vmatprep.subr.bf16.mxu0 0
          %4549 = vmatpush1.bf16.msra.mxu0 0
          %4550 = vmatprep.subr.bf16.mxu0 0
          %4551 = vmatpush1.bf16.msra.mxu0 0
          %4552 = vmatprep.subr.bf16.mxu0 0
          %4553 = vmatpush1.bf16.msra.mxu0 0
          %4554 = vmatprep.subr.bf16.mxu0 0
          %4555 = vmatpush1.bf16.msra.mxu0 0
          %4556 = vmatprep.subr.bf16.mxu0 0
          %4557 = vmatpush1.bf16.msra.mxu0 0
          %4558 = vmatprep.subr.bf16.mxu0 0
          %4559 = vmatpush1.bf16.msra.mxu0 %v2318
          %4560 = vmatprep.subr.bf16.mxu0 0
          %4561 = vmatpush2.bf16.msra.mxu0 0
          %4562 = vmatprep.subr.bf16.mxu0 0
          %4563 = vmatpush2.bf16.msra.mxu0 0
          %4564 = vmatprep.subr.bf16.mxu0 0
          %4565 = vmatpush2.bf16.msra.mxu0 0
          %4566 = vmatprep.subr.bf16.mxu0 0
          %4567 = vmatpush2.bf16.msra.mxu0 0
          %4568 = vmatprep.subr.bf16.mxu0 0
          %4569 = vmatpush2.bf16.msra.mxu0 0
          %4570 = vmatprep.subr.bf16.mxu0 0
          %4571 = vmatpush2.bf16.msra.mxu0 0
          %4572 = vmatprep.subr.bf16.mxu0 0
          %4573 = vmatpush2.bf16.msra.mxu0 0
          %4574 = vmatprep.subr.bf16.mxu0 0
          %4575 = vmatpush2.bf16.msra.mxu0 0
          %4576 = vmatprep.mubr.bf16.mxu0 0
          %4577 = vmatmul.mubr.bf16.gmra.mxu0 %v4542
          %v4578 = vpop.f32.mrf.mxu0
          %v4579 = vadd.f32 0.0, %v4578
          %v4580 = vpop.f32.mrf.mxu0
          %v4581 = vpop.f32.mrf.mxu0
          %v4582 = vpop.f32.mrf.mxu0
          %4583 = vdwg.mxu0
          %v4585 = vsel %vm2028, %v4540, 0
          %4587 = vmatprep.subr.bf16.mxu0 0
          %4588 = vmatpush1.bf16.msra.mxu0 0
          %4589 = vmatprep.subr.bf16.mxu0 0
          %4590 = vmatpush1.bf16.msra.mxu0 0
          %4591 = vmatprep.subr.bf16.mxu0 0
          %4592 = vmatpush1.bf16.msra.mxu0 0
          %4593 = vmatprep.subr.bf16.mxu0 0
          %4594 = vmatpush1.bf16.msra.mxu0 0
          %4595 = vmatprep.subr.bf16.mxu0 0
          %4596 = vmatpush1.bf16.msra.mxu0 0
          %4597 = vmatprep.subr.bf16.mxu0 0
          %4598 = vmatpush1.bf16.msra.mxu0 0
          %4599 = vmatprep.subr.bf16.mxu0 0
          %4600 = vmatpush1.bf16.msra.mxu0 0
          %4601 = vmatprep.subr.bf16.mxu0 0
          %4602 = vmatpush1.bf16.msra.mxu0 %v2319
          %4603 = vmatprep.subr.bf16.mxu0 0
          %4604 = vmatpush2.bf16.msra.mxu0 0
          %4605 = vmatprep.subr.bf16.mxu0 0
          %4606 = vmatpush2.bf16.msra.mxu0 0
          %4607 = vmatprep.subr.bf16.mxu0 0
          %4608 = vmatpush2.bf16.msra.mxu0 0
          %4609 = vmatprep.subr.bf16.mxu0 0
          %4610 = vmatpush2.bf16.msra.mxu0 0
          %4611 = vmatprep.subr.bf16.mxu0 0
          %4612 = vmatpush2.bf16.msra.mxu0 0
          %4613 = vmatprep.subr.bf16.mxu0 0
          %4614 = vmatpush2.bf16.msra.mxu0 0
          %4615 = vmatprep.subr.bf16.mxu0 0
          %4616 = vmatpush2.bf16.msra.mxu0 0
          %4617 = vmatprep.subr.bf16.mxu0 0
          %4618 = vmatpush2.bf16.msra.mxu0 0
          %4619 = vmatprep.mubr.bf16.mxu0 0
          %4620 = vmatmul.mubr.bf16.gmra.mxu0 %v4585
          %v4621 = vpop.f32.mrf.mxu0
          %v4622 = vadd.f32 0.0, %v4621
          %v4623 = vpop.f32.mrf.mxu0
          %v4624 = vpop.f32.mrf.mxu0
          %v4625 = vpop.f32.mrf.mxu0
          %4626 = vdwg.mxu0
          %4628 = vrot.lane.b32.xlu0 %v4427, 120
          %v4629 = vpop.permute.xlu0 %4628
          %v4631 = vsel %vm1108, %v4629, 0
          %4633 = vmatprep.subr.bf16.mxu0 0
          %4634 = vmatpush1.bf16.xpose.msra.mxu0 0
          %4635 = vmatprep.subr.bf16.mxu0 0
          %4636 = vmatpush1.bf16.xpose.msra.mxu0 0
          %4637 = vmatprep.subr.bf16.mxu0 0
          %4638 = vmatpush1.bf16.xpose.msra.mxu0 0
          %4639 = vmatprep.subr.bf16.mxu0 0
          %4640 = vmatpush1.bf16.xpose.msra.mxu0 0
          %4641 = vmatprep.subr.bf16.mxu0 0
          %4642 = vmatpush1.bf16.xpose.msra.mxu0 0
          %4643 = vmatprep.subr.bf16.mxu0 0
          %4644 = vmatpush1.bf16.xpose.msra.mxu0 0
          %4645 = vmatprep.subr.bf16.mxu0 0
          %4646 = vmatpush1.bf16.xpose.msra.mxu0 0
          %4647 = vmatprep.subr.bf16.mxu0 0
          %4648 = vmatpush1.bf16.xpose.msra.mxu0 %v2416
          %4649 = vmatprep.subr.bf16.mxu0 0
          %4650 = vmatpush2.bf16.xpose.msra.mxu0 0
          %4651 = vmatprep.subr.bf16.mxu0 0
          %4652 = vmatpush2.bf16.xpose.msra.mxu0 0
          %4653 = vmatprep.subr.bf16.mxu0 0
          %4654 = vmatpush2.bf16.xpose.msra.mxu0 0
          %4655 = vmatprep.subr.bf16.mxu0 0
          %4656 = vmatpush2.bf16.xpose.msra.mxu0 0
          %4657 = vmatprep.subr.bf16.mxu0 0
          %4658 = vmatpush2.bf16.xpose.msra.mxu0 0
          %4659 = vmatprep.subr.bf16.mxu0 0
          %4660 = vmatpush2.bf16.xpose.msra.mxu0 0
          %4661 = vmatprep.subr.bf16.mxu0 0
          %4662 = vmatpush2.bf16.xpose.msra.mxu0 0
          %4663 = vmatprep.subr.bf16.mxu0 0
          %4664 = vmatpush2.bf16.xpose.msra.mxu0 0
          %4665 = vmatprep.mubr.bf16.mxu0 0
          %4666 = vmatmul.mubr.bf16.gmra.mxu0 %v4631
          %v4667 = vpop.f32.mrf.mxu0
          %v4668 = vadd.f32 0.0, %v4667
          %v4669 = vpop.f32.mrf.mxu0
          %v4670 = vpop.f32.mrf.mxu0
          %v4671 = vpop.f32.mrf.mxu0
          %4672 = vdwg.mxu0
          %4674 = vrot.lane.b32.xlu0 %v4428, 120
          %v4675 = vpop.permute.xlu0 %4674
          %v4677 = vsel %vm1108, %v4675, 0
          %4679 = vmatprep.subr.bf16.mxu0 0
          %4680 = vmatpush1.bf16.xpose.msra.mxu0 0
          %4681 = vmatprep.subr.bf16.mxu0 0
          %4682 = vmatpush1.bf16.xpose.msra.mxu0 0
          %4683 = vmatprep.subr.bf16.mxu0 0
          %4684 = vmatpush1.bf16.xpose.msra.mxu0 0
          %4685 = vmatprep.subr.bf16.mxu0 0
          %4686 = vmatpush1.bf16.xpose.msra.mxu0 0
          %4687 = vmatprep.subr.bf16.mxu0 0
          %4688 = vmatpush1.bf16.xpose.msra.mxu0 0
          %4689 = vmatprep.subr.bf16.mxu0 0
          %4690 = vmatpush1.bf16.xpose.msra.mxu0 0
          %4691 = vmatprep.subr.bf16.mxu0 0
          %4692 = vmatpush1.bf16.xpose.msra.mxu0 0
          %4693 = vmatprep.subr.bf16.mxu0 0
          %4694 = vmatpush1.bf16.xpose.msra.mxu0 %v2468
          %4695 = vmatprep.subr.bf16.mxu0 0
          %4696 = vmatpush2.bf16.xpose.msra.mxu0 0
          %4697 = vmatprep.subr.bf16.mxu0 0
          %4698 = vmatpush2.bf16.xpose.msra.mxu0 0
          %4699 = vmatprep.subr.bf16.mxu0 0
          %4700 = vmatpush2.bf16.xpose.msra.mxu0 0
          %4701 = vmatprep.subr.bf16.mxu0 0
          %4702 = vmatpush2.bf16.xpose.msra.mxu0 0
          %4703 = vmatprep.subr.bf16.mxu0 0
          %4704 = vmatpush2.bf16.xpose.msra.mxu0 0
          %4705 = vmatprep.subr.bf16.mxu0 0
          %4706 = vmatpush2.bf16.xpose.msra.mxu0 0
          %4707 = vmatprep.subr.bf16.mxu0 0
          %4708 = vmatpush2.bf16.xpose.msra.mxu0 0
          %4709 = vmatprep.subr.bf16.mxu0 0
          %4710 = vmatpush2.bf16.xpose.msra.mxu0 0
          %4711 = vmatprep.mubr.bf16.mxu0 0
          %4712 = vmatmul.mubr.bf16.gmra.mxu0 %v4677
          %v4713 = vpop.f32.mrf.mxu0
          %v4714 = vadd.f32 0.0, %v4713
          %v4715 = vpop.f32.mrf.mxu0
          %v4716 = vpop.f32.mrf.mxu0
          %v4717 = vpop.f32.mrf.mxu0
          %4718 = vdwg.mxu0
          %v4719 = vmul.f32 %v4668, 0.35355338
          %v4720 = vmul.f32 %v4714, 0.35355338
          %v4721 = vsel %vm2028, %v4719, -inf
          %4722 = vmax.xlane.f32.xlu0 %v4721
          %v4723 = vpop.xlane.xlu0 %4722
          %v4724 = vsel %vm2028, %v4720, -inf
          %4725 = vmax.xlane.f32.xlu0 %v4724
          %v4726 = vpop.xlane.xlu0 %4725
          %v4727 = vsub.f32 %v4719, %v4723
          %v4728 = vsub.f32 %v4720, %v4726
          %v4729 = vmul.f32 %v4727, 1.442695
          %v4730 = vpow.pop %v4729
          %v4731 = vmul.f32 %v4728, 1.442695
          %v4732 = vpow.pop %v4731
          %v4733 = vsel %vm2028, %v4730, 0.0
          %4734 = vadd.xlane.f32.xlu0 %v4733
          %v4735 = vpop.xlane.xlu0 %4734
          %v4736 = vsel %vm2028, %v4732, 0.0
          %4737 = vadd.xlane.f32.xlu0 %v4736
          %v4738 = vpop.xlane.xlu0 %4737
          %v4739 = vrcp.pop %v4735
          %v4740 = vrcp.pop %v4738
          %v4741 = vmul.f32 %v4730, %v4739
          %v4742 = vmul.f32 %v4732, %v4740
          %v4743 = vpack.c.bf16 %v4741, %v4741
          %v4744 = vpack.c.bf16 %v4742, %v4742
          %v4746 = vsel %vm2028, %v4743, 0
          %4748 = vmatprep.subr.bf16.mxu0 0
          %4749 = vmatpush1.bf16.msra.mxu0 0
          %4750 = vmatprep.subr.bf16.mxu0 0
          %4751 = vmatpush1.bf16.msra.mxu0 0
          %4752 = vmatprep.subr.bf16.mxu0 0
          %4753 = vmatpush1.bf16.msra.mxu0 0
          %4754 = vmatprep.subr.bf16.mxu0 0
          %4755 = vmatpush1.bf16.msra.mxu0 0
          %4756 = vmatprep.subr.bf16.mxu0 0
          %4757 = vmatpush1.bf16.msra.mxu0 0
          %4758 = vmatprep.subr.bf16.mxu0 0
          %4759 = vmatpush1.bf16.msra.mxu0 0
          %4760 = vmatprep.subr.bf16.mxu0 0
          %4761 = vmatpush1.bf16.msra.mxu0 0
          %4762 = vmatprep.subr.bf16.mxu0 0
          %4763 = vmatpush1.bf16.msra.mxu0 %v2538
          %4764 = vmatprep.subr.bf16.mxu0 0
          %4765 = vmatpush2.bf16.msra.mxu0 0
          %4766 = vmatprep.subr.bf16.mxu0 0
          %4767 = vmatpush2.bf16.msra.mxu0 0
          %4768 = vmatprep.subr.bf16.mxu0 0
          %4769 = vmatpush2.bf16.msra.mxu0 0
          %4770 = vmatprep.subr.bf16.mxu0 0
          %4771 = vmatpush2.bf16.msra.mxu0 0
          %4772 = vmatprep.subr.bf16.mxu0 0
          %4773 = vmatpush2.bf16.msra.mxu0 0
          %4774 = vmatprep.subr.bf16.mxu0 0
          %4775 = vmatpush2.bf16.msra.mxu0 0
          %4776 = vmatprep.subr.bf16.mxu0 0
          %4777 = vmatpush2.bf16.msra.mxu0 0
          %4778 = vmatprep.subr.bf16.mxu0 0
          %4779 = vmatpush2.bf16.msra.mxu0 0
          %4780 = vmatprep.mubr.bf16.mxu0 0
          %4781 = vmatmul.mubr.bf16.gmra.mxu0 %v4746
          %v4782 = vpop.f32.mrf.mxu0
          %v4783 = vadd.f32 0.0, %v4782
          %v4784 = vpop.f32.mrf.mxu0
          %v4785 = vpop.f32.mrf.mxu0
          %v4786 = vpop.f32.mrf.mxu0
          %4787 = vdwg.mxu0
          %v4789 = vsel %vm2028, %v4744, 0
          %4791 = vmatprep.subr.bf16.mxu0 0
          %4792 = vmatpush1.bf16.msra.mxu0 0
          %4793 = vmatprep.subr.bf16.mxu0 0
          %4794 = vmatpush1.bf16.msra.mxu0 0
          %4795 = vmatprep.subr.bf16.mxu0 0
          %4796 = vmatpush1.bf16.msra.mxu0 0
          %4797 = vmatprep.subr.bf16.mxu0 0
          %4798 = vmatpush1.bf16.msra.mxu0 0
          %4799 = vmatprep.subr.bf16.mxu0 0
          %4800 = vmatpush1.bf16.msra.mxu0 0
          %4801 = vmatprep.subr.bf16.mxu0 0
          %4802 = vmatpush1.bf16.msra.mxu0 0
          %4803 = vmatprep.subr.bf16.mxu0 0
          %4804 = vmatpush1.bf16.msra.mxu0 0
          %4805 = vmatprep.subr.bf16.mxu0 0
          %4806 = vmatpush1.bf16.msra.mxu0 %v2585
          %4807 = vmatprep.subr.bf16.mxu0 0
          %4808 = vmatpush2.bf16.msra.mxu0 0
          %4809 = vmatprep.subr.bf16.mxu0 0
          %4810 = vmatpush2.bf16.msra.mxu0 0
          %4811 = vmatprep.subr.bf16.mxu0 0
          %4812 = vmatpush2.bf16.msra.mxu0 0
          %4813 = vmatprep.subr.bf16.mxu0 0
          %4814 = vmatpush2.bf16.msra.mxu0 0
          %4815 = vmatprep.subr.bf16.mxu0 0
          %4816 = vmatpush2.bf16.msra.mxu0 0
          %4817 = vmatprep.subr.bf16.mxu0 0
          %4818 = vmatpush2.bf16.msra.mxu0 0
          %4819 = vmatprep.subr.bf16.mxu0 0
          %4820 = vmatpush2.bf16.msra.mxu0 0
          %4821 = vmatprep.subr.bf16.mxu0 0
          %4822 = vmatpush2.bf16.msra.mxu0 0
          %4823 = vmatprep.mubr.bf16.mxu0 0
          %4824 = vmatmul.mubr.bf16.gmra.mxu0 %v4789
          %v4825 = vpop.f32.mrf.mxu0
          %v4826 = vadd.f32 0.0, %v4825
          %v4827 = vpop.f32.mrf.mxu0
          %v4828 = vpop.f32.mrf.mxu0
          %v4829 = vpop.f32.mrf.mxu0
          %4830 = vdwg.mxu0
          %4831 = vrot.lane.b32.xlu0 %v4427, 112
          %v4832 = vpop.permute.xlu0 %4831
          %v4834 = vsel %vm1108, %v4832, 0
          %4836 = vmatprep.subr.bf16.mxu0 0
          %4837 = vmatpush1.bf16.xpose.msra.mxu0 0
          %4838 = vmatprep.subr.bf16.mxu0 0
          %4839 = vmatpush1.bf16.xpose.msra.mxu0 0
          %4840 = vmatprep.subr.bf16.mxu0 0
          %4841 = vmatpush1.bf16.xpose.msra.mxu0 0
          %4842 = vmatprep.subr.bf16.mxu0 0
          %4843 = vmatpush1.bf16.xpose.msra.mxu0 0
          %4844 = vmatprep.subr.bf16.mxu0 0
          %4845 = vmatpush1.bf16.xpose.msra.mxu0 0
          %4846 = vmatprep.subr.bf16.mxu0 0
          %4847 = vmatpush1.bf16.xpose.msra.mxu0 0
          %4848 = vmatprep.subr.bf16.mxu0 0
          %4849 = vmatpush1.bf16.xpose.msra.mxu0 0
          %4850 = vmatprep.subr.bf16.mxu0 0
          %4851 = vmatpush1.bf16.xpose.msra.mxu0 %v2638
          %4852 = vmatprep.subr.bf16.mxu0 0
          %4853 = vmatpush2.bf16.xpose.msra.mxu0 0
          %4854 = vmatprep.subr.bf16.mxu0 0
          %4855 = vmatpush2.bf16.xpose.msra.mxu0 0
          %4856 = vmatprep.subr.bf16.mxu0 0
          %4857 = vmatpush2.bf16.xpose.msra.mxu0 0
          %4858 = vmatprep.subr.bf16.mxu0 0
          %4859 = vmatpush2.bf16.xpose.msra.mxu0 0
          %4860 = vmatprep.subr.bf16.mxu0 0
          %4861 = vmatpush2.bf16.xpose.msra.mxu0 0
          %4862 = vmatprep.subr.bf16.mxu0 0
          %4863 = vmatpush2.bf16.xpose.msra.mxu0 0
          %4864 = vmatprep.subr.bf16.mxu0 0
          %4865 = vmatpush2.bf16.xpose.msra.mxu0 0
          %4866 = vmatprep.subr.bf16.mxu0 0
          %4867 = vmatpush2.bf16.xpose.msra.mxu0 0
          %4868 = vmatprep.mubr.bf16.mxu0 0
          %4869 = vmatmul.mubr.bf16.gmra.mxu0 %v4834
          %v4870 = vpop.f32.mrf.mxu0
          %v4871 = vadd.f32 0.0, %v4870
          %v4872 = vpop.f32.mrf.mxu0
          %v4873 = vpop.f32.mrf.mxu0
          %v4874 = vpop.f32.mrf.mxu0
          %4875 = vdwg.mxu0
          %4876 = vrot.lane.b32.xlu0 %v4428, 112
          %v4877 = vpop.permute.xlu0 %4876
          %v4879 = vsel %vm1108, %v4877, 0
          %4881 = vmatprep.subr.bf16.mxu0 0
          %4882 = vmatpush1.bf16.xpose.msra.mxu0 0
          %4883 = vmatprep.subr.bf16.mxu0 0
          %4884 = vmatpush1.bf16.xpose.msra.mxu0 0
          %4885 = vmatprep.subr.bf16.mxu0 0
          %4886 = vmatpush1.bf16.xpose.msra.mxu0 0
          %4887 = vmatprep.subr.bf16.mxu0 0
          %4888 = vmatpush1.bf16.xpose.msra.mxu0 0
          %4889 = vmatprep.subr.bf16.mxu0 0
          %4890 = vmatpush1.bf16.xpose.msra.mxu0 0
          %4891 = vmatprep.subr.bf16.mxu0 0
          %4892 = vmatpush1.bf16.xpose.msra.mxu0 0
          %4893 = vmatprep.subr.bf16.mxu0 0
          %4894 = vmatpush1.bf16.xpose.msra.mxu0 0
          %4895 = vmatprep.subr.bf16.mxu0 0
          %4896 = vmatpush1.bf16.xpose.msra.mxu0 %v2688
          %4897 = vmatprep.subr.bf16.mxu0 0
          %4898 = vmatpush2.bf16.xpose.msra.mxu0 0
          %4899 = vmatprep.subr.bf16.mxu0 0
          %4900 = vmatpush2.bf16.xpose.msra.mxu0 0
          %4901 = vmatprep.subr.bf16.mxu0 0
          %4902 = vmatpush2.bf16.xpose.msra.mxu0 0
          %4903 = vmatprep.subr.bf16.mxu0 0
          %4904 = vmatpush2.bf16.xpose.msra.mxu0 0
          %4905 = vmatprep.subr.bf16.mxu0 0
          %4906 = vmatpush2.bf16.xpose.msra.mxu0 0
          %4907 = vmatprep.subr.bf16.mxu0 0
          %4908 = vmatpush2.bf16.xpose.msra.mxu0 0
          %4909 = vmatprep.subr.bf16.mxu0 0
          %4910 = vmatpush2.bf16.xpose.msra.mxu0 0
          %4911 = vmatprep.subr.bf16.mxu0 0
          %4912 = vmatpush2.bf16.xpose.msra.mxu0 0
          %4913 = vmatprep.mubr.bf16.mxu0 0
          %4914 = vmatmul.mubr.bf16.gmra.mxu0 %v4879
          %v4915 = vpop.f32.mrf.mxu0
          %v4916 = vadd.f32 0.0, %v4915
          %v4917 = vpop.f32.mrf.mxu0
          %v4918 = vpop.f32.mrf.mxu0
          %v4919 = vpop.f32.mrf.mxu0
          %4920 = vdwg.mxu0
          %v4921 = vmul.f32 %v4871, 0.35355338
          %v4922 = vmul.f32 %v4916, 0.35355338
          %v4923 = vsel %vm2028, %v4921, -inf
          %4924 = vmax.xlane.f32.xlu0 %v4923
          %v4925 = vpop.xlane.xlu0 %4924
          %v4926 = vsel %vm2028, %v4922, -inf
          %4927 = vmax.xlane.f32.xlu0 %v4926
          %v4928 = vpop.xlane.xlu0 %4927
          %v4929 = vsub.f32 %v4921, %v4925
          %v4930 = vsub.f32 %v4922, %v4928
          %v4931 = vmul.f32 %v4929, 1.442695
          %v4932 = vpow.pop %v4931
          %v4933 = vmul.f32 %v4930, 1.442695
          %v4934 = vpow.pop %v4933
          %v4935 = vsel %vm2028, %v4932, 0.0
          %4936 = vadd.xlane.f32.xlu0 %v4935
          %v4937 = vpop.xlane.xlu0 %4936
          %v4938 = vsel %vm2028, %v4934, 0.0
          %4939 = vadd.xlane.f32.xlu0 %v4938
          %v4940 = vpop.xlane.xlu0 %4939
          %v4941 = vrcp.pop %v4937
          %v4942 = vrcp.pop %v4940
          %v4943 = vmul.f32 %v4932, %v4941
          %v4944 = vmul.f32 %v4934, %v4942
          %v4945 = vpack.c.bf16 %v4943, %v4943
          %v4946 = vpack.c.bf16 %v4944, %v4944
          %v4948 = vsel %vm2028, %v4945, 0
          %4950 = vmatprep.subr.bf16.mxu0 0
          %4951 = vmatpush1.bf16.msra.mxu0 0
          %4952 = vmatprep.subr.bf16.mxu0 0
          %4953 = vmatpush1.bf16.msra.mxu0 0
          %4954 = vmatprep.subr.bf16.mxu0 0
          %4955 = vmatpush1.bf16.msra.mxu0 0
          %4956 = vmatprep.subr.bf16.mxu0 0
          %4957 = vmatpush1.bf16.msra.mxu0 0
          %4958 = vmatprep.subr.bf16.mxu0 0
          %4959 = vmatpush1.bf16.msra.mxu0 0
          %4960 = vmatprep.subr.bf16.mxu0 0
          %4961 = vmatpush1.bf16.msra.mxu0 0
          %4962 = vmatprep.subr.bf16.mxu0 0
          %4963 = vmatpush1.bf16.msra.mxu0 0
          %4964 = vmatprep.subr.bf16.mxu0 0
          %4965 = vmatpush1.bf16.msra.mxu0 %v2757
          %4966 = vmatprep.subr.bf16.mxu0 0
          %4967 = vmatpush2.bf16.msra.mxu0 0
          %4968 = vmatprep.subr.bf16.mxu0 0
          %4969 = vmatpush2.bf16.msra.mxu0 0
          %4970 = vmatprep.subr.bf16.mxu0 0
          %4971 = vmatpush2.bf16.msra.mxu0 0
          %4972 = vmatprep.subr.bf16.mxu0 0
          %4973 = vmatpush2.bf16.msra.mxu0 0
          %4974 = vmatprep.subr.bf16.mxu0 0
          %4975 = vmatpush2.bf16.msra.mxu0 0
          %4976 = vmatprep.subr.bf16.mxu0 0
          %4977 = vmatpush2.bf16.msra.mxu0 0
          %4978 = vmatprep.subr.bf16.mxu0 0
          %4979 = vmatpush2.bf16.msra.mxu0 0
          %4980 = vmatprep.subr.bf16.mxu0 0
          %4981 = vmatpush2.bf16.msra.mxu0 0
          %4982 = vmatprep.mubr.bf16.mxu0 0
          %4983 = vmatmul.mubr.bf16.gmra.mxu0 %v4948
          %v4984 = vpop.f32.mrf.mxu0
          %v4985 = vadd.f32 0.0, %v4984
          %v4986 = vpop.f32.mrf.mxu0
          %v4987 = vpop.f32.mrf.mxu0
          %v4988 = vpop.f32.mrf.mxu0
          %4989 = vdwg.mxu0
          %v4991 = vsel %vm2028, %v4946, 0
          %4993 = vmatprep.subr.bf16.mxu0 0
          %4994 = vmatpush1.bf16.msra.mxu0 0
          %4995 = vmatprep.subr.bf16.mxu0 0
          %4996 = vmatpush1.bf16.msra.mxu0 0
          %4997 = vmatprep.subr.bf16.mxu0 0
          %4998 = vmatpush1.bf16.msra.mxu0 0
          %4999 = vmatprep.subr.bf16.mxu0 0
          %5000 = vmatpush1.bf16.msra.mxu0 0
          %5001 = vmatprep.subr.bf16.mxu0 0
          %5002 = vmatpush1.bf16.msra.mxu0 0
          %5003 = vmatprep.subr.bf16.mxu0 0
          %5004 = vmatpush1.bf16.msra.mxu0 0
          %5005 = vmatprep.subr.bf16.mxu0 0
          %5006 = vmatpush1.bf16.msra.mxu0 0
          %5007 = vmatprep.subr.bf16.mxu0 0
          %5008 = vmatpush1.bf16.msra.mxu0 %v2803
          %5009 = vmatprep.subr.bf16.mxu0 0
          %5010 = vmatpush2.bf16.msra.mxu0 0
          %5011 = vmatprep.subr.bf16.mxu0 0
          %5012 = vmatpush2.bf16.msra.mxu0 0
          %5013 = vmatprep.subr.bf16.mxu0 0
          %5014 = vmatpush2.bf16.msra.mxu0 0
          %5015 = vmatprep.subr.bf16.mxu0 0
          %5016 = vmatpush2.bf16.msra.mxu0 0
          %5017 = vmatprep.subr.bf16.mxu0 0
          %5018 = vmatpush2.bf16.msra.mxu0 0
          %5019 = vmatprep.subr.bf16.mxu0 0
          %5020 = vmatpush2.bf16.msra.mxu0 0
          %5021 = vmatprep.subr.bf16.mxu0 0
          %5022 = vmatpush2.bf16.msra.mxu0 0
          %5023 = vmatprep.subr.bf16.mxu0 0
          %5024 = vmatpush2.bf16.msra.mxu0 0
          %5025 = vmatprep.mubr.bf16.mxu0 0
          %5026 = vmatmul.mubr.bf16.gmra.mxu0 %v4991
          %v5027 = vpop.f32.mrf.mxu0
          %v5028 = vadd.f32 0.0, %v5027
          %v5029 = vpop.f32.mrf.mxu0
          %v5030 = vpop.f32.mrf.mxu0
          %v5031 = vpop.f32.mrf.mxu0
          %5032 = vdwg.mxu0
          %5033 = vrot.lane.b32.xlu0 %v4427, 104
          %v5034 = vpop.permute.xlu0 %5033
          %v5036 = vsel %vm1108, %v5034, 0
          %5038 = vmatprep.subr.bf16.mxu0 0
          %5039 = vmatpush1.bf16.xpose.msra.mxu0 0
          %5040 = vmatprep.subr.bf16.mxu0 0
          %5041 = vmatpush1.bf16.xpose.msra.mxu0 0
          %5042 = vmatprep.subr.bf16.mxu0 0
          %5043 = vmatpush1.bf16.xpose.msra.mxu0 0
          %5044 = vmatprep.subr.bf16.mxu0 0
          %5045 = vmatpush1.bf16.xpose.msra.mxu0 0
          %5046 = vmatprep.subr.bf16.mxu0 0
          %5047 = vmatpush1.bf16.xpose.msra.mxu0 0
          %5048 = vmatprep.subr.bf16.mxu0 0
          %5049 = vmatpush1.bf16.xpose.msra.mxu0 0
          %5050 = vmatprep.subr.bf16.mxu0 0
          %5051 = vmatpush1.bf16.xpose.msra.mxu0 0
          %5052 = vmatprep.subr.bf16.mxu0 0
          %5053 = vmatpush1.bf16.xpose.msra.mxu0 %v2856
          %5054 = vmatprep.subr.bf16.mxu0 0
          %5055 = vmatpush2.bf16.xpose.msra.mxu0 0
          %5056 = vmatprep.subr.bf16.mxu0 0
          %5057 = vmatpush2.bf16.xpose.msra.mxu0 0
          %5058 = vmatprep.subr.bf16.mxu0 0
          %5059 = vmatpush2.bf16.xpose.msra.mxu0 0
          %5060 = vmatprep.subr.bf16.mxu0 0
          %5061 = vmatpush2.bf16.xpose.msra.mxu0 0
          %5062 = vmatprep.subr.bf16.mxu0 0
          %5063 = vmatpush2.bf16.xpose.msra.mxu0 0
          %5064 = vmatprep.subr.bf16.mxu0 0
          %5065 = vmatpush2.bf16.xpose.msra.mxu0 0
          %5066 = vmatprep.subr.bf16.mxu0 0
          %5067 = vmatpush2.bf16.xpose.msra.mxu0 0
          %5068 = vmatprep.subr.bf16.mxu0 0
          %5069 = vmatpush2.bf16.xpose.msra.mxu0 0
          %5070 = vmatprep.mubr.bf16.mxu0 0
          %5071 = vmatmul.mubr.bf16.gmra.mxu0 %v5036
          %v5072 = vpop.f32.mrf.mxu0
          %v5073 = vadd.f32 0.0, %v5072
          %v5074 = vpop.f32.mrf.mxu0
          %v5075 = vpop.f32.mrf.mxu0
          %v5076 = vpop.f32.mrf.mxu0
          %5077 = vdwg.mxu0
          %5078 = vrot.lane.b32.xlu0 %v4428, 104
          %v5079 = vpop.permute.xlu0 %5078
          %v5081 = vsel %vm1108, %v5079, 0
          %5083 = vmatprep.subr.bf16.mxu0 0
          %5084 = vmatpush1.bf16.xpose.msra.mxu0 0
          %5085 = vmatprep.subr.bf16.mxu0 0
          %5086 = vmatpush1.bf16.xpose.msra.mxu0 0
          %5087 = vmatprep.subr.bf16.mxu0 0
          %5088 = vmatpush1.bf16.xpose.msra.mxu0 0
          %5089 = vmatprep.subr.bf16.mxu0 0
          %5090 = vmatpush1.bf16.xpose.msra.mxu0 0
          %5091 = vmatprep.subr.bf16.mxu0 0
          %5092 = vmatpush1.bf16.xpose.msra.mxu0 0
          %5093 = vmatprep.subr.bf16.mxu0 0
          %5094 = vmatpush1.bf16.xpose.msra.mxu0 0
          %5095 = vmatprep.subr.bf16.mxu0 0
          %5096 = vmatpush1.bf16.xpose.msra.mxu0 0
          %5097 = vmatprep.subr.bf16.mxu0 0
          %5098 = vmatpush1.bf16.xpose.msra.mxu0 %v2906
          %5099 = vmatprep.subr.bf16.mxu0 0
          %5100 = vmatpush2.bf16.xpose.msra.mxu0 0
          %5101 = vmatprep.subr.bf16.mxu0 0
          %5102 = vmatpush2.bf16.xpose.msra.mxu0 0
          %5103 = vmatprep.subr.bf16.mxu0 0
          %5104 = vmatpush2.bf16.xpose.msra.mxu0 0
          %5105 = vmatprep.subr.bf16.mxu0 0
          %5106 = vmatpush2.bf16.xpose.msra.mxu0 0
          %5107 = vmatprep.subr.bf16.mxu0 0
          %5108 = vmatpush2.bf16.xpose.msra.mxu0 0
          %5109 = vmatprep.subr.bf16.mxu0 0
          %5110 = vmatpush2.bf16.xpose.msra.mxu0 0
          %5111 = vmatprep.subr.bf16.mxu0 0
          %5112 = vmatpush2.bf16.xpose.msra.mxu0 0
          %5113 = vmatprep.subr.bf16.mxu0 0
          %5114 = vmatpush2.bf16.xpose.msra.mxu0 0
          %5115 = vmatprep.mubr.bf16.mxu0 0
          %5116 = vmatmul.mubr.bf16.gmra.mxu0 %v5081
          %v5117 = vpop.f32.mrf.mxu0
          %v5118 = vadd.f32 0.0, %v5117
          %v5119 = vpop.f32.mrf.mxu0
          %v5120 = vpop.f32.mrf.mxu0
          %v5121 = vpop.f32.mrf.mxu0
          %5122 = vdwg.mxu0
          %v5123 = vmul.f32 %v5073, 0.35355338
          %v5124 = vmul.f32 %v5118, 0.35355338
          %v5125 = vsel %vm2028, %v5123, -inf
          %5126 = vmax.xlane.f32.xlu0 %v5125
          %v5127 = vpop.xlane.xlu0 %5126
          %v5128 = vsel %vm2028, %v5124, -inf
          %5129 = vmax.xlane.f32.xlu0 %v5128
          %v5130 = vpop.xlane.xlu0 %5129
          %v5131 = vsub.f32 %v5123, %v5127
          %v5132 = vsub.f32 %v5124, %v5130
          %v5133 = vmul.f32 %v5131, 1.442695
          %v5134 = vpow.pop %v5133
          %v5135 = vmul.f32 %v5132, 1.442695
          %v5136 = vpow.pop %v5135
          %v5137 = vsel %vm2028, %v5134, 0.0
          %5138 = vadd.xlane.f32.xlu0 %v5137
          %v5139 = vpop.xlane.xlu0 %5138
          %v5140 = vsel %vm2028, %v5136, 0.0
          %5141 = vadd.xlane.f32.xlu0 %v5140
          %v5142 = vpop.xlane.xlu0 %5141
          %v5143 = vrcp.pop %v5139
          %v5144 = vrcp.pop %v5142
          %v5145 = vmul.f32 %v5134, %v5143
          %v5146 = vmul.f32 %v5136, %v5144
          %v5147 = vpack.c.bf16 %v5145, %v5145
          %v5148 = vpack.c.bf16 %v5146, %v5146
          %v5150 = vsel %vm2028, %v5147, 0
          %5152 = vmatprep.subr.bf16.mxu0 0
          %5153 = vmatpush1.bf16.msra.mxu0 0
          %5154 = vmatprep.subr.bf16.mxu0 0
          %5155 = vmatpush1.bf16.msra.mxu0 0
          %5156 = vmatprep.subr.bf16.mxu0 0
          %5157 = vmatpush1.bf16.msra.mxu0 0
          %5158 = vmatprep.subr.bf16.mxu0 0
          %5159 = vmatpush1.bf16.msra.mxu0 0
          %5160 = vmatprep.subr.bf16.mxu0 0
          %5161 = vmatpush1.bf16.msra.mxu0 0
          %5162 = vmatprep.subr.bf16.mxu0 0
          %5163 = vmatpush1.bf16.msra.mxu0 0
          %5164 = vmatprep.subr.bf16.mxu0 0
          %5165 = vmatpush1.bf16.msra.mxu0 0
          %5166 = vmatprep.subr.bf16.mxu0 0
          %5167 = vmatpush1.bf16.msra.mxu0 %v2975
          %5168 = vmatprep.subr.bf16.mxu0 0
          %5169 = vmatpush2.bf16.msra.mxu0 0
          %5170 = vmatprep.subr.bf16.mxu0 0
          %5171 = vmatpush2.bf16.msra.mxu0 0
          %5172 = vmatprep.subr.bf16.mxu0 0
          %5173 = vmatpush2.bf16.msra.mxu0 0
          %5174 = vmatprep.subr.bf16.mxu0 0
          %5175 = vmatpush2.bf16.msra.mxu0 0
          %5176 = vmatprep.subr.bf16.mxu0 0
          %5177 = vmatpush2.bf16.msra.mxu0 0
          %5178 = vmatprep.subr.bf16.mxu0 0
          %5179 = vmatpush2.bf16.msra.mxu0 0
          %5180 = vmatprep.subr.bf16.mxu0 0
          %5181 = vmatpush2.bf16.msra.mxu0 0
          %5182 = vmatprep.subr.bf16.mxu0 0
          %5183 = vmatpush2.bf16.msra.mxu0 0
          %5184 = vmatprep.mubr.bf16.mxu0 0
          %5185 = vmatmul.mubr.bf16.gmra.mxu0 %v5150
          %v5186 = vpop.f32.mrf.mxu0
          %v5187 = vadd.f32 0.0, %v5186
          %v5188 = vpop.f32.mrf.mxu0
          %v5189 = vpop.f32.mrf.mxu0
          %v5190 = vpop.f32.mrf.mxu0
          %5191 = vdwg.mxu0
          %v5193 = vsel %vm2028, %v5148, 0
          %5195 = vmatprep.subr.bf16.mxu0 0
          %5196 = vmatpush1.bf16.msra.mxu0 0
          %5197 = vmatprep.subr.bf16.mxu0 0
          %5198 = vmatpush1.bf16.msra.mxu0 0
          %5199 = vmatprep.subr.bf16.mxu0 0
          %5200 = vmatpush1.bf16.msra.mxu0 0
          %5201 = vmatprep.subr.bf16.mxu0 0
          %5202 = vmatpush1.bf16.msra.mxu0 0
          %5203 = vmatprep.subr.bf16.mxu0 0
          %5204 = vmatpush1.bf16.msra.mxu0 0
          %5205 = vmatprep.subr.bf16.mxu0 0
          %5206 = vmatpush1.bf16.msra.mxu0 0
          %5207 = vmatprep.subr.bf16.mxu0 0
          %5208 = vmatpush1.bf16.msra.mxu0 0
          %5209 = vmatprep.subr.bf16.mxu0 0
          %5210 = vmatpush1.bf16.msra.mxu0 %v3021
          %5211 = vmatprep.subr.bf16.mxu0 0
          %5212 = vmatpush2.bf16.msra.mxu0 0
          %5213 = vmatprep.subr.bf16.mxu0 0
          %5214 = vmatpush2.bf16.msra.mxu0 0
          %5215 = vmatprep.subr.bf16.mxu0 0
          %5216 = vmatpush2.bf16.msra.mxu0 0
          %5217 = vmatprep.subr.bf16.mxu0 0
          %5218 = vmatpush2.bf16.msra.mxu0 0
          %5219 = vmatprep.subr.bf16.mxu0 0
          %5220 = vmatpush2.bf16.msra.mxu0 0
          %5221 = vmatprep.subr.bf16.mxu0 0
          %5222 = vmatpush2.bf16.msra.mxu0 0
          %5223 = vmatprep.subr.bf16.mxu0 0
          %5224 = vmatpush2.bf16.msra.mxu0 0
          %5225 = vmatprep.subr.bf16.mxu0 0
          %5226 = vmatpush2.bf16.msra.mxu0 0
          %5227 = vmatprep.mubr.bf16.mxu0 0
          %5228 = vmatmul.mubr.bf16.gmra.mxu0 %v5193
          %v5229 = vpop.f32.mrf.mxu0
          %v5230 = vadd.f32 0.0, %v5229
          %v5231 = vpop.f32.mrf.mxu0
          %v5232 = vpop.f32.mrf.mxu0
          %v5233 = vpop.f32.mrf.mxu0
          %5234 = vdwg.mxu0
          %5237 = vrot.lane.b32.xlu0 %v4783, 8
          %v5238 = vpop.permute.xlu0 %5237
          %5239 = vrot.lane.b32.xlu0 %v4826, 8
          %v5240 = vpop.permute.xlu0 %5239
          %5245 = vrot.lane.b32.xlu0 %v4985, 16
          %v5246 = vpop.permute.xlu0 %5245
          %5247 = vrot.lane.b32.xlu0 %v5028, 16
          %v5248 = vpop.permute.xlu0 %5247
          %5253 = vrot.lane.b32.xlu0 %v5187, 24
          %v5254 = vpop.permute.xlu0 %5253
          %5255 = vrot.lane.b32.xlu0 %v5230, 24
          %v5256 = vpop.permute.xlu0 %5255
          %v5259 = vsel %vm1108, %v4579, %v5238
          %v5260 = vsel %vm1108, %v4622, %v5240
          %v5261 = vsel %vm2028, %v5259, %v5246
          %v5262 = vsel %vm2028, %v5260, %v5248
          %v5263 = vsel %vm2031, %v5261, %v5254
          %v5264 = vsel %vm2031, %v5262, %v5256
          %v5265 = vpack.c.bf16 %v5264, %v5263
          %v5267 = vsel %vm707, %v5265, 0
          %5269 = vmatprep.subr.bf16.mxu0 0
          %5270 = vmatpush1.bf16.msra.mxu0 0
          %5271 = vmatprep.subr.bf16.mxu0 0
          %5272 = vmatpush1.bf16.msra.mxu0 0
          %5273 = vmatprep.subr.bf16.mxu0 0
          %5274 = vmatpush1.bf16.msra.mxu0 0
          %5275 = vmatprep.subr.bf16.mxu0 0
          %5276 = vmatpush1.bf16.msra.mxu0 0
          %5277 = vmatprep.subr.bf16.mxu0 0
          %5278 = vmatpush1.bf16.msra.mxu0 0
          %5279 = vmatprep.subr.bf16.mxu0 0
          %5280 = vmatpush1.bf16.msra.mxu0 0
          %5281 = vmatprep.subr.bf16.mxu0 0
          %5282 = vmatpush1.bf16.msra.mxu0 %v3110
          %5283 = vmatprep.subr.bf16.mxu0 0
          %5284 = vmatpush1.bf16.msra.mxu0 %v3109
          %5285 = vmatprep.subr.bf16.mxu0 0
          %5286 = vmatpush2.bf16.msra.mxu0 0
          %5287 = vmatprep.subr.bf16.mxu0 0
          %5288 = vmatpush2.bf16.msra.mxu0 0
          %5289 = vmatprep.subr.bf16.mxu0 0
          %5290 = vmatpush2.bf16.msra.mxu0 0
          %5291 = vmatprep.subr.bf16.mxu0 0
          %5292 = vmatpush2.bf16.msra.mxu0 0
          %5293 = vmatprep.subr.bf16.mxu0 0
          %5294 = vmatpush2.bf16.msra.mxu0 0
          %5295 = vmatprep.subr.bf16.mxu0 0
          %5296 = vmatpush2.bf16.msra.mxu0 0
          %5297 = vmatprep.subr.bf16.mxu0 0
          %5298 = vmatpush2.bf16.msra.mxu0 0
          %5299 = vmatprep.subr.bf16.mxu0 0
          %5300 = vmatpush2.bf16.msra.mxu0 0
          %5301 = vmatprep.mubr.bf16.mxu0 0
          %5302 = vmatmul.mubr.bf16.gmra.mxu0 %v5267
          %v5303 = vpop.f32.mrf.mxu0
          %v5304 = vadd.f32 %v3100, %v5303
          %v5305 = vpop.f32.mrf.mxu0
          %v5306 = vpop.f32.mrf.mxu0
          %v5307 = vadd.f32 %v3100, %v5306
          %v5308 = vpop.f32.mrf.mxu0
          %5309 = vdwg.mxu0
          %v5310 = vadd.f32 %v4350, %v5304
          %v5311 = vadd.f32 %v4351, %v5307
          %v5312 = vsel %vm707, %v5310, 0.0
          %5313 = vadd.xlane.f32.xlu0 %v5312
          %v5314 = vpop.xlane.xlu0 %5313
          %v5315 = vsel %vm707, %v5311, 0.0
          %5316 = vadd.xlane.f32.xlu0 %v5315
          %v5317 = vpop.xlane.xlu0 %5316
          %v5318 = vmul.f32 %v5314, %v714
          %v5319 = vmul.f32 %v5317, %v714
          %v5320 = vsub.f32 %v5310, %v5318
          %v5321 = vsub.f32 %v5311, %v5319
          %v5322 = vmul.f32 %v5320, %v5320
          %v5323 = vmul.f32 %v5321, %v5321
          %v5324 = vsel %vm707, %v5322, 0.0
          %5325 = vadd.xlane.f32.xlu0 %v5324
          %v5326 = vpop.xlane.xlu0 %5325
          %v5327 = vsel %vm707, %v5323, 0.0
          %5328 = vadd.xlane.f32.xlu0 %v5327
          %v5329 = vpop.xlane.xlu0 %5328
          %v5330 = vmul.f32 %v5326, %v714
          %v5331 = vmul.f32 %v5329, %v714
          %v5332 = vadd.f32 %v5330, 1e-05
          %v5333 = vadd.f32 %v5331, 1e-05
          %v5334 = vrsqrt.pop %v5332
          %v5335 = vrsqrt.pop %v5333
          %v5336 = vmul.f32 %v5320, %v5334
          %v5337 = vmul.f32 %v5321, %v5335
          %v5338 = vmul.f32 %v5336, %v3188
          %v5339 = vmul.f32 %v5337, %v3188
          %v5340 = vadd.f32 %v5338, %v3194
          %v5341 = vadd.f32 %v5339, %v3194
          %v5342 = vpack.c.bf16 %v5341, %v5340
          %v5344 = vsel %vm707, %v5342, 0
          %5346 = vmatprep.subr.bf16.mxu0 0
          %5347 = vmatpush1.bf16.msra.mxu0 0
          %5348 = vmatprep.subr.bf16.mxu0 0
          %5349 = vmatpush1.bf16.msra.mxu0 0
          %5350 = vmatprep.subr.bf16.mxu0 0
          %5351 = vmatpush1.bf16.msra.mxu0 0
          %5352 = vmatprep.subr.bf16.mxu0 0
          %5353 = vmatpush1.bf16.msra.mxu0 0
          %5354 = vmatprep.subr.bf16.mxu0 0
          %5355 = vmatpush1.bf16.msra.mxu0 0
          %5356 = vmatprep.subr.bf16.mxu0 0
          %5357 = vmatpush1.bf16.msra.mxu0 0
          %5358 = vmatprep.subr.bf16.mxu0 0
          %5359 = vmatpush1.bf16.msra.mxu0 %v3213
          %5360 = vmatprep.subr.bf16.mxu0 0
          %5361 = vmatpush1.bf16.msra.mxu0 %v3212
          %5362 = vmatprep.subr.bf16.mxu0 0
          %5363 = vmatpush2.bf16.msra.mxu0 0
          %5364 = vmatprep.subr.bf16.mxu0 0
          %5365 = vmatpush2.bf16.msra.mxu0 0
          %5366 = vmatprep.subr.bf16.mxu0 0
          %5367 = vmatpush2.bf16.msra.mxu0 0
          %5368 = vmatprep.subr.bf16.mxu0 0
          %5369 = vmatpush2.bf16.msra.mxu0 0
          %5370 = vmatprep.subr.bf16.mxu0 0
          %5371 = vmatpush2.bf16.msra.mxu0 0
          %5372 = vmatprep.subr.bf16.mxu0 0
          %5373 = vmatpush2.bf16.msra.mxu0 0
          %5374 = vmatprep.subr.bf16.mxu0 0
          %5375 = vmatpush2.bf16.msra.mxu0 0
          %5376 = vmatprep.subr.bf16.mxu0 0
          %5377 = vmatpush2.bf16.msra.mxu0 0
          %5378 = vmatprep.mubr.bf16.mxu0 0
          %5379 = vmatmul.mubr.bf16.gmra.mxu0 %v5344
          %v5380 = vpop.f32.mrf.mxu0
          %v5381 = vadd.f32 %v3202, %v5380
          %v5382 = vpop.f32.mrf.mxu0
          %v5383 = vpop.f32.mrf.mxu0
          %v5384 = vadd.f32 %v3202, %v5383
          %v5385 = vpop.f32.mrf.mxu0
          %5386 = vdwg.mxu0
          %v5387 = vmul.f32 %v5381, 0.5
          %v5388 = vmul.f32 %v5384, 0.5
          %v5389 = vmul.f32 %v5381, 0.70710677
          %v5390 = vmul.f32 %v5384, 0.70710677
          %vm5391 = vcmp.ge.f32.partialorder %v5389, 0.0
          %vm5392 = vcmp.ge.f32.partialorder %v5390, 0.0
          %v5393 = vsel %vm5391, 1.0, -1.0
          %v5394 = vsel %vm5392, 1.0, -1.0
          %v5395 = vand.u32 2147483647, %v5389
          %v5396 = vand.u32 2147483647, %v5390
          %v5397 = vmul.f32 %v5395, 0.3275911
          %v5398 = vmul.f32 %v5396, 0.3275911
          %v5399 = vadd.f32 %v5397, 1.0
          %v5400 = vadd.f32 %v5398, 1.0
          %v5401 = vrcp.pop %v5399
          %v5402 = vmul.f32 1.0, %v5401
          %v5403 = vrcp.pop %v5400
          %v5404 = vmul.f32 1.0, %v5403
          %v5405 = vmul.f32 %v5402, 1.0614054
          %v5406 = vmul.f32 %v5404, 1.0614054
          %v5407 = vadd.f32 %v5405, -1.4531521
          %v5408 = vadd.f32 %v5406, -1.4531521
          %v5409 = vmul.f32 %v5407, %v5402
          %v5410 = vmul.f32 %v5408, %v5404
          %v5411 = vadd.f32 %v5409, 1.4214138
          %v5412 = vadd.f32 %v5410, 1.4214138
          %v5413 = vmul.f32 %v5411, %v5402
          %v5414 = vmul.f32 %v5412, %v5404
          %v5415 = vadd.f32 %v5413, -0.28449672
          %v5416 = vadd.f32 %v5414, -0.28449672
          %v5417 = vmul.f32 %v5415, %v5402
          %v5418 = vmul.f32 %v5416, %v5404
          %v5419 = vadd.f32 %v5417, 0.2548296
          %v5420 = vadd.f32 %v5418, 0.2548296
          %v5421 = vmul.f32 %v5419, %v5402
          %v5422 = vmul.f32 %v5420, %v5404
          %v5423 = vsub.f32 0.0, %v5395
          %v5424 = vsub.f32 0.0, %v5396
          %v5425 = vmul.f32 %v5423, %v5395
          %v5426 = vmul.f32 %v5424, %v5396
          %v5427 = vmul.f32 %v5425, 1.442695
          %v5428 = vpow.pop %v5427
          %v5429 = vmul.f32 %v5426, 1.442695
          %v5430 = vpow.pop %v5429
          %v5431 = vmul.f32 %v5421, %v5428
          %v5432 = vmul.f32 %v5422, %v5430
          %v5433 = vsub.f32 1.0, %v5431
          %v5434 = vsub.f32 1.0, %v5432
          %v5435 = vmul.f32 %v5393, %v5433
          %v5436 = vmul.f32 %v5394, %v5434
          %v5437 = vadd.f32 %v5435, 1.0
          %v5438 = vadd.f32 %v5436, 1.0
          %v5439 = vmul.f32 %v5387, %v5437
          %v5440 = vmul.f32 %v5388, %v5438
          %v5441 = vpack.c.bf16 %v5440, %v5439
          %5442 = vmatprep.subr.bf16.mxu0 0
          %5443 = vmatpush1.bf16.msra.mxu0 %v3358
          %5444 = vmatprep.subr.bf16.mxu0 0
          %5445 = vmatpush1.bf16.msra.mxu0 %v3357
          %5446 = vmatprep.subr.bf16.mxu0 0
          %5447 = vmatpush1.bf16.msra.mxu0 %v3356
          %5448 = vmatprep.subr.bf16.mxu0 0
          %5449 = vmatpush1.bf16.msra.mxu0 %v3355
          %5450 = vmatprep.subr.bf16.mxu0 0
          %5451 = vmatpush1.bf16.msra.mxu0 %v3354
          %5452 = vmatprep.subr.bf16.mxu0 0
          %5453 = vmatpush1.bf16.msra.mxu0 %v3353
          %5454 = vmatprep.subr.bf16.mxu0 0
          %5455 = vmatpush1.bf16.msra.mxu0 %v3352
          %5456 = vmatprep.subr.bf16.mxu0 0
          %5457 = vmatpush1.bf16.msra.mxu0 %v3351
          %5458 = vmatprep.subr.bf16.mxu0 0
          %5459 = vmatpush2.bf16.msra.mxu0 0
          %5460 = vmatprep.subr.bf16.mxu0 0
          %5461 = vmatpush2.bf16.msra.mxu0 0
          %5462 = vmatprep.subr.bf16.mxu0 0
          %5463 = vmatpush2.bf16.msra.mxu0 0
          %5464 = vmatprep.subr.bf16.mxu0 0
          %5465 = vmatpush2.bf16.msra.mxu0 0
          %5466 = vmatprep.subr.bf16.mxu0 0
          %5467 = vmatpush2.bf16.msra.mxu0 0
          %5468 = vmatprep.subr.bf16.mxu0 0
          %5469 = vmatpush2.bf16.msra.mxu0 0
          %5470 = vmatprep.subr.bf16.mxu0 0
          %5471 = vmatpush2.bf16.msra.mxu0 0
          %5472 = vmatprep.subr.bf16.mxu0 0
          %5473 = vmatpush2.bf16.msra.mxu0 0
          %5474 = vmatprep.mubr.bf16.mxu0 0
          %5475 = vmatmul.mubr.bf16.gmra.mxu0 %v5441
          %v5476 = vpop.f32.mrf.mxu0
          %v5477 = vadd.f32 %v3318, %v5476
          %v5478 = vpop.f32.mrf.mxu0
          %v5479 = vpop.f32.mrf.mxu0
          %v5480 = vadd.f32 %v3318, %v5479
          %v5481 = vpop.f32.mrf.mxu0
          %5482 = vdwg.mxu0
          %v5483 = vadd.f32 %v5310, %v5477
          %v5484 = vadd.f32 %v5311, %v5480
          %5485 = vst.msk [vmem:[#allocation3] sm:$0xff] %vm707, %v5483
          %5486 = vst.msk [vmem:[#allocation3 + $0x8] sm:$0xff] %vm707, %v5484
        $region92: #{decoder_forward.1} parent=63 // pred_fallthru
          _
        %p5487 = scmp.eq.s32.totalorder %s33, 1
        // Predicated region
        $region93: #{decoder_forward.1} parent=63 // pred_check
          %p5488 = pneg %p5487
        $region94: #{decoder_forward.1} parent=63 // pred_check_branch
          %5490 = sbr.rel (%p5488) target = $region96
        $region95: #{decoder_forward.1} parent=63 // pred_region
          %v5491 = vld [vmem:[#allocation9] sm:$0x3]
          %v5492 = vsel %vm707, %v3408, 0.0
          %5493 = vadd.xlane.f32.xlu0 %v5492
          %v5494 = vpop.xlane.xlu0 %5493
          %v5495 = vsel %vm707, %v3409, 0.0
          %5496 = vadd.xlane.f32.xlu0 %v5495
          %v5497 = vpop.xlane.xlu0 %5496
          %v5498 = vmul.f32 %v5494, %v714
          %v5499 = vmul.f32 %v5497, %v714
          %v5500 = vsub.f32 %v3408, %v5498
          %v5501 = vsub.f32 %v3409, %v5499
          %v5502 = vmul.f32 %v5500, %v5500
          %v5503 = vmul.f32 %v5501, %v5501
          %v5504 = vsel %vm707, %v5502, 0.0
          %5505 = vadd.xlane.f32.xlu0 %v5504
          %v5506 = vpop.xlane.xlu0 %5505
          %v5507 = vsel %vm707, %v5503, 0.0
          %5508 = vadd.xlane.f32.xlu0 %v5507
          %v5509 = vpop.xlane.xlu0 %5508
          %v5510 = vmul.f32 %v5506, %v714
          %v5511 = vmul.f32 %v5509, %v714
          %v5512 = vadd.f32 %v5510, 1e-05
          %v5513 = vadd.f32 %v5511, 1e-05
          %v5514 = vrsqrt.pop %v5512
          %v5515 = vrsqrt.pop %v5513
          %v5516 = vmul.f32 %v5500, %v5514
          %v5517 = vmul.f32 %v5501, %v5515
          %v5518 = vlaneseq
          %v5519 = vshrl.u32 %v5518, 7
          %v5520 = vsub.s32 0, %v5519
          %v5521 = vrot.slane %v5491, %v5520
          %v5522 = vmul.f32 %v5516, %v5521
          %v5523 = vmul.f32 %v5517, %v5521
          %v5524 = vlaneseq
          %v5525 = vshrl.u32 %v5524, 7
          %v5526 = vsub.s32 1, %v5525
          %v5527 = vrot.slane %v5491, %v5526
          %v5528 = vadd.f32 %v5522, %v5527
          %v5529 = vadd.f32 %v5523, %v5527
          %5530 = vst.msk [vmem:[#allocation13] sm:$0xff] %vm707, %v5528
          %5531 = vst.msk [vmem:[#allocation13 + $0x8] sm:$0xff] %vm707, %v5529
        $region96: #{decoder_forward.1} parent=63 // pred_fallthru
          _
        // Predicated region
        $region97: #{decoder_forward.1} parent=63 // pred_check
          %p5532 = pneg %p339
        $region98: #{decoder_forward.1} parent=63 // pred_check_branch
          %5534 = sbr.rel (%p5532) target = $region100
        $region99: #{decoder_forward.1} parent=63 // pred_region
          %s5535 = smul.u32 2, %s32
          %s5537 = ssub.s32 256, 256
          %5538 = vsyncadd [#allocation6], %s5537
          %s5539 = smul.addr %s5535, 128
          %s5540 = scalar_lea.hbm %s11, %s5539
          %s5541 = sshll.u32 [#allocation13], 4
          %s5542 = int_to_ptr.vmem [resolvable:$true] %s5541
          %5547 = dma.vmem_to_hbm [thread:$0]  %s5542, 256, %s5540, [#allocation6], 128, 128, 8
        $region100: #{decoder_forward.1} parent=63 // pred_fallthru
          _
        // Predicated region
        $region101: #{decoder_forward.1} parent=63 // pred_check
          %p5548 = pneg %p339
        $region102: #{decoder_forward.1} parent=63 // pred_check_branch
          %5550 = sbr.rel (%p5548) target = $region104
        $region103: #{decoder_forward.1} parent=63 // pred_region
          %5551 = dma.done [#allocation6], 256
        $region104: #{decoder_forward.1} parent=63 // pred_fallthru
          _
      $region64: #{decoder_forward.1} parent=5 // pred_fallthru
        _
      %p5552 = scmp.le.s32.totalorder 2, %s23
      // Predicated region
      $region105: #{decoder_forward.1} parent=5 // pred_check
        %p5553 = pneg %p5552
      $region106: #{decoder_forward.1} parent=5 // pred_check_branch
        %5555 = sbr.rel (%p5553) target = $region108
      $region107: #{decoder_forward.1} parent=5 // pred_region
        %s5556 = ssub.s32 %s23, 2
      $region108: #{decoder_forward.1} parent=5 // pred_fallthru
        _
    $region6: #{decoder_forward.1} parent=1 // loop_footer
      %s27 = sadd.s32 1, %s23
    $region7: #{decoder_forward.1} parent=1 // loop_footer_branch
      %22 = sbr.rel target = $region3
    $region8: #{decoder_forward.1} parent=1 // loop_exit
      _
    %5557 = vsyncpa [#allocation5], 1
    %s5558 = scalar_lea.sflag [#allocation5], 1
    %5559 = vsyncpa %s5558, 1
    %5560 = vsyncpa [#allocation8], 1
    %5561 = vsyncpa [#allocation11], 1
    %s5562 = scalar_lea.sflag [#allocation11], 1
    %5563 = vsyncpa %s5562, 1
    %5564 = vsyncpa [#allocation6], 1
    %s5565 = scalar_lea.sflag [#allocation6], 1
    %5566 = vsyncpa %s5565, 1

</llo_original>
